<compile_context>
chip_gen: v6e
topology: v6e:2x2x1
jax: 0.10.0
libtpu: 0.0.40
codegen_flags: <defaults>
</compile_context>

<pallas_src>
import functools

import jax
import jax.numpy as jnp
from jax import lax
from jax.experimental import pallas as pl
from jax.experimental.pallas import tpu as pltpu

EPS = 1e-5


def _round_up(x, m):
    return ((x + m - 1) // m) * m


# ---------------------------------------------------------------------------
# In-kernel helpers
# ---------------------------------------------------------------------------
def _valid_mask(H, W):
    """(Hp*Wp, 1) f32 mask over the halo-extended per-image domain: 1.0 on real
    pixels, 0.0 on the 1-pixel halo ring.  Built from an iota with a float
    floor-divide (no vector integer div); misrounding can only occur on halo
    rows, which stay excluded either way."""
    Hp, Wp = H + 2, W + 2
    Mi = Hp * Wp
    idx = lax.broadcasted_iota(jnp.int32, (Mi, 1), 0).astype(jnp.float32)
    h = jnp.floor(idx * (1.0 / Wp))
    w = idx - h * Wp
    ok = (h > 0.5) & (h < H + 0.5) & (w > 0.5) & (w < W + 0.5)
    return jnp.where(ok, 1.0, 0.0).astype(jnp.float32)


# ---------------------------------------------------------------------------
# Kernel A: conv1 (9 shifted-tap matmuls) + residual 1x1 conv statistics.
#   One grid step == one image.  Outputs raw conv1 activations over the
#   halo-extended domain plus masked s1/s2 partial sums for bn1 and bn_down.
# ---------------------------------------------------------------------------
def _conv1_res_kernel(xg_ref, w1_ref, wd_ref, y1_ref, sa_ref, *, H, W, gi):
    Hp, Wp = H + 2, W + 2
    Mi = Hp * Wp
    mask = _valid_mask(H, W)

    acc = None
    for t in range(9):
        dy, dx = divmod(t, 3)
        off = gi + (dy - 1) * Wp + (dx - 1)          # static row offset
        tap = xg_ref[off:off + Mi, :]                # contiguous window read
        d = jnp.dot(tap, w1_ref[t], preferred_element_type=jnp.float32)
        acc = d if acc is None else acc + d

    am = acc * mask
    sa_ref[0:1, :] = jnp.sum(am, axis=0, keepdims=True)
    sa_ref[1:2, :] = jnp.sum(acc * am, axis=0, keepdims=True)

    # residual 1x1 conv: statistics only (values recomputed in the epilogue,
    # cheaper than an HBM round-trip of a full (Mi, C) tensor).
    res = jnp.dot(xg_ref[gi:gi + Mi, :], wd_ref[...],
                  preferred_element_type=jnp.float32)
    rm = res * mask
    sa_ref[2:3, :] = jnp.sum(rm, axis=0, keepdims=True)
    sa_ref[3:4, :] = jnp.sum(res * rm, axis=0, keepdims=True)

    y1_ref[...] = acc.astype(y1_ref.dtype)


# ---------------------------------------------------------------------------
# Kernel B: bn1 (folded scale/bias) -> ReLU -> conv2, + bn2 statistics.
#   z1 (the zero-padded conv2 input) lives in a guarded VMEM scratch, stored
#   twice with a 1-row offset in the upper lane block so that one contiguous
#   row-window read yields two taps side by side (K = 2C paired matmuls for
#   the 256-deep v6e/v7x MXU; remaining taps use K = C).
# ---------------------------------------------------------------------------
def _bn1_conv2_kernel(y1_ref, sb1_ref, w2p_ref, w2s_ref, y2_ref, s2_ref,
                      z1_ref, *, H, W, C, gi):
    Hp, Wp = H + 2, W + 2
    Mi = Hp * Wp
    mask = _valid_mask(H, W)

    scale1 = sb1_ref[0:1, :]
    bias1 = sb1_ref[1:2, :]
    z = jnp.maximum(y1_ref[...].astype(jnp.float32) * scale1 + bias1, 0.0) * mask
    z = z.astype(z1_ref.dtype)

    # zero guard bands, then store z twice (lane block 1 shifted down by 1 row)
    z1_ref[0:gi + 1, :] = jnp.zeros((gi + 1, 2 * C), z1_ref.dtype)
    z1_ref[gi + Mi:gi + Mi + gi, :] = jnp.zeros((gi, 2 * C), z1_ref.dtype)
    z1_ref[gi:gi + Mi, 0:C] = z
    z1_ref[gi + 1:gi + 1 + Mi, C:2 * C] = z

    acc = None
    for dy in range(3):
        # paired taps (dy, dx=2) + (dy, dx=1): single K = 2C matmul
        op = gi + (dy - 1) * Wp + 1
        d = jnp.dot(z1_ref[op:op + Mi, :], w2p_ref[dy],
                    preferred_element_type=jnp.float32)
        acc = d if acc is None else acc + d
    for dy in range(3):
        # remaining tap (dy, dx=0): K = C matmul on lane block 0 only
        o0 = gi + (dy - 1) * Wp - 1
        acc = acc + jnp.dot(z1_ref[o0:o0 + Mi, 0:C], w2s_ref[dy],
                            preferred_element_type=jnp.float32)

    am = acc * mask
    s2_ref[0:1, :] = jnp.sum(am, axis=0, keepdims=True)
    s2_ref[1:2, :] = jnp.sum(acc * am, axis=0, keepdims=True)
    y2_ref[...] = acc.astype(y2_ref.dtype)


# ---------------------------------------------------------------------------
# Kernel C: epilogue -- bn2 apply + residual (recomputed 1x1 conv) bn apply,
#   add, ReLU.  Halo rows are written too and sliced away in the wrapper.
# ---------------------------------------------------------------------------
def _epilogue_kernel(y2_ref, xg_ref, wd_ref, sb_ref, out_ref, *, H, W, gi):
    Hp, Wp = H + 2, W + 2
    Mi = Hp * Wp
    res = jnp.dot(xg_ref[gi:gi + Mi, :], wd_ref[...],
                  preferred_element_type=jnp.float32)
    scale2, bias2 = sb_ref[0:1, :], sb_ref[1:2, :]
    scaled, biasd = sb_ref[2:3, :], sb_ref[3:4, :]
    y2 = y2_ref[...].astype(jnp.float32)
    out = jnp.maximum(y2 * scale2 + bias2 + res * scaled + biasd, 0.0)
    out_ref[...] = out.astype(out_ref.dtype)


# ---------------------------------------------------------------------------
# Wrapper
# ---------------------------------------------------------------------------
def _finalize_bn(s1, s2, gamma, beta, count):
    mean = s1 / count
    var = s2 / count - mean * mean
    scale = gamma * lax.rsqrt(var + EPS)
    bias = beta - mean * scale
    return scale, bias


def _compiler_params(block_bytes, scratch_bytes=0):
    # block_bytes = per-grid-step window bytes; x2 for double buffering.
    need = 2 * block_bytes + scratch_bytes
    limit = int(need * 1.25) + (8 << 20)            # headroom for compiler scratch
    limit = min(max(limit, 16 << 20), 100 << 20)
    return pltpu.CompilerParams(dimension_semantics=("parallel",),
                                vmem_limit_bytes=limit)


def double_conv(x_nchw, params, *, mxu_dtype=jnp.bfloat16, out_dtype=None):
    N, Cin, H, W = x_nchw.shape
    Cout = params["w1"].shape[-1]
    C = _round_up(Cout, 128)                 # lane-dense channels for the MXU
    Hp, Wp = H + 2, W + 2
    Mi = Hp * Wp                             # halo-extended pixels per image
    gi = Wp + 1                              # guard rows = max |tap row offset|
    Mg = Mi + 2 * gi
    m_real = N * H * W
    inter_dtype = mxu_dtype
    if out_dtype is None:
        out_dtype = mxu_dtype
    itm = jnp.dtype(mxu_dtype).itemsize

    # ---- operands ----------------------------------------------------------
    x_nhwc = jnp.transpose(x_nchw, (0, 2, 3, 1)).astype(jnp.float32)
    xpad = jnp.pad(x_nhwc, ((0, 0), (1, 1), (1, 1), (0, 0)))      # (N,Hp,Wp,Cin)
    xg = jnp.pad(xpad.reshape(N, Mi, Cin), ((0, 0), (gi, gi), (0, 0)))
    xg = xg.astype(mxu_dtype)                                      # (N, Mg, Cin)

    def cpad(a, axis):
        pw = [(0, 0)] * a.ndim
        pw[axis] = (0, C - a.shape[axis])
        return jnp.pad(a, pw)

    w1 = cpad(params["w1"], 3).reshape(9, Cin, C).astype(mxu_dtype)   # (9,Cin,C)
    w2 = cpad(cpad(params["w2"], 3), 2)                               # (3,3,C,C)
    w2p = jnp.stack([jnp.concatenate([w2[dy, 2], w2[dy, 1]], axis=0)
                     for dy in range(3)]).astype(mxu_dtype)           # (3,2C,C)
    w2s = jnp.stack([w2[dy, 0] for dy in range(3)]).astype(mxu_dtype)  # (3,C,C)
    wd = cpad(params["wd"], 1).astype(mxu_dtype)                      # (Cin, C)
    g1, b1 = cpad(params["g1"], 0), cpad(params["b1"], 0)
    g2, b2 = cpad(params["g2"], 0), cpad(params["b2"], 0)
    gd, bd = cpad(params["gd"], 0), cpad(params["bd"], 0)

    full = lambda shape: pl.BlockSpec(shape, lambda i: (0,) * len(shape))
    per_img = lambda shape: pl.BlockSpec((None,) + shape,
                                         lambda i: (i,) + (0,) * len(shape))

    # ---- call A: conv1 + residual statistics -------------------------------
    blkA = (Mg * Cin * itm + 9 * Cin * C * itm + Cin * C * itm
            + Mi * C * itm + 4 * C * 4)
    y1_raw, stats_a = pl.pallas_call(
        functools.partial(_conv1_res_kernel, H=H, W=W, gi=gi),
        grid=(N,),
        in_specs=[per_img((Mg, Cin)), full((9, Cin, C)), full((Cin, C))],
        out_specs=(per_img((Mi, C)), per_img((4, C))),
        out_shape=(jax.ShapeDtypeStruct((N, Mi, C), inter_dtype),
                   jax.ShapeDtypeStruct((N, 4, C), jnp.float32)),
        compiler_params=_compiler_params(blkA),
        cost_estimate=pl.CostEstimate(flops=2 * N * Mi * 10 * Cin * C,
                                      transcendentals=0,
                                      bytes_accessed=N * blkA),
    )(xg, w1, wd)

    sa = jnp.sum(stats_a, axis=0)                       # (4, C) f32
    scale1, bias1 = _finalize_bn(sa[0], sa[1], g1, b1, m_real)
    scaled, biasd = _finalize_bn(sa[2], sa[3], gd, bd, m_real)
    sb1 = jnp.stack([scale1, bias1])                    # (2, C)

    # ---- call B: bn1 -> relu -> conv2 + bn2 statistics ----------------------
    blkB = (2 * Mi * C * itm + 2 * C * 4
            + (3 * 2 * C * C + 3 * C * C) * itm + 2 * C * 4)
    scratchB = Mg * 2 * C * itm
    y2_raw, stats_b = pl.pallas_call(
        functools.partial(_bn1_conv2_kernel, H=H, W=W, C=C, gi=gi),
        grid=(N,),
        in_specs=[per_img((Mi, C)), full((2, C)),
                  full((3, 2 * C, C)), full((3, C, C))],
        out_specs=(per_img((Mi, C)), per_img((2, C))),
        out_shape=(jax.ShapeDtypeStruct((N, Mi, C), inter_dtype),
                   jax.ShapeDtypeStruct((N, 2, C), jnp.float32)),
        scratch_shapes=[pltpu.VMEM((Mg, 2 * C), mxu_dtype)],
        compiler_params=_compiler_params(blkB, scratch_bytes=scratchB),
        cost_estimate=pl.CostEstimate(flops=2 * N * Mi * 9 * C * C,
                                      transcendentals=0,
                                      bytes_accessed=N * blkB),
    )(y1_raw, sb1, w2p, w2s)

    sb_ = jnp.sum(stats_b, axis=0)
    scale2, bias2 = _finalize_bn(sb_[0], sb_[1], g2, b2, m_real)
    sb2d = jnp.stack([scale2, bias2, scaled, biasd])    # (4, C)

    # ---- call C: bn2 apply + residual + add + relu --------------------------
    blkC = (Mi * C * itm + Mg * Cin * itm + Cin * C * itm + 4 * C * 4
            + Mi * C * jnp.dtype(out_dtype).itemsize)
    out_ext = pl.pallas_call(
        functools.partial(_epilogue_kernel, H=H, W=W, gi=gi),
        grid=(N,),
        in_specs=[per_img((Mi, C)), per_img((Mg, Cin)), full((Cin, C)),
                  full((4, C))],
        out_specs=per_img((Mi, C)),
        out_shape=jax.ShapeDtypeStruct((N, Mi, C), out_dtype),
        compiler_params=_compiler_params(blkC),
        cost_estimate=pl.CostEstimate(flops=2 * N * Mi * Cin * C,
                                      transcendentals=0,
                                      bytes_accessed=N * blkC),
    )(y2_raw, xg, wd, sb2d)

    out = out_ext.reshape(N, Hp, Wp, C)[:, 1:H + 1, 1:W + 1, :Cout]
    return jnp.transpose(out, (0, 3, 1, 2))             # back to NCHW


# ---------------------------------------------------------------------------
# Pure-JAX reference (NCHW, mirrors the PyTorch module in train mode)
# ---------------------------------------------------------------------------
def reference(x, p):
    def conv(x, w_hwio):
        w_oihw = jnp.transpose(w_hwio, (3, 2, 0, 1))
        return lax.conv_general_dilated(
            x, w_oihw, window_strides=(1, 1), padding="SAME",
            dimension_numbers=("NCHW", "OIHW", "NCHW"))

    def bn(x, g, b):
        mean = jnp.mean(x, axis=(0, 2, 3), keepdims=True)
        var = jnp.mean((x - mean) ** 2, axis=(0, 2, 3), keepdims=True)
        return ((x - mean) * lax.rsqrt(var + EPS) * g.reshape(1, -1, 1, 1)
                + b.reshape(1, -1, 1, 1))

    wd_hwio = p["wd"].reshape(1, 1, *p["wd"].shape)
    residual = bn(conv(x, wd_hwio), p["gd"], p["bd"])
    y = jax.nn.relu(bn(conv(x, p["w1"]), p["g1"], p["b1"]))
    y = bn(conv(y, p["w2"]), p["g2"], p["b2"])
    return jax.nn.relu(y + residual)


# ---------------------------------------------------------------------------
if __name__ == "__main__":
    N, Cin, Cout, H, W = 2, 4, 8, 16, 16

    key = jax.random.PRNGKey(0)
    kx, k1, k2, kd, kg = jax.random.split(key, 5)
    kg1, kb1, kg2, kb2, kgd, kbd = jax.random.split(kg, 6)

    params = {
        "w1": 0.1 * jax.random.normal(k1, (3, 3, Cin, Cout), jnp.float32),
        "w2": 0.1 * jax.random.normal(k2, (3, 3, Cout, Cout), jnp.float32),
        "wd": 0.1 * jax.random.normal(kd, (Cin, Cout), jnp.float32),
        "g1": 1.0 + 0.1 * jax.random.normal(kg1, (Cout,), jnp.float32),
        "b1": 0.1 * jax.random.normal(kb1, (Cout,), jnp.float32),
        "g2": 1.0 + 0.1 * jax.random.normal(kg2, (Cout,), jnp.float32),
        "b2": 0.1 * jax.random.normal(kb2, (Cout,), jnp.float32),
        "gd": 1.0 + 0.1 * jax.random.normal(kgd, (Cout,), jnp.float32),
        "bd": 0.1 * jax.random.normal(kbd, (Cout,), jnp.float32),
    }

    x = jax.random.normal(kx, (N, Cin, H, W), jnp.float32)
    ref = reference(x, params)

    # Strict-precision path (f32 MXU operands / f32 intermediates).
    f32_fn = jax.jit(functools.partial(double_conv, mxu_dtype=jnp.float32))
    out_f32 = jax.block_until_ready(f32_fn(x, params))
    assert out_f32.shape == (N, Cout, H, W), out_f32.shape
    err_f32 = float(jnp.max(jnp.abs(out_f32 - ref)))
    assert err_f32 < 2e-3, f"f32 path max abs error {err_f32}"

    # Default fast path: bf16 MXU operands, bf16 intermediates and output.
    out_bf16 = jax.block_until_ready(jax.jit(double_conv)(x, params))
    assert out_bf16.shape == (N, Cout, H, W), out_bf16.shape
    assert out_bf16.dtype == jnp.bfloat16
    err_bf16 = float(jnp.max(jnp.abs(out_bf16.astype(jnp.float32) - ref)))
    assert err_bf16 < 1e-1, f"bf16 path max abs error {err_bf16}"

    print("KERNEL_OK")
</pallas_src>

<mosaic_0001>
module attributes {stable_mosaic.version = 11 : i64} {
  func.func @_conv1_res_kernel(%arg0: i32, %arg1: memref<1x362x4xf32, #tpu.memory_space<vmem>>, %arg2: memref<9x4x128xf32, #tpu.memory_space<vmem>>, %arg3: memref<4x128xf32, #tpu.memory_space<vmem>>, %arg4: memref<1x324x128xf32, #tpu.memory_space<vmem>>, %arg5: memref<1x4x128xf32, #tpu.memory_space<vmem>>) attributes {dimension_semantics = [#tpu.dimension_semantics<parallel>], iteration_bounds = array<i64: 2>, scalar_prefetch = 0 : i64, scratch_operands = 0 : i64, tpu.core_type = #tpu.core_type<tc>, window_params = [{transform_indices = @transform_0, window_bounds = array<i64: 1, 362, 4>}, {pipeline_mode = #tpu.pipeline_mode<synchronous>, transform_indices = @transform_1, window_bounds = array<i64: 9, 4, 128>}, {pipeline_mode = #tpu.pipeline_mode<synchronous>, transform_indices = @transform_2, window_bounds = array<i64: 4, 128>}, {transform_indices = @transform_3, window_bounds = array<i64: 1, 324, 128>}, {transform_indices = @transform_4, window_bounds = array<i64: 1, 4, 128>}]} {
    %0 = tpu.iota {dimensions = array<i32: 0>} : vector<324x1xi32>
    %1 = arith.sitofp %0 : vector<324x1xi32> to vector<324x1xf32>
    %cst = arith.constant 0.055555556 : f32
    %2 = vector.broadcast %cst : f32 to vector<324x1xf32>
    %3 = arith.mulf %1, %2 : vector<324x1xf32>
    %4 = math.floor %3 : vector<324x1xf32>
    %cst_0 = arith.constant 1.800000e+01 : f32
    %5 = vector.broadcast %cst_0 : f32 to vector<324x1xf32>
    %6 = arith.mulf %4, %5 : vector<324x1xf32>
    %7 = arith.subf %1, %6 : vector<324x1xf32>
    %cst_1 = arith.constant 5.000000e-01 : f32
    %8 = vector.broadcast %cst_1 : f32 to vector<324x1xf32>
    %9 = arith.cmpf ogt, %4, %8 : vector<324x1xf32>
    %cst_2 = arith.constant 1.650000e+01 : f32
    %10 = vector.broadcast %cst_2 : f32 to vector<324x1xf32>
    %11 = arith.cmpf olt, %4, %10 : vector<324x1xf32>
    %12 = arith.andi %9, %11 : vector<324x1xi1>
    %cst_3 = arith.constant 5.000000e-01 : f32
    %13 = vector.broadcast %cst_3 : f32 to vector<324x1xf32>
    %14 = arith.cmpf ogt, %7, %13 : vector<324x1xf32>
    %15 = arith.andi %12, %14 : vector<324x1xi1>
    %cst_4 = arith.constant 1.650000e+01 : f32
    %16 = vector.broadcast %cst_4 : f32 to vector<324x1xf32>
    %17 = arith.cmpf olt, %7, %16 : vector<324x1xf32>
    %18 = arith.andi %15, %17 : vector<324x1xi1>
    %cst_5 = arith.constant 1.000000e+00 : f32
    %cst_6 = arith.constant 0.000000e+00 : f32
    %19 = vector.broadcast %cst_5 : f32 to vector<324x1xf32>
    %20 = vector.broadcast %cst_6 : f32 to vector<324x1xf32>
    %21 = arith.select %18, %19, %20 : vector<324x1xi1>, vector<324x1xf32>
    %c0 = arith.constant 0 : index
    %c0_7 = arith.constant 0 : index
    %c0_8 = arith.constant 0 : index
    %22 = vector.load %arg1[%c0, %c0_7, %c0_8] : memref<1x362x4xf32, #tpu.memory_space<vmem>>, vector<1x324x4xf32>
    %23 = vector.shape_cast %22 : vector<1x324x4xf32> to vector<324x4xf32>
    %c0_9 = arith.constant 0 : index
    %c0_10 = arith.constant 0 : index
    %c0_11 = arith.constant 0 : index
    %24 = vector.load %arg2[%c0_9, %c0_10, %c0_11] : memref<9x4x128xf32, #tpu.memory_space<vmem>>, vector<1x4x128xf32>
    %25 = vector.shape_cast %24 : vector<1x4x128xf32> to vector<4x128xf32>
    %cst_12 = arith.constant dense<0.000000e+00> : vector<324x128xf32>
    %26 = tpu.matmul %23, %25, %cst_12 {dimension_numbers = #tpu.dot_dimension_numbers<[1], [0], [0], [1], [0, 0, 1, 1], [], []>} : vector<324x4xf32>, vector<4x128xf32>, vector<324x128xf32> -> vector<324x128xf32>
    %c0_13 = arith.constant 0 : index
    %c1 = arith.constant 1 : index
    %c0_14 = arith.constant 0 : index
    %27 = vector.load %arg1[%c0_13, %c1, %c0_14] : memref<1x362x4xf32, #tpu.memory_space<vmem>>, vector<1x324x4xf32>
    %28 = vector.shape_cast %27 : vector<1x324x4xf32> to vector<324x4xf32>
    %c1_15 = arith.constant 1 : index
    %c0_16 = arith.constant 0 : index
    %c0_17 = arith.constant 0 : index
    %29 = vector.load %arg2[%c1_15, %c0_16, %c0_17] : memref<9x4x128xf32, #tpu.memory_space<vmem>>, vector<1x4x128xf32>
    %30 = vector.shape_cast %29 : vector<1x4x128xf32> to vector<4x128xf32>
    %cst_18 = arith.constant dense<0.000000e+00> : vector<324x128xf32>
    %31 = tpu.matmul %28, %30, %cst_18 {dimension_numbers = #tpu.dot_dimension_numbers<[1], [0], [0], [1], [0, 0, 1, 1], [], []>} : vector<324x4xf32>, vector<4x128xf32>, vector<324x128xf32> -> vector<324x128xf32>
    %32 = arith.addf %26, %31 : vector<324x128xf32>
    %c0_19 = arith.constant 0 : index
    %c2 = arith.constant 2 : index
    %c0_20 = arith.constant 0 : index
    %33 = vector.load %arg1[%c0_19, %c2, %c0_20] : memref<1x362x4xf32, #tpu.memory_space<vmem>>, vector<1x324x4xf32>
    %34 = vector.shape_cast %33 : vector<1x324x4xf32> to vector<324x4xf32>
    %c2_21 = arith.constant 2 : index
    %c0_22 = arith.constant 0 : index
    %c0_23 = arith.constant 0 : index
    %35 = vector.load %arg2[%c2_21, %c0_22, %c0_23] : memref<9x4x128xf32, #tpu.memory_space<vmem>>, vector<1x4x128xf32>
    %36 = vector.shape_cast %35 : vector<1x4x128xf32> to vector<4x128xf32>
    %cst_24 = arith.constant dense<0.000000e+00> : vector<324x128xf32>
    %37 = tpu.matmul %34, %36, %cst_24 {dimension_numbers = #tpu.dot_dimension_numbers<[1], [0], [0], [1], [0, 0, 1, 1], [], []>} : vector<324x4xf32>, vector<4x128xf32>, vector<324x128xf32> -> vector<324x128xf32>
    %38 = arith.addf %32, %37 : vector<324x128xf32>
    %c0_25 = arith.constant 0 : index
    %c18 = arith.constant 18 : index
    %c0_26 = arith.constant 0 : index
    %39 = vector.load %arg1[%c0_25, %c18, %c0_26] : memref<1x362x4xf32, #tpu.memory_space<vmem>>, vector<1x324x4xf32>
    %40 = vector.shape_cast %39 : vector<1x324x4xf32> to vector<324x4xf32>
    %c3 = arith.constant 3 : index
    %c0_27 = arith.constant 0 : index
    %c0_28 = arith.constant 0 : index
    %41 = vector.load %arg2[%c3, %c0_27, %c0_28] : memref<9x4x128xf32, #tpu.memory_space<vmem>>, vector<1x4x128xf32>
    %42 = vector.shape_cast %41 : vector<1x4x128xf32> to vector<4x128xf32>
    %cst_29 = arith.constant dense<0.000000e+00> : vector<324x128xf32>
    %43 = tpu.matmul %40, %42, %cst_29 {dimension_numbers = #tpu.dot_dimension_numbers<[1], [0], [0], [1], [0, 0, 1, 1], [], []>} : vector<324x4xf32>, vector<4x128xf32>, vector<324x128xf32> -> vector<324x128xf32>
    %44 = arith.addf %38, %43 : vector<324x128xf32>
    %c0_30 = arith.constant 0 : index
    %c19 = arith.constant 19 : index
    %c0_31 = arith.constant 0 : index
    %45 = vector.load %arg1[%c0_30, %c19, %c0_31] : memref<1x362x4xf32, #tpu.memory_space<vmem>>, vector<1x324x4xf32>
    %46 = vector.shape_cast %45 : vector<1x324x4xf32> to vector<324x4xf32>
    %c4 = arith.constant 4 : index
    %c0_32 = arith.constant 0 : index
    %c0_33 = arith.constant 0 : index
    %47 = vector.load %arg2[%c4, %c0_32, %c0_33] : memref<9x4x128xf32, #tpu.memory_space<vmem>>, vector<1x4x128xf32>
    %48 = vector.shape_cast %47 : vector<1x4x128xf32> to vector<4x128xf32>
    %cst_34 = arith.constant dense<0.000000e+00> : vector<324x128xf32>
    %49 = tpu.matmul %46, %48, %cst_34 {dimension_numbers = #tpu.dot_dimension_numbers<[1], [0], [0], [1], [0, 0, 1, 1], [], []>} : vector<324x4xf32>, vector<4x128xf32>, vector<324x128xf32> -> vector<324x128xf32>
    %50 = arith.addf %44, %49 : vector<324x128xf32>
    %c0_35 = arith.constant 0 : index
    %c20 = arith.constant 20 : index
    %c0_36 = arith.constant 0 : index
    %51 = vector.load %arg1[%c0_35, %c20, %c0_36] : memref<1x362x4xf32, #tpu.memory_space<vmem>>, vector<1x324x4xf32>
    %52 = vector.shape_cast %51 : vector<1x324x4xf32> to vector<324x4xf32>
    %c5 = arith.constant 5 : index
    %c0_37 = arith.constant 0 : index
    %c0_38 = arith.constant 0 : index
    %53 = vector.load %arg2[%c5, %c0_37, %c0_38] : memref<9x4x128xf32, #tpu.memory_space<vmem>>, vector<1x4x128xf32>
    %54 = vector.shape_cast %53 : vector<1x4x128xf32> to vector<4x128xf32>
    %cst_39 = arith.constant dense<0.000000e+00> : vector<324x128xf32>
    %55 = tpu.matmul %52, %54, %cst_39 {dimension_numbers = #tpu.dot_dimension_numbers<[1], [0], [0], [1], [0, 0, 1, 1], [], []>} : vector<324x4xf32>, vector<4x128xf32>, vector<324x128xf32> -> vector<324x128xf32>
    %56 = arith.addf %50, %55 : vector<324x128xf32>
    %c0_40 = arith.constant 0 : index
    %c36 = arith.constant 36 : index
    %c0_41 = arith.constant 0 : index
    %57 = vector.load %arg1[%c0_40, %c36, %c0_41] : memref<1x362x4xf32, #tpu.memory_space<vmem>>, vector<1x324x4xf32>
    %58 = vector.shape_cast %57 : vector<1x324x4xf32> to vector<324x4xf32>
    %c6 = arith.constant 6 : index
    %c0_42 = arith.constant 0 : index
    %c0_43 = arith.constant 0 : index
    %59 = vector.load %arg2[%c6, %c0_42, %c0_43] : memref<9x4x128xf32, #tpu.memory_space<vmem>>, vector<1x4x128xf32>
    %60 = vector.shape_cast %59 : vector<1x4x128xf32> to vector<4x128xf32>
    %cst_44 = arith.constant dense<0.000000e+00> : vector<324x128xf32>
    %61 = tpu.matmul %58, %60, %cst_44 {dimension_numbers = #tpu.dot_dimension_numbers<[1], [0], [0], [1], [0, 0, 1, 1], [], []>} : vector<324x4xf32>, vector<4x128xf32>, vector<324x128xf32> -> vector<324x128xf32>
    %62 = arith.addf %56, %61 : vector<324x128xf32>
    %c0_45 = arith.constant 0 : index
    %c37 = arith.constant 37 : index
    %c0_46 = arith.constant 0 : index
    %63 = vector.load %arg1[%c0_45, %c37, %c0_46] : memref<1x362x4xf32, #tpu.memory_space<vmem>>, vector<1x324x4xf32>
    %64 = vector.shape_cast %63 : vector<1x324x4xf32> to vector<324x4xf32>
    %c7 = arith.constant 7 : index
    %c0_47 = arith.constant 0 : index
    %c0_48 = arith.constant 0 : index
    %65 = vector.load %arg2[%c7, %c0_47, %c0_48] : memref<9x4x128xf32, #tpu.memory_space<vmem>>, vector<1x4x128xf32>
    %66 = vector.shape_cast %65 : vector<1x4x128xf32> to vector<4x128xf32>
    %cst_49 = arith.constant dense<0.000000e+00> : vector<324x128xf32>
    %67 = tpu.matmul %64, %66, %cst_49 {dimension_numbers = #tpu.dot_dimension_numbers<[1], [0], [0], [1], [0, 0, 1, 1], [], []>} : vector<324x4xf32>, vector<4x128xf32>, vector<324x128xf32> -> vector<324x128xf32>
    %68 = arith.addf %62, %67 : vector<324x128xf32>
    %c0_50 = arith.constant 0 : index
    %c38 = arith.constant 38 : index
    %c0_51 = arith.constant 0 : index
    %69 = vector.load %arg1[%c0_50, %c38, %c0_51] : memref<1x362x4xf32, #tpu.memory_space<vmem>>, vector<1x324x4xf32>
    %70 = vector.shape_cast %69 : vector<1x324x4xf32> to vector<324x4xf32>
    %c8 = arith.constant 8 : index
    %c0_52 = arith.constant 0 : index
    %c0_53 = arith.constant 0 : index
    %71 = vector.load %arg2[%c8, %c0_52, %c0_53] : memref<9x4x128xf32, #tpu.memory_space<vmem>>, vector<1x4x128xf32>
    %72 = vector.shape_cast %71 : vector<1x4x128xf32> to vector<4x128xf32>
    %cst_54 = arith.constant dense<0.000000e+00> : vector<324x128xf32>
    %73 = tpu.matmul %70, %72, %cst_54 {dimension_numbers = #tpu.dot_dimension_numbers<[1], [0], [0], [1], [0, 0, 1, 1], [], []>} : vector<324x4xf32>, vector<4x128xf32>, vector<324x128xf32> -> vector<324x128xf32>
    %74 = arith.addf %68, %73 : vector<324x128xf32>
    %75 = vector.broadcast %21 : vector<324x1xf32> to vector<324x128xf32>
    %76 = arith.mulf %74, %75 : vector<324x128xf32>
    %cst_55 = arith.constant dense<0.000000e+00> : vector<128xf32>
    %77 = vector.multi_reduction <add>, %76, %cst_55 [0] : vector<324x128xf32> to vector<128xf32>
    %78 = vector.shape_cast %77 : vector<128xf32> to vector<1x128xf32>
    %c0_56 = arith.constant 0 : index
    %c0_57 = arith.constant 0 : index
    %c0_58 = arith.constant 0 : index
    %79 = vector.load %arg5[%c0_56, %c0_57, %c0_58] : memref<1x4x128xf32, #tpu.memory_space<vmem>>, vector<1x1x128xf32>
    %80 = vector.shape_cast %79 : vector<1x1x128xf32> to vector<1x128xf32>
    %81 = vector.shape_cast %78 : vector<1x128xf32> to vector<1x1x128xf32>
    tpu.vector_store %arg5[%c0_56, %c0_57, %c0_58], %81 {strides = array<i32>} : memref<1x4x128xf32, #tpu.memory_space<vmem>>, vector<1x1x128xf32>,
    %82 = arith.mulf %74, %76 : vector<324x128xf32>
    %cst_59 = arith.constant dense<0.000000e+00> : vector<128xf32>
    %83 = vector.multi_reduction <add>, %82, %cst_59 [0] : vector<324x128xf32> to vector<128xf32>
    %84 = vector.shape_cast %83 : vector<128xf32> to vector<1x128xf32>
    %c0_60 = arith.constant 0 : index
    %c1_61 = arith.constant 1 : index
    %c0_62 = arith.constant 0 : index
    %85 = vector.load %arg5[%c0_60, %c1_61, %c0_62] : memref<1x4x128xf32, #tpu.memory_space<vmem>>, vector<1x1x128xf32>
    %86 = vector.shape_cast %85 : vector<1x1x128xf32> to vector<1x128xf32>
    %87 = vector.shape_cast %84 : vector<1x128xf32> to vector<1x1x128xf32>
    tpu.vector_store %arg5[%c0_60, %c1_61, %c0_62], %87 {strides = array<i32>} : memref<1x4x128xf32, #tpu.memory_space<vmem>>, vector<1x1x128xf32>,
    %c0_63 = arith.constant 0 : index
    %c19_64 = arith.constant 19 : index
    %c0_65 = arith.constant 0 : index
    %88 = vector.load %arg1[%c0_63, %c19_64, %c0_65] : memref<1x362x4xf32, #tpu.memory_space<vmem>>, vector<1x324x4xf32>
    %89 = vector.shape_cast %88 : vector<1x324x4xf32> to vector<324x4xf32>
    %c0_66 = arith.constant 0 : index
    %c0_67 = arith.constant 0 : index
    %90 = vector.load %arg3[%c0_66, %c0_67] : memref<4x128xf32, #tpu.memory_space<vmem>>, vector<4x128xf32>
    %cst_68 = arith.constant dense<0.000000e+00> : vector<324x128xf32>
    %91 = tpu.matmul %89, %90, %cst_68 {dimension_numbers = #tpu.dot_dimension_numbers<[1], [0], [0], [1], [0, 0, 1, 1], [], []>} : vector<324x4xf32>, vector<4x128xf32>, vector<324x128xf32> -> vector<324x128xf32>
    %92 = vector.broadcast %21 : vector<324x1xf32> to vector<324x128xf32>
    %93 = arith.mulf %91, %92 : vector<324x128xf32>
    %cst_69 = arith.constant dense<0.000000e+00> : vector<128xf32>
    %94 = vector.multi_reduction <add>, %93, %cst_69 [0] : vector<324x128xf32> to vector<128xf32>
    %95 = vector.shape_cast %94 : vector<128xf32> to vector<1x128xf32>
    %c0_70 = arith.constant 0 : index
    %c2_71 = arith.constant 2 : index
    %c0_72 = arith.constant 0 : index
    %96 = vector.load %arg5[%c0_70, %c2_71, %c0_72] : memref<1x4x128xf32, #tpu.memory_space<vmem>>, vector<1x1x128xf32>
    %97 = vector.shape_cast %96 : vector<1x1x128xf32> to vector<1x128xf32>
    %98 = vector.shape_cast %95 : vector<1x128xf32> to vector<1x1x128xf32>
    tpu.vector_store %arg5[%c0_70, %c2_71, %c0_72], %98 {strides = array<i32>} : memref<1x4x128xf32, #tpu.memory_space<vmem>>, vector<1x1x128xf32>,
    %99 = arith.mulf %91, %93 : vector<324x128xf32>
    %cst_73 = arith.constant dense<0.000000e+00> : vector<128xf32>
    %100 = vector.multi_reduction <add>, %99, %cst_73 [0] : vector<324x128xf32> to vector<128xf32>
    %101 = vector.shape_cast %100 : vector<128xf32> to vector<1x128xf32>
    %c0_74 = arith.constant 0 : index
    %c3_75 = arith.constant 3 : index
    %c0_76 = arith.constant 0 : index
    %102 = vector.load %arg5[%c0_74, %c3_75, %c0_76] : memref<1x4x128xf32, #tpu.memory_space<vmem>>, vector<1x1x128xf32>
    %103 = vector.shape_cast %102 : vector<1x1x128xf32> to vector<1x128xf32>
    %104 = vector.shape_cast %101 : vector<1x128xf32> to vector<1x1x128xf32>
    tpu.vector_store %arg5[%c0_74, %c3_75, %c0_76], %104 {strides = array<i32>} : memref<1x4x128xf32, #tpu.memory_space<vmem>>, vector<1x1x128xf32>,
    %c0_77 = arith.constant 0 : index
    %c0_78 = arith.constant 0 : index
    %c0_79 = arith.constant 0 : index
    %105 = vector.load %arg4[%c0_77, %c0_78, %c0_79] : memref<1x324x128xf32, #tpu.memory_space<vmem>>, vector<1x324x128xf32>
    %106 = vector.shape_cast %105 : vector<1x324x128xf32> to vector<324x128xf32>
    %107 = vector.shape_cast %74 : vector<324x128xf32> to vector<1x324x128xf32>
    tpu.vector_store %arg4[%c0_77, %c0_78, %c0_79], %107 {strides = array<i32>} : memref<1x324x128xf32, #tpu.memory_space<vmem>>, vector<1x324x128xf32>,
    return
  }
  func.func @transform_0(%arg0: i32) -> (i32, i32, i32) {
    %c0_i32 = arith.constant 0 : i32
    %c0_i32_0 = arith.constant 0 : i32
    %c0_i32_1 = arith.constant 0 : i32
    return %arg0, %c0_i32, %c0_i32_0 : i32, i32, i32
  }
  func.func @transform_1(%arg0: i32) -> (i32, i32, i32) {
    %c0_i32 = arith.constant 0 : i32
    %c0_i32_0 = arith.constant 0 : i32
    %c0_i32_1 = arith.constant 0 : i32
    %c0_i32_2 = arith.constant 0 : i32
    return %c0_i32, %c0_i32_0, %c0_i32_1 : i32, i32, i32
  }
  func.func @transform_2(%arg0: i32) -> (i32, i32) {
    %c0_i32 = arith.constant 0 : i32
    %c0_i32_0 = arith.constant 0 : i32
    %c0_i32_1 = arith.constant 0 : i32
    return %c0_i32, %c0_i32_0 : i32, i32
  }
  func.func @transform_3(%arg0: i32) -> (i32, i32, i32) {
    %c0_i32 = arith.constant 0 : i32
    %c0_i32_0 = arith.constant 0 : i32
    %c0_i32_1 = arith.constant 0 : i32
    return %arg0, %c0_i32, %c0_i32_0 : i32, i32, i32
  }
  func.func @transform_4(%arg0: i32) -> (i32, i32, i32) {
    %c0_i32 = arith.constant 0 : i32
    %c0_i32_0 = arith.constant 0 : i32
    %c0_i32_1 = arith.constant 0 : i32
    return %arg0, %c0_i32, %c0_i32_0 : i32, i32, i32
  }
}

module attributes {stable_mosaic.version = 11 : i64} {
  func.func @_bn1_conv2_kernel(%arg0: i32, %arg1: memref<1x324x128xf32, #tpu.memory_space<vmem>>, %arg2: memref<2x128xf32, #tpu.memory_space<vmem>>, %arg3: memref<3x256x128xf32, #tpu.memory_space<vmem>>, %arg4: memref<3x128x128xf32, #tpu.memory_space<vmem>>, %arg5: memref<1x324x128xf32, #tpu.memory_space<vmem>>, %arg6: memref<1x2x128xf32, #tpu.memory_space<vmem>>, %arg7: memref<362x256xf32, #tpu.memory_space<vmem>>) attributes {dimension_semantics = [#tpu.dimension_semantics<parallel>], iteration_bounds = array<i64: 2>, scalar_prefetch = 0 : i64, scratch_operands = 1 : i64, tpu.core_type = #tpu.core_type<tc>, window_params = [{transform_indices = @transform_0, window_bounds = array<i64: 1, 324, 128>}, {pipeline_mode = #tpu.pipeline_mode<synchronous>, transform_indices = @transform_1, window_bounds = array<i64: 2, 128>}, {pipeline_mode = #tpu.pipeline_mode<synchronous>, transform_indices = @transform_2, window_bounds = array<i64: 3, 256, 128>}, {pipeline_mode = #tpu.pipeline_mode<synchronous>, transform_indices = @transform_3, window_bounds = array<i64: 3, 128, 128>}, {transform_indices = @transform_4, window_bounds = array<i64: 1, 324, 128>}, {transform_indices = @transform_5, window_bounds = array<i64: 1, 2, 128>}]} {
    %0 = tpu.iota {dimensions = array<i32: 0>} : vector<324x1xi32>
    %1 = arith.sitofp %0 : vector<324x1xi32> to vector<324x1xf32>
    %cst = arith.constant 0.055555556 : f32
    %2 = vector.broadcast %cst : f32 to vector<324x1xf32>
    %3 = arith.mulf %1, %2 : vector<324x1xf32>
    %4 = math.floor %3 : vector<324x1xf32>
    %cst_0 = arith.constant 1.800000e+01 : f32
    %5 = vector.broadcast %cst_0 : f32 to vector<324x1xf32>
    %6 = arith.mulf %4, %5 : vector<324x1xf32>
    %7 = arith.subf %1, %6 : vector<324x1xf32>
    %cst_1 = arith.constant 5.000000e-01 : f32
    %8 = vector.broadcast %cst_1 : f32 to vector<324x1xf32>
    %9 = arith.cmpf ogt, %4, %8 : vector<324x1xf32>
    %cst_2 = arith.constant 1.650000e+01 : f32
    %10 = vector.broadcast %cst_2 : f32 to vector<324x1xf32>
    %11 = arith.cmpf olt, %4, %10 : vector<324x1xf32>
    %12 = arith.andi %9, %11 : vector<324x1xi1>
    %cst_3 = arith.constant 5.000000e-01 : f32
    %13 = vector.broadcast %cst_3 : f32 to vector<324x1xf32>
    %14 = arith.cmpf ogt, %7, %13 : vector<324x1xf32>
    %15 = arith.andi %12, %14 : vector<324x1xi1>
    %cst_4 = arith.constant 1.650000e+01 : f32
    %16 = vector.broadcast %cst_4 : f32 to vector<324x1xf32>
    %17 = arith.cmpf olt, %7, %16 : vector<324x1xf32>
    %18 = arith.andi %15, %17 : vector<324x1xi1>
    %cst_5 = arith.constant 1.000000e+00 : f32
    %cst_6 = arith.constant 0.000000e+00 : f32
    %19 = vector.broadcast %cst_5 : f32 to vector<324x1xf32>
    %20 = vector.broadcast %cst_6 : f32 to vector<324x1xf32>
    %21 = arith.select %18, %19, %20 : vector<324x1xi1>, vector<324x1xf32>
    %c0 = arith.constant 0 : index
    %c0_7 = arith.constant 0 : index
    %22 = vector.load %arg2[%c0, %c0_7] : memref<2x128xf32, #tpu.memory_space<vmem>>, vector<1x128xf32>
    %c1 = arith.constant 1 : index
    %c0_8 = arith.constant 0 : index
    %23 = vector.load %arg2[%c1, %c0_8] : memref<2x128xf32, #tpu.memory_space<vmem>>, vector<1x128xf32>
    %c0_9 = arith.constant 0 : index
    %c0_10 = arith.constant 0 : index
    %c0_11 = arith.constant 0 : index
    %24 = vector.load %arg1[%c0_9, %c0_10, %c0_11] : memref<1x324x128xf32, #tpu.memory_space<vmem>>, vector<1x324x128xf32>
    %25 = vector.shape_cast %24 : vector<1x324x128xf32> to vector<324x128xf32>
    %26 = vector.broadcast %22 : vector<1x128xf32> to vector<324x128xf32>
    %27 = arith.mulf %25, %26 : vector<324x128xf32>
    %28 = vector.broadcast %23 : vector<1x128xf32> to vector<324x128xf32>
    %29 = arith.addf %27, %28 : vector<324x128xf32>
    %cst_12 = arith.constant 0.000000e+00 : f32
    %30 = vector.broadcast %cst_12 : f32 to vector<324x128xf32>
    %31 = arith.maximumf %29, %30 : vector<324x128xf32>
    %32 = vector.broadcast %21 : vector<324x1xf32> to vector<324x128xf32>
    %33 = arith.mulf %31, %32 : vector<324x128xf32>
    %cst_13 = arith.constant 0.000000e+00 : f32
    %34 = vector.broadcast %cst_13 : f32 to vector<20x256xf32>
    %c0_14 = arith.constant 0 : index
    %c0_15 = arith.constant 0 : index
    %35 = vector.load %arg7[%c0_14, %c0_15] : memref<362x256xf32, #tpu.memory_space<vmem>>, vector<20x256xf32>
    tpu.vector_store %arg7[%c0_14, %c0_15], %34 {strides = array<i32>} : memref<362x256xf32, #tpu.memory_space<vmem>>, vector<20x256xf32>,
    %cst_16 = arith.constant 0.000000e+00 : f32
    %36 = vector.broadcast %cst_16 : f32 to vector<19x256xf32>
    %c343 = arith.constant 343 : index
    %c0_17 = arith.constant 0 : index
    %37 = vector.load %arg7[%c343, %c0_17] : memref<362x256xf32, #tpu.memory_space<vmem>>, vector<19x256xf32>
    tpu.vector_store %arg7[%c343, %c0_17], %36 {strides = array<i32>} : memref<362x256xf32, #tpu.memory_space<vmem>>, vector<19x256xf32>,
    %c19 = arith.constant 19 : index
    %c0_18 = arith.constant 0 : index
    %38 = vector.load %arg7[%c19, %c0_18] : memref<362x256xf32, #tpu.memory_space<vmem>>, vector<324x128xf32>
    tpu.vector_store %arg7[%c19, %c0_18], %33 {strides = array<i32>} : memref<362x256xf32, #tpu.memory_space<vmem>>, vector<324x128xf32>,
    %c20 = arith.constant 20 : index
    %c128 = arith.constant 128 : index
    %39 = vector.load %arg7[%c20, %c128] : memref<362x256xf32, #tpu.memory_space<vmem>>, vector<324x128xf32>
    tpu.vector_store %arg7[%c20, %c128], %33 {strides = array<i32>} : memref<362x256xf32, #tpu.memory_space<vmem>>, vector<324x128xf32>,
    %c2 = arith.constant 2 : index
    %c0_19 = arith.constant 0 : index
    %40 = vector.load %arg7[%c2, %c0_19] : memref<362x256xf32, #tpu.memory_space<vmem>>, vector<324x256xf32>
    %c0_20 = arith.constant 0 : index
    %c0_21 = arith.constant 0 : index
    %c0_22 = arith.constant 0 : index
    %41 = vector.load %arg3[%c0_20, %c0_21, %c0_22] : memref<3x256x128xf32, #tpu.memory_space<vmem>>, vector<1x256x128xf32>
    %42 = vector.shape_cast %41 : vector<1x256x128xf32> to vector<256x128xf32>
    %cst_23 = arith.constant dense<0.000000e+00> : vector<324x128xf32>
    %43 = tpu.matmul %40, %42, %cst_23 {dimension_numbers = #tpu.dot_dimension_numbers<[1], [0], [0], [1], [0, 0, 1, 1], [], []>} : vector<324x256xf32>, vector<256x128xf32>, vector<324x128xf32> -> vector<324x128xf32>
    %c20_24 = arith.constant 20 : index
    %c0_25 = arith.constant 0 : index
    %44 = vector.load %arg7[%c20_24, %c0_25] : memref<362x256xf32, #tpu.memory_space<vmem>>, vector<324x256xf32>
    %c1_26 = arith.constant 1 : index
    %c0_27 = arith.constant 0 : index
    %c0_28 = arith.constant 0 : index
    %45 = vector.load %arg3[%c1_26, %c0_27, %c0_28] : memref<3x256x128xf32, #tpu.memory_space<vmem>>, vector<1x256x128xf32>
    %46 = vector.shape_cast %45 : vector<1x256x128xf32> to vector<256x128xf32>
    %cst_29 = arith.constant dense<0.000000e+00> : vector<324x128xf32>
    %47 = tpu.matmul %44, %46, %cst_29 {dimension_numbers = #tpu.dot_dimension_numbers<[1], [0], [0], [1], [0, 0, 1, 1], [], []>} : vector<324x256xf32>, vector<256x128xf32>, vector<324x128xf32> -> vector<324x128xf32>
    %48 = arith.addf %43, %47 : vector<324x128xf32>
    %c38 = arith.constant 38 : index
    %c0_30 = arith.constant 0 : index
    %49 = vector.load %arg7[%c38, %c0_30] : memref<362x256xf32, #tpu.memory_space<vmem>>, vector<324x256xf32>
    %c2_31 = arith.constant 2 : index
    %c0_32 = arith.constant 0 : index
    %c0_33 = arith.constant 0 : index
    %50 = vector.load %arg3[%c2_31, %c0_32, %c0_33] : memref<3x256x128xf32, #tpu.memory_space<vmem>>, vector<1x256x128xf32>
    %51 = vector.shape_cast %50 : vector<1x256x128xf32> to vector<256x128xf32>
    %cst_34 = arith.constant dense<0.000000e+00> : vector<324x128xf32>
    %52 = tpu.matmul %49, %51, %cst_34 {dimension_numbers = #tpu.dot_dimension_numbers<[1], [0], [0], [1], [0, 0, 1, 1], [], []>} : vector<324x256xf32>, vector<256x128xf32>, vector<324x128xf32> -> vector<324x128xf32>
    %53 = arith.addf %48, %52 : vector<324x128xf32>
    %c0_35 = arith.constant 0 : index
    %c0_36 = arith.constant 0 : index
    %54 = vector.load %arg7[%c0_35, %c0_36] : memref<362x256xf32, #tpu.memory_space<vmem>>, vector<324x128xf32>
    %c0_37 = arith.constant 0 : index
    %c0_38 = arith.constant 0 : index
    %c0_39 = arith.constant 0 : index
    %55 = vector.load %arg4[%c0_37, %c0_38, %c0_39] : memref<3x128x128xf32, #tpu.memory_space<vmem>>, vector<1x128x128xf32>
    %56 = vector.shape_cast %55 : vector<1x128x128xf32> to vector<128x128xf32>
    %cst_40 = arith.constant dense<0.000000e+00> : vector<324x128xf32>
    %57 = tpu.matmul %54, %56, %cst_40 {dimension_numbers = #tpu.dot_dimension_numbers<[1], [0], [0], [1], [0, 0, 1, 1], [], []>} : vector<324x128xf32>, vector<128x128xf32>, vector<324x128xf32> -> vector<324x128xf32>
    %58 = arith.addf %53, %57 : vector<324x128xf32>
    %c18 = arith.constant 18 : index
    %c0_41 = arith.constant 0 : index
    %59 = vector.load %arg7[%c18, %c0_41] : memref<362x256xf32, #tpu.memory_space<vmem>>, vector<324x128xf32>
    %c1_42 = arith.constant 1 : index
    %c0_43 = arith.constant 0 : index
    %c0_44 = arith.constant 0 : index
    %60 = vector.load %arg4[%c1_42, %c0_43, %c0_44] : memref<3x128x128xf32, #tpu.memory_space<vmem>>, vector<1x128x128xf32>
    %61 = vector.shape_cast %60 : vector<1x128x128xf32> to vector<128x128xf32>
    %cst_45 = arith.constant dense<0.000000e+00> : vector<324x128xf32>
    %62 = tpu.matmul %59, %61, %cst_45 {dimension_numbers = #tpu.dot_dimension_numbers<[1], [0], [0], [1], [0, 0, 1, 1], [], []>} : vector<324x128xf32>, vector<128x128xf32>, vector<324x128xf32> -> vector<324x128xf32>
    %63 = arith.addf %58, %62 : vector<324x128xf32>
    %c36 = arith.constant 36 : index
    %c0_46 = arith.constant 0 : index
    %64 = vector.load %arg7[%c36, %c0_46] : memref<362x256xf32, #tpu.memory_space<vmem>>, vector<324x128xf32>
    %c2_47 = arith.constant 2 : index
    %c0_48 = arith.constant 0 : index
    %c0_49 = arith.constant 0 : index
    %65 = vector.load %arg4[%c2_47, %c0_48, %c0_49] : memref<3x128x128xf32, #tpu.memory_space<vmem>>, vector<1x128x128xf32>
    %66 = vector.shape_cast %65 : vector<1x128x128xf32> to vector<128x128xf32>
    %cst_50 = arith.constant dense<0.000000e+00> : vector<324x128xf32>
    %67 = tpu.matmul %64, %66, %cst_50 {dimension_numbers = #tpu.dot_dimension_numbers<[1], [0], [0], [1], [0, 0, 1, 1], [], []>} : vector<324x128xf32>, vector<128x128xf32>, vector<324x128xf32> -> vector<324x128xf32>
    %68 = arith.addf %63, %67 : vector<324x128xf32>
    %69 = vector.broadcast %21 : vector<324x1xf32> to vector<324x128xf32>
    %70 = arith.mulf %68, %69 : vector<324x128xf32>
    %cst_51 = arith.constant dense<0.000000e+00> : vector<128xf32>
    %71 = vector.multi_reduction <add>, %70, %cst_51 [0] : vector<324x128xf32> to vector<128xf32>
    %72 = vector.shape_cast %71 : vector<128xf32> to vector<1x128xf32>
    %c0_52 = arith.constant 0 : index
    %c0_53 = arith.constant 0 : index
    %c0_54 = arith.constant 0 : index
    %73 = vector.load %arg6[%c0_52, %c0_53, %c0_54] : memref<1x2x128xf32, #tpu.memory_space<vmem>>, vector<1x1x128xf32>
    %74 = vector.shape_cast %73 : vector<1x1x128xf32> to vector<1x128xf32>
    %75 = vector.shape_cast %72 : vector<1x128xf32> to vector<1x1x128xf32>
    tpu.vector_store %arg6[%c0_52, %c0_53, %c0_54], %75 {strides = array<i32>} : memref<1x2x128xf32, #tpu.memory_space<vmem>>, vector<1x1x128xf32>,
    %76 = arith.mulf %68, %70 : vector<324x128xf32>
    %cst_55 = arith.constant dense<0.000000e+00> : vector<128xf32>
    %77 = vector.multi_reduction <add>, %76, %cst_55 [0] : vector<324x128xf32> to vector<128xf32>
    %78 = vector.shape_cast %77 : vector<128xf32> to vector<1x128xf32>
    %c0_56 = arith.constant 0 : index
    %c1_57 = arith.constant 1 : index
    %c0_58 = arith.constant 0 : index
    %79 = vector.load %arg6[%c0_56, %c1_57, %c0_58] : memref<1x2x128xf32, #tpu.memory_space<vmem>>, vector<1x1x128xf32>
    %80 = vector.shape_cast %79 : vector<1x1x128xf32> to vector<1x128xf32>
    %81 = vector.shape_cast %78 : vector<1x128xf32> to vector<1x1x128xf32>
    tpu.vector_store %arg6[%c0_56, %c1_57, %c0_58], %81 {strides = array<i32>} : memref<1x2x128xf32, #tpu.memory_space<vmem>>, vector<1x1x128xf32>,
    %c0_59 = arith.constant 0 : index
    %c0_60 = arith.constant 0 : index
    %c0_61 = arith.constant 0 : index
    %82 = vector.load %arg5[%c0_59, %c0_60, %c0_61] : memref<1x324x128xf32, #tpu.memory_space<vmem>>, vector<1x324x128xf32>
    %83 = vector.shape_cast %82 : vector<1x324x128xf32> to vector<324x128xf32>
    %84 = vector.shape_cast %68 : vector<324x128xf32> to vector<1x324x128xf32>
    tpu.vector_store %arg5[%c0_59, %c0_60, %c0_61], %84 {strides = array<i32>} : memref<1x324x128xf32, #tpu.memory_space<vmem>>, vector<1x324x128xf32>,
    return
  }
  func.func @transform_0(%arg0: i32) -> (i32, i32, i32) {
    %c0_i32 = arith.constant 0 : i32
    %c0_i32_0 = arith.constant 0 : i32
    %c0_i32_1 = arith.constant 0 : i32
    return %arg0, %c0_i32, %c0_i32_0 : i32, i32, i32
  }
  func.func @transform_1(%arg0: i32) -> (i32, i32) {
    %c0_i32 = arith.constant 0 : i32
    %c0_i32_0 = arith.constant 0 : i32
    %c0_i32_1 = arith.constant 0 : i32
    return %c0_i32, %c0_i32_0 : i32, i32
  }
  func.func @transform_2(%arg0: i32) -> (i32, i32, i32) {
    %c0_i32 = arith.constant 0 : i32
    %c0_i32_0 = arith.constant 0 : i32
    %c0_i32_1 = arith.constant 0 : i32
    %c0_i32_2 = arith.constant 0 : i32
    return %c0_i32, %c0_i32_0, %c0_i32_1 : i32, i32, i32
  }
  func.func @transform_3(%arg0: i32) -> (i32, i32, i32) {
    %c0_i32 = arith.constant 0 : i32
    %c0_i32_0 = arith.constant 0 : i32
    %c0_i32_1 = arith.constant 0 : i32
    %c0_i32_2 = arith.constant 0 : i32
    return %c0_i32, %c0_i32_0, %c0_i32_1 : i32, i32, i32
  }
  func.func @transform_4(%arg0: i32) -> (i32, i32, i32) {
    %c0_i32 = arith.constant 0 : i32
    %c0_i32_0 = arith.constant 0 : i32
    %c0_i32_1 = arith.constant 0 : i32
    return %arg0, %c0_i32, %c0_i32_0 : i32, i32, i32
  }
  func.func @transform_5(%arg0: i32) -> (i32, i32, i32) {
    %c0_i32 = arith.constant 0 : i32
    %c0_i32_0 = arith.constant 0 : i32
    %c0_i32_1 = arith.constant 0 : i32
    return %arg0, %c0_i32, %c0_i32_0 : i32, i32, i32
  }
}

module attributes {stable_mosaic.version = 11 : i64} {
  func.func @_epilogue_kernel(%arg0: i32, %arg1: memref<1x324x128xf32, #tpu.memory_space<vmem>>, %arg2: memref<1x362x4xf32, #tpu.memory_space<vmem>>, %arg3: memref<4x128xf32, #tpu.memory_space<vmem>>, %arg4: memref<4x128xf32, #tpu.memory_space<vmem>>, %arg5: memref<1x324x128xf32, #tpu.memory_space<vmem>>) attributes {dimension_semantics = [#tpu.dimension_semantics<parallel>], iteration_bounds = array<i64: 2>, scalar_prefetch = 0 : i64, scratch_operands = 0 : i64, tpu.core_type = #tpu.core_type<tc>, window_params = [{transform_indices = @transform_0, window_bounds = array<i64: 1, 324, 128>}, {transform_indices = @transform_1, window_bounds = array<i64: 1, 362, 4>}, {pipeline_mode = #tpu.pipeline_mode<synchronous>, transform_indices = @transform_2, window_bounds = array<i64: 4, 128>}, {pipeline_mode = #tpu.pipeline_mode<synchronous>, transform_indices = @transform_3, window_bounds = array<i64: 4, 128>}, {transform_indices = @transform_4, window_bounds = array<i64: 1, 324, 128>}]} {
    %c0 = arith.constant 0 : index
    %c19 = arith.constant 19 : index
    %c0_0 = arith.constant 0 : index
    %0 = vector.load %arg2[%c0, %c19, %c0_0] : memref<1x362x4xf32, #tpu.memory_space<vmem>>, vector<1x324x4xf32>
    %1 = vector.shape_cast %0 : vector<1x324x4xf32> to vector<324x4xf32>
    %c0_1 = arith.constant 0 : index
    %c0_2 = arith.constant 0 : index
    %2 = vector.load %arg3[%c0_1, %c0_2] : memref<4x128xf32, #tpu.memory_space<vmem>>, vector<4x128xf32>
    %cst = arith.constant dense<0.000000e+00> : vector<324x128xf32>
    %3 = tpu.matmul %1, %2, %cst {dimension_numbers = #tpu.dot_dimension_numbers<[1], [0], [0], [1], [0, 0, 1, 1], [], []>} : vector<324x4xf32>, vector<4x128xf32>, vector<324x128xf32> -> vector<324x128xf32>
    %c0_3 = arith.constant 0 : index
    %c0_4 = arith.constant 0 : index
    %4 = vector.load %arg4[%c0_3, %c0_4] : memref<4x128xf32, #tpu.memory_space<vmem>>, vector<1x128xf32>
    %c1 = arith.constant 1 : index
    %c0_5 = arith.constant 0 : index
    %5 = vector.load %arg4[%c1, %c0_5] : memref<4x128xf32, #tpu.memory_space<vmem>>, vector<1x128xf32>
    %c2 = arith.constant 2 : index
    %c0_6 = arith.constant 0 : index
    %6 = vector.load %arg4[%c2, %c0_6] : memref<4x128xf32, #tpu.memory_space<vmem>>, vector<1x128xf32>
    %c3 = arith.constant 3 : index
    %c0_7 = arith.constant 0 : index
    %7 = vector.load %arg4[%c3, %c0_7] : memref<4x128xf32, #tpu.memory_space<vmem>>, vector<1x128xf32>
    %c0_8 = arith.constant 0 : index
    %c0_9 = arith.constant 0 : index
    %c0_10 = arith.constant 0 : index
    %8 = vector.load %arg1[%c0_8, %c0_9, %c0_10] : memref<1x324x128xf32, #tpu.memory_space<vmem>>, vector<1x324x128xf32>
    %9 = vector.shape_cast %8 : vector<1x324x128xf32> to vector<324x128xf32>
    %10 = vector.broadcast %4 : vector<1x128xf32> to vector<324x128xf32>
    %11 = arith.mulf %9, %10 : vector<324x128xf32>
    %12 = vector.broadcast %5 : vector<1x128xf32> to vector<324x128xf32>
    %13 = arith.addf %11, %12 : vector<324x128xf32>
    %14 = vector.broadcast %6 : vector<1x128xf32> to vector<324x128xf32>
    %15 = arith.mulf %3, %14 : vector<324x128xf32>
    %16 = arith.addf %13, %15 : vector<324x128xf32>
    %17 = vector.broadcast %7 : vector<1x128xf32> to vector<324x128xf32>
    %18 = arith.addf %16, %17 : vector<324x128xf32>
    %cst_11 = arith.constant 0.000000e+00 : f32
    %19 = vector.broadcast %cst_11 : f32 to vector<324x128xf32>
    %20 = arith.maximumf %18, %19 : vector<324x128xf32>
    %c0_12 = arith.constant 0 : index
    %c0_13 = arith.constant 0 : index
    %c0_14 = arith.constant 0 : index
    %21 = vector.load %arg5[%c0_12, %c0_13, %c0_14] : memref<1x324x128xf32, #tpu.memory_space<vmem>>, vector<1x324x128xf32>
    %22 = vector.shape_cast %21 : vector<1x324x128xf32> to vector<324x128xf32>
    %23 = vector.shape_cast %20 : vector<324x128xf32> to vector<1x324x128xf32>
    tpu.vector_store %arg5[%c0_12, %c0_13, %c0_14], %23 {strides = array<i32>} : memref<1x324x128xf32, #tpu.memory_space<vmem>>, vector<1x324x128xf32>,
    return
  }
  func.func @transform_0(%arg0: i32) -> (i32, i32, i32) {
    %c0_i32 = arith.constant 0 : i32
    %c0_i32_0 = arith.constant 0 : i32
    %c0_i32_1 = arith.constant 0 : i32
    return %arg0, %c0_i32, %c0_i32_0 : i32, i32, i32
  }
  func.func @transform_1(%arg0: i32) -> (i32, i32, i32) {
    %c0_i32 = arith.constant 0 : i32
    %c0_i32_0 = arith.constant 0 : i32
    %c0_i32_1 = arith.constant 0 : i32
    return %arg0, %c0_i32, %c0_i32_0 : i32, i32, i32
  }
  func.func @transform_2(%arg0: i32) -> (i32, i32) {
    %c0_i32 = arith.constant 0 : i32
    %c0_i32_0 = arith.constant 0 : i32
    %c0_i32_1 = arith.constant 0 : i32
    return %c0_i32, %c0_i32_0 : i32, i32
  }
  func.func @transform_3(%arg0: i32) -> (i32, i32) {
    %c0_i32 = arith.constant 0 : i32
    %c0_i32_0 = arith.constant 0 : i32
    %c0_i32_1 = arith.constant 0 : i32
    return %c0_i32, %c0_i32_0 : i32, i32
  }
  func.func @transform_4(%arg0: i32) -> (i32, i32, i32) {
    %c0_i32 = arith.constant 0 : i32
    %c0_i32_0 = arith.constant 0 : i32
    %c0_i32_1 = arith.constant 0 : i32
    return %arg0, %c0_i32, %c0_i32_0 : i32, i32, i32
  }
}

</mosaic_0001>

<llo_original>
// kernel: double_conv.5
$region0: #{double_conv.5}
  #allocation0 [shape = 'u32[]', space=smem, size = 0x4, offset = 0x4, fixed_abs, tag = 'smem constant byte address 0x4 - core index']
  #allocation1 [shape = 'u32[144,128]{1,0:T(1,128)}', space=vmem, size = 0x12000, scoped, tag = 'internal scratch']
  %s0 = inlined_call_operand.vmem [shape: f32[2,324,128], index: 0, kind: input, shape index: {}]
  %s1 = inlined_call_operand.vmem [shape: f32[2,362,4], index: 1, kind: input, shape index: {}]
  %s2 = inlined_call_operand.vmem [shape: f32[4,128], index: 2, kind: input, shape index: {}]
  %s3 = inlined_call_operand.vmem [shape: f32[4,128], index: 3, kind: input, shape index: {}]
  %s4 = inlined_call_operand.vmem [shape: f32[2,324,128], index: 4, kind: output, shape index: {}]
  %s5 = sld [smem:[#allocation0]]
  $region49: #{double_conv.5} parent=0
    _
  %s7 = ssub.s32 1, %s5
  %s8 = scalar_select 0, %s7, %s5
  loop: start=0, step=1, limit=4
  $region2: #{double_conv.5} parent=0 // loop_pre_header
    _
  $region3: #{double_conv.5} parent=0 // loop_header
    %s10 = sphi 0, %s14
    %p11 = scmp.ge.s32.totalorder %s10, 4
    %s20 = sphi 0, %s22
    %s23 = sphi 0, %s20
    %s24 = sphi 0, %s23
    %s40 = sphi 0, %s24
    %s46 = sphi 0, %s48
    %s49 = sphi 0, %s46
    %s50 = sphi 0, %s49
    %s66 = sphi 0, %s50
    %s70 = sphi 0, %s70
    %s72 = sphi 0, %s70
    %s73 = sphi 0, %s72
    %s87 = sphi 0, %s73
    %s91 = sphi 0, %s91
    %s93 = sphi 0, %s91
    %s94 = sphi 0, %s93
    %s108 = sphi 0, %s94
    %s114 = sphi 0, %s116
    %s117 = sphi 0, %s114
    %s118 = sphi 0, %s117
    %s134 = sphi 0, %s118
  $region4: #{double_conv.5} parent=0 // loop_header_branch
    %13 = sbr.rel (%p11) target = $region8
  $region5: #{double_conv.5} parent=0 // loop_body
    %s15 = ssub.s32 %s10, 1
    %s16 = ssub.s32 %s10, 2
    %s17 = sadd.s32 %s10, 1
    %s18 = ssub.s32 %s10, %s17
    %p19 = scmp.eq.s32.totalorder %s18, 0
    %s21 = sadd.s32 %s20, 1
    %s22 = scalar_select %p19, %s20, %s21
    %p25 = pneg %p19
    %p26 = scmp.eq.s32.totalorder %s10, 1
    %p27 = por %p25, %p26
    %p28 = scmp.ne.s32.totalorder %s20, %s23
    %p29 = scmp.eq.s32.totalorder %s10, 0
    %p30 = por %p28, %p29
    %p31 = scmp.ne.s32.totalorder %s20, %s23
    %p32 = scmp.eq.s32.totalorder %s15, 1
    %p33 = por %p31, %p32
    %p34 = scmp.ne.s32.totalorder %s23, %s24
    %p35 = scmp.eq.s32.totalorder %s15, 0
    %p36 = por %p34, %p35
    %p37 = scmp.ne.s32.totalorder %s23, %s24
    %p38 = scmp.eq.s32.totalorder %s16, 1
    %p39 = por %p37, %p38
    %p41 = scmp.ne.s32.totalorder %s24, %s40
    %p42 = scmp.eq.s32.totalorder %s16, 0
    %p43 = por %p41, %p42
    %s44 = ssub.s32 %s10, %s17
    %p45 = scmp.eq.s32.totalorder %s44, 0
    %s47 = sadd.s32 %s46, 1
    %s48 = scalar_select %p45, %s46, %s47
    %p51 = pneg %p45
    %p52 = scmp.eq.s32.totalorder %s10, 1
    %p53 = por %p51, %p52
    %p54 = scmp.ne.s32.totalorder %s46, %s49
    %p55 = scmp.eq.s32.totalorder %s10, 0
    %p56 = por %p54, %p55
    %p57 = scmp.ne.s32.totalorder %s46, %s49
    %p58 = scmp.eq.s32.totalorder %s15, 1
    %p59 = por %p57, %p58
    %p60 = scmp.ne.s32.totalorder %s49, %s50
    %p61 = scmp.eq.s32.totalorder %s15, 0
    %p62 = por %p60, %p61
    %p63 = scmp.ne.s32.totalorder %s49, %s50
    %p64 = scmp.eq.s32.totalorder %s16, 1
    %p65 = por %p63, %p64
    %p67 = scmp.ne.s32.totalorder %s50, %s66
    %p68 = scmp.eq.s32.totalorder %s16, 0
    %p69 = por %p67, %p68
    %s71 = sadd.s32 %s70, 1
    %p74 = scmp.eq.s32.totalorder %s10, 1
    %p75 = scmp.ne.s32.totalorder %s70, %s72
    %p76 = scmp.eq.s32.totalorder %s10, 0
    %p77 = por %p75, %p76
    %p78 = scmp.ne.s32.totalorder %s70, %s72
    %p79 = scmp.eq.s32.totalorder %s15, 1
    %p80 = por %p78, %p79
    %p81 = scmp.ne.s32.totalorder %s72, %s73
    %p82 = scmp.eq.s32.totalorder %s15, 0
    %p83 = por %p81, %p82
    %p84 = scmp.ne.s32.totalorder %s72, %s73
    %p85 = scmp.eq.s32.totalorder %s16, 1
    %p86 = por %p84, %p85
    %p88 = scmp.ne.s32.totalorder %s73, %s87
    %p89 = scmp.eq.s32.totalorder %s16, 0
    %p90 = por %p88, %p89
    %s92 = sadd.s32 %s91, 1
    %p95 = scmp.eq.s32.totalorder %s10, 1
    %p96 = scmp.ne.s32.totalorder %s91, %s93
    %p97 = scmp.eq.s32.totalorder %s10, 0
    %p98 = por %p96, %p97
    %p99 = scmp.ne.s32.totalorder %s91, %s93
    %p100 = scmp.eq.s32.totalorder %s15, 1
    %p101 = por %p99, %p100
    %p102 = scmp.ne.s32.totalorder %s93, %s94
    %p103 = scmp.eq.s32.totalorder %s15, 0
    %p104 = por %p102, %p103
    %p105 = scmp.ne.s32.totalorder %s93, %s94
    %p106 = scmp.eq.s32.totalorder %s16, 1
    %p107 = por %p105, %p106
    %p109 = scmp.ne.s32.totalorder %s94, %s108
    %p110 = scmp.eq.s32.totalorder %s16, 0
    %p111 = por %p109, %p110
    %s112 = ssub.s32 %s10, %s17
    %p113 = scmp.eq.s32.totalorder %s112, 0
    %s115 = sadd.s32 %s114, 1
    %s116 = scalar_select %p113, %s114, %s115
    %p119 = pneg %p113
    %p120 = scmp.eq.s32.totalorder %s10, 1
    %p121 = por %p119, %p120
    %p122 = scmp.ne.s32.totalorder %s114, %s117
    %p123 = scmp.eq.s32.totalorder %s10, 0
    %p124 = por %p122, %p123
    %p125 = scmp.ne.s32.totalorder %s114, %s117
    %p126 = scmp.eq.s32.totalorder %s15, 1
    %p127 = por %p125, %p126
    %p128 = scmp.ne.s32.totalorder %s117, %s118
    %p129 = scmp.eq.s32.totalorder %s15, 0
    %p130 = por %p128, %p129
    %p131 = scmp.ne.s32.totalorder %s117, %s118
    %p132 = scmp.eq.s32.totalorder %s16, 1
    %p133 = por %p131, %p132
    %p135 = scmp.ne.s32.totalorder %s118, %s134
    %p136 = scmp.eq.s32.totalorder %s16, 0
    %p137 = por %p135, %p136
    %p138 = scmp.le.s32.totalorder 1, %s10
    %p139 = scmp.lt.s32.totalorder %s10, 3
    %p140 = pnand %p138, %p139
    %p141 = pneg %p140
    // Predicated region
    $region9: #{double_conv.5} parent=5 // pred_check
      _
    $region10: #{double_conv.5} parent=5 // pred_check_branch
      %143 = sbr.rel (%p140) target = $region12
    $region11: #{double_conv.5} parent=5 // pred_region
      %s144 = ssub.s32 %s10, 1
      // Predicated region
      $region13: #{double_conv.5} parent=11 // pred_check
        %p145 = pneg %p83
      $region14: #{double_conv.5} parent=11 // pred_check_branch
        %147 = sbr.rel (%p145) target = $region16
      $region15: #{double_conv.5} parent=11 // pred_region
        _
      $region16: #{double_conv.5} parent=11 // pred_fallthru
        _
      // Predicated region
      $region17: #{double_conv.5} parent=11 // pred_check
        %p148 = pneg %p104
      $region18: #{double_conv.5} parent=11 // pred_check_branch
        %150 = sbr.rel (%p148) target = $region20
      $region19: #{double_conv.5} parent=11 // pred_region
        _
      $region20: #{double_conv.5} parent=11 // pred_fallthru
        _
    $region12: #{double_conv.5} parent=5 // pred_fallthru
      _
    %p151 = scmp.lt.s32.totalorder %s10, 2
    // Predicated region
    $region21: #{double_conv.5} parent=5 // pred_check
      %p152 = pneg %p151
    $region22: #{double_conv.5} parent=5 // pred_check_branch
      %154 = sbr.rel (%p152) target = $region24
    $region23: #{double_conv.5} parent=5 // pred_region
      // Predicated region
      $region25: #{double_conv.5} parent=23 // pred_check
        %p155 = pneg %p30
      $region26: #{double_conv.5} parent=23 // pred_check_branch
        %157 = sbr.rel (%p155) target = $region28
      $region27: #{double_conv.5} parent=23 // pred_region
        %p158 = scmp.lt.s32.totalorder %s10, 1
        %s159 = scalar_select %p158, %s10, 1
        %s160 = smul.addr %s159, 41
        %s161 = smul.addr %s160, 8
        %s162 = scalar_lea.vmem %s0, %s161
      $region28: #{double_conv.5} parent=23 // pred_fallthru
        _
      // Predicated region
      $region29: #{double_conv.5} parent=23 // pred_check
        %p163 = pneg %p56
      $region30: #{double_conv.5} parent=23 // pred_check_branch
        %165 = sbr.rel (%p163) target = $region32
      $region31: #{double_conv.5} parent=23 // pred_region
        %p166 = scmp.lt.s32.totalorder %s10, 1
        %s167 = scalar_select %p166, %s10, 1
        %s168 = smul.addr %s167, 46
        %s169 = smul.addr %s168, 8
        %s170 = scalar_lea.vmem %s1, %s169
      $region32: #{double_conv.5} parent=23 // pred_fallthru
        _
    $region24: #{double_conv.5} parent=5 // pred_fallthru
      _
    %p171 = scmp.le.s32.totalorder 1, %s10
    %p172 = scmp.lt.s32.totalorder %s10, 3
    %p173 = pnand %p171, %p172
    %p174 = pneg %p173
    // Predicated region
    $region33: #{double_conv.5} parent=5 // pred_check
      _
    $region34: #{double_conv.5} parent=5 // pred_check_branch
      %176 = sbr.rel (%p173) target = $region36
    $region35: #{double_conv.5} parent=5 // pred_region
      %s177 = ssub.s32 %s10, 1
      %p178 = scmp.lt.s32.totalorder %s15, 1
      %s179 = scalar_select %p178, %s15, 1
      %s180 = smul.addr %s179, 41
      %s181 = smul.addr %s180, 8
      %s182 = scalar_lea.vmem %s0, %s181
      %p183 = pneg %p36
      %p184 = pneg %p33
      %p185 = scmp.lt.s32.totalorder %s15, 1
      %s186 = scalar_select %p185, %s15, 1
      %s187 = smul.addr %s186, 46
      %s188 = smul.addr %s187, 8
      %s189 = scalar_lea.vmem %s1, %s188
      %p190 = pneg %p62
      %p191 = pneg %p59
      %p192 = pneg %p83
      %p193 = pneg %p80
      %p194 = pneg %p104
      %p195 = pneg %p101
      %p196 = pneg %p130
      %p197 = pneg %p127
      %p198 = scmp.lt.s32.totalorder %s15, 1
      %s199 = scalar_select %p198, %s15, 1
      %s200 = smul.addr %s199, 41
      %s201 = smul.addr %s200, 8
      %s202 = scalar_lea.vmem %s4, %s201
      %p203 = scmp.lt.s32.totalorder %s15, 1
      %s204 = scalar_select %p203, %s15, 1
      %s205 = smul.addr %s204, 41
      %s206 = smul.addr %s205, 8
      %s207 = scalar_lea.vmem %s0, %s206
      %p208 = scmp.lt.s32.totalorder %s15, 1
      %s209 = scalar_select %p208, %s15, 1
      %s210 = smul.addr %s209, 46
      %s211 = smul.addr %s210, 8
      %s212 = scalar_lea.vmem %s1, %s211
      %p213 = scmp.lt.s32.totalorder %s15, 1
      %s214 = scalar_select %p213, %s15, 1
      %s215 = smul.addr %s214, 41
      %s216 = smul.addr %s215, 8
      %s217 = scalar_lea.vmem %s4, %s216
      %v218 = vld [vmem:[%s212 + $0x13] sm:$0xff]
      %v219 = vld [vmem:[%s212 + $0x1b] sm:$0xff]
      %v220 = vld [vmem:[%s212 + $0x23] sm:$0xff]
      %v221 = vld [vmem:[%s212 + $0x2b] sm:$0xff]
      %v222 = vld [vmem:[%s212 + $0x33] sm:$0xff]
      %v223 = vld [vmem:[%s212 + $0x3b] sm:$0xff]
      %v224 = vld [vmem:[%s212 + $0x43] sm:$0xff]
      %v225 = vld [vmem:[%s212 + $0x4b] sm:$0xff]
      %v226 = vld [vmem:[%s212 + $0x53] sm:$0xff]
      %v227 = vld [vmem:[%s212 + $0x5b] sm:$0xff]
      %v228 = vld [vmem:[%s212 + $0x63] sm:$0xff]
      %v229 = vld [vmem:[%s212 + $0x6b] sm:$0xff]
      %v230 = vld [vmem:[%s212 + $0x73] sm:$0xff]
      %v231 = vld [vmem:[%s212 + $0x7b] sm:$0xff]
      %v232 = vld [vmem:[%s212 + $0x83] sm:$0xff]
      %v233 = vld [vmem:[%s212 + $0x8b] sm:$0xff]
      %v234 = vld [vmem:[%s212 + $0x93] sm:$0xff]
      %v235 = vld [vmem:[%s212 + $0x9b] sm:$0xff]
      %v236 = vld [vmem:[%s212 + $0xa3] sm:$0xff]
      %v237 = vld [vmem:[%s212 + $0xab] sm:$0xff]
      %v238 = vld [vmem:[%s212 + $0xb3] sm:$0xff]
      %v239 = vld [vmem:[%s212 + $0xbb] sm:$0xff]
      %v240 = vld [vmem:[%s212 + $0xc3] sm:$0xff]
      %v241 = vld [vmem:[%s212 + $0xcb] sm:$0xff]
      %v242 = vld [vmem:[%s212 + $0xd3] sm:$0xff]
      %v243 = vld [vmem:[%s212 + $0xdb] sm:$0xff]
      %v244 = vld [vmem:[%s212 + $0xe3] sm:$0xff]
      %v245 = vld [vmem:[%s212 + $0xeb] sm:$0xff]
      %v246 = vld [vmem:[%s212 + $0xf3] sm:$0xff]
      %v247 = vld [vmem:[%s212 + $0xfb] sm:$0xff]
      %v248 = vld [vmem:[%s212 + $0x103] sm:$0xff]
      %v249 = vld [vmem:[%s212 + $0x10b] sm:$0xff]
      %v250 = vld [vmem:[%s212 + $0x113] sm:$0xff]
      %v251 = vld [vmem:[%s212 + $0x11b] sm:$0xff]
      %v252 = vld [vmem:[%s212 + $0x123] sm:$0xff]
      %v253 = vld [vmem:[%s212 + $0x12b] sm:$0xff]
      %v254 = vld [vmem:[%s212 + $0x133] sm:$0xff]
      %v255 = vld [vmem:[%s212 + $0x13b] sm:$0xff]
      %v256 = vld [vmem:[%s212 + $0x143] sm:$0xff]
      %v257 = vld [vmem:[%s212 + $0x14b] sm:$0xff]
      %v258 = vld [vmem:[%s212 + $0x153] sm:$0xf]
      %v259 = vld [vmem:[%s2] sm:$0xf]
      %vm260 = vcmask 31744
      %v262 = vsel %vm260, %v218, 0
      %v265 = vsel %vm260, %v219, 0
      %v268 = vsel %vm260, %v220, 0
      %v271 = vsel %vm260, %v221, 0
      %v274 = vsel %vm260, %v222, 0
      %v277 = vsel %vm260, %v223, 0
      %v280 = vsel %vm260, %v224, 0
      %v283 = vsel %vm260, %v225, 0
      %v286 = vsel %vm260, %v226, 0
      %v289 = vsel %vm260, %v227, 0
      %v292 = vsel %vm260, %v228, 0
      %v295 = vsel %vm260, %v229, 0
      %v298 = vsel %vm260, %v230, 0
      %v301 = vsel %vm260, %v231, 0
      %v304 = vsel %vm260, %v232, 0
      %v307 = vsel %vm260, %v233, 0
      %v310 = vsel %vm260, %v234, 0
      %v313 = vsel %vm260, %v235, 0
      %v316 = vsel %vm260, %v236, 0
      %v319 = vsel %vm260, %v237, 0
      %v322 = vsel %vm260, %v238, 0
      %v325 = vsel %vm260, %v239, 0
      %v328 = vsel %vm260, %v240, 0
      %v331 = vsel %vm260, %v241, 0
      %v334 = vsel %vm260, %v242, 0
      %v337 = vsel %vm260, %v243, 0
      %v340 = vsel %vm260, %v244, 0
      %v343 = vsel %vm260, %v245, 0
      %v346 = vsel %vm260, %v246, 0
      %v349 = vsel %vm260, %v247, 0
      %v352 = vsel %vm260, %v248, 0
      %v355 = vsel %vm260, %v249, 0
      %v358 = vsel %vm260, %v250, 0
      %v361 = vsel %vm260, %v251, 0
      %v364 = vsel %vm260, %v252, 0
      %v367 = vsel %vm260, %v253, 0
      %v370 = vsel %vm260, %v254, 0
      %v373 = vsel %vm260, %v255, 0
      %v376 = vsel %vm260, %v256, 0
      %v379 = vsel %vm260, %v257, 0
      %v382 = vsel %vm260, %v258, 0
      %vm384 = vcmask 1043456
      %v386 = vsel %vm384, %v259, 0
      %388 = vmatprep.subr.mxu0 0.0
      %389 = vmatpush1.msra.mxu0 0.0
      %390 = vmatprep.subr.mxu0 0.0
      %391 = vmatpush1.msra.mxu0 0.0
      %392 = vmatprep.subr.mxu0 0.0
      %393 = vmatpush1.msra.mxu0 0.0
      %394 = vmatprep.subr.mxu0 0.0
      %395 = vmatpush1.msra.mxu0 0.0
      %396 = vmatprep.subr.mxu0 0.0
      %397 = vmatpush1.msra.mxu0 0.0
      %398 = vmatprep.subr.mxu0 0.0
      %399 = vmatpush1.msra.mxu0 0.0
      %400 = vmatprep.subr.mxu0 0.0
      %401 = vmatpush1.msra.mxu0 0.0
      %402 = vmatprep.subr.mxu0 0.0
      %403 = vmatpush1.msra.mxu0 0.0
      %404 = vmatprep.subr.mxu0 0.0
      %405 = vmatpush1.msra.mxu0 0.0
      %406 = vmatprep.subr.mxu0 0.0
      %407 = vmatpush1.msra.mxu0 0.0
      %408 = vmatprep.subr.mxu0 0.0
      %409 = vmatpush1.msra.mxu0 0.0
      %410 = vmatprep.subr.mxu0 0.0
      %411 = vmatpush1.msra.mxu0 0.0
      %412 = vmatprep.subr.mxu0 0.0
      %413 = vmatpush1.msra.mxu0 0.0
      %414 = vmatprep.subr.mxu0 0.0
      %415 = vmatpush1.msra.mxu0 0.0
      %416 = vmatprep.subr.mxu0 0.0
      %417 = vmatpush1.msra.mxu0 0.0
      %418 = vmatprep.subr.mxu0 0.0
      %419 = vmatpush1.msra.mxu0 %v386
      %420 = vmatprep.subr.mxu0 0.0
      %421 = vmatpush2.msra.mxu0 0.0
      %422 = vmatprep.subr.mxu0 0.0
      %423 = vmatpush2.msra.mxu0 0.0
      %424 = vmatprep.subr.mxu0 0.0
      %425 = vmatpush2.msra.mxu0 0.0
      %426 = vmatprep.subr.mxu0 0.0
      %427 = vmatpush2.msra.mxu0 0.0
      %428 = vmatprep.subr.mxu0 0.0
      %429 = vmatpush2.msra.mxu0 0.0
      %430 = vmatprep.subr.mxu0 0.0
      %431 = vmatpush2.msra.mxu0 0.0
      %432 = vmatprep.subr.mxu0 0.0
      %433 = vmatpush2.msra.mxu0 0.0
      %434 = vmatprep.subr.mxu0 0.0
      %435 = vmatpush2.msra.mxu0 0.0
      %436 = vmatprep.subr.mxu0 0.0
      %437 = vmatpush2.msra.mxu0 0.0
      %438 = vmatprep.subr.mxu0 0.0
      %439 = vmatpush2.msra.mxu0 0.0
      %440 = vmatprep.subr.mxu0 0.0
      %441 = vmatpush2.msra.mxu0 0.0
      %442 = vmatprep.subr.mxu0 0.0
      %443 = vmatpush2.msra.mxu0 0.0
      %444 = vmatprep.subr.mxu0 0.0
      %445 = vmatpush2.msra.mxu0 0.0
      %446 = vmatprep.subr.mxu0 0.0
      %447 = vmatpush2.msra.mxu0 0.0
      %448 = vmatprep.subr.mxu0 0.0
      %449 = vmatpush2.msra.mxu0 0.0
      %450 = vmatprep.subr.mxu0 0.0
      %451 = vmatpush2.msra.mxu0 0.0
      %452 = vmatprep.mubr.f32.mxu0 0.0
      %453 = vmatmul.mubr.f32.gmra.mxu0 %v262
      %v454 = vpop.f32.mrf.mxu0
      %v455 = vadd.f32 0.0, %v454
      %v456 = vpop.f32.mrf.mxu0
      %457 = vmatprep.mubr.f32.mxu0 0.0
      %458 = vmatmul.mubr.f32.gmra.mxu0 %v265
      %v459 = vpop.f32.mrf.mxu0
      %v460 = vadd.f32 0.0, %v459
      %v461 = vpop.f32.mrf.mxu0
      %462 = vmatprep.mubr.f32.mxu0 0.0
      %463 = vmatmul.mubr.f32.gmra.mxu0 %v268
      %v464 = vpop.f32.mrf.mxu0
      %v465 = vadd.f32 0.0, %v464
      %v466 = vpop.f32.mrf.mxu0
      %467 = vmatprep.mubr.f32.mxu0 0.0
      %468 = vmatmul.mubr.f32.gmra.mxu0 %v271
      %v469 = vpop.f32.mrf.mxu0
      %v470 = vadd.f32 0.0, %v469
      %v471 = vpop.f32.mrf.mxu0
      %472 = vmatprep.mubr.f32.mxu0 0.0
      %473 = vmatmul.mubr.f32.gmra.mxu0 %v274
      %v474 = vpop.f32.mrf.mxu0
      %v475 = vadd.f32 0.0, %v474
      %v476 = vpop.f32.mrf.mxu0
      %477 = vmatprep.mubr.f32.mxu0 0.0
      %478 = vmatmul.mubr.f32.gmra.mxu0 %v277
      %v479 = vpop.f32.mrf.mxu0
      %v480 = vadd.f32 0.0, %v479
      %v481 = vpop.f32.mrf.mxu0
      %482 = vmatprep.mubr.f32.mxu0 0.0
      %483 = vmatmul.mubr.f32.gmra.mxu0 %v280
      %v484 = vpop.f32.mrf.mxu0
      %v485 = vadd.f32 0.0, %v484
      %v486 = vpop.f32.mrf.mxu0
      %487 = vmatprep.mubr.f32.mxu0 0.0
      %488 = vmatmul.mubr.f32.gmra.mxu0 %v283
      %v489 = vpop.f32.mrf.mxu0
      %v490 = vadd.f32 0.0, %v489
      %v491 = vpop.f32.mrf.mxu0
      %492 = vmatprep.mubr.f32.mxu0 0.0
      %493 = vmatmul.mubr.f32.gmra.mxu0 %v286
      %v494 = vpop.f32.mrf.mxu0
      %v495 = vadd.f32 0.0, %v494
      %v496 = vpop.f32.mrf.mxu0
      %497 = vmatprep.mubr.f32.mxu0 0.0
      %498 = vmatmul.mubr.f32.gmra.mxu0 %v289
      %v499 = vpop.f32.mrf.mxu0
      %v500 = vadd.f32 0.0, %v499
      %v501 = vpop.f32.mrf.mxu0
      %502 = vmatprep.mubr.f32.mxu0 0.0
      %503 = vmatmul.mubr.f32.gmra.mxu0 %v292
      %v504 = vpop.f32.mrf.mxu0
      %v505 = vadd.f32 0.0, %v504
      %v506 = vpop.f32.mrf.mxu0
      %507 = vmatprep.mubr.f32.mxu0 0.0
      %508 = vmatmul.mubr.f32.gmra.mxu0 %v295
      %v509 = vpop.f32.mrf.mxu0
      %v510 = vadd.f32 0.0, %v509
      %v511 = vpop.f32.mrf.mxu0
      %512 = vmatprep.mubr.f32.mxu0 0.0
      %513 = vmatmul.mubr.f32.gmra.mxu0 %v298
      %v514 = vpop.f32.mrf.mxu0
      %v515 = vadd.f32 0.0, %v514
      %v516 = vpop.f32.mrf.mxu0
      %517 = vmatprep.mubr.f32.mxu0 0.0
      %518 = vmatmul.mubr.f32.gmra.mxu0 %v301
      %v519 = vpop.f32.mrf.mxu0
      %v520 = vadd.f32 0.0, %v519
      %v521 = vpop.f32.mrf.mxu0
      %522 = vmatprep.mubr.f32.mxu0 0.0
      %523 = vmatmul.mubr.f32.gmra.mxu0 %v304
      %v524 = vpop.f32.mrf.mxu0
      %v525 = vadd.f32 0.0, %v524
      %v526 = vpop.f32.mrf.mxu0
      %527 = vmatprep.mubr.f32.mxu0 0.0
      %528 = vmatmul.mubr.f32.gmra.mxu0 %v307
      %v529 = vpop.f32.mrf.mxu0
      %v530 = vadd.f32 0.0, %v529
      %v531 = vpop.f32.mrf.mxu0
      %532 = vmatprep.mubr.f32.mxu0 0.0
      %533 = vmatmul.mubr.f32.gmra.mxu0 %v310
      %v534 = vpop.f32.mrf.mxu0
      %v535 = vadd.f32 0.0, %v534
      %v536 = vpop.f32.mrf.mxu0
      %537 = vmatprep.mubr.f32.mxu0 0.0
      %538 = vmatmul.mubr.f32.gmra.mxu0 %v313
      %v539 = vpop.f32.mrf.mxu0
      %v540 = vadd.f32 0.0, %v539
      %v541 = vpop.f32.mrf.mxu0
      %542 = vmatprep.mubr.f32.mxu0 0.0
      %543 = vmatmul.mubr.f32.gmra.mxu0 %v316
      %v544 = vpop.f32.mrf.mxu0
      %v545 = vadd.f32 0.0, %v544
      %v546 = vpop.f32.mrf.mxu0
      %547 = vmatprep.mubr.f32.mxu0 0.0
      %548 = vmatmul.mubr.f32.gmra.mxu0 %v319
      %v549 = vpop.f32.mrf.mxu0
      %v550 = vadd.f32 0.0, %v549
      %v551 = vpop.f32.mrf.mxu0
      %552 = vmatprep.mubr.f32.mxu0 0.0
      %553 = vmatmul.mubr.f32.gmra.mxu0 %v322
      %v554 = vpop.f32.mrf.mxu0
      %v555 = vadd.f32 0.0, %v554
      %v556 = vpop.f32.mrf.mxu0
      %557 = vmatprep.mubr.f32.mxu0 0.0
      %558 = vmatmul.mubr.f32.gmra.mxu0 %v325
      %v559 = vpop.f32.mrf.mxu0
      %v560 = vadd.f32 0.0, %v559
      %v561 = vpop.f32.mrf.mxu0
      %562 = vmatprep.mubr.f32.mxu0 0.0
      %563 = vmatmul.mubr.f32.gmra.mxu0 %v328
      %v564 = vpop.f32.mrf.mxu0
      %v565 = vadd.f32 0.0, %v564
      %v566 = vpop.f32.mrf.mxu0
      %567 = vmatprep.mubr.f32.mxu0 0.0
      %568 = vmatmul.mubr.f32.gmra.mxu0 %v331
      %v569 = vpop.f32.mrf.mxu0
      %v570 = vadd.f32 0.0, %v569
      %v571 = vpop.f32.mrf.mxu0
      %572 = vmatprep.mubr.f32.mxu0 0.0
      %573 = vmatmul.mubr.f32.gmra.mxu0 %v334
      %v574 = vpop.f32.mrf.mxu0
      %v575 = vadd.f32 0.0, %v574
      %v576 = vpop.f32.mrf.mxu0
      %577 = vmatprep.mubr.f32.mxu0 0.0
      %578 = vmatmul.mubr.f32.gmra.mxu0 %v337
      %v579 = vpop.f32.mrf.mxu0
      %v580 = vadd.f32 0.0, %v579
      %v581 = vpop.f32.mrf.mxu0
      %582 = vmatprep.mubr.f32.mxu0 0.0
      %583 = vmatmul.mubr.f32.gmra.mxu0 %v340
      %v584 = vpop.f32.mrf.mxu0
      %v585 = vadd.f32 0.0, %v584
      %v586 = vpop.f32.mrf.mxu0
      %587 = vmatprep.mubr.f32.mxu0 0.0
      %588 = vmatmul.mubr.f32.gmra.mxu0 %v343
      %v589 = vpop.f32.mrf.mxu0
      %v590 = vadd.f32 0.0, %v589
      %v591 = vpop.f32.mrf.mxu0
      %592 = vmatprep.mubr.f32.mxu0 0.0
      %593 = vmatmul.mubr.f32.gmra.mxu0 %v346
      %v594 = vpop.f32.mrf.mxu0
      %v595 = vadd.f32 0.0, %v594
      %v596 = vpop.f32.mrf.mxu0
      %597 = vmatprep.mubr.f32.mxu0 0.0
      %598 = vmatmul.mubr.f32.gmra.mxu0 %v349
      %v599 = vpop.f32.mrf.mxu0
      %v600 = vadd.f32 0.0, %v599
      %v601 = vpop.f32.mrf.mxu0
      %602 = vmatprep.mubr.f32.mxu0 0.0
      %603 = vmatmul.mubr.f32.gmra.mxu0 %v352
      %v604 = vpop.f32.mrf.mxu0
      %v605 = vadd.f32 0.0, %v604
      %v606 = vpop.f32.mrf.mxu0
      %607 = vmatprep.mubr.f32.mxu0 0.0
      %608 = vmatmul.mubr.f32.gmra.mxu0 %v355
      %v609 = vpop.f32.mrf.mxu0
      %v610 = vadd.f32 0.0, %v609
      %v611 = vpop.f32.mrf.mxu0
      %612 = vmatprep.mubr.f32.mxu0 0.0
      %613 = vmatmul.mubr.f32.gmra.mxu0 %v358
      %v614 = vpop.f32.mrf.mxu0
      %v615 = vadd.f32 0.0, %v614
      %v616 = vpop.f32.mrf.mxu0
      %617 = vmatprep.mubr.f32.mxu0 0.0
      %618 = vmatmul.mubr.f32.gmra.mxu0 %v361
      %v619 = vpop.f32.mrf.mxu0
      %v620 = vadd.f32 0.0, %v619
      %v621 = vpop.f32.mrf.mxu0
      %622 = vmatprep.mubr.f32.mxu0 0.0
      %623 = vmatmul.mubr.f32.gmra.mxu0 %v364
      %v624 = vpop.f32.mrf.mxu0
      %v625 = vadd.f32 0.0, %v624
      %v626 = vpop.f32.mrf.mxu0
      %627 = vmatprep.mubr.f32.mxu0 0.0
      %628 = vmatmul.mubr.f32.gmra.mxu0 %v367
      %v629 = vpop.f32.mrf.mxu0
      %v630 = vadd.f32 0.0, %v629
      %v631 = vpop.f32.mrf.mxu0
      %632 = vmatprep.mubr.f32.mxu0 0.0
      %633 = vmatmul.mubr.f32.gmra.mxu0 %v370
      %v634 = vpop.f32.mrf.mxu0
      %v635 = vadd.f32 0.0, %v634
      %v636 = vpop.f32.mrf.mxu0
      %637 = vmatprep.mubr.f32.mxu0 0.0
      %638 = vmatmul.mubr.f32.gmra.mxu0 %v373
      %v639 = vpop.f32.mrf.mxu0
      %v640 = vadd.f32 0.0, %v639
      %v641 = vpop.f32.mrf.mxu0
      %642 = vmatprep.mubr.f32.mxu0 0.0
      %643 = vmatmul.mubr.f32.gmra.mxu0 %v376
      %v644 = vpop.f32.mrf.mxu0
      %v645 = vadd.f32 0.0, %v644
      %v646 = vpop.f32.mrf.mxu0
      %647 = vmatprep.mubr.f32.mxu0 0.0
      %648 = vmatmul.mubr.f32.gmra.mxu0 %v379
      %v649 = vpop.f32.mrf.mxu0
      %v650 = vadd.f32 0.0, %v649
      %v651 = vpop.f32.mrf.mxu0
      %652 = vmatprep.mubr.f32.mxu0 0.0
      %653 = vmatmul.mubr.f32.gmra.mxu0 %v382
      %v654 = vpop.f32.mrf.mxu0
      %v655 = vadd.f32 0.0, %v654
      %v656 = vpop.f32.mrf.mxu0
      %657 = vdwg.mxu0
      %v658 = vld [vmem:[%s3] sm:$0x1]
      %v659 = vld [vmem:[%s3 + $0x1] sm:$0x1]
      %v660 = vld [vmem:[%s3 + $0x2] sm:$0x1]
      %v661 = vld [vmem:[%s3 + $0x3] sm:$0x1]
      %v662 = vld [vmem:[%s207] sm:$0xff]
      %v663 = vld [vmem:[%s207 + $0x8] sm:$0xff]
      %v664 = vld [vmem:[%s207 + $0x10] sm:$0xff]
      %v665 = vld [vmem:[%s207 + $0x18] sm:$0xff]
      %v666 = vld [vmem:[%s207 + $0x20] sm:$0xff]
      %v667 = vld [vmem:[%s207 + $0x28] sm:$0xff]
      %v668 = vld [vmem:[%s207 + $0x30] sm:$0xff]
      %v669 = vld [vmem:[%s207 + $0x38] sm:$0xff]
      %v670 = vld [vmem:[%s207 + $0x40] sm:$0xff]
      %v671 = vld [vmem:[%s207 + $0x48] sm:$0xff]
      %v672 = vld [vmem:[%s207 + $0x50] sm:$0xff]
      %v673 = vld [vmem:[%s207 + $0x58] sm:$0xff]
      %v674 = vld [vmem:[%s207 + $0x60] sm:$0xff]
      %v675 = vld [vmem:[%s207 + $0x68] sm:$0xff]
      %v676 = vld [vmem:[%s207 + $0x70] sm:$0xff]
      %v677 = vld [vmem:[%s207 + $0x78] sm:$0xff]
      %v678 = vld [vmem:[%s207 + $0x80] sm:$0xff]
      %v679 = vld [vmem:[%s207 + $0x88] sm:$0xff]
      %v680 = vld [vmem:[%s207 + $0x90] sm:$0xff]
      %v681 = vld [vmem:[%s207 + $0x98] sm:$0xff]
      %v682 = vld [vmem:[%s207 + $0xa0] sm:$0xff]
      %v683 = vld [vmem:[%s207 + $0xa8] sm:$0xff]
      %v684 = vld [vmem:[%s207 + $0xb0] sm:$0xff]
      %v685 = vld [vmem:[%s207 + $0xb8] sm:$0xff]
      %v686 = vld [vmem:[%s207 + $0xc0] sm:$0xff]
      %v687 = vld [vmem:[%s207 + $0xc8] sm:$0xff]
      %v688 = vld [vmem:[%s207 + $0xd0] sm:$0xff]
      %v689 = vld [vmem:[%s207 + $0xd8] sm:$0xff]
      %v690 = vld [vmem:[%s207 + $0xe0] sm:$0xff]
      %v691 = vld [vmem:[%s207 + $0xe8] sm:$0xff]
      %v692 = vld [vmem:[%s207 + $0xf0] sm:$0xff]
      %v693 = vld [vmem:[%s207 + $0xf8] sm:$0xff]
      %v694 = vld [vmem:[%s207 + $0x100] sm:$0xff]
      %v695 = vld [vmem:[%s207 + $0x108] sm:$0xff]
      %v696 = vld [vmem:[%s207 + $0x110] sm:$0xff]
      %v697 = vld [vmem:[%s207 + $0x118] sm:$0xff]
      %v698 = vld [vmem:[%s207 + $0x120] sm:$0xff]
      %v699 = vld [vmem:[%s207 + $0x128] sm:$0xff]
      %v700 = vld [vmem:[%s207 + $0x130] sm:$0xff]
      %v701 = vld [vmem:[%s207 + $0x138] sm:$0xff]
      %v702 = vld [vmem:[%s207 + $0x140] sm:$0xf]
      %v703 = vlaneseq
      %v704 = vshrl.u32 %v703, 7
      %v705 = vsub.s32 0, %v704
      %v706 = vrot.slane %v658, %v705
      %v707 = vmul.f32 %v662, %v706
      %v708 = vmul.f32 %v663, %v706
      %v709 = vmul.f32 %v664, %v706
      %v710 = vmul.f32 %v665, %v706
      %v711 = vmul.f32 %v666, %v706
      %v712 = vmul.f32 %v667, %v706
      %v713 = vmul.f32 %v668, %v706
      %v714 = vmul.f32 %v669, %v706
      %v715 = vmul.f32 %v670, %v706
      %v716 = vmul.f32 %v671, %v706
      %v717 = vmul.f32 %v672, %v706
      %v718 = vmul.f32 %v673, %v706
      %v719 = vmul.f32 %v674, %v706
      %v720 = vmul.f32 %v675, %v706
      %v721 = vmul.f32 %v676, %v706
      %v722 = vmul.f32 %v677, %v706
      %v723 = vmul.f32 %v678, %v706
      %v724 = vmul.f32 %v679, %v706
      %v725 = vmul.f32 %v680, %v706
      %v726 = vmul.f32 %v681, %v706
      %v727 = vmul.f32 %v682, %v706
      %v728 = vmul.f32 %v683, %v706
      %v729 = vmul.f32 %v684, %v706
      %v730 = vmul.f32 %v685, %v706
      %v731 = vmul.f32 %v686, %v706
      %v732 = vmul.f32 %v687, %v706
      %v733 = vmul.f32 %v688, %v706
      %v734 = vmul.f32 %v689, %v706
      %v735 = vmul.f32 %v690, %v706
      %v736 = vmul.f32 %v691, %v706
      %v737 = vmul.f32 %v692, %v706
      %v738 = vmul.f32 %v693, %v706
      %v739 = vmul.f32 %v694, %v706
      %v740 = vmul.f32 %v695, %v706
      %v741 = vmul.f32 %v696, %v706
      %v742 = vmul.f32 %v697, %v706
      %v743 = vmul.f32 %v698, %v706
      %v744 = vmul.f32 %v699, %v706
      %v745 = vmul.f32 %v700, %v706
      %v746 = vmul.f32 %v701, %v706
      %v747 = vmul.f32 %v702, %v706
      %v748 = vlaneseq
      %v749 = vshrl.u32 %v748, 7
      %v750 = vsub.s32 0, %v749
      %v751 = vrot.slane %v659, %v750
      %v752 = vadd.f32 %v707, %v751
      %v753 = vadd.f32 %v708, %v751
      %v754 = vadd.f32 %v709, %v751
      %v755 = vadd.f32 %v710, %v751
      %v756 = vadd.f32 %v711, %v751
      %v757 = vadd.f32 %v712, %v751
      %v758 = vadd.f32 %v713, %v751
      %v759 = vadd.f32 %v714, %v751
      %v760 = vadd.f32 %v715, %v751
      %v761 = vadd.f32 %v716, %v751
      %v762 = vadd.f32 %v717, %v751
      %v763 = vadd.f32 %v718, %v751
      %v764 = vadd.f32 %v719, %v751
      %v765 = vadd.f32 %v720, %v751
      %v766 = vadd.f32 %v721, %v751
      %v767 = vadd.f32 %v722, %v751
      %v768 = vadd.f32 %v723, %v751
      %v769 = vadd.f32 %v724, %v751
      %v770 = vadd.f32 %v725, %v751
      %v771 = vadd.f32 %v726, %v751
      %v772 = vadd.f32 %v727, %v751
      %v773 = vadd.f32 %v728, %v751
      %v774 = vadd.f32 %v729, %v751
      %v775 = vadd.f32 %v730, %v751
      %v776 = vadd.f32 %v731, %v751
      %v777 = vadd.f32 %v732, %v751
      %v778 = vadd.f32 %v733, %v751
      %v779 = vadd.f32 %v734, %v751
      %v780 = vadd.f32 %v735, %v751
      %v781 = vadd.f32 %v736, %v751
      %v782 = vadd.f32 %v737, %v751
      %v783 = vadd.f32 %v738, %v751
      %v784 = vadd.f32 %v739, %v751
      %v785 = vadd.f32 %v740, %v751
      %v786 = vadd.f32 %v741, %v751
      %v787 = vadd.f32 %v742, %v751
      %v788 = vadd.f32 %v743, %v751
      %v789 = vadd.f32 %v744, %v751
      %v790 = vadd.f32 %v745, %v751
      %v791 = vadd.f32 %v746, %v751
      %v792 = vadd.f32 %v747, %v751
      %v793 = vlaneseq
      %v794 = vshrl.u32 %v793, 7
      %v795 = vsub.s32 0, %v794
      %v796 = vrot.slane %v660, %v795
      %v797 = vmul.f32 %v455, %v796
      %v798 = vmul.f32 %v460, %v796
      %v799 = vmul.f32 %v465, %v796
      %v800 = vmul.f32 %v470, %v796
      %v801 = vmul.f32 %v475, %v796
      %v802 = vmul.f32 %v480, %v796
      %v803 = vmul.f32 %v485, %v796
      %v804 = vmul.f32 %v490, %v796
      %v805 = vmul.f32 %v495, %v796
      %v806 = vmul.f32 %v500, %v796
      %v807 = vmul.f32 %v505, %v796
      %v808 = vmul.f32 %v510, %v796
      %v809 = vmul.f32 %v515, %v796
      %v810 = vmul.f32 %v520, %v796
      %v811 = vmul.f32 %v525, %v796
      %v812 = vmul.f32 %v530, %v796
      %v813 = vmul.f32 %v535, %v796
      %v814 = vmul.f32 %v540, %v796
      %v815 = vmul.f32 %v545, %v796
      %v816 = vmul.f32 %v550, %v796
      %v817 = vmul.f32 %v555, %v796
      %v818 = vmul.f32 %v560, %v796
      %v819 = vmul.f32 %v565, %v796
      %v820 = vmul.f32 %v570, %v796
      %v821 = vmul.f32 %v575, %v796
      %v822 = vmul.f32 %v580, %v796
      %v823 = vmul.f32 %v585, %v796
      %v824 = vmul.f32 %v590, %v796
      %v825 = vmul.f32 %v595, %v796
      %v826 = vmul.f32 %v600, %v796
      %v827 = vmul.f32 %v605, %v796
      %v828 = vmul.f32 %v610, %v796
      %v829 = vmul.f32 %v615, %v796
      %v830 = vmul.f32 %v620, %v796
      %v831 = vmul.f32 %v625, %v796
      %v832 = vmul.f32 %v630, %v796
      %v833 = vmul.f32 %v635, %v796
      %v834 = vmul.f32 %v640, %v796
      %v835 = vmul.f32 %v645, %v796
      %v836 = vmul.f32 %v650, %v796
      %v837 = vmul.f32 %v655, %v796
      %v838 = vadd.f32 %v752, %v797
      %v839 = vadd.f32 %v753, %v798
      %v840 = vadd.f32 %v754, %v799
      %v841 = vadd.f32 %v755, %v800
      %v842 = vadd.f32 %v756, %v801
      %v843 = vadd.f32 %v757, %v802
      %v844 = vadd.f32 %v758, %v803
      %v845 = vadd.f32 %v759, %v804
      %v846 = vadd.f32 %v760, %v805
      %v847 = vadd.f32 %v761, %v806
      %v848 = vadd.f32 %v762, %v807
      %v849 = vadd.f32 %v763, %v808
      %v850 = vadd.f32 %v764, %v809
      %v851 = vadd.f32 %v765, %v810
      %v852 = vadd.f32 %v766, %v811
      %v853 = vadd.f32 %v767, %v812
      %v854 = vadd.f32 %v768, %v813
      %v855 = vadd.f32 %v769, %v814
      %v856 = vadd.f32 %v770, %v815
      %v857 = vadd.f32 %v771, %v816
      %v858 = vadd.f32 %v772, %v817
      %v859 = vadd.f32 %v773, %v818
      %v860 = vadd.f32 %v774, %v819
      %v861 = vadd.f32 %v775, %v820
      %v862 = vadd.f32 %v776, %v821
      %v863 = vadd.f32 %v777, %v822
      %v864 = vadd.f32 %v778, %v823
      %v865 = vadd.f32 %v779, %v824
      %v866 = vadd.f32 %v780, %v825
      %v867 = vadd.f32 %v781, %v826
      %v868 = vadd.f32 %v782, %v827
      %v869 = vadd.f32 %v783, %v828
      %v870 = vadd.f32 %v784, %v829
      %v871 = vadd.f32 %v785, %v830
      %v872 = vadd.f32 %v786, %v831
      %v873 = vadd.f32 %v787, %v832
      %v874 = vadd.f32 %v788, %v833
      %v875 = vadd.f32 %v789, %v834
      %v876 = vadd.f32 %v790, %v835
      %v877 = vadd.f32 %v791, %v836
      %v878 = vadd.f32 %v792, %v837
      %v879 = vlaneseq
      %v880 = vshrl.u32 %v879, 7
      %v881 = vsub.s32 0, %v880
      %v882 = vrot.slane %v661, %v881
      %v883 = vadd.f32 %v838, %v882
      %v884 = vadd.f32 %v839, %v882
      %v885 = vadd.f32 %v840, %v882
      %v886 = vadd.f32 %v841, %v882
      %v887 = vadd.f32 %v842, %v882
      %v888 = vadd.f32 %v843, %v882
      %v889 = vadd.f32 %v844, %v882
      %v890 = vadd.f32 %v845, %v882
      %v891 = vadd.f32 %v846, %v882
      %v892 = vadd.f32 %v847, %v882
      %v893 = vadd.f32 %v848, %v882
      %v894 = vadd.f32 %v849, %v882
      %v895 = vadd.f32 %v850, %v882
      %v896 = vadd.f32 %v851, %v882
      %v897 = vadd.f32 %v852, %v882
      %v898 = vadd.f32 %v853, %v882
      %v899 = vadd.f32 %v854, %v882
      %v900 = vadd.f32 %v855, %v882
      %v901 = vadd.f32 %v856, %v882
      %v902 = vadd.f32 %v857, %v882
      %v903 = vadd.f32 %v858, %v882
      %v904 = vadd.f32 %v859, %v882
      %v905 = vadd.f32 %v860, %v882
      %v906 = vadd.f32 %v861, %v882
      %v907 = vadd.f32 %v862, %v882
      %v908 = vadd.f32 %v863, %v882
      %v909 = vadd.f32 %v864, %v882
      %v910 = vadd.f32 %v865, %v882
      %v911 = vadd.f32 %v866, %v882
      %v912 = vadd.f32 %v867, %v882
      %v913 = vadd.f32 %v868, %v882
      %v914 = vadd.f32 %v869, %v882
      %v915 = vadd.f32 %v870, %v882
      %v916 = vadd.f32 %v871, %v882
      %v917 = vadd.f32 %v872, %v882
      %v918 = vadd.f32 %v873, %v882
      %v919 = vadd.f32 %v874, %v882
      %v920 = vadd.f32 %v875, %v882
      %v921 = vadd.f32 %v876, %v882
      %v922 = vadd.f32 %v877, %v882
      %v923 = vadd.f32 %v878, %v882
      %v924 = vmax.f32 %v883, 0.0
      %v925 = vmax.f32 %v884, 0.0
      %v926 = vmax.f32 %v885, 0.0
      %v927 = vmax.f32 %v886, 0.0
      %v928 = vmax.f32 %v887, 0.0
      %v929 = vmax.f32 %v888, 0.0
      %v930 = vmax.f32 %v889, 0.0
      %v931 = vmax.f32 %v890, 0.0
      %v932 = vmax.f32 %v891, 0.0
      %v933 = vmax.f32 %v892, 0.0
      %v934 = vmax.f32 %v893, 0.0
      %v935 = vmax.f32 %v894, 0.0
      %v936 = vmax.f32 %v895, 0.0
      %v937 = vmax.f32 %v896, 0.0
      %v938 = vmax.f32 %v897, 0.0
      %v939 = vmax.f32 %v898, 0.0
      %v940 = vmax.f32 %v899, 0.0
      %v941 = vmax.f32 %v900, 0.0
      %v942 = vmax.f32 %v901, 0.0
      %v943 = vmax.f32 %v902, 0.0
      %v944 = vmax.f32 %v903, 0.0
      %v945 = vmax.f32 %v904, 0.0
      %v946 = vmax.f32 %v905, 0.0
      %v947 = vmax.f32 %v906, 0.0
      %v948 = vmax.f32 %v907, 0.0
      %v949 = vmax.f32 %v908, 0.0
      %v950 = vmax.f32 %v909, 0.0
      %v951 = vmax.f32 %v910, 0.0
      %v952 = vmax.f32 %v911, 0.0
      %v953 = vmax.f32 %v912, 0.0
      %v954 = vmax.f32 %v913, 0.0
      %v955 = vmax.f32 %v914, 0.0
      %v956 = vmax.f32 %v915, 0.0
      %v957 = vmax.f32 %v916, 0.0
      %v958 = vmax.f32 %v917, 0.0
      %v959 = vmax.f32 %v918, 0.0
      %v960 = vmax.f32 %v919, 0.0
      %v961 = vmax.f32 %v920, 0.0
      %v962 = vmax.f32 %v921, 0.0
      %v963 = vmax.f32 %v922, 0.0
      %v964 = vmax.f32 %v923, 0.0
      %965 = vst [vmem:[%s217] sm:$0xff] %v924
      %966 = vst [vmem:[%s217 + $0x8] sm:$0xff] %v925
      %967 = vst [vmem:[%s217 + $0x10] sm:$0xff] %v926
      %968 = vst [vmem:[%s217 + $0x18] sm:$0xff] %v927
      %969 = vst [vmem:[%s217 + $0x20] sm:$0xff] %v928
      %970 = vst [vmem:[%s217 + $0x28] sm:$0xff] %v929
      %971 = vst [vmem:[%s217 + $0x30] sm:$0xff] %v930
      %972 = vst [vmem:[%s217 + $0x38] sm:$0xff] %v931
      %973 = vst [vmem:[%s217 + $0x40] sm:$0xff] %v932
      %974 = vst [vmem:[%s217 + $0x48] sm:$0xff] %v933
      %975 = vst [vmem:[%s217 + $0x50] sm:$0xff] %v934
      %976 = vst [vmem:[%s217 + $0x58] sm:$0xff] %v935
      %977 = vst [vmem:[%s217 + $0x60] sm:$0xff] %v936
      %978 = vst [vmem:[%s217 + $0x68] sm:$0xff] %v937
      %979 = vst [vmem:[%s217 + $0x70] sm:$0xff] %v938
      %980 = vst [vmem:[%s217 + $0x78] sm:$0xff] %v939
      %981 = vst [vmem:[%s217 + $0x80] sm:$0xff] %v940
      %982 = vst [vmem:[%s217 + $0x88] sm:$0xff] %v941
      %983 = vst [vmem:[%s217 + $0x90] sm:$0xff] %v942
      %984 = vst [vmem:[%s217 + $0x98] sm:$0xff] %v943
      %985 = vst [vmem:[%s217 + $0xa0] sm:$0xff] %v944
      %986 = vst [vmem:[%s217 + $0xa8] sm:$0xff] %v945
      %987 = vst [vmem:[%s217 + $0xb0] sm:$0xff] %v946
      %988 = vst [vmem:[%s217 + $0xb8] sm:$0xff] %v947
      %989 = vst [vmem:[%s217 + $0xc0] sm:$0xff] %v948
      %990 = vst [vmem:[%s217 + $0xc8] sm:$0xff] %v949
      %991 = vst [vmem:[%s217 + $0xd0] sm:$0xff] %v950
      %992 = vst [vmem:[%s217 + $0xd8] sm:$0xff] %v951
      %993 = vst [vmem:[%s217 + $0xe0] sm:$0xff] %v952
      %994 = vst [vmem:[%s217 + $0xe8] sm:$0xff] %v953
      %995 = vst [vmem:[%s217 + $0xf0] sm:$0xff] %v954
      %996 = vst [vmem:[%s217 + $0xf8] sm:$0xff] %v955
      %997 = vst [vmem:[%s217 + $0x100] sm:$0xff] %v956
      %998 = vst [vmem:[%s217 + $0x108] sm:$0xff] %v957
      %999 = vst [vmem:[%s217 + $0x110] sm:$0xff] %v958
      %1000 = vst [vmem:[%s217 + $0x118] sm:$0xff] %v959
      %1001 = vst [vmem:[%s217 + $0x120] sm:$0xff] %v960
      %1002 = vst [vmem:[%s217 + $0x128] sm:$0xff] %v961
      %1003 = vst [vmem:[%s217 + $0x130] sm:$0xff] %v962
      %1004 = vst [vmem:[%s217 + $0x138] sm:$0xff] %v963
      %1005 = vst [vmem:[%s217 + $0x140] sm:$0xf] %v964
      %p1006 = scmp.lt.s32.totalorder %s15, 1
      %s1007 = scalar_select %p1006, %s15, 1
      %s1008 = smul.addr %s1007, 41
      %s1009 = smul.addr %s1008, 8
      %s1010 = scalar_lea.vmem %s4, %s1009
      // Predicated region
      $region37: #{double_conv.5} parent=35 // pred_check
        %p1011 = pneg %p127
      $region38: #{double_conv.5} parent=35 // pred_check_branch
        %1013 = sbr.rel (%p1011) target = $region40
      $region39: #{double_conv.5} parent=35 // pred_region
        _
      $region40: #{double_conv.5} parent=35 // pred_fallthru
        _
    $region36: #{double_conv.5} parent=5 // pred_fallthru
      _
    %p1014 = scmp.le.s32.totalorder 2, %s10
    // Predicated region
    $region41: #{double_conv.5} parent=5 // pred_check
      %p1015 = pneg %p1014
    $region42: #{double_conv.5} parent=5 // pred_check_branch
      %1017 = sbr.rel (%p1015) target = $region44
    $region43: #{double_conv.5} parent=5 // pred_region
      %s1018 = ssub.s32 %s10, 2
      // Predicated region
      $region45: #{double_conv.5} parent=43 // pred_check
        %p1019 = pneg %p133
      $region46: #{double_conv.5} parent=43 // pred_check_branch
        %1021 = sbr.rel (%p1019) target = $region48
      $region47: #{double_conv.5} parent=43 // pred_region
        %p1022 = scmp.lt.s32.totalorder %s16, 1
        %s1023 = scalar_select %p1022, %s16, 1
        %s1024 = smul.addr %s1023, 41
        %s1025 = smul.addr %s1024, 8
        %s1026 = scalar_lea.vmem %s4, %s1025
      $region48: #{double_conv.5} parent=43 // pred_fallthru
        _
    $region44: #{double_conv.5} parent=5 // pred_fallthru
      _
  $region6: #{double_conv.5} parent=0 // loop_footer
    %s14 = sadd.s32 1, %s10
  $region7: #{double_conv.5} parent=0 // loop_footer_branch
    %9 = sbr.rel target = $region3
  $region8: #{double_conv.5} parent=0 // loop_exit
    _

// kernel: double_conv.3
$region0: #{double_conv.3}
  #allocation0 [shape = 'u32[]', space=smem, size = 0x4, offset = 0x4, fixed_abs, tag = 'smem constant byte address 0x4 - core index']
  #allocation1 [shape = 'u32[144,128]{1,0:T(1,128)}', space=vmem, size = 0x12000, scoped, tag = 'internal scratch']
  %s0 = inlined_call_operand.vmem [shape: f32[2,362,4], index: 0, kind: input, shape index: {}]
  %s1 = inlined_call_operand.vmem [shape: f32[9,4,128], index: 1, kind: input, shape index: {}]
  %s2 = inlined_call_operand.vmem [shape: f32[4,128], index: 2, kind: input, shape index: {}]
  %s3 = inlined_call_operand.vmem [shape: f32[2,324,128], index: 3, kind: output, shape index: {0}]
  %s4 = inlined_call_operand.vmem [shape: f32[2,4,128], index: 4, kind: output, shape index: {1}]
  %5 = xla_tuple %s3, %s4
  %s6 = sld [smem:[#allocation0]]
  $region53: #{double_conv.3} parent=0
    _
  %s8 = ssub.s32 1, %s6
  %s9 = scalar_select 0, %s8, %s6
  loop: start=0, step=1, limit=4
  $region2: #{double_conv.3} parent=0 // loop_pre_header
    _
  $region3: #{double_conv.3} parent=0 // loop_header
    %s11 = sphi 0, %s15
    %p12 = scmp.ge.s32.totalorder %s11, 4
    %s21 = sphi 0, %s23
    %s24 = sphi 0, %s21
    %s25 = sphi 0, %s24
    %s41 = sphi 0, %s25
    %s45 = sphi 0, %s45
    %s47 = sphi 0, %s45
    %s48 = sphi 0, %s47
    %s62 = sphi 0, %s48
    %s66 = sphi 0, %s66
    %s68 = sphi 0, %s66
    %s69 = sphi 0, %s68
    %s83 = sphi 0, %s69
    %s89 = sphi 0, %s91
    %s92 = sphi 0, %s89
    %s93 = sphi 0, %s92
    %s109 = sphi 0, %s93
    %s115 = sphi 0, %s117
    %s118 = sphi 0, %s115
    %s119 = sphi 0, %s118
    %s135 = sphi 0, %s119
  $region4: #{double_conv.3} parent=0 // loop_header_branch
    %14 = sbr.rel (%p12) target = $region8
  $region5: #{double_conv.3} parent=0 // loop_body
    %s16 = ssub.s32 %s11, 1
    %s17 = ssub.s32 %s11, 2
    %s18 = sadd.s32 %s11, 1
    %s19 = ssub.s32 %s11, %s18
    %p20 = scmp.eq.s32.totalorder %s19, 0
    %s22 = sadd.s32 %s21, 1
    %s23 = scalar_select %p20, %s21, %s22
    %p26 = pneg %p20
    %p27 = scmp.eq.s32.totalorder %s11, 1
    %p28 = por %p26, %p27
    %p29 = scmp.ne.s32.totalorder %s21, %s24
    %p30 = scmp.eq.s32.totalorder %s11, 0
    %p31 = por %p29, %p30
    %p32 = scmp.ne.s32.totalorder %s21, %s24
    %p33 = scmp.eq.s32.totalorder %s16, 1
    %p34 = por %p32, %p33
    %p35 = scmp.ne.s32.totalorder %s24, %s25
    %p36 = scmp.eq.s32.totalorder %s16, 0
    %p37 = por %p35, %p36
    %p38 = scmp.ne.s32.totalorder %s24, %s25
    %p39 = scmp.eq.s32.totalorder %s17, 1
    %p40 = por %p38, %p39
    %p42 = scmp.ne.s32.totalorder %s25, %s41
    %p43 = scmp.eq.s32.totalorder %s17, 0
    %p44 = por %p42, %p43
    %s46 = sadd.s32 %s45, 1
    %p49 = scmp.eq.s32.totalorder %s11, 1
    %p50 = scmp.ne.s32.totalorder %s45, %s47
    %p51 = scmp.eq.s32.totalorder %s11, 0
    %p52 = por %p50, %p51
    %p53 = scmp.ne.s32.totalorder %s45, %s47
    %p54 = scmp.eq.s32.totalorder %s16, 1
    %p55 = por %p53, %p54
    %p56 = scmp.ne.s32.totalorder %s47, %s48
    %p57 = scmp.eq.s32.totalorder %s16, 0
    %p58 = por %p56, %p57
    %p59 = scmp.ne.s32.totalorder %s47, %s48
    %p60 = scmp.eq.s32.totalorder %s17, 1
    %p61 = por %p59, %p60
    %p63 = scmp.ne.s32.totalorder %s48, %s62
    %p64 = scmp.eq.s32.totalorder %s17, 0
    %p65 = por %p63, %p64
    %s67 = sadd.s32 %s66, 1
    %p70 = scmp.eq.s32.totalorder %s11, 1
    %p71 = scmp.ne.s32.totalorder %s66, %s68
    %p72 = scmp.eq.s32.totalorder %s11, 0
    %p73 = por %p71, %p72
    %p74 = scmp.ne.s32.totalorder %s66, %s68
    %p75 = scmp.eq.s32.totalorder %s16, 1
    %p76 = por %p74, %p75
    %p77 = scmp.ne.s32.totalorder %s68, %s69
    %p78 = scmp.eq.s32.totalorder %s16, 0
    %p79 = por %p77, %p78
    %p80 = scmp.ne.s32.totalorder %s68, %s69
    %p81 = scmp.eq.s32.totalorder %s17, 1
    %p82 = por %p80, %p81
    %p84 = scmp.ne.s32.totalorder %s69, %s83
    %p85 = scmp.eq.s32.totalorder %s17, 0
    %p86 = por %p84, %p85
    %s87 = ssub.s32 %s11, %s18
    %p88 = scmp.eq.s32.totalorder %s87, 0
    %s90 = sadd.s32 %s89, 1
    %s91 = scalar_select %p88, %s89, %s90
    %p94 = pneg %p88
    %p95 = scmp.eq.s32.totalorder %s11, 1
    %p96 = por %p94, %p95
    %p97 = scmp.ne.s32.totalorder %s89, %s92
    %p98 = scmp.eq.s32.totalorder %s11, 0
    %p99 = por %p97, %p98
    %p100 = scmp.ne.s32.totalorder %s89, %s92
    %p101 = scmp.eq.s32.totalorder %s16, 1
    %p102 = por %p100, %p101
    %p103 = scmp.ne.s32.totalorder %s92, %s93
    %p104 = scmp.eq.s32.totalorder %s16, 0
    %p105 = por %p103, %p104
    %p106 = scmp.ne.s32.totalorder %s92, %s93
    %p107 = scmp.eq.s32.totalorder %s17, 1
    %p108 = por %p106, %p107
    %p110 = scmp.ne.s32.totalorder %s93, %s109
    %p111 = scmp.eq.s32.totalorder %s17, 0
    %p112 = por %p110, %p111
    %s113 = ssub.s32 %s11, %s18
    %p114 = scmp.eq.s32.totalorder %s113, 0
    %s116 = sadd.s32 %s115, 1
    %s117 = scalar_select %p114, %s115, %s116
    %p120 = pneg %p114
    %p121 = scmp.eq.s32.totalorder %s11, 1
    %p122 = por %p120, %p121
    %p123 = scmp.ne.s32.totalorder %s115, %s118
    %p124 = scmp.eq.s32.totalorder %s11, 0
    %p125 = por %p123, %p124
    %p126 = scmp.ne.s32.totalorder %s115, %s118
    %p127 = scmp.eq.s32.totalorder %s16, 1
    %p128 = por %p126, %p127
    %p129 = scmp.ne.s32.totalorder %s118, %s119
    %p130 = scmp.eq.s32.totalorder %s16, 0
    %p131 = por %p129, %p130
    %p132 = scmp.ne.s32.totalorder %s118, %s119
    %p133 = scmp.eq.s32.totalorder %s17, 1
    %p134 = por %p132, %p133
    %p136 = scmp.ne.s32.totalorder %s119, %s135
    %p137 = scmp.eq.s32.totalorder %s17, 0
    %p138 = por %p136, %p137
    %p139 = scmp.le.s32.totalorder 1, %s11
    %p140 = scmp.lt.s32.totalorder %s11, 3
    %p141 = pnand %p139, %p140
    %p142 = pneg %p141
    // Predicated region
    $region9: #{double_conv.3} parent=5 // pred_check
      _
    $region10: #{double_conv.3} parent=5 // pred_check_branch
      %144 = sbr.rel (%p141) target = $region12
    $region11: #{double_conv.3} parent=5 // pred_region
      %s145 = ssub.s32 %s11, 1
      // Predicated region
      $region13: #{double_conv.3} parent=11 // pred_check
        %p146 = pneg %p58
      $region14: #{double_conv.3} parent=11 // pred_check_branch
        %148 = sbr.rel (%p146) target = $region16
      $region15: #{double_conv.3} parent=11 // pred_region
        _
      $region16: #{double_conv.3} parent=11 // pred_fallthru
        _
      // Predicated region
      $region17: #{double_conv.3} parent=11 // pred_check
        %p149 = pneg %p79
      $region18: #{double_conv.3} parent=11 // pred_check_branch
        %151 = sbr.rel (%p149) target = $region20
      $region19: #{double_conv.3} parent=11 // pred_region
        _
      $region20: #{double_conv.3} parent=11 // pred_fallthru
        _
    $region12: #{double_conv.3} parent=5 // pred_fallthru
      _
    %p152 = scmp.lt.s32.totalorder %s11, 2
    // Predicated region
    $region21: #{double_conv.3} parent=5 // pred_check
      %p153 = pneg %p152
    $region22: #{double_conv.3} parent=5 // pred_check_branch
      %155 = sbr.rel (%p153) target = $region24
    $region23: #{double_conv.3} parent=5 // pred_region
      // Predicated region
      $region25: #{double_conv.3} parent=23 // pred_check
        %p156 = pneg %p31
      $region26: #{double_conv.3} parent=23 // pred_check_branch
        %158 = sbr.rel (%p156) target = $region28
      $region27: #{double_conv.3} parent=23 // pred_region
        %p159 = scmp.lt.s32.totalorder %s11, 1
        %s160 = scalar_select %p159, %s11, 1
        %s161 = smul.addr %s160, 46
        %s162 = smul.addr %s161, 8
        %s163 = scalar_lea.vmem %s0, %s162
      $region28: #{double_conv.3} parent=23 // pred_fallthru
        _
    $region24: #{double_conv.3} parent=5 // pred_fallthru
      _
    %p164 = scmp.le.s32.totalorder 1, %s11
    %p165 = scmp.lt.s32.totalorder %s11, 3
    %p166 = pnand %p164, %p165
    %p167 = pneg %p166
    // Predicated region
    $region29: #{double_conv.3} parent=5 // pred_check
      _
    $region30: #{double_conv.3} parent=5 // pred_check_branch
      %169 = sbr.rel (%p166) target = $region32
    $region31: #{double_conv.3} parent=5 // pred_region
      %s170 = ssub.s32 %s11, 1
      %p171 = scmp.lt.s32.totalorder %s16, 1
      %s172 = scalar_select %p171, %s16, 1
      %s173 = smul.addr %s172, 46
      %s174 = smul.addr %s173, 8
      %s175 = scalar_lea.vmem %s0, %s174
      %p176 = pneg %p37
      %p177 = pneg %p34
      %p178 = pneg %p58
      %p179 = pneg %p55
      %p180 = pneg %p79
      %p181 = pneg %p76
      %p182 = pneg %p105
      %p183 = pneg %p102
      %p184 = scmp.lt.s32.totalorder %s16, 1
      %s185 = scalar_select %p184, %s16, 1
      %s186 = smul.addr %s185, 41
      %s187 = smul.addr %s186, 8
      %s188 = scalar_lea.vmem %s3, %s187
      %p189 = pneg %p131
      %p190 = pneg %p128
      %p191 = scmp.lt.s32.totalorder %s16, 1
      %s192 = scalar_select %p191, %s16, 1
      %s193 = smul.addr %s192, 4
      %s194 = scalar_lea.vmem %s4, %s193
      %p195 = scmp.lt.s32.totalorder %s16, 1
      %s196 = scalar_select %p195, %s16, 1
      %s197 = smul.addr %s196, 46
      %s198 = smul.addr %s197, 8
      %s199 = scalar_lea.vmem %s0, %s198
      %p200 = scmp.lt.s32.totalorder %s16, 1
      %s201 = scalar_select %p200, %s16, 1
      %s202 = smul.addr %s201, 41
      %s203 = smul.addr %s202, 8
      %s204 = scalar_lea.vmem %s3, %s203
      %p205 = scmp.lt.s32.totalorder %s16, 1
      %s206 = scalar_select %p205, %s16, 1
      %s207 = smul.addr %s206, 4
      %s208 = scalar_lea.vmem %s4, %s207
      %v209 = vlaneseq
      %v210 = vshrl.u32 %v209, 7
      %v211 = vadd.s32 %v210, 8
      %v212 = vadd.s32 %v210, 16
      %v213 = vadd.s32 %v210, 24
      %v214 = vadd.s32 %v210, 32
      %v215 = vadd.s32 %v210, 40
      %v216 = vadd.s32 %v210, 48
      %v217 = vadd.s32 %v210, 56
      %v218 = vadd.s32 %v210, 64
      %v219 = vadd.s32 %v210, 72
      %v220 = vadd.s32 %v210, 80
      %v221 = vadd.s32 %v210, 88
      %v222 = vadd.s32 %v210, 96
      %v223 = vadd.s32 %v210, 104
      %v224 = vadd.s32 %v210, 112
      %v225 = vadd.s32 %v210, 120
      %v226 = vadd.s32 %v210, 128
      %v227 = vadd.s32 %v210, 136
      %v228 = vadd.s32 %v210, 144
      %v229 = vadd.s32 %v210, 152
      %v230 = vadd.s32 %v210, 160
      %v231 = vadd.s32 %v210, 168
      %v232 = vadd.s32 %v210, 176
      %v233 = vadd.s32 %v210, 184
      %v234 = vadd.s32 %v210, 192
      %v235 = vadd.s32 %v210, 200
      %v236 = vadd.s32 %v210, 208
      %v237 = vadd.s32 %v210, 216
      %v238 = vadd.s32 %v210, 224
      %v239 = vadd.s32 %v210, 232
      %v240 = vadd.s32 %v210, 240
      %v241 = vadd.s32 %v210, 248
      %v242 = vadd.s32 %v210, 256
      %v243 = vadd.s32 %v210, 264
      %v244 = vadd.s32 %v210, 272
      %v245 = vadd.s32 %v210, 280
      %v246 = vadd.s32 %v210, 288
      %v247 = vadd.s32 %v210, 296
      %v248 = vadd.s32 %v210, 304
      %v249 = vadd.s32 %v210, 312
      %v250 = vadd.s32 %v210, 320
      %v251 = vcvt.s32.f32 %v210
      %v252 = vcvt.s32.f32 %v211
      %v253 = vcvt.s32.f32 %v212
      %v254 = vcvt.s32.f32 %v213
      %v255 = vcvt.s32.f32 %v214
      %v256 = vcvt.s32.f32 %v215
      %v257 = vcvt.s32.f32 %v216
      %v258 = vcvt.s32.f32 %v217
      %v259 = vcvt.s32.f32 %v218
      %v260 = vcvt.s32.f32 %v219
      %v261 = vcvt.s32.f32 %v220
      %v262 = vcvt.s32.f32 %v221
      %v263 = vcvt.s32.f32 %v222
      %v264 = vcvt.s32.f32 %v223
      %v265 = vcvt.s32.f32 %v224
      %v266 = vcvt.s32.f32 %v225
      %v267 = vcvt.s32.f32 %v226
      %v268 = vcvt.s32.f32 %v227
      %v269 = vcvt.s32.f32 %v228
      %v270 = vcvt.s32.f32 %v229
      %v271 = vcvt.s32.f32 %v230
      %v272 = vcvt.s32.f32 %v231
      %v273 = vcvt.s32.f32 %v232
      %v274 = vcvt.s32.f32 %v233
      %v275 = vcvt.s32.f32 %v234
      %v276 = vcvt.s32.f32 %v235
      %v277 = vcvt.s32.f32 %v236
      %v278 = vcvt.s32.f32 %v237
      %v279 = vcvt.s32.f32 %v238
      %v280 = vcvt.s32.f32 %v239
      %v281 = vcvt.s32.f32 %v240
      %v282 = vcvt.s32.f32 %v241
      %v283 = vcvt.s32.f32 %v242
      %v284 = vcvt.s32.f32 %v243
      %v285 = vcvt.s32.f32 %v244
      %v286 = vcvt.s32.f32 %v245
      %v287 = vcvt.s32.f32 %v246
      %v288 = vcvt.s32.f32 %v247
      %v289 = vcvt.s32.f32 %v248
      %v290 = vcvt.s32.f32 %v249
      %v291 = vcvt.s32.f32 %v250
      %v292 = vmul.f32 %v251, 0.055555556
      %v293 = vmul.f32 %v252, 0.055555556
      %v294 = vmul.f32 %v253, 0.055555556
      %v295 = vmul.f32 %v254, 0.055555556
      %v296 = vmul.f32 %v255, 0.055555556
      %v297 = vmul.f32 %v256, 0.055555556
      %v298 = vmul.f32 %v257, 0.055555556
      %v299 = vmul.f32 %v258, 0.055555556
      %v300 = vmul.f32 %v259, 0.055555556
      %v301 = vmul.f32 %v260, 0.055555556
      %v302 = vmul.f32 %v261, 0.055555556
      %v303 = vmul.f32 %v262, 0.055555556
      %v304 = vmul.f32 %v263, 0.055555556
      %v305 = vmul.f32 %v264, 0.055555556
      %v306 = vmul.f32 %v265, 0.055555556
      %v307 = vmul.f32 %v266, 0.055555556
      %v308 = vmul.f32 %v267, 0.055555556
      %v309 = vmul.f32 %v268, 0.055555556
      %v310 = vmul.f32 %v269, 0.055555556
      %v311 = vmul.f32 %v270, 0.055555556
      %v312 = vmul.f32 %v271, 0.055555556
      %v313 = vmul.f32 %v272, 0.055555556
      %v314 = vmul.f32 %v273, 0.055555556
      %v315 = vmul.f32 %v274, 0.055555556
      %v316 = vmul.f32 %v275, 0.055555556
      %v317 = vmul.f32 %v276, 0.055555556
      %v318 = vmul.f32 %v277, 0.055555556
      %v319 = vmul.f32 %v278, 0.055555556
      %v320 = vmul.f32 %v279, 0.055555556
      %v321 = vmul.f32 %v280, 0.055555556
      %v322 = vmul.f32 %v281, 0.055555556
      %v323 = vmul.f32 %v282, 0.055555556
      %v324 = vmul.f32 %v283, 0.055555556
      %v325 = vmul.f32 %v284, 0.055555556
      %v326 = vmul.f32 %v285, 0.055555556
      %v327 = vmul.f32 %v286, 0.055555556
      %v328 = vmul.f32 %v287, 0.055555556
      %v329 = vmul.f32 %v288, 0.055555556
      %v330 = vmul.f32 %v289, 0.055555556
      %v331 = vmul.f32 %v290, 0.055555556
      %v332 = vmul.f32 %v291, 0.055555556
      %v333 = vfloor.f32 %v292
      %v334 = vfloor.f32 %v293
      %v335 = vfloor.f32 %v294
      %v336 = vfloor.f32 %v295
      %v337 = vfloor.f32 %v296
      %v338 = vfloor.f32 %v297
      %v339 = vfloor.f32 %v298
      %v340 = vfloor.f32 %v299
      %v341 = vfloor.f32 %v300
      %v342 = vfloor.f32 %v301
      %v343 = vfloor.f32 %v302
      %v344 = vfloor.f32 %v303
      %v345 = vfloor.f32 %v304
      %v346 = vfloor.f32 %v305
      %v347 = vfloor.f32 %v306
      %v348 = vfloor.f32 %v307
      %v349 = vfloor.f32 %v308
      %v350 = vfloor.f32 %v309
      %v351 = vfloor.f32 %v310
      %v352 = vfloor.f32 %v311
      %v353 = vfloor.f32 %v312
      %v354 = vfloor.f32 %v313
      %v355 = vfloor.f32 %v314
      %v356 = vfloor.f32 %v315
      %v357 = vfloor.f32 %v316
      %v358 = vfloor.f32 %v317
      %v359 = vfloor.f32 %v318
      %v360 = vfloor.f32 %v319
      %v361 = vfloor.f32 %v320
      %v362 = vfloor.f32 %v321
      %v363 = vfloor.f32 %v322
      %v364 = vfloor.f32 %v323
      %v365 = vfloor.f32 %v324
      %v366 = vfloor.f32 %v325
      %v367 = vfloor.f32 %v326
      %v368 = vfloor.f32 %v327
      %v369 = vfloor.f32 %v328
      %v370 = vfloor.f32 %v329
      %v371 = vfloor.f32 %v330
      %v372 = vfloor.f32 %v331
      %v373 = vfloor.f32 %v332
      %v374 = vmul.f32 %v333, 18.0
      %v375 = vmul.f32 %v334, 18.0
      %v376 = vmul.f32 %v335, 18.0
      %v377 = vmul.f32 %v336, 18.0
      %v378 = vmul.f32 %v337, 18.0
      %v379 = vmul.f32 %v338, 18.0
      %v380 = vmul.f32 %v339, 18.0
      %v381 = vmul.f32 %v340, 18.0
      %v382 = vmul.f32 %v341, 18.0
      %v383 = vmul.f32 %v342, 18.0
      %v384 = vmul.f32 %v343, 18.0
      %v385 = vmul.f32 %v344, 18.0
      %v386 = vmul.f32 %v345, 18.0
      %v387 = vmul.f32 %v346, 18.0
      %v388 = vmul.f32 %v347, 18.0
      %v389 = vmul.f32 %v348, 18.0
      %v390 = vmul.f32 %v349, 18.0
      %v391 = vmul.f32 %v350, 18.0
      %v392 = vmul.f32 %v351, 18.0
      %v393 = vmul.f32 %v352, 18.0
      %v394 = vmul.f32 %v353, 18.0
      %v395 = vmul.f32 %v354, 18.0
      %v396 = vmul.f32 %v355, 18.0
      %v397 = vmul.f32 %v356, 18.0
      %v398 = vmul.f32 %v357, 18.0
      %v399 = vmul.f32 %v358, 18.0
      %v400 = vmul.f32 %v359, 18.0
      %v401 = vmul.f32 %v360, 18.0
      %v402 = vmul.f32 %v361, 18.0
      %v403 = vmul.f32 %v362, 18.0
      %v404 = vmul.f32 %v363, 18.0
      %v405 = vmul.f32 %v364, 18.0
      %v406 = vmul.f32 %v365, 18.0
      %v407 = vmul.f32 %v366, 18.0
      %v408 = vmul.f32 %v367, 18.0
      %v409 = vmul.f32 %v368, 18.0
      %v410 = vmul.f32 %v369, 18.0
      %v411 = vmul.f32 %v370, 18.0
      %v412 = vmul.f32 %v371, 18.0
      %v413 = vmul.f32 %v372, 18.0
      %v414 = vmul.f32 %v373, 18.0
      %v415 = vsub.f32 %v251, %v374
      %v416 = vsub.f32 %v252, %v375
      %v417 = vsub.f32 %v253, %v376
      %v418 = vsub.f32 %v254, %v377
      %v419 = vsub.f32 %v255, %v378
      %v420 = vsub.f32 %v256, %v379
      %v421 = vsub.f32 %v257, %v380
      %v422 = vsub.f32 %v258, %v381
      %v423 = vsub.f32 %v259, %v382
      %v424 = vsub.f32 %v260, %v383
      %v425 = vsub.f32 %v261, %v384
      %v426 = vsub.f32 %v262, %v385
      %v427 = vsub.f32 %v263, %v386
      %v428 = vsub.f32 %v264, %v387
      %v429 = vsub.f32 %v265, %v388
      %v430 = vsub.f32 %v266, %v389
      %v431 = vsub.f32 %v267, %v390
      %v432 = vsub.f32 %v268, %v391
      %v433 = vsub.f32 %v269, %v392
      %v434 = vsub.f32 %v270, %v393
      %v435 = vsub.f32 %v271, %v394
      %v436 = vsub.f32 %v272, %v395
      %v437 = vsub.f32 %v273, %v396
      %v438 = vsub.f32 %v274, %v397
      %v439 = vsub.f32 %v275, %v398
      %v440 = vsub.f32 %v276, %v399
      %v441 = vsub.f32 %v277, %v400
      %v442 = vsub.f32 %v278, %v401
      %v443 = vsub.f32 %v279, %v402
      %v444 = vsub.f32 %v280, %v403
      %v445 = vsub.f32 %v281, %v404
      %v446 = vsub.f32 %v282, %v405
      %v447 = vsub.f32 %v283, %v406
      %v448 = vsub.f32 %v284, %v407
      %v449 = vsub.f32 %v285, %v408
      %v450 = vsub.f32 %v286, %v409
      %v451 = vsub.f32 %v287, %v410
      %v452 = vsub.f32 %v288, %v411
      %v453 = vsub.f32 %v289, %v412
      %v454 = vsub.f32 %v290, %v413
      %v455 = vsub.f32 %v291, %v414
      %vm456 = vcmp.gt.f32.partialorder %v333, 0.5
      %vm457 = vcmp.gt.f32.partialorder %v334, 0.5
      %vm458 = vcmp.gt.f32.partialorder %v335, 0.5
      %vm459 = vcmp.gt.f32.partialorder %v336, 0.5
      %vm460 = vcmp.gt.f32.partialorder %v337, 0.5
      %vm461 = vcmp.gt.f32.partialorder %v338, 0.5
      %vm462 = vcmp.gt.f32.partialorder %v339, 0.5
      %vm463 = vcmp.gt.f32.partialorder %v340, 0.5
      %vm464 = vcmp.gt.f32.partialorder %v341, 0.5
      %vm465 = vcmp.gt.f32.partialorder %v342, 0.5
      %vm466 = vcmp.gt.f32.partialorder %v343, 0.5
      %vm467 = vcmp.gt.f32.partialorder %v344, 0.5
      %vm468 = vcmp.gt.f32.partialorder %v345, 0.5
      %vm469 = vcmp.gt.f32.partialorder %v346, 0.5
      %vm470 = vcmp.gt.f32.partialorder %v347, 0.5
      %vm471 = vcmp.gt.f32.partialorder %v348, 0.5
      %vm472 = vcmp.gt.f32.partialorder %v349, 0.5
      %vm473 = vcmp.gt.f32.partialorder %v350, 0.5
      %vm474 = vcmp.gt.f32.partialorder %v351, 0.5
      %vm475 = vcmp.gt.f32.partialorder %v352, 0.5
      %vm476 = vcmp.gt.f32.partialorder %v353, 0.5
      %vm477 = vcmp.gt.f32.partialorder %v354, 0.5
      %vm478 = vcmp.gt.f32.partialorder %v355, 0.5
      %vm479 = vcmp.gt.f32.partialorder %v356, 0.5
      %vm480 = vcmp.gt.f32.partialorder %v357, 0.5
      %vm481 = vcmp.gt.f32.partialorder %v358, 0.5
      %vm482 = vcmp.gt.f32.partialorder %v359, 0.5
      %vm483 = vcmp.gt.f32.partialorder %v360, 0.5
      %vm484 = vcmp.gt.f32.partialorder %v361, 0.5
      %vm485 = vcmp.gt.f32.partialorder %v362, 0.5
      %vm486 = vcmp.gt.f32.partialorder %v363, 0.5
      %vm487 = vcmp.gt.f32.partialorder %v364, 0.5
      %vm488 = vcmp.gt.f32.partialorder %v365, 0.5
      %vm489 = vcmp.gt.f32.partialorder %v366, 0.5
      %vm490 = vcmp.gt.f32.partialorder %v367, 0.5
      %vm491 = vcmp.gt.f32.partialorder %v368, 0.5
      %vm492 = vcmp.gt.f32.partialorder %v369, 0.5
      %vm493 = vcmp.gt.f32.partialorder %v370, 0.5
      %vm494 = vcmp.gt.f32.partialorder %v371, 0.5
      %vm495 = vcmp.gt.f32.partialorder %v372, 0.5
      %vm496 = vcmp.gt.f32.partialorder %v373, 0.5
      %vm497 = vcmp.lt.f32.partialorder %v333, 16.5
      %vm498 = vcmp.lt.f32.partialorder %v334, 16.5
      %vm499 = vcmp.lt.f32.partialorder %v335, 16.5
      %vm500 = vcmp.lt.f32.partialorder %v336, 16.5
      %vm501 = vcmp.lt.f32.partialorder %v337, 16.5
      %vm502 = vcmp.lt.f32.partialorder %v338, 16.5
      %vm503 = vcmp.lt.f32.partialorder %v339, 16.5
      %vm504 = vcmp.lt.f32.partialorder %v340, 16.5
      %vm505 = vcmp.lt.f32.partialorder %v341, 16.5
      %vm506 = vcmp.lt.f32.partialorder %v342, 16.5
      %vm507 = vcmp.lt.f32.partialorder %v343, 16.5
      %vm508 = vcmp.lt.f32.partialorder %v344, 16.5
      %vm509 = vcmp.lt.f32.partialorder %v345, 16.5
      %vm510 = vcmp.lt.f32.partialorder %v346, 16.5
      %vm511 = vcmp.lt.f32.partialorder %v347, 16.5
      %vm512 = vcmp.lt.f32.partialorder %v348, 16.5
      %vm513 = vcmp.lt.f32.partialorder %v349, 16.5
      %vm514 = vcmp.lt.f32.partialorder %v350, 16.5
      %vm515 = vcmp.lt.f32.partialorder %v351, 16.5
      %vm516 = vcmp.lt.f32.partialorder %v352, 16.5
      %vm517 = vcmp.lt.f32.partialorder %v353, 16.5
      %vm518 = vcmp.lt.f32.partialorder %v354, 16.5
      %vm519 = vcmp.lt.f32.partialorder %v355, 16.5
      %vm520 = vcmp.lt.f32.partialorder %v356, 16.5
      %vm521 = vcmp.lt.f32.partialorder %v357, 16.5
      %vm522 = vcmp.lt.f32.partialorder %v358, 16.5
      %vm523 = vcmp.lt.f32.partialorder %v359, 16.5
      %vm524 = vcmp.lt.f32.partialorder %v360, 16.5
      %vm525 = vcmp.lt.f32.partialorder %v361, 16.5
      %vm526 = vcmp.lt.f32.partialorder %v362, 16.5
      %vm527 = vcmp.lt.f32.partialorder %v363, 16.5
      %vm528 = vcmp.lt.f32.partialorder %v364, 16.5
      %vm529 = vcmp.lt.f32.partialorder %v365, 16.5
      %vm530 = vcmp.lt.f32.partialorder %v366, 16.5
      %vm531 = vcmp.lt.f32.partialorder %v367, 16.5
      %vm532 = vcmp.lt.f32.partialorder %v368, 16.5
      %vm533 = vcmp.lt.f32.partialorder %v369, 16.5
      %vm534 = vcmp.lt.f32.partialorder %v370, 16.5
      %vm535 = vcmp.lt.f32.partialorder %v371, 16.5
      %vm536 = vcmp.lt.f32.partialorder %v372, 16.5
      %vm537 = vcmp.lt.f32.partialorder %v373, 16.5
      %vm538 = vmand %vm456, %vm497
      %vm539 = vmand %vm457, %vm498
      %vm540 = vmand %vm458, %vm499
      %vm541 = vmand %vm459, %vm500
      %vm542 = vmand %vm460, %vm501
      %vm543 = vmand %vm461, %vm502
      %vm544 = vmand %vm462, %vm503
      %vm545 = vmand %vm463, %vm504
      %vm546 = vmand %vm464, %vm505
      %vm547 = vmand %vm465, %vm506
      %vm548 = vmand %vm466, %vm507
      %vm549 = vmand %vm467, %vm508
      %vm550 = vmand %vm468, %vm509
      %vm551 = vmand %vm469, %vm510
      %vm552 = vmand %vm470, %vm511
      %vm553 = vmand %vm471, %vm512
      %vm554 = vmand %vm472, %vm513
      %vm555 = vmand %vm473, %vm514
      %vm556 = vmand %vm474, %vm515
      %vm557 = vmand %vm475, %vm516
      %vm558 = vmand %vm476, %vm517
      %vm559 = vmand %vm477, %vm518
      %vm560 = vmand %vm478, %vm519
      %vm561 = vmand %vm479, %vm520
      %vm562 = vmand %vm480, %vm521
      %vm563 = vmand %vm481, %vm522
      %vm564 = vmand %vm482, %vm523
      %vm565 = vmand %vm483, %vm524
      %vm566 = vmand %vm484, %vm525
      %vm567 = vmand %vm485, %vm526
      %vm568 = vmand %vm486, %vm527
      %vm569 = vmand %vm487, %vm528
      %vm570 = vmand %vm488, %vm529
      %vm571 = vmand %vm489, %vm530
      %vm572 = vmand %vm490, %vm531
      %vm573 = vmand %vm491, %vm532
      %vm574 = vmand %vm492, %vm533
      %vm575 = vmand %vm493, %vm534
      %vm576 = vmand %vm494, %vm535
      %vm577 = vmand %vm495, %vm536
      %vm578 = vmand %vm496, %vm537
      %vm579 = vcmp.gt.f32.partialorder %v415, 0.5
      %vm580 = vcmp.gt.f32.partialorder %v416, 0.5
      %vm581 = vcmp.gt.f32.partialorder %v417, 0.5
      %vm582 = vcmp.gt.f32.partialorder %v418, 0.5
      %vm583 = vcmp.gt.f32.partialorder %v419, 0.5
      %vm584 = vcmp.gt.f32.partialorder %v420, 0.5
      %vm585 = vcmp.gt.f32.partialorder %v421, 0.5
      %vm586 = vcmp.gt.f32.partialorder %v422, 0.5
      %vm587 = vcmp.gt.f32.partialorder %v423, 0.5
      %vm588 = vcmp.gt.f32.partialorder %v424, 0.5
      %vm589 = vcmp.gt.f32.partialorder %v425, 0.5
      %vm590 = vcmp.gt.f32.partialorder %v426, 0.5
      %vm591 = vcmp.gt.f32.partialorder %v427, 0.5
      %vm592 = vcmp.gt.f32.partialorder %v428, 0.5
      %vm593 = vcmp.gt.f32.partialorder %v429, 0.5
      %vm594 = vcmp.gt.f32.partialorder %v430, 0.5
      %vm595 = vcmp.gt.f32.partialorder %v431, 0.5
      %vm596 = vcmp.gt.f32.partialorder %v432, 0.5
      %vm597 = vcmp.gt.f32.partialorder %v433, 0.5
      %vm598 = vcmp.gt.f32.partialorder %v434, 0.5
      %vm599 = vcmp.gt.f32.partialorder %v435, 0.5
      %vm600 = vcmp.gt.f32.partialorder %v436, 0.5
      %vm601 = vcmp.gt.f32.partialorder %v437, 0.5
      %vm602 = vcmp.gt.f32.partialorder %v438, 0.5
      %vm603 = vcmp.gt.f32.partialorder %v439, 0.5
      %vm604 = vcmp.gt.f32.partialorder %v440, 0.5
      %vm605 = vcmp.gt.f32.partialorder %v441, 0.5
      %vm606 = vcmp.gt.f32.partialorder %v442, 0.5
      %vm607 = vcmp.gt.f32.partialorder %v443, 0.5
      %vm608 = vcmp.gt.f32.partialorder %v444, 0.5
      %vm609 = vcmp.gt.f32.partialorder %v445, 0.5
      %vm610 = vcmp.gt.f32.partialorder %v446, 0.5
      %vm611 = vcmp.gt.f32.partialorder %v447, 0.5
      %vm612 = vcmp.gt.f32.partialorder %v448, 0.5
      %vm613 = vcmp.gt.f32.partialorder %v449, 0.5
      %vm614 = vcmp.gt.f32.partialorder %v450, 0.5
      %vm615 = vcmp.gt.f32.partialorder %v451, 0.5
      %vm616 = vcmp.gt.f32.partialorder %v452, 0.5
      %vm617 = vcmp.gt.f32.partialorder %v453, 0.5
      %vm618 = vcmp.gt.f32.partialorder %v454, 0.5
      %vm619 = vcmp.gt.f32.partialorder %v455, 0.5
      %vm620 = vmand %vm538, %vm579
      %vm621 = vmand %vm539, %vm580
      %vm622 = vmand %vm540, %vm581
      %vm623 = vmand %vm541, %vm582
      %vm624 = vmand %vm542, %vm583
      %vm625 = vmand %vm543, %vm584
      %vm626 = vmand %vm544, %vm585
      %vm627 = vmand %vm545, %vm586
      %vm628 = vmand %vm546, %vm587
      %vm629 = vmand %vm547, %vm588
      %vm630 = vmand %vm548, %vm589
      %vm631 = vmand %vm549, %vm590
      %vm632 = vmand %vm550, %vm591
      %vm633 = vmand %vm551, %vm592
      %vm634 = vmand %vm552, %vm593
      %vm635 = vmand %vm553, %vm594
      %vm636 = vmand %vm554, %vm595
      %vm637 = vmand %vm555, %vm596
      %vm638 = vmand %vm556, %vm597
      %vm639 = vmand %vm557, %vm598
      %vm640 = vmand %vm558, %vm599
      %vm641 = vmand %vm559, %vm600
      %vm642 = vmand %vm560, %vm601
      %vm643 = vmand %vm561, %vm602
      %vm644 = vmand %vm562, %vm603
      %vm645 = vmand %vm563, %vm604
      %vm646 = vmand %vm564, %vm605
      %vm647 = vmand %vm565, %vm606
      %vm648 = vmand %vm566, %vm607
      %vm649 = vmand %vm567, %vm608
      %vm650 = vmand %vm568, %vm609
      %vm651 = vmand %vm569, %vm610
      %vm652 = vmand %vm570, %vm611
      %vm653 = vmand %vm571, %vm612
      %vm654 = vmand %vm572, %vm613
      %vm655 = vmand %vm573, %vm614
      %vm656 = vmand %vm574, %vm615
      %vm657 = vmand %vm575, %vm616
      %vm658 = vmand %vm576, %vm617
      %vm659 = vmand %vm577, %vm618
      %vm660 = vmand %vm578, %vm619
      %vm661 = vcmp.lt.f32.partialorder %v415, 16.5
      %vm662 = vcmp.lt.f32.partialorder %v416, 16.5
      %vm663 = vcmp.lt.f32.partialorder %v417, 16.5
      %vm664 = vcmp.lt.f32.partialorder %v418, 16.5
      %vm665 = vcmp.lt.f32.partialorder %v419, 16.5
      %vm666 = vcmp.lt.f32.partialorder %v420, 16.5
      %vm667 = vcmp.lt.f32.partialorder %v421, 16.5
      %vm668 = vcmp.lt.f32.partialorder %v422, 16.5
      %vm669 = vcmp.lt.f32.partialorder %v423, 16.5
      %vm670 = vcmp.lt.f32.partialorder %v424, 16.5
      %vm671 = vcmp.lt.f32.partialorder %v425, 16.5
      %vm672 = vcmp.lt.f32.partialorder %v426, 16.5
      %vm673 = vcmp.lt.f32.partialorder %v427, 16.5
      %vm674 = vcmp.lt.f32.partialorder %v428, 16.5
      %vm675 = vcmp.lt.f32.partialorder %v429, 16.5
      %vm676 = vcmp.lt.f32.partialorder %v430, 16.5
      %vm677 = vcmp.lt.f32.partialorder %v431, 16.5
      %vm678 = vcmp.lt.f32.partialorder %v432, 16.5
      %vm679 = vcmp.lt.f32.partialorder %v433, 16.5
      %vm680 = vcmp.lt.f32.partialorder %v434, 16.5
      %vm681 = vcmp.lt.f32.partialorder %v435, 16.5
      %vm682 = vcmp.lt.f32.partialorder %v436, 16.5
      %vm683 = vcmp.lt.f32.partialorder %v437, 16.5
      %vm684 = vcmp.lt.f32.partialorder %v438, 16.5
      %vm685 = vcmp.lt.f32.partialorder %v439, 16.5
      %vm686 = vcmp.lt.f32.partialorder %v440, 16.5
      %vm687 = vcmp.lt.f32.partialorder %v441, 16.5
      %vm688 = vcmp.lt.f32.partialorder %v442, 16.5
      %vm689 = vcmp.lt.f32.partialorder %v443, 16.5
      %vm690 = vcmp.lt.f32.partialorder %v444, 16.5
      %vm691 = vcmp.lt.f32.partialorder %v445, 16.5
      %vm692 = vcmp.lt.f32.partialorder %v446, 16.5
      %vm693 = vcmp.lt.f32.partialorder %v447, 16.5
      %vm694 = vcmp.lt.f32.partialorder %v448, 16.5
      %vm695 = vcmp.lt.f32.partialorder %v449, 16.5
      %vm696 = vcmp.lt.f32.partialorder %v450, 16.5
      %vm697 = vcmp.lt.f32.partialorder %v451, 16.5
      %vm698 = vcmp.lt.f32.partialorder %v452, 16.5
      %vm699 = vcmp.lt.f32.partialorder %v453, 16.5
      %vm700 = vcmp.lt.f32.partialorder %v454, 16.5
      %vm701 = vcmp.lt.f32.partialorder %v455, 16.5
      %vm702 = vmand %vm620, %vm661
      %vm703 = vmand %vm621, %vm662
      %vm704 = vmand %vm622, %vm663
      %vm705 = vmand %vm623, %vm664
      %vm706 = vmand %vm624, %vm665
      %vm707 = vmand %vm625, %vm666
      %vm708 = vmand %vm626, %vm667
      %vm709 = vmand %vm627, %vm668
      %vm710 = vmand %vm628, %vm669
      %vm711 = vmand %vm629, %vm670
      %vm712 = vmand %vm630, %vm671
      %vm713 = vmand %vm631, %vm672
      %vm714 = vmand %vm632, %vm673
      %vm715 = vmand %vm633, %vm674
      %vm716 = vmand %vm634, %vm675
      %vm717 = vmand %vm635, %vm676
      %vm718 = vmand %vm636, %vm677
      %vm719 = vmand %vm637, %vm678
      %vm720 = vmand %vm638, %vm679
      %vm721 = vmand %vm639, %vm680
      %vm722 = vmand %vm640, %vm681
      %vm723 = vmand %vm641, %vm682
      %vm724 = vmand %vm642, %vm683
      %vm725 = vmand %vm643, %vm684
      %vm726 = vmand %vm644, %vm685
      %vm727 = vmand %vm645, %vm686
      %vm728 = vmand %vm646, %vm687
      %vm729 = vmand %vm647, %vm688
      %vm730 = vmand %vm648, %vm689
      %vm731 = vmand %vm649, %vm690
      %vm732 = vmand %vm650, %vm691
      %vm733 = vmand %vm651, %vm692
      %vm734 = vmand %vm652, %vm693
      %vm735 = vmand %vm653, %vm694
      %vm736 = vmand %vm654, %vm695
      %vm737 = vmand %vm655, %vm696
      %vm738 = vmand %vm656, %vm697
      %vm739 = vmand %vm657, %vm698
      %vm740 = vmand %vm658, %vm699
      %vm741 = vmand %vm659, %vm700
      %vm742 = vmand %vm660, %vm701
      %v743 = vsel %vm702, 1.0, 0.0
      %v744 = vsel %vm703, 1.0, 0.0
      %v745 = vsel %vm704, 1.0, 0.0
      %v746 = vsel %vm705, 1.0, 0.0
      %v747 = vsel %vm706, 1.0, 0.0
      %v748 = vsel %vm707, 1.0, 0.0
      %v749 = vsel %vm708, 1.0, 0.0
      %v750 = vsel %vm709, 1.0, 0.0
      %v751 = vsel %vm710, 1.0, 0.0
      %v752 = vsel %vm711, 1.0, 0.0
      %v753 = vsel %vm712, 1.0, 0.0
      %v754 = vsel %vm713, 1.0, 0.0
      %v755 = vsel %vm714, 1.0, 0.0
      %v756 = vsel %vm715, 1.0, 0.0
      %v757 = vsel %vm716, 1.0, 0.0
      %v758 = vsel %vm717, 1.0, 0.0
      %v759 = vsel %vm718, 1.0, 0.0
      %v760 = vsel %vm719, 1.0, 0.0
      %v761 = vsel %vm720, 1.0, 0.0
      %v762 = vsel %vm721, 1.0, 0.0
      %v763 = vsel %vm722, 1.0, 0.0
      %v764 = vsel %vm723, 1.0, 0.0
      %v765 = vsel %vm724, 1.0, 0.0
      %v766 = vsel %vm725, 1.0, 0.0
      %v767 = vsel %vm726, 1.0, 0.0
      %v768 = vsel %vm727, 1.0, 0.0
      %v769 = vsel %vm728, 1.0, 0.0
      %v770 = vsel %vm729, 1.0, 0.0
      %v771 = vsel %vm730, 1.0, 0.0
      %v772 = vsel %vm731, 1.0, 0.0
      %v773 = vsel %vm732, 1.0, 0.0
      %v774 = vsel %vm733, 1.0, 0.0
      %v775 = vsel %vm734, 1.0, 0.0
      %v776 = vsel %vm735, 1.0, 0.0
      %v777 = vsel %vm736, 1.0, 0.0
      %v778 = vsel %vm737, 1.0, 0.0
      %v779 = vsel %vm738, 1.0, 0.0
      %v780 = vsel %vm739, 1.0, 0.0
      %v781 = vsel %vm740, 1.0, 0.0
      %v782 = vsel %vm741, 1.0, 0.0
      %v783 = vsel %vm742, 1.0, 0.0
      %v784 = vld [vmem:[%s199] sm:$0xff]
      %v785 = vld [vmem:[%s199 + $0x8] sm:$0xff]
      %v786 = vld [vmem:[%s199 + $0x10] sm:$0xff]
      %v787 = vld [vmem:[%s199 + $0x18] sm:$0xff]
      %v788 = vld [vmem:[%s199 + $0x20] sm:$0xff]
      %v789 = vld [vmem:[%s199 + $0x28] sm:$0xff]
      %v790 = vld [vmem:[%s199 + $0x30] sm:$0xff]
      %v791 = vld [vmem:[%s199 + $0x38] sm:$0xff]
      %v792 = vld [vmem:[%s199 + $0x40] sm:$0xff]
      %v793 = vld [vmem:[%s199 + $0x48] sm:$0xff]
      %v794 = vld [vmem:[%s199 + $0x50] sm:$0xff]
      %v795 = vld [vmem:[%s199 + $0x58] sm:$0xff]
      %v796 = vld [vmem:[%s199 + $0x60] sm:$0xff]
      %v797 = vld [vmem:[%s199 + $0x68] sm:$0xff]
      %v798 = vld [vmem:[%s199 + $0x70] sm:$0xff]
      %v799 = vld [vmem:[%s199 + $0x78] sm:$0xff]
      %v800 = vld [vmem:[%s199 + $0x80] sm:$0xff]
      %v801 = vld [vmem:[%s199 + $0x88] sm:$0xff]
      %v802 = vld [vmem:[%s199 + $0x90] sm:$0xff]
      %v803 = vld [vmem:[%s199 + $0x98] sm:$0xff]
      %v804 = vld [vmem:[%s199 + $0xa0] sm:$0xff]
      %v805 = vld [vmem:[%s199 + $0xa8] sm:$0xff]
      %v806 = vld [vmem:[%s199 + $0xb0] sm:$0xff]
      %v807 = vld [vmem:[%s199 + $0xb8] sm:$0xff]
      %v808 = vld [vmem:[%s199 + $0xc0] sm:$0xff]
      %v809 = vld [vmem:[%s199 + $0xc8] sm:$0xff]
      %v810 = vld [vmem:[%s199 + $0xd0] sm:$0xff]
      %v811 = vld [vmem:[%s199 + $0xd8] sm:$0xff]
      %v812 = vld [vmem:[%s199 + $0xe0] sm:$0xff]
      %v813 = vld [vmem:[%s199 + $0xe8] sm:$0xff]
      %v814 = vld [vmem:[%s199 + $0xf0] sm:$0xff]
      %v815 = vld [vmem:[%s199 + $0xf8] sm:$0xff]
      %v816 = vld [vmem:[%s199 + $0x100] sm:$0xff]
      %v817 = vld [vmem:[%s199 + $0x108] sm:$0xff]
      %v818 = vld [vmem:[%s199 + $0x110] sm:$0xff]
      %v819 = vld [vmem:[%s199 + $0x118] sm:$0xff]
      %v820 = vld [vmem:[%s199 + $0x120] sm:$0xff]
      %v821 = vld [vmem:[%s199 + $0x128] sm:$0xff]
      %v822 = vld [vmem:[%s199 + $0x130] sm:$0xff]
      %v823 = vld [vmem:[%s199 + $0x138] sm:$0xff]
      %v824 = vld [vmem:[%s199 + $0x140] sm:$0xf]
      %v825 = vld [vmem:[%s1] sm:$0xf]
      %v826 = vld [vmem:[%s199 + $0x1] sm:$0xff]
      %v827 = vld [vmem:[%s199 + $0x9] sm:$0xff]
      %v828 = vld [vmem:[%s199 + $0x11] sm:$0xff]
      %v829 = vld [vmem:[%s199 + $0x19] sm:$0xff]
      %v830 = vld [vmem:[%s199 + $0x21] sm:$0xff]
      %v831 = vld [vmem:[%s199 + $0x29] sm:$0xff]
      %v832 = vld [vmem:[%s199 + $0x31] sm:$0xff]
      %v833 = vld [vmem:[%s199 + $0x39] sm:$0xff]
      %v834 = vld [vmem:[%s199 + $0x41] sm:$0xff]
      %v835 = vld [vmem:[%s199 + $0x49] sm:$0xff]
      %v836 = vld [vmem:[%s199 + $0x51] sm:$0xff]
      %v837 = vld [vmem:[%s199 + $0x59] sm:$0xff]
      %v838 = vld [vmem:[%s199 + $0x61] sm:$0xff]
      %v839 = vld [vmem:[%s199 + $0x69] sm:$0xff]
      %v840 = vld [vmem:[%s199 + $0x71] sm:$0xff]
      %v841 = vld [vmem:[%s199 + $0x79] sm:$0xff]
      %v842 = vld [vmem:[%s199 + $0x81] sm:$0xff]
      %v843 = vld [vmem:[%s199 + $0x89] sm:$0xff]
      %v844 = vld [vmem:[%s199 + $0x91] sm:$0xff]
      %v845 = vld [vmem:[%s199 + $0x99] sm:$0xff]
      %v846 = vld [vmem:[%s199 + $0xa1] sm:$0xff]
      %v847 = vld [vmem:[%s199 + $0xa9] sm:$0xff]
      %v848 = vld [vmem:[%s199 + $0xb1] sm:$0xff]
      %v849 = vld [vmem:[%s199 + $0xb9] sm:$0xff]
      %v850 = vld [vmem:[%s199 + $0xc1] sm:$0xff]
      %v851 = vld [vmem:[%s199 + $0xc9] sm:$0xff]
      %v852 = vld [vmem:[%s199 + $0xd1] sm:$0xff]
      %v853 = vld [vmem:[%s199 + $0xd9] sm:$0xff]
      %v854 = vld [vmem:[%s199 + $0xe1] sm:$0xff]
      %v855 = vld [vmem:[%s199 + $0xe9] sm:$0xff]
      %v856 = vld [vmem:[%s199 + $0xf1] sm:$0xff]
      %v857 = vld [vmem:[%s199 + $0xf9] sm:$0xff]
      %v858 = vld [vmem:[%s199 + $0x101] sm:$0xff]
      %v859 = vld [vmem:[%s199 + $0x109] sm:$0xff]
      %v860 = vld [vmem:[%s199 + $0x111] sm:$0xff]
      %v861 = vld [vmem:[%s199 + $0x119] sm:$0xff]
      %v862 = vld [vmem:[%s199 + $0x121] sm:$0xff]
      %v863 = vld [vmem:[%s199 + $0x129] sm:$0xff]
      %v864 = vld [vmem:[%s199 + $0x131] sm:$0xff]
      %v865 = vld [vmem:[%s199 + $0x139] sm:$0xff]
      %v866 = vld [vmem:[%s199 + $0x141] sm:$0xf]
      %s867 = scalar_lea.vmem %s1, 4
      %v868 = vld [vmem:[%s867] sm:$0xf]
      %vm869 = vcmask 31744
      %v871 = vsel %vm869, %v826, 0
      %v874 = vsel %vm869, %v827, 0
      %v877 = vsel %vm869, %v828, 0
      %v880 = vsel %vm869, %v829, 0
      %v883 = vsel %vm869, %v830, 0
      %v886 = vsel %vm869, %v831, 0
      %v889 = vsel %vm869, %v832, 0
      %v892 = vsel %vm869, %v833, 0
      %v895 = vsel %vm869, %v834, 0
      %v898 = vsel %vm869, %v835, 0
      %v901 = vsel %vm869, %v836, 0
      %v904 = vsel %vm869, %v837, 0
      %v907 = vsel %vm869, %v838, 0
      %v910 = vsel %vm869, %v839, 0
      %v913 = vsel %vm869, %v840, 0
      %v916 = vsel %vm869, %v841, 0
      %v919 = vsel %vm869, %v842, 0
      %v922 = vsel %vm869, %v843, 0
      %v925 = vsel %vm869, %v844, 0
      %v928 = vsel %vm869, %v845, 0
      %v931 = vsel %vm869, %v846, 0
      %v934 = vsel %vm869, %v847, 0
      %v937 = vsel %vm869, %v848, 0
      %v940 = vsel %vm869, %v849, 0
      %v943 = vsel %vm869, %v850, 0
      %v946 = vsel %vm869, %v851, 0
      %v949 = vsel %vm869, %v852, 0
      %v952 = vsel %vm869, %v853, 0
      %v955 = vsel %vm869, %v854, 0
      %v958 = vsel %vm869, %v855, 0
      %v961 = vsel %vm869, %v856, 0
      %v964 = vsel %vm869, %v857, 0
      %v967 = vsel %vm869, %v858, 0
      %v970 = vsel %vm869, %v859, 0
      %v973 = vsel %vm869, %v860, 0
      %v976 = vsel %vm869, %v861, 0
      %v979 = vsel %vm869, %v862, 0
      %v982 = vsel %vm869, %v863, 0
      %v985 = vsel %vm869, %v864, 0
      %v988 = vsel %vm869, %v865, 0
      %v991 = vsel %vm869, %v866, 0
      %vm993 = vcmask 1043456
      %v995 = vsel %vm993, %v868, 0
      %997 = vmatprep.subr.mxu0 0.0
      %998 = vmatpush1.msra.mxu0 0.0
      %999 = vmatprep.subr.mxu0 0.0
      %1000 = vmatpush1.msra.mxu0 0.0
      %1001 = vmatprep.subr.mxu0 0.0
      %1002 = vmatpush1.msra.mxu0 0.0
      %1003 = vmatprep.subr.mxu0 0.0
      %1004 = vmatpush1.msra.mxu0 0.0
      %1005 = vmatprep.subr.mxu0 0.0
      %1006 = vmatpush1.msra.mxu0 0.0
      %1007 = vmatprep.subr.mxu0 0.0
      %1008 = vmatpush1.msra.mxu0 0.0
      %1009 = vmatprep.subr.mxu0 0.0
      %1010 = vmatpush1.msra.mxu0 0.0
      %1011 = vmatprep.subr.mxu0 0.0
      %1012 = vmatpush1.msra.mxu0 0.0
      %1013 = vmatprep.subr.mxu0 0.0
      %1014 = vmatpush1.msra.mxu0 0.0
      %1015 = vmatprep.subr.mxu0 0.0
      %1016 = vmatpush1.msra.mxu0 0.0
      %1017 = vmatprep.subr.mxu0 0.0
      %1018 = vmatpush1.msra.mxu0 0.0
      %1019 = vmatprep.subr.mxu0 0.0
      %1020 = vmatpush1.msra.mxu0 0.0
      %1021 = vmatprep.subr.mxu0 0.0
      %1022 = vmatpush1.msra.mxu0 0.0
      %1023 = vmatprep.subr.mxu0 0.0
      %1024 = vmatpush1.msra.mxu0 0.0
      %1025 = vmatprep.subr.mxu0 0.0
      %1026 = vmatpush1.msra.mxu0 0.0
      %1027 = vmatprep.subr.mxu0 0.0
      %1028 = vmatpush1.msra.mxu0 %v995
      %1029 = vmatprep.subr.mxu0 0.0
      %1030 = vmatpush2.msra.mxu0 0.0
      %1031 = vmatprep.subr.mxu0 0.0
      %1032 = vmatpush2.msra.mxu0 0.0
      %1033 = vmatprep.subr.mxu0 0.0
      %1034 = vmatpush2.msra.mxu0 0.0
      %1035 = vmatprep.subr.mxu0 0.0
      %1036 = vmatpush2.msra.mxu0 0.0
      %1037 = vmatprep.subr.mxu0 0.0
      %1038 = vmatpush2.msra.mxu0 0.0
      %1039 = vmatprep.subr.mxu0 0.0
      %1040 = vmatpush2.msra.mxu0 0.0
      %1041 = vmatprep.subr.mxu0 0.0
      %1042 = vmatpush2.msra.mxu0 0.0
      %1043 = vmatprep.subr.mxu0 0.0
      %1044 = vmatpush2.msra.mxu0 0.0
      %1045 = vmatprep.subr.mxu0 0.0
      %1046 = vmatpush2.msra.mxu0 0.0
      %1047 = vmatprep.subr.mxu0 0.0
      %1048 = vmatpush2.msra.mxu0 0.0
      %1049 = vmatprep.subr.mxu0 0.0
      %1050 = vmatpush2.msra.mxu0 0.0
      %1051 = vmatprep.subr.mxu0 0.0
      %1052 = vmatpush2.msra.mxu0 0.0
      %1053 = vmatprep.subr.mxu0 0.0
      %1054 = vmatpush2.msra.mxu0 0.0
      %1055 = vmatprep.subr.mxu0 0.0
      %1056 = vmatpush2.msra.mxu0 0.0
      %1057 = vmatprep.subr.mxu0 0.0
      %1058 = vmatpush2.msra.mxu0 0.0
      %1059 = vmatprep.subr.mxu0 0.0
      %1060 = vmatpush2.msra.mxu0 0.0
      %1061 = vmatprep.mubr.f32.mxu0 0.0
      %1062 = vmatmul.mubr.f32.gmra.mxu0 %v871
      %v1063 = vpop.f32.mrf.mxu0
      %v1064 = vadd.f32 0.0, %v1063
      %v1065 = vpop.f32.mrf.mxu0
      %1066 = vmatprep.mubr.f32.mxu0 0.0
      %1067 = vmatmul.mubr.f32.gmra.mxu0 %v874
      %v1068 = vpop.f32.mrf.mxu0
      %v1069 = vadd.f32 0.0, %v1068
      %v1070 = vpop.f32.mrf.mxu0
      %1071 = vmatprep.mubr.f32.mxu0 0.0
      %1072 = vmatmul.mubr.f32.gmra.mxu0 %v877
      %v1073 = vpop.f32.mrf.mxu0
      %v1074 = vadd.f32 0.0, %v1073
      %v1075 = vpop.f32.mrf.mxu0
      %1076 = vmatprep.mubr.f32.mxu0 0.0
      %1077 = vmatmul.mubr.f32.gmra.mxu0 %v880
      %v1078 = vpop.f32.mrf.mxu0
      %v1079 = vadd.f32 0.0, %v1078
      %v1080 = vpop.f32.mrf.mxu0
      %1081 = vmatprep.mubr.f32.mxu0 0.0
      %1082 = vmatmul.mubr.f32.gmra.mxu0 %v883
      %v1083 = vpop.f32.mrf.mxu0
      %v1084 = vadd.f32 0.0, %v1083
      %v1085 = vpop.f32.mrf.mxu0
      %1086 = vmatprep.mubr.f32.mxu0 0.0
      %1087 = vmatmul.mubr.f32.gmra.mxu0 %v886
      %v1088 = vpop.f32.mrf.mxu0
      %v1089 = vadd.f32 0.0, %v1088
      %v1090 = vpop.f32.mrf.mxu0
      %1091 = vmatprep.mubr.f32.mxu0 0.0
      %1092 = vmatmul.mubr.f32.gmra.mxu0 %v889
      %v1093 = vpop.f32.mrf.mxu0
      %v1094 = vadd.f32 0.0, %v1093
      %v1095 = vpop.f32.mrf.mxu0
      %1096 = vmatprep.mubr.f32.mxu0 0.0
      %1097 = vmatmul.mubr.f32.gmra.mxu0 %v892
      %v1098 = vpop.f32.mrf.mxu0
      %v1099 = vadd.f32 0.0, %v1098
      %v1100 = vpop.f32.mrf.mxu0
      %1101 = vmatprep.mubr.f32.mxu0 0.0
      %1102 = vmatmul.mubr.f32.gmra.mxu0 %v895
      %v1103 = vpop.f32.mrf.mxu0
      %v1104 = vadd.f32 0.0, %v1103
      %v1105 = vpop.f32.mrf.mxu0
      %1106 = vmatprep.mubr.f32.mxu0 0.0
      %1107 = vmatmul.mubr.f32.gmra.mxu0 %v898
      %v1108 = vpop.f32.mrf.mxu0
      %v1109 = vadd.f32 0.0, %v1108
      %v1110 = vpop.f32.mrf.mxu0
      %1111 = vmatprep.mubr.f32.mxu0 0.0
      %1112 = vmatmul.mubr.f32.gmra.mxu0 %v901
      %v1113 = vpop.f32.mrf.mxu0
      %v1114 = vadd.f32 0.0, %v1113
      %v1115 = vpop.f32.mrf.mxu0
      %1116 = vmatprep.mubr.f32.mxu0 0.0
      %1117 = vmatmul.mubr.f32.gmra.mxu0 %v904
      %v1118 = vpop.f32.mrf.mxu0
      %v1119 = vadd.f32 0.0, %v1118
      %v1120 = vpop.f32.mrf.mxu0
      %1121 = vmatprep.mubr.f32.mxu0 0.0
      %1122 = vmatmul.mubr.f32.gmra.mxu0 %v907
      %v1123 = vpop.f32.mrf.mxu0
      %v1124 = vadd.f32 0.0, %v1123
      %v1125 = vpop.f32.mrf.mxu0
      %1126 = vmatprep.mubr.f32.mxu0 0.0
      %1127 = vmatmul.mubr.f32.gmra.mxu0 %v910
      %v1128 = vpop.f32.mrf.mxu0
      %v1129 = vadd.f32 0.0, %v1128
      %v1130 = vpop.f32.mrf.mxu0
      %1131 = vmatprep.mubr.f32.mxu0 0.0
      %1132 = vmatmul.mubr.f32.gmra.mxu0 %v913
      %v1133 = vpop.f32.mrf.mxu0
      %v1134 = vadd.f32 0.0, %v1133
      %v1135 = vpop.f32.mrf.mxu0
      %1136 = vmatprep.mubr.f32.mxu0 0.0
      %1137 = vmatmul.mubr.f32.gmra.mxu0 %v916
      %v1138 = vpop.f32.mrf.mxu0
      %v1139 = vadd.f32 0.0, %v1138
      %v1140 = vpop.f32.mrf.mxu0
      %1141 = vmatprep.mubr.f32.mxu0 0.0
      %1142 = vmatmul.mubr.f32.gmra.mxu0 %v919
      %v1143 = vpop.f32.mrf.mxu0
      %v1144 = vadd.f32 0.0, %v1143
      %v1145 = vpop.f32.mrf.mxu0
      %1146 = vmatprep.mubr.f32.mxu0 0.0
      %1147 = vmatmul.mubr.f32.gmra.mxu0 %v922
      %v1148 = vpop.f32.mrf.mxu0
      %v1149 = vadd.f32 0.0, %v1148
      %v1150 = vpop.f32.mrf.mxu0
      %1151 = vmatprep.mubr.f32.mxu0 0.0
      %1152 = vmatmul.mubr.f32.gmra.mxu0 %v925
      %v1153 = vpop.f32.mrf.mxu0
      %v1154 = vadd.f32 0.0, %v1153
      %v1155 = vpop.f32.mrf.mxu0
      %1156 = vmatprep.mubr.f32.mxu0 0.0
      %1157 = vmatmul.mubr.f32.gmra.mxu0 %v928
      %v1158 = vpop.f32.mrf.mxu0
      %v1159 = vadd.f32 0.0, %v1158
      %v1160 = vpop.f32.mrf.mxu0
      %1161 = vmatprep.mubr.f32.mxu0 0.0
      %1162 = vmatmul.mubr.f32.gmra.mxu0 %v931
      %v1163 = vpop.f32.mrf.mxu0
      %v1164 = vadd.f32 0.0, %v1163
      %v1165 = vpop.f32.mrf.mxu0
      %1166 = vmatprep.mubr.f32.mxu0 0.0
      %1167 = vmatmul.mubr.f32.gmra.mxu0 %v934
      %v1168 = vpop.f32.mrf.mxu0
      %v1169 = vadd.f32 0.0, %v1168
      %v1170 = vpop.f32.mrf.mxu0
      %1171 = vmatprep.mubr.f32.mxu0 0.0
      %1172 = vmatmul.mubr.f32.gmra.mxu0 %v937
      %v1173 = vpop.f32.mrf.mxu0
      %v1174 = vadd.f32 0.0, %v1173
      %v1175 = vpop.f32.mrf.mxu0
      %1176 = vmatprep.mubr.f32.mxu0 0.0
      %1177 = vmatmul.mubr.f32.gmra.mxu0 %v940
      %v1178 = vpop.f32.mrf.mxu0
      %v1179 = vadd.f32 0.0, %v1178
      %v1180 = vpop.f32.mrf.mxu0
      %1181 = vmatprep.mubr.f32.mxu0 0.0
      %1182 = vmatmul.mubr.f32.gmra.mxu0 %v943
      %v1183 = vpop.f32.mrf.mxu0
      %v1184 = vadd.f32 0.0, %v1183
      %v1185 = vpop.f32.mrf.mxu0
      %1186 = vmatprep.mubr.f32.mxu0 0.0
      %1187 = vmatmul.mubr.f32.gmra.mxu0 %v946
      %v1188 = vpop.f32.mrf.mxu0
      %v1189 = vadd.f32 0.0, %v1188
      %v1190 = vpop.f32.mrf.mxu0
      %1191 = vmatprep.mubr.f32.mxu0 0.0
      %1192 = vmatmul.mubr.f32.gmra.mxu0 %v949
      %v1193 = vpop.f32.mrf.mxu0
      %v1194 = vadd.f32 0.0, %v1193
      %v1195 = vpop.f32.mrf.mxu0
      %1196 = vmatprep.mubr.f32.mxu0 0.0
      %1197 = vmatmul.mubr.f32.gmra.mxu0 %v952
      %v1198 = vpop.f32.mrf.mxu0
      %v1199 = vadd.f32 0.0, %v1198
      %v1200 = vpop.f32.mrf.mxu0
      %1201 = vmatprep.mubr.f32.mxu0 0.0
      %1202 = vmatmul.mubr.f32.gmra.mxu0 %v955
      %v1203 = vpop.f32.mrf.mxu0
      %v1204 = vadd.f32 0.0, %v1203
      %v1205 = vpop.f32.mrf.mxu0
      %1206 = vmatprep.mubr.f32.mxu0 0.0
      %1207 = vmatmul.mubr.f32.gmra.mxu0 %v958
      %v1208 = vpop.f32.mrf.mxu0
      %v1209 = vadd.f32 0.0, %v1208
      %v1210 = vpop.f32.mrf.mxu0
      %1211 = vmatprep.mubr.f32.mxu0 0.0
      %1212 = vmatmul.mubr.f32.gmra.mxu0 %v961
      %v1213 = vpop.f32.mrf.mxu0
      %v1214 = vadd.f32 0.0, %v1213
      %v1215 = vpop.f32.mrf.mxu0
      %1216 = vmatprep.mubr.f32.mxu0 0.0
      %1217 = vmatmul.mubr.f32.gmra.mxu0 %v964
      %v1218 = vpop.f32.mrf.mxu0
      %v1219 = vadd.f32 0.0, %v1218
      %v1220 = vpop.f32.mrf.mxu0
      %1221 = vmatprep.mubr.f32.mxu0 0.0
      %1222 = vmatmul.mubr.f32.gmra.mxu0 %v967
      %v1223 = vpop.f32.mrf.mxu0
      %v1224 = vadd.f32 0.0, %v1223
      %v1225 = vpop.f32.mrf.mxu0
      %1226 = vmatprep.mubr.f32.mxu0 0.0
      %1227 = vmatmul.mubr.f32.gmra.mxu0 %v970
      %v1228 = vpop.f32.mrf.mxu0
      %v1229 = vadd.f32 0.0, %v1228
      %v1230 = vpop.f32.mrf.mxu0
      %1231 = vmatprep.mubr.f32.mxu0 0.0
      %1232 = vmatmul.mubr.f32.gmra.mxu0 %v973
      %v1233 = vpop.f32.mrf.mxu0
      %v1234 = vadd.f32 0.0, %v1233
      %v1235 = vpop.f32.mrf.mxu0
      %1236 = vmatprep.mubr.f32.mxu0 0.0
      %1237 = vmatmul.mubr.f32.gmra.mxu0 %v976
      %v1238 = vpop.f32.mrf.mxu0
      %v1239 = vadd.f32 0.0, %v1238
      %v1240 = vpop.f32.mrf.mxu0
      %1241 = vmatprep.mubr.f32.mxu0 0.0
      %1242 = vmatmul.mubr.f32.gmra.mxu0 %v979
      %v1243 = vpop.f32.mrf.mxu0
      %v1244 = vadd.f32 0.0, %v1243
      %v1245 = vpop.f32.mrf.mxu0
      %1246 = vmatprep.mubr.f32.mxu0 0.0
      %1247 = vmatmul.mubr.f32.gmra.mxu0 %v982
      %v1248 = vpop.f32.mrf.mxu0
      %v1249 = vadd.f32 0.0, %v1248
      %v1250 = vpop.f32.mrf.mxu0
      %1251 = vmatprep.mubr.f32.mxu0 0.0
      %1252 = vmatmul.mubr.f32.gmra.mxu0 %v985
      %v1253 = vpop.f32.mrf.mxu0
      %v1254 = vadd.f32 0.0, %v1253
      %v1255 = vpop.f32.mrf.mxu0
      %1256 = vmatprep.mubr.f32.mxu0 0.0
      %1257 = vmatmul.mubr.f32.gmra.mxu0 %v988
      %v1258 = vpop.f32.mrf.mxu0
      %v1259 = vadd.f32 0.0, %v1258
      %v1260 = vpop.f32.mrf.mxu0
      %1261 = vmatprep.mubr.f32.mxu0 0.0
      %1262 = vmatmul.mubr.f32.gmra.mxu0 %v991
      %v1263 = vpop.f32.mrf.mxu0
      %v1264 = vadd.f32 0.0, %v1263
      %v1265 = vpop.f32.mrf.mxu0
      %1266 = vdwg.mxu0
      %v1268 = vsel %vm869, %v784, 0
      %v1271 = vsel %vm869, %v785, 0
      %v1274 = vsel %vm869, %v786, 0
      %v1277 = vsel %vm869, %v787, 0
      %v1280 = vsel %vm869, %v788, 0
      %v1283 = vsel %vm869, %v789, 0
      %v1286 = vsel %vm869, %v790, 0
      %v1289 = vsel %vm869, %v791, 0
      %v1292 = vsel %vm869, %v792, 0
      %v1295 = vsel %vm869, %v793, 0
      %v1298 = vsel %vm869, %v794, 0
      %v1301 = vsel %vm869, %v795, 0
      %v1304 = vsel %vm869, %v796, 0
      %v1307 = vsel %vm869, %v797, 0
      %v1310 = vsel %vm869, %v798, 0
      %v1313 = vsel %vm869, %v799, 0
      %v1316 = vsel %vm869, %v800, 0
      %v1319 = vsel %vm869, %v801, 0
      %v1322 = vsel %vm869, %v802, 0
      %v1325 = vsel %vm869, %v803, 0
      %v1328 = vsel %vm869, %v804, 0
      %v1331 = vsel %vm869, %v805, 0
      %v1334 = vsel %vm869, %v806, 0
      %v1337 = vsel %vm869, %v807, 0
      %v1340 = vsel %vm869, %v808, 0
      %v1343 = vsel %vm869, %v809, 0
      %v1346 = vsel %vm869, %v810, 0
      %v1349 = vsel %vm869, %v811, 0
      %v1352 = vsel %vm869, %v812, 0
      %v1355 = vsel %vm869, %v813, 0
      %v1358 = vsel %vm869, %v814, 0
      %v1361 = vsel %vm869, %v815, 0
      %v1364 = vsel %vm869, %v816, 0
      %v1367 = vsel %vm869, %v817, 0
      %v1370 = vsel %vm869, %v818, 0
      %v1373 = vsel %vm869, %v819, 0
      %v1376 = vsel %vm869, %v820, 0
      %v1379 = vsel %vm869, %v821, 0
      %v1382 = vsel %vm869, %v822, 0
      %v1385 = vsel %vm869, %v823, 0
      %v1388 = vsel %vm869, %v824, 0
      %v1391 = vsel %vm993, %v825, 0
      %1393 = vmatprep.subr.mxu0 0.0
      %1394 = vmatpush1.msra.mxu0 0.0
      %1395 = vmatprep.subr.mxu0 0.0
      %1396 = vmatpush1.msra.mxu0 0.0
      %1397 = vmatprep.subr.mxu0 0.0
      %1398 = vmatpush1.msra.mxu0 0.0
      %1399 = vmatprep.subr.mxu0 0.0
      %1400 = vmatpush1.msra.mxu0 0.0
      %1401 = vmatprep.subr.mxu0 0.0
      %1402 = vmatpush1.msra.mxu0 0.0
      %1403 = vmatprep.subr.mxu0 0.0
      %1404 = vmatpush1.msra.mxu0 0.0
      %1405 = vmatprep.subr.mxu0 0.0
      %1406 = vmatpush1.msra.mxu0 0.0
      %1407 = vmatprep.subr.mxu0 0.0
      %1408 = vmatpush1.msra.mxu0 0.0
      %1409 = vmatprep.subr.mxu0 0.0
      %1410 = vmatpush1.msra.mxu0 0.0
      %1411 = vmatprep.subr.mxu0 0.0
      %1412 = vmatpush1.msra.mxu0 0.0
      %1413 = vmatprep.subr.mxu0 0.0
      %1414 = vmatpush1.msra.mxu0 0.0
      %1415 = vmatprep.subr.mxu0 0.0
      %1416 = vmatpush1.msra.mxu0 0.0
      %1417 = vmatprep.subr.mxu0 0.0
      %1418 = vmatpush1.msra.mxu0 0.0
      %1419 = vmatprep.subr.mxu0 0.0
      %1420 = vmatpush1.msra.mxu0 0.0
      %1421 = vmatprep.subr.mxu0 0.0
      %1422 = vmatpush1.msra.mxu0 0.0
      %1423 = vmatprep.subr.mxu0 0.0
      %1424 = vmatpush1.msra.mxu0 %v1391
      %1425 = vmatprep.subr.mxu0 0.0
      %1426 = vmatpush2.msra.mxu0 0.0
      %1427 = vmatprep.subr.mxu0 0.0
      %1428 = vmatpush2.msra.mxu0 0.0
      %1429 = vmatprep.subr.mxu0 0.0
      %1430 = vmatpush2.msra.mxu0 0.0
      %1431 = vmatprep.subr.mxu0 0.0
      %1432 = vmatpush2.msra.mxu0 0.0
      %1433 = vmatprep.subr.mxu0 0.0
      %1434 = vmatpush2.msra.mxu0 0.0
      %1435 = vmatprep.subr.mxu0 0.0
      %1436 = vmatpush2.msra.mxu0 0.0
      %1437 = vmatprep.subr.mxu0 0.0
      %1438 = vmatpush2.msra.mxu0 0.0
      %1439 = vmatprep.subr.mxu0 0.0
      %1440 = vmatpush2.msra.mxu0 0.0
      %1441 = vmatprep.subr.mxu0 0.0
      %1442 = vmatpush2.msra.mxu0 0.0
      %1443 = vmatprep.subr.mxu0 0.0
      %1444 = vmatpush2.msra.mxu0 0.0
      %1445 = vmatprep.subr.mxu0 0.0
      %1446 = vmatpush2.msra.mxu0 0.0
      %1447 = vmatprep.subr.mxu0 0.0
      %1448 = vmatpush2.msra.mxu0 0.0
      %1449 = vmatprep.subr.mxu0 0.0
      %1450 = vmatpush2.msra.mxu0 0.0
      %1451 = vmatprep.subr.mxu0 0.0
      %1452 = vmatpush2.msra.mxu0 0.0
      %1453 = vmatprep.subr.mxu0 0.0
      %1454 = vmatpush2.msra.mxu0 0.0
      %1455 = vmatprep.subr.mxu0 0.0
      %1456 = vmatpush2.msra.mxu0 0.0
      %1457 = vmatprep.mubr.f32.mxu0 0.0
      %1458 = vmatmul.mubr.f32.gmra.mxu0 %v1268
      %v1459 = vpop.f32.mrf.mxu0
      %v1460 = vadd.f32 %v1064, %v1459
      %v1461 = vpop.f32.mrf.mxu0
      %1462 = vmatprep.mubr.f32.mxu0 0.0
      %1463 = vmatmul.mubr.f32.gmra.mxu0 %v1271
      %v1464 = vpop.f32.mrf.mxu0
      %v1465 = vadd.f32 %v1069, %v1464
      %v1466 = vpop.f32.mrf.mxu0
      %1467 = vmatprep.mubr.f32.mxu0 0.0
      %1468 = vmatmul.mubr.f32.gmra.mxu0 %v1274
      %v1469 = vpop.f32.mrf.mxu0
      %v1470 = vadd.f32 %v1074, %v1469
      %v1471 = vpop.f32.mrf.mxu0
      %1472 = vmatprep.mubr.f32.mxu0 0.0
      %1473 = vmatmul.mubr.f32.gmra.mxu0 %v1277
      %v1474 = vpop.f32.mrf.mxu0
      %v1475 = vadd.f32 %v1079, %v1474
      %v1476 = vpop.f32.mrf.mxu0
      %1477 = vmatprep.mubr.f32.mxu0 0.0
      %1478 = vmatmul.mubr.f32.gmra.mxu0 %v1280
      %v1479 = vpop.f32.mrf.mxu0
      %v1480 = vadd.f32 %v1084, %v1479
      %v1481 = vpop.f32.mrf.mxu0
      %1482 = vmatprep.mubr.f32.mxu0 0.0
      %1483 = vmatmul.mubr.f32.gmra.mxu0 %v1283
      %v1484 = vpop.f32.mrf.mxu0
      %v1485 = vadd.f32 %v1089, %v1484
      %v1486 = vpop.f32.mrf.mxu0
      %1487 = vmatprep.mubr.f32.mxu0 0.0
      %1488 = vmatmul.mubr.f32.gmra.mxu0 %v1286
      %v1489 = vpop.f32.mrf.mxu0
      %v1490 = vadd.f32 %v1094, %v1489
      %v1491 = vpop.f32.mrf.mxu0
      %1492 = vmatprep.mubr.f32.mxu0 0.0
      %1493 = vmatmul.mubr.f32.gmra.mxu0 %v1289
      %v1494 = vpop.f32.mrf.mxu0
      %v1495 = vadd.f32 %v1099, %v1494
      %v1496 = vpop.f32.mrf.mxu0
      %1497 = vmatprep.mubr.f32.mxu0 0.0
      %1498 = vmatmul.mubr.f32.gmra.mxu0 %v1292
      %v1499 = vpop.f32.mrf.mxu0
      %v1500 = vadd.f32 %v1104, %v1499
      %v1501 = vpop.f32.mrf.mxu0
      %1502 = vmatprep.mubr.f32.mxu0 0.0
      %1503 = vmatmul.mubr.f32.gmra.mxu0 %v1295
      %v1504 = vpop.f32.mrf.mxu0
      %v1505 = vadd.f32 %v1109, %v1504
      %v1506 = vpop.f32.mrf.mxu0
      %1507 = vmatprep.mubr.f32.mxu0 0.0
      %1508 = vmatmul.mubr.f32.gmra.mxu0 %v1298
      %v1509 = vpop.f32.mrf.mxu0
      %v1510 = vadd.f32 %v1114, %v1509
      %v1511 = vpop.f32.mrf.mxu0
      %1512 = vmatprep.mubr.f32.mxu0 0.0
      %1513 = vmatmul.mubr.f32.gmra.mxu0 %v1301
      %v1514 = vpop.f32.mrf.mxu0
      %v1515 = vadd.f32 %v1119, %v1514
      %v1516 = vpop.f32.mrf.mxu0
      %1517 = vmatprep.mubr.f32.mxu0 0.0
      %1518 = vmatmul.mubr.f32.gmra.mxu0 %v1304
      %v1519 = vpop.f32.mrf.mxu0
      %v1520 = vadd.f32 %v1124, %v1519
      %v1521 = vpop.f32.mrf.mxu0
      %1522 = vmatprep.mubr.f32.mxu0 0.0
      %1523 = vmatmul.mubr.f32.gmra.mxu0 %v1307
      %v1524 = vpop.f32.mrf.mxu0
      %v1525 = vadd.f32 %v1129, %v1524
      %v1526 = vpop.f32.mrf.mxu0
      %1527 = vmatprep.mubr.f32.mxu0 0.0
      %1528 = vmatmul.mubr.f32.gmra.mxu0 %v1310
      %v1529 = vpop.f32.mrf.mxu0
      %v1530 = vadd.f32 %v1134, %v1529
      %v1531 = vpop.f32.mrf.mxu0
      %1532 = vmatprep.mubr.f32.mxu0 0.0
      %1533 = vmatmul.mubr.f32.gmra.mxu0 %v1313
      %v1534 = vpop.f32.mrf.mxu0
      %v1535 = vadd.f32 %v1139, %v1534
      %v1536 = vpop.f32.mrf.mxu0
      %1537 = vmatprep.mubr.f32.mxu0 0.0
      %1538 = vmatmul.mubr.f32.gmra.mxu0 %v1316
      %v1539 = vpop.f32.mrf.mxu0
      %v1540 = vadd.f32 %v1144, %v1539
      %v1541 = vpop.f32.mrf.mxu0
      %1542 = vmatprep.mubr.f32.mxu0 0.0
      %1543 = vmatmul.mubr.f32.gmra.mxu0 %v1319
      %v1544 = vpop.f32.mrf.mxu0
      %v1545 = vadd.f32 %v1149, %v1544
      %v1546 = vpop.f32.mrf.mxu0
      %1547 = vmatprep.mubr.f32.mxu0 0.0
      %1548 = vmatmul.mubr.f32.gmra.mxu0 %v1322
      %v1549 = vpop.f32.mrf.mxu0
      %v1550 = vadd.f32 %v1154, %v1549
      %v1551 = vpop.f32.mrf.mxu0
      %1552 = vmatprep.mubr.f32.mxu0 0.0
      %1553 = vmatmul.mubr.f32.gmra.mxu0 %v1325
      %v1554 = vpop.f32.mrf.mxu0
      %v1555 = vadd.f32 %v1159, %v1554
      %v1556 = vpop.f32.mrf.mxu0
      %1557 = vmatprep.mubr.f32.mxu0 0.0
      %1558 = vmatmul.mubr.f32.gmra.mxu0 %v1328
      %v1559 = vpop.f32.mrf.mxu0
      %v1560 = vadd.f32 %v1164, %v1559
      %v1561 = vpop.f32.mrf.mxu0
      %1562 = vmatprep.mubr.f32.mxu0 0.0
      %1563 = vmatmul.mubr.f32.gmra.mxu0 %v1331
      %v1564 = vpop.f32.mrf.mxu0
      %v1565 = vadd.f32 %v1169, %v1564
      %v1566 = vpop.f32.mrf.mxu0
      %1567 = vmatprep.mubr.f32.mxu0 0.0
      %1568 = vmatmul.mubr.f32.gmra.mxu0 %v1334
      %v1569 = vpop.f32.mrf.mxu0
      %v1570 = vadd.f32 %v1174, %v1569
      %v1571 = vpop.f32.mrf.mxu0
      %1572 = vmatprep.mubr.f32.mxu0 0.0
      %1573 = vmatmul.mubr.f32.gmra.mxu0 %v1337
      %v1574 = vpop.f32.mrf.mxu0
      %v1575 = vadd.f32 %v1179, %v1574
      %v1576 = vpop.f32.mrf.mxu0
      %1577 = vmatprep.mubr.f32.mxu0 0.0
      %1578 = vmatmul.mubr.f32.gmra.mxu0 %v1340
      %v1579 = vpop.f32.mrf.mxu0
      %v1580 = vadd.f32 %v1184, %v1579
      %v1581 = vpop.f32.mrf.mxu0
      %1582 = vmatprep.mubr.f32.mxu0 0.0
      %1583 = vmatmul.mubr.f32.gmra.mxu0 %v1343
      %v1584 = vpop.f32.mrf.mxu0
      %v1585 = vadd.f32 %v1189, %v1584
      %v1586 = vpop.f32.mrf.mxu0
      %1587 = vmatprep.mubr.f32.mxu0 0.0
      %1588 = vmatmul.mubr.f32.gmra.mxu0 %v1346
      %v1589 = vpop.f32.mrf.mxu0
      %v1590 = vadd.f32 %v1194, %v1589
      %v1591 = vpop.f32.mrf.mxu0
      %1592 = vmatprep.mubr.f32.mxu0 0.0
      %1593 = vmatmul.mubr.f32.gmra.mxu0 %v1349
      %v1594 = vpop.f32.mrf.mxu0
      %v1595 = vadd.f32 %v1199, %v1594
      %v1596 = vpop.f32.mrf.mxu0
      %1597 = vmatprep.mubr.f32.mxu0 0.0
      %1598 = vmatmul.mubr.f32.gmra.mxu0 %v1352
      %v1599 = vpop.f32.mrf.mxu0
      %v1600 = vadd.f32 %v1204, %v1599
      %v1601 = vpop.f32.mrf.mxu0
      %1602 = vmatprep.mubr.f32.mxu0 0.0
      %1603 = vmatmul.mubr.f32.gmra.mxu0 %v1355
      %v1604 = vpop.f32.mrf.mxu0
      %v1605 = vadd.f32 %v1209, %v1604
      %v1606 = vpop.f32.mrf.mxu0
      %1607 = vmatprep.mubr.f32.mxu0 0.0
      %1608 = vmatmul.mubr.f32.gmra.mxu0 %v1358
      %v1609 = vpop.f32.mrf.mxu0
      %v1610 = vadd.f32 %v1214, %v1609
      %v1611 = vpop.f32.mrf.mxu0
      %1612 = vmatprep.mubr.f32.mxu0 0.0
      %1613 = vmatmul.mubr.f32.gmra.mxu0 %v1361
      %v1614 = vpop.f32.mrf.mxu0
      %v1615 = vadd.f32 %v1219, %v1614
      %v1616 = vpop.f32.mrf.mxu0
      %1617 = vmatprep.mubr.f32.mxu0 0.0
      %1618 = vmatmul.mubr.f32.gmra.mxu0 %v1364
      %v1619 = vpop.f32.mrf.mxu0
      %v1620 = vadd.f32 %v1224, %v1619
      %v1621 = vpop.f32.mrf.mxu0
      %1622 = vmatprep.mubr.f32.mxu0 0.0
      %1623 = vmatmul.mubr.f32.gmra.mxu0 %v1367
      %v1624 = vpop.f32.mrf.mxu0
      %v1625 = vadd.f32 %v1229, %v1624
      %v1626 = vpop.f32.mrf.mxu0
      %1627 = vmatprep.mubr.f32.mxu0 0.0
      %1628 = vmatmul.mubr.f32.gmra.mxu0 %v1370
      %v1629 = vpop.f32.mrf.mxu0
      %v1630 = vadd.f32 %v1234, %v1629
      %v1631 = vpop.f32.mrf.mxu0
      %1632 = vmatprep.mubr.f32.mxu0 0.0
      %1633 = vmatmul.mubr.f32.gmra.mxu0 %v1373
      %v1634 = vpop.f32.mrf.mxu0
      %v1635 = vadd.f32 %v1239, %v1634
      %v1636 = vpop.f32.mrf.mxu0
      %1637 = vmatprep.mubr.f32.mxu0 0.0
      %1638 = vmatmul.mubr.f32.gmra.mxu0 %v1376
      %v1639 = vpop.f32.mrf.mxu0
      %v1640 = vadd.f32 %v1244, %v1639
      %v1641 = vpop.f32.mrf.mxu0
      %1642 = vmatprep.mubr.f32.mxu0 0.0
      %1643 = vmatmul.mubr.f32.gmra.mxu0 %v1379
      %v1644 = vpop.f32.mrf.mxu0
      %v1645 = vadd.f32 %v1249, %v1644
      %v1646 = vpop.f32.mrf.mxu0
      %1647 = vmatprep.mubr.f32.mxu0 0.0
      %1648 = vmatmul.mubr.f32.gmra.mxu0 %v1382
      %v1649 = vpop.f32.mrf.mxu0
      %v1650 = vadd.f32 %v1254, %v1649
      %v1651 = vpop.f32.mrf.mxu0
      %1652 = vmatprep.mubr.f32.mxu0 0.0
      %1653 = vmatmul.mubr.f32.gmra.mxu0 %v1385
      %v1654 = vpop.f32.mrf.mxu0
      %v1655 = vadd.f32 %v1259, %v1654
      %v1656 = vpop.f32.mrf.mxu0
      %1657 = vmatprep.mubr.f32.mxu0 0.0
      %1658 = vmatmul.mubr.f32.gmra.mxu0 %v1388
      %v1659 = vpop.f32.mrf.mxu0
      %v1660 = vadd.f32 %v1264, %v1659
      %v1661 = vpop.f32.mrf.mxu0
      %1662 = vdwg.mxu0
      %v1663 = vld [vmem:[%s199 + $0x2] sm:$0xff]
      %v1664 = vld [vmem:[%s199 + $0xa] sm:$0xff]
      %v1665 = vld [vmem:[%s199 + $0x12] sm:$0xff]
      %v1666 = vld [vmem:[%s199 + $0x1a] sm:$0xff]
      %v1667 = vld [vmem:[%s199 + $0x22] sm:$0xff]
      %v1668 = vld [vmem:[%s199 + $0x2a] sm:$0xff]
      %v1669 = vld [vmem:[%s199 + $0x32] sm:$0xff]
      %v1670 = vld [vmem:[%s199 + $0x3a] sm:$0xff]
      %v1671 = vld [vmem:[%s199 + $0x42] sm:$0xff]
      %v1672 = vld [vmem:[%s199 + $0x4a] sm:$0xff]
      %v1673 = vld [vmem:[%s199 + $0x52] sm:$0xff]
      %v1674 = vld [vmem:[%s199 + $0x5a] sm:$0xff]
      %v1675 = vld [vmem:[%s199 + $0x62] sm:$0xff]
      %v1676 = vld [vmem:[%s199 + $0x6a] sm:$0xff]
      %v1677 = vld [vmem:[%s199 + $0x72] sm:$0xff]
      %v1678 = vld [vmem:[%s199 + $0x7a] sm:$0xff]
      %v1679 = vld [vmem:[%s199 + $0x82] sm:$0xff]
      %v1680 = vld [vmem:[%s199 + $0x8a] sm:$0xff]
      %v1681 = vld [vmem:[%s199 + $0x92] sm:$0xff]
      %v1682 = vld [vmem:[%s199 + $0x9a] sm:$0xff]
      %v1683 = vld [vmem:[%s199 + $0xa2] sm:$0xff]
      %v1684 = vld [vmem:[%s199 + $0xaa] sm:$0xff]
      %v1685 = vld [vmem:[%s199 + $0xb2] sm:$0xff]
      %v1686 = vld [vmem:[%s199 + $0xba] sm:$0xff]
      %v1687 = vld [vmem:[%s199 + $0xc2] sm:$0xff]
      %v1688 = vld [vmem:[%s199 + $0xca] sm:$0xff]
      %v1689 = vld [vmem:[%s199 + $0xd2] sm:$0xff]
      %v1690 = vld [vmem:[%s199 + $0xda] sm:$0xff]
      %v1691 = vld [vmem:[%s199 + $0xe2] sm:$0xff]
      %v1692 = vld [vmem:[%s199 + $0xea] sm:$0xff]
      %v1693 = vld [vmem:[%s199 + $0xf2] sm:$0xff]
      %v1694 = vld [vmem:[%s199 + $0xfa] sm:$0xff]
      %v1695 = vld [vmem:[%s199 + $0x102] sm:$0xff]
      %v1696 = vld [vmem:[%s199 + $0x10a] sm:$0xff]
      %v1697 = vld [vmem:[%s199 + $0x112] sm:$0xff]
      %v1698 = vld [vmem:[%s199 + $0x11a] sm:$0xff]
      %v1699 = vld [vmem:[%s199 + $0x122] sm:$0xff]
      %v1700 = vld [vmem:[%s199 + $0x12a] sm:$0xff]
      %v1701 = vld [vmem:[%s199 + $0x132] sm:$0xff]
      %v1702 = vld [vmem:[%s199 + $0x13a] sm:$0xff]
      %v1703 = vld [vmem:[%s199 + $0x142] sm:$0xf]
      %s1704 = scalar_lea.vmem %s1, 8
      %v1705 = vld [vmem:[%s1704] sm:$0xf]
      %v1707 = vsel %vm869, %v1663, 0
      %v1710 = vsel %vm869, %v1664, 0
      %v1713 = vsel %vm869, %v1665, 0
      %v1716 = vsel %vm869, %v1666, 0
      %v1719 = vsel %vm869, %v1667, 0
      %v1722 = vsel %vm869, %v1668, 0
      %v1725 = vsel %vm869, %v1669, 0
      %v1728 = vsel %vm869, %v1670, 0
      %v1731 = vsel %vm869, %v1671, 0
      %v1734 = vsel %vm869, %v1672, 0
      %v1737 = vsel %vm869, %v1673, 0
      %v1740 = vsel %vm869, %v1674, 0
      %v1743 = vsel %vm869, %v1675, 0
      %v1746 = vsel %vm869, %v1676, 0
      %v1749 = vsel %vm869, %v1677, 0
      %v1752 = vsel %vm869, %v1678, 0
      %v1755 = vsel %vm869, %v1679, 0
      %v1758 = vsel %vm869, %v1680, 0
      %v1761 = vsel %vm869, %v1681, 0
      %v1764 = vsel %vm869, %v1682, 0
      %v1767 = vsel %vm869, %v1683, 0
      %v1770 = vsel %vm869, %v1684, 0
      %v1773 = vsel %vm869, %v1685, 0
      %v1776 = vsel %vm869, %v1686, 0
      %v1779 = vsel %vm869, %v1687, 0
      %v1782 = vsel %vm869, %v1688, 0
      %v1785 = vsel %vm869, %v1689, 0
      %v1788 = vsel %vm869, %v1690, 0
      %v1791 = vsel %vm869, %v1691, 0
      %v1794 = vsel %vm869, %v1692, 0
      %v1797 = vsel %vm869, %v1693, 0
      %v1800 = vsel %vm869, %v1694, 0
      %v1803 = vsel %vm869, %v1695, 0
      %v1806 = vsel %vm869, %v1696, 0
      %v1809 = vsel %vm869, %v1697, 0
      %v1812 = vsel %vm869, %v1698, 0
      %v1815 = vsel %vm869, %v1699, 0
      %v1818 = vsel %vm869, %v1700, 0
      %v1821 = vsel %vm869, %v1701, 0
      %v1824 = vsel %vm869, %v1702, 0
      %v1827 = vsel %vm869, %v1703, 0
      %v1830 = vsel %vm993, %v1705, 0
      %1832 = vmatprep.subr.mxu0 0.0
      %1833 = vmatpush1.msra.mxu0 0.0
      %1834 = vmatprep.subr.mxu0 0.0
      %1835 = vmatpush1.msra.mxu0 0.0
      %1836 = vmatprep.subr.mxu0 0.0
      %1837 = vmatpush1.msra.mxu0 0.0
      %1838 = vmatprep.subr.mxu0 0.0
      %1839 = vmatpush1.msra.mxu0 0.0
      %1840 = vmatprep.subr.mxu0 0.0
      %1841 = vmatpush1.msra.mxu0 0.0
      %1842 = vmatprep.subr.mxu0 0.0
      %1843 = vmatpush1.msra.mxu0 0.0
      %1844 = vmatprep.subr.mxu0 0.0
      %1845 = vmatpush1.msra.mxu0 0.0
      %1846 = vmatprep.subr.mxu0 0.0
      %1847 = vmatpush1.msra.mxu0 0.0
      %1848 = vmatprep.subr.mxu0 0.0
      %1849 = vmatpush1.msra.mxu0 0.0
      %1850 = vmatprep.subr.mxu0 0.0
      %1851 = vmatpush1.msra.mxu0 0.0
      %1852 = vmatprep.subr.mxu0 0.0
      %1853 = vmatpush1.msra.mxu0 0.0
      %1854 = vmatprep.subr.mxu0 0.0
      %1855 = vmatpush1.msra.mxu0 0.0
      %1856 = vmatprep.subr.mxu0 0.0
      %1857 = vmatpush1.msra.mxu0 0.0
      %1858 = vmatprep.subr.mxu0 0.0
      %1859 = vmatpush1.msra.mxu0 0.0
      %1860 = vmatprep.subr.mxu0 0.0
      %1861 = vmatpush1.msra.mxu0 0.0
      %1862 = vmatprep.subr.mxu0 0.0
      %1863 = vmatpush1.msra.mxu0 %v1830
      %1864 = vmatprep.subr.mxu0 0.0
      %1865 = vmatpush2.msra.mxu0 0.0
      %1866 = vmatprep.subr.mxu0 0.0
      %1867 = vmatpush2.msra.mxu0 0.0
      %1868 = vmatprep.subr.mxu0 0.0
      %1869 = vmatpush2.msra.mxu0 0.0
      %1870 = vmatprep.subr.mxu0 0.0
      %1871 = vmatpush2.msra.mxu0 0.0
      %1872 = vmatprep.subr.mxu0 0.0
      %1873 = vmatpush2.msra.mxu0 0.0
      %1874 = vmatprep.subr.mxu0 0.0
      %1875 = vmatpush2.msra.mxu0 0.0
      %1876 = vmatprep.subr.mxu0 0.0
      %1877 = vmatpush2.msra.mxu0 0.0
      %1878 = vmatprep.subr.mxu0 0.0
      %1879 = vmatpush2.msra.mxu0 0.0
      %1880 = vmatprep.subr.mxu0 0.0
      %1881 = vmatpush2.msra.mxu0 0.0
      %1882 = vmatprep.subr.mxu0 0.0
      %1883 = vmatpush2.msra.mxu0 0.0
      %1884 = vmatprep.subr.mxu0 0.0
      %1885 = vmatpush2.msra.mxu0 0.0
      %1886 = vmatprep.subr.mxu0 0.0
      %1887 = vmatpush2.msra.mxu0 0.0
      %1888 = vmatprep.subr.mxu0 0.0
      %1889 = vmatpush2.msra.mxu0 0.0
      %1890 = vmatprep.subr.mxu0 0.0
      %1891 = vmatpush2.msra.mxu0 0.0
      %1892 = vmatprep.subr.mxu0 0.0
      %1893 = vmatpush2.msra.mxu0 0.0
      %1894 = vmatprep.subr.mxu0 0.0
      %1895 = vmatpush2.msra.mxu0 0.0
      %1896 = vmatprep.mubr.f32.mxu0 0.0
      %1897 = vmatmul.mubr.f32.gmra.mxu0 %v1707
      %v1898 = vpop.f32.mrf.mxu0
      %v1899 = vadd.f32 0.0, %v1898
      %v1900 = vpop.f32.mrf.mxu0
      %1901 = vmatprep.mubr.f32.mxu0 0.0
      %1902 = vmatmul.mubr.f32.gmra.mxu0 %v1710
      %v1903 = vpop.f32.mrf.mxu0
      %v1904 = vadd.f32 0.0, %v1903
      %v1905 = vpop.f32.mrf.mxu0
      %1906 = vmatprep.mubr.f32.mxu0 0.0
      %1907 = vmatmul.mubr.f32.gmra.mxu0 %v1713
      %v1908 = vpop.f32.mrf.mxu0
      %v1909 = vadd.f32 0.0, %v1908
      %v1910 = vpop.f32.mrf.mxu0
      %1911 = vmatprep.mubr.f32.mxu0 0.0
      %1912 = vmatmul.mubr.f32.gmra.mxu0 %v1716
      %v1913 = vpop.f32.mrf.mxu0
      %v1914 = vadd.f32 0.0, %v1913
      %v1915 = vpop.f32.mrf.mxu0
      %1916 = vmatprep.mubr.f32.mxu0 0.0
      %1917 = vmatmul.mubr.f32.gmra.mxu0 %v1719
      %v1918 = vpop.f32.mrf.mxu0
      %v1919 = vadd.f32 0.0, %v1918
      %v1920 = vpop.f32.mrf.mxu0
      %1921 = vmatprep.mubr.f32.mxu0 0.0
      %1922 = vmatmul.mubr.f32.gmra.mxu0 %v1722
      %v1923 = vpop.f32.mrf.mxu0
      %v1924 = vadd.f32 0.0, %v1923
      %v1925 = vpop.f32.mrf.mxu0
      %1926 = vmatprep.mubr.f32.mxu0 0.0
      %1927 = vmatmul.mubr.f32.gmra.mxu0 %v1725
      %v1928 = vpop.f32.mrf.mxu0
      %v1929 = vadd.f32 0.0, %v1928
      %v1930 = vpop.f32.mrf.mxu0
      %1931 = vmatprep.mubr.f32.mxu0 0.0
      %1932 = vmatmul.mubr.f32.gmra.mxu0 %v1728
      %v1933 = vpop.f32.mrf.mxu0
      %v1934 = vadd.f32 0.0, %v1933
      %v1935 = vpop.f32.mrf.mxu0
      %1936 = vmatprep.mubr.f32.mxu0 0.0
      %1937 = vmatmul.mubr.f32.gmra.mxu0 %v1731
      %v1938 = vpop.f32.mrf.mxu0
      %v1939 = vadd.f32 0.0, %v1938
      %v1940 = vpop.f32.mrf.mxu0
      %1941 = vmatprep.mubr.f32.mxu0 0.0
      %1942 = vmatmul.mubr.f32.gmra.mxu0 %v1734
      %v1943 = vpop.f32.mrf.mxu0
      %v1944 = vadd.f32 0.0, %v1943
      %v1945 = vpop.f32.mrf.mxu0
      %1946 = vmatprep.mubr.f32.mxu0 0.0
      %1947 = vmatmul.mubr.f32.gmra.mxu0 %v1737
      %v1948 = vpop.f32.mrf.mxu0
      %v1949 = vadd.f32 0.0, %v1948
      %v1950 = vpop.f32.mrf.mxu0
      %1951 = vmatprep.mubr.f32.mxu0 0.0
      %1952 = vmatmul.mubr.f32.gmra.mxu0 %v1740
      %v1953 = vpop.f32.mrf.mxu0
      %v1954 = vadd.f32 0.0, %v1953
      %v1955 = vpop.f32.mrf.mxu0
      %1956 = vmatprep.mubr.f32.mxu0 0.0
      %1957 = vmatmul.mubr.f32.gmra.mxu0 %v1743
      %v1958 = vpop.f32.mrf.mxu0
      %v1959 = vadd.f32 0.0, %v1958
      %v1960 = vpop.f32.mrf.mxu0
      %1961 = vmatprep.mubr.f32.mxu0 0.0
      %1962 = vmatmul.mubr.f32.gmra.mxu0 %v1746
      %v1963 = vpop.f32.mrf.mxu0
      %v1964 = vadd.f32 0.0, %v1963
      %v1965 = vpop.f32.mrf.mxu0
      %1966 = vmatprep.mubr.f32.mxu0 0.0
      %1967 = vmatmul.mubr.f32.gmra.mxu0 %v1749
      %v1968 = vpop.f32.mrf.mxu0
      %v1969 = vadd.f32 0.0, %v1968
      %v1970 = vpop.f32.mrf.mxu0
      %1971 = vmatprep.mubr.f32.mxu0 0.0
      %1972 = vmatmul.mubr.f32.gmra.mxu0 %v1752
      %v1973 = vpop.f32.mrf.mxu0
      %v1974 = vadd.f32 0.0, %v1973
      %v1975 = vpop.f32.mrf.mxu0
      %1976 = vmatprep.mubr.f32.mxu0 0.0
      %1977 = vmatmul.mubr.f32.gmra.mxu0 %v1755
      %v1978 = vpop.f32.mrf.mxu0
      %v1979 = vadd.f32 0.0, %v1978
      %v1980 = vpop.f32.mrf.mxu0
      %1981 = vmatprep.mubr.f32.mxu0 0.0
      %1982 = vmatmul.mubr.f32.gmra.mxu0 %v1758
      %v1983 = vpop.f32.mrf.mxu0
      %v1984 = vadd.f32 0.0, %v1983
      %v1985 = vpop.f32.mrf.mxu0
      %1986 = vmatprep.mubr.f32.mxu0 0.0
      %1987 = vmatmul.mubr.f32.gmra.mxu0 %v1761
      %v1988 = vpop.f32.mrf.mxu0
      %v1989 = vadd.f32 0.0, %v1988
      %v1990 = vpop.f32.mrf.mxu0
      %1991 = vmatprep.mubr.f32.mxu0 0.0
      %1992 = vmatmul.mubr.f32.gmra.mxu0 %v1764
      %v1993 = vpop.f32.mrf.mxu0
      %v1994 = vadd.f32 0.0, %v1993
      %v1995 = vpop.f32.mrf.mxu0
      %1996 = vmatprep.mubr.f32.mxu0 0.0
      %1997 = vmatmul.mubr.f32.gmra.mxu0 %v1767
      %v1998 = vpop.f32.mrf.mxu0
      %v1999 = vadd.f32 0.0, %v1998
      %v2000 = vpop.f32.mrf.mxu0
      %2001 = vmatprep.mubr.f32.mxu0 0.0
      %2002 = vmatmul.mubr.f32.gmra.mxu0 %v1770
      %v2003 = vpop.f32.mrf.mxu0
      %v2004 = vadd.f32 0.0, %v2003
      %v2005 = vpop.f32.mrf.mxu0
      %2006 = vmatprep.mubr.f32.mxu0 0.0
      %2007 = vmatmul.mubr.f32.gmra.mxu0 %v1773
      %v2008 = vpop.f32.mrf.mxu0
      %v2009 = vadd.f32 0.0, %v2008
      %v2010 = vpop.f32.mrf.mxu0
      %2011 = vmatprep.mubr.f32.mxu0 0.0
      %2012 = vmatmul.mubr.f32.gmra.mxu0 %v1776
      %v2013 = vpop.f32.mrf.mxu0
      %v2014 = vadd.f32 0.0, %v2013
      %v2015 = vpop.f32.mrf.mxu0
      %2016 = vmatprep.mubr.f32.mxu0 0.0
      %2017 = vmatmul.mubr.f32.gmra.mxu0 %v1779
      %v2018 = vpop.f32.mrf.mxu0
      %v2019 = vadd.f32 0.0, %v2018
      %v2020 = vpop.f32.mrf.mxu0
      %2021 = vmatprep.mubr.f32.mxu0 0.0
      %2022 = vmatmul.mubr.f32.gmra.mxu0 %v1782
      %v2023 = vpop.f32.mrf.mxu0
      %v2024 = vadd.f32 0.0, %v2023
      %v2025 = vpop.f32.mrf.mxu0
      %2026 = vmatprep.mubr.f32.mxu0 0.0
      %2027 = vmatmul.mubr.f32.gmra.mxu0 %v1785
      %v2028 = vpop.f32.mrf.mxu0
      %v2029 = vadd.f32 0.0, %v2028
      %v2030 = vpop.f32.mrf.mxu0
      %2031 = vmatprep.mubr.f32.mxu0 0.0
      %2032 = vmatmul.mubr.f32.gmra.mxu0 %v1788
      %v2033 = vpop.f32.mrf.mxu0
      %v2034 = vadd.f32 0.0, %v2033
      %v2035 = vpop.f32.mrf.mxu0
      %2036 = vmatprep.mubr.f32.mxu0 0.0
      %2037 = vmatmul.mubr.f32.gmra.mxu0 %v1791
      %v2038 = vpop.f32.mrf.mxu0
      %v2039 = vadd.f32 0.0, %v2038
      %v2040 = vpop.f32.mrf.mxu0
      %2041 = vmatprep.mubr.f32.mxu0 0.0
      %2042 = vmatmul.mubr.f32.gmra.mxu0 %v1794
      %v2043 = vpop.f32.mrf.mxu0
      %v2044 = vadd.f32 0.0, %v2043
      %v2045 = vpop.f32.mrf.mxu0
      %2046 = vmatprep.mubr.f32.mxu0 0.0
      %2047 = vmatmul.mubr.f32.gmra.mxu0 %v1797
      %v2048 = vpop.f32.mrf.mxu0
      %v2049 = vadd.f32 0.0, %v2048
      %v2050 = vpop.f32.mrf.mxu0
      %2051 = vmatprep.mubr.f32.mxu0 0.0
      %2052 = vmatmul.mubr.f32.gmra.mxu0 %v1800
      %v2053 = vpop.f32.mrf.mxu0
      %v2054 = vadd.f32 0.0, %v2053
      %v2055 = vpop.f32.mrf.mxu0
      %2056 = vmatprep.mubr.f32.mxu0 0.0
      %2057 = vmatmul.mubr.f32.gmra.mxu0 %v1803
      %v2058 = vpop.f32.mrf.mxu0
      %v2059 = vadd.f32 0.0, %v2058
      %v2060 = vpop.f32.mrf.mxu0
      %2061 = vmatprep.mubr.f32.mxu0 0.0
      %2062 = vmatmul.mubr.f32.gmra.mxu0 %v1806
      %v2063 = vpop.f32.mrf.mxu0
      %v2064 = vadd.f32 0.0, %v2063
      %v2065 = vpop.f32.mrf.mxu0
      %2066 = vmatprep.mubr.f32.mxu0 0.0
      %2067 = vmatmul.mubr.f32.gmra.mxu0 %v1809
      %v2068 = vpop.f32.mrf.mxu0
      %v2069 = vadd.f32 0.0, %v2068
      %v2070 = vpop.f32.mrf.mxu0
      %2071 = vmatprep.mubr.f32.mxu0 0.0
      %2072 = vmatmul.mubr.f32.gmra.mxu0 %v1812
      %v2073 = vpop.f32.mrf.mxu0
      %v2074 = vadd.f32 0.0, %v2073
      %v2075 = vpop.f32.mrf.mxu0
      %2076 = vmatprep.mubr.f32.mxu0 0.0
      %2077 = vmatmul.mubr.f32.gmra.mxu0 %v1815
      %v2078 = vpop.f32.mrf.mxu0
      %v2079 = vadd.f32 0.0, %v2078
      %v2080 = vpop.f32.mrf.mxu0
      %2081 = vmatprep.mubr.f32.mxu0 0.0
      %2082 = vmatmul.mubr.f32.gmra.mxu0 %v1818
      %v2083 = vpop.f32.mrf.mxu0
      %v2084 = vadd.f32 0.0, %v2083
      %v2085 = vpop.f32.mrf.mxu0
      %2086 = vmatprep.mubr.f32.mxu0 0.0
      %2087 = vmatmul.mubr.f32.gmra.mxu0 %v1821
      %v2088 = vpop.f32.mrf.mxu0
      %v2089 = vadd.f32 0.0, %v2088
      %v2090 = vpop.f32.mrf.mxu0
      %2091 = vmatprep.mubr.f32.mxu0 0.0
      %2092 = vmatmul.mubr.f32.gmra.mxu0 %v1824
      %v2093 = vpop.f32.mrf.mxu0
      %v2094 = vadd.f32 0.0, %v2093
      %v2095 = vpop.f32.mrf.mxu0
      %2096 = vmatprep.mubr.f32.mxu0 0.0
      %2097 = vmatmul.mubr.f32.gmra.mxu0 %v1827
      %v2098 = vpop.f32.mrf.mxu0
      %v2099 = vadd.f32 0.0, %v2098
      %v2100 = vpop.f32.mrf.mxu0
      %2101 = vdwg.mxu0
      %v2102 = vadd.f32 %v1460, %v1899
      %v2103 = vadd.f32 %v1465, %v1904
      %v2104 = vadd.f32 %v1470, %v1909
      %v2105 = vadd.f32 %v1475, %v1914
      %v2106 = vadd.f32 %v1480, %v1919
      %v2107 = vadd.f32 %v1485, %v1924
      %v2108 = vadd.f32 %v1490, %v1929
      %v2109 = vadd.f32 %v1495, %v1934
      %v2110 = vadd.f32 %v1500, %v1939
      %v2111 = vadd.f32 %v1505, %v1944
      %v2112 = vadd.f32 %v1510, %v1949
      %v2113 = vadd.f32 %v1515, %v1954
      %v2114 = vadd.f32 %v1520, %v1959
      %v2115 = vadd.f32 %v1525, %v1964
      %v2116 = vadd.f32 %v1530, %v1969
      %v2117 = vadd.f32 %v1535, %v1974
      %v2118 = vadd.f32 %v1540, %v1979
      %v2119 = vadd.f32 %v1545, %v1984
      %v2120 = vadd.f32 %v1550, %v1989
      %v2121 = vadd.f32 %v1555, %v1994
      %v2122 = vadd.f32 %v1560, %v1999
      %v2123 = vadd.f32 %v1565, %v2004
      %v2124 = vadd.f32 %v1570, %v2009
      %v2125 = vadd.f32 %v1575, %v2014
      %v2126 = vadd.f32 %v1580, %v2019
      %v2127 = vadd.f32 %v1585, %v2024
      %v2128 = vadd.f32 %v1590, %v2029
      %v2129 = vadd.f32 %v1595, %v2034
      %v2130 = vadd.f32 %v1600, %v2039
      %v2131 = vadd.f32 %v1605, %v2044
      %v2132 = vadd.f32 %v1610, %v2049
      %v2133 = vadd.f32 %v1615, %v2054
      %v2134 = vadd.f32 %v1620, %v2059
      %v2135 = vadd.f32 %v1625, %v2064
      %v2136 = vadd.f32 %v1630, %v2069
      %v2137 = vadd.f32 %v1635, %v2074
      %v2138 = vadd.f32 %v1640, %v2079
      %v2139 = vadd.f32 %v1645, %v2084
      %v2140 = vadd.f32 %v1650, %v2089
      %v2141 = vadd.f32 %v1655, %v2094
      %v2142 = vadd.f32 %v1660, %v2099
      %v2143 = vld [vmem:[%s199 + $0x12] sm:$0xff]
      %v2144 = vld [vmem:[%s199 + $0x1a] sm:$0xff]
      %v2145 = vld [vmem:[%s199 + $0x22] sm:$0xff]
      %v2146 = vld [vmem:[%s199 + $0x2a] sm:$0xff]
      %v2147 = vld [vmem:[%s199 + $0x32] sm:$0xff]
      %v2148 = vld [vmem:[%s199 + $0x3a] sm:$0xff]
      %v2149 = vld [vmem:[%s199 + $0x42] sm:$0xff]
      %v2150 = vld [vmem:[%s199 + $0x4a] sm:$0xff]
      %v2151 = vld [vmem:[%s199 + $0x52] sm:$0xff]
      %v2152 = vld [vmem:[%s199 + $0x5a] sm:$0xff]
      %v2153 = vld [vmem:[%s199 + $0x62] sm:$0xff]
      %v2154 = vld [vmem:[%s199 + $0x6a] sm:$0xff]
      %v2155 = vld [vmem:[%s199 + $0x72] sm:$0xff]
      %v2156 = vld [vmem:[%s199 + $0x7a] sm:$0xff]
      %v2157 = vld [vmem:[%s199 + $0x82] sm:$0xff]
      %v2158 = vld [vmem:[%s199 + $0x8a] sm:$0xff]
      %v2159 = vld [vmem:[%s199 + $0x92] sm:$0xff]
      %v2160 = vld [vmem:[%s199 + $0x9a] sm:$0xff]
      %v2161 = vld [vmem:[%s199 + $0xa2] sm:$0xff]
      %v2162 = vld [vmem:[%s199 + $0xaa] sm:$0xff]
      %v2163 = vld [vmem:[%s199 + $0xb2] sm:$0xff]
      %v2164 = vld [vmem:[%s199 + $0xba] sm:$0xff]
      %v2165 = vld [vmem:[%s199 + $0xc2] sm:$0xff]
      %v2166 = vld [vmem:[%s199 + $0xca] sm:$0xff]
      %v2167 = vld [vmem:[%s199 + $0xd2] sm:$0xff]
      %v2168 = vld [vmem:[%s199 + $0xda] sm:$0xff]
      %v2169 = vld [vmem:[%s199 + $0xe2] sm:$0xff]
      %v2170 = vld [vmem:[%s199 + $0xea] sm:$0xff]
      %v2171 = vld [vmem:[%s199 + $0xf2] sm:$0xff]
      %v2172 = vld [vmem:[%s199 + $0xfa] sm:$0xff]
      %v2173 = vld [vmem:[%s199 + $0x102] sm:$0xff]
      %v2174 = vld [vmem:[%s199 + $0x10a] sm:$0xff]
      %v2175 = vld [vmem:[%s199 + $0x112] sm:$0xff]
      %v2176 = vld [vmem:[%s199 + $0x11a] sm:$0xff]
      %v2177 = vld [vmem:[%s199 + $0x122] sm:$0xff]
      %v2178 = vld [vmem:[%s199 + $0x12a] sm:$0xff]
      %v2179 = vld [vmem:[%s199 + $0x132] sm:$0xff]
      %v2180 = vld [vmem:[%s199 + $0x13a] sm:$0xff]
      %v2181 = vld [vmem:[%s199 + $0x142] sm:$0xff]
      %v2182 = vld [vmem:[%s199 + $0x14a] sm:$0xff]
      %v2183 = vld [vmem:[%s199 + $0x152] sm:$0xf]
      %s2184 = scalar_lea.vmem %s1, 12
      %v2185 = vld [vmem:[%s2184] sm:$0xf]
      %v2187 = vsel %vm869, %v2143, 0
      %v2190 = vsel %vm869, %v2144, 0
      %v2193 = vsel %vm869, %v2145, 0
      %v2196 = vsel %vm869, %v2146, 0
      %v2199 = vsel %vm869, %v2147, 0
      %v2202 = vsel %vm869, %v2148, 0
      %v2205 = vsel %vm869, %v2149, 0
      %v2208 = vsel %vm869, %v2150, 0
      %v2211 = vsel %vm869, %v2151, 0
      %v2214 = vsel %vm869, %v2152, 0
      %v2217 = vsel %vm869, %v2153, 0
      %v2220 = vsel %vm869, %v2154, 0
      %v2223 = vsel %vm869, %v2155, 0
      %v2226 = vsel %vm869, %v2156, 0
      %v2229 = vsel %vm869, %v2157, 0
      %v2232 = vsel %vm869, %v2158, 0
      %v2235 = vsel %vm869, %v2159, 0
      %v2238 = vsel %vm869, %v2160, 0
      %v2241 = vsel %vm869, %v2161, 0
      %v2244 = vsel %vm869, %v2162, 0
      %v2247 = vsel %vm869, %v2163, 0
      %v2250 = vsel %vm869, %v2164, 0
      %v2253 = vsel %vm869, %v2165, 0
      %v2256 = vsel %vm869, %v2166, 0
      %v2259 = vsel %vm869, %v2167, 0
      %v2262 = vsel %vm869, %v2168, 0
      %v2265 = vsel %vm869, %v2169, 0
      %v2268 = vsel %vm869, %v2170, 0
      %v2271 = vsel %vm869, %v2171, 0
      %v2274 = vsel %vm869, %v2172, 0
      %v2277 = vsel %vm869, %v2173, 0
      %v2280 = vsel %vm869, %v2174, 0
      %v2283 = vsel %vm869, %v2175, 0
      %v2286 = vsel %vm869, %v2176, 0
      %v2289 = vsel %vm869, %v2177, 0
      %v2292 = vsel %vm869, %v2178, 0
      %v2295 = vsel %vm869, %v2179, 0
      %v2298 = vsel %vm869, %v2180, 0
      %v2301 = vsel %vm869, %v2181, 0
      %v2304 = vsel %vm869, %v2182, 0
      %v2307 = vsel %vm869, %v2183, 0
      %v2310 = vsel %vm993, %v2185, 0
      %2312 = vmatprep.subr.mxu0 0.0
      %2313 = vmatpush1.msra.mxu0 0.0
      %2314 = vmatprep.subr.mxu0 0.0
      %2315 = vmatpush1.msra.mxu0 0.0
      %2316 = vmatprep.subr.mxu0 0.0
      %2317 = vmatpush1.msra.mxu0 0.0
      %2318 = vmatprep.subr.mxu0 0.0
      %2319 = vmatpush1.msra.mxu0 0.0
      %2320 = vmatprep.subr.mxu0 0.0
      %2321 = vmatpush1.msra.mxu0 0.0
      %2322 = vmatprep.subr.mxu0 0.0
      %2323 = vmatpush1.msra.mxu0 0.0
      %2324 = vmatprep.subr.mxu0 0.0
      %2325 = vmatpush1.msra.mxu0 0.0
      %2326 = vmatprep.subr.mxu0 0.0
      %2327 = vmatpush1.msra.mxu0 0.0
      %2328 = vmatprep.subr.mxu0 0.0
      %2329 = vmatpush1.msra.mxu0 0.0
      %2330 = vmatprep.subr.mxu0 0.0
      %2331 = vmatpush1.msra.mxu0 0.0
      %2332 = vmatprep.subr.mxu0 0.0
      %2333 = vmatpush1.msra.mxu0 0.0
      %2334 = vmatprep.subr.mxu0 0.0
      %2335 = vmatpush1.msra.mxu0 0.0
      %2336 = vmatprep.subr.mxu0 0.0
      %2337 = vmatpush1.msra.mxu0 0.0
      %2338 = vmatprep.subr.mxu0 0.0
      %2339 = vmatpush1.msra.mxu0 0.0
      %2340 = vmatprep.subr.mxu0 0.0
      %2341 = vmatpush1.msra.mxu0 0.0
      %2342 = vmatprep.subr.mxu0 0.0
      %2343 = vmatpush1.msra.mxu0 %v2310
      %2344 = vmatprep.subr.mxu0 0.0
      %2345 = vmatpush2.msra.mxu0 0.0
      %2346 = vmatprep.subr.mxu0 0.0
      %2347 = vmatpush2.msra.mxu0 0.0
      %2348 = vmatprep.subr.mxu0 0.0
      %2349 = vmatpush2.msra.mxu0 0.0
      %2350 = vmatprep.subr.mxu0 0.0
      %2351 = vmatpush2.msra.mxu0 0.0
      %2352 = vmatprep.subr.mxu0 0.0
      %2353 = vmatpush2.msra.mxu0 0.0
      %2354 = vmatprep.subr.mxu0 0.0
      %2355 = vmatpush2.msra.mxu0 0.0
      %2356 = vmatprep.subr.mxu0 0.0
      %2357 = vmatpush2.msra.mxu0 0.0
      %2358 = vmatprep.subr.mxu0 0.0
      %2359 = vmatpush2.msra.mxu0 0.0
      %2360 = vmatprep.subr.mxu0 0.0
      %2361 = vmatpush2.msra.mxu0 0.0
      %2362 = vmatprep.subr.mxu0 0.0
      %2363 = vmatpush2.msra.mxu0 0.0
      %2364 = vmatprep.subr.mxu0 0.0
      %2365 = vmatpush2.msra.mxu0 0.0
      %2366 = vmatprep.subr.mxu0 0.0
      %2367 = vmatpush2.msra.mxu0 0.0
      %2368 = vmatprep.subr.mxu0 0.0
      %2369 = vmatpush2.msra.mxu0 0.0
      %2370 = vmatprep.subr.mxu0 0.0
      %2371 = vmatpush2.msra.mxu0 0.0
      %2372 = vmatprep.subr.mxu0 0.0
      %2373 = vmatpush2.msra.mxu0 0.0
      %2374 = vmatprep.subr.mxu0 0.0
      %2375 = vmatpush2.msra.mxu0 0.0
      %2376 = vmatprep.mubr.f32.mxu0 0.0
      %2377 = vmatmul.mubr.f32.gmra.mxu0 %v2187
      %v2378 = vpop.f32.mrf.mxu0
      %v2379 = vadd.f32 0.0, %v2378
      %v2380 = vpop.f32.mrf.mxu0
      %2381 = vmatprep.mubr.f32.mxu0 0.0
      %2382 = vmatmul.mubr.f32.gmra.mxu0 %v2190
      %v2383 = vpop.f32.mrf.mxu0
      %v2384 = vadd.f32 0.0, %v2383
      %v2385 = vpop.f32.mrf.mxu0
      %2386 = vmatprep.mubr.f32.mxu0 0.0
      %2387 = vmatmul.mubr.f32.gmra.mxu0 %v2193
      %v2388 = vpop.f32.mrf.mxu0
      %v2389 = vadd.f32 0.0, %v2388
      %v2390 = vpop.f32.mrf.mxu0
      %2391 = vmatprep.mubr.f32.mxu0 0.0
      %2392 = vmatmul.mubr.f32.gmra.mxu0 %v2196
      %v2393 = vpop.f32.mrf.mxu0
      %v2394 = vadd.f32 0.0, %v2393
      %v2395 = vpop.f32.mrf.mxu0
      %2396 = vmatprep.mubr.f32.mxu0 0.0
      %2397 = vmatmul.mubr.f32.gmra.mxu0 %v2199
      %v2398 = vpop.f32.mrf.mxu0
      %v2399 = vadd.f32 0.0, %v2398
      %v2400 = vpop.f32.mrf.mxu0
      %2401 = vmatprep.mubr.f32.mxu0 0.0
      %2402 = vmatmul.mubr.f32.gmra.mxu0 %v2202
      %v2403 = vpop.f32.mrf.mxu0
      %v2404 = vadd.f32 0.0, %v2403
      %v2405 = vpop.f32.mrf.mxu0
      %2406 = vmatprep.mubr.f32.mxu0 0.0
      %2407 = vmatmul.mubr.f32.gmra.mxu0 %v2205
      %v2408 = vpop.f32.mrf.mxu0
      %v2409 = vadd.f32 0.0, %v2408
      %v2410 = vpop.f32.mrf.mxu0
      %2411 = vmatprep.mubr.f32.mxu0 0.0
      %2412 = vmatmul.mubr.f32.gmra.mxu0 %v2208
      %v2413 = vpop.f32.mrf.mxu0
      %v2414 = vadd.f32 0.0, %v2413
      %v2415 = vpop.f32.mrf.mxu0
      %2416 = vmatprep.mubr.f32.mxu0 0.0
      %2417 = vmatmul.mubr.f32.gmra.mxu0 %v2211
      %v2418 = vpop.f32.mrf.mxu0
      %v2419 = vadd.f32 0.0, %v2418
      %v2420 = vpop.f32.mrf.mxu0
      %2421 = vmatprep.mubr.f32.mxu0 0.0
      %2422 = vmatmul.mubr.f32.gmra.mxu0 %v2214
      %v2423 = vpop.f32.mrf.mxu0
      %v2424 = vadd.f32 0.0, %v2423
      %v2425 = vpop.f32.mrf.mxu0
      %2426 = vmatprep.mubr.f32.mxu0 0.0
      %2427 = vmatmul.mubr.f32.gmra.mxu0 %v2217
      %v2428 = vpop.f32.mrf.mxu0
      %v2429 = vadd.f32 0.0, %v2428
      %v2430 = vpop.f32.mrf.mxu0
      %2431 = vmatprep.mubr.f32.mxu0 0.0
      %2432 = vmatmul.mubr.f32.gmra.mxu0 %v2220
      %v2433 = vpop.f32.mrf.mxu0
      %v2434 = vadd.f32 0.0, %v2433
      %v2435 = vpop.f32.mrf.mxu0
      %2436 = vmatprep.mubr.f32.mxu0 0.0
      %2437 = vmatmul.mubr.f32.gmra.mxu0 %v2223
      %v2438 = vpop.f32.mrf.mxu0
      %v2439 = vadd.f32 0.0, %v2438
      %v2440 = vpop.f32.mrf.mxu0
      %2441 = vmatprep.mubr.f32.mxu0 0.0
      %2442 = vmatmul.mubr.f32.gmra.mxu0 %v2226
      %v2443 = vpop.f32.mrf.mxu0
      %v2444 = vadd.f32 0.0, %v2443
      %v2445 = vpop.f32.mrf.mxu0
      %2446 = vmatprep.mubr.f32.mxu0 0.0
      %2447 = vmatmul.mubr.f32.gmra.mxu0 %v2229
      %v2448 = vpop.f32.mrf.mxu0
      %v2449 = vadd.f32 0.0, %v2448
      %v2450 = vpop.f32.mrf.mxu0
      %2451 = vmatprep.mubr.f32.mxu0 0.0
      %2452 = vmatmul.mubr.f32.gmra.mxu0 %v2232
      %v2453 = vpop.f32.mrf.mxu0
      %v2454 = vadd.f32 0.0, %v2453
      %v2455 = vpop.f32.mrf.mxu0
      %2456 = vmatprep.mubr.f32.mxu0 0.0
      %2457 = vmatmul.mubr.f32.gmra.mxu0 %v2235
      %v2458 = vpop.f32.mrf.mxu0
      %v2459 = vadd.f32 0.0, %v2458
      %v2460 = vpop.f32.mrf.mxu0
      %2461 = vmatprep.mubr.f32.mxu0 0.0
      %2462 = vmatmul.mubr.f32.gmra.mxu0 %v2238
      %v2463 = vpop.f32.mrf.mxu0
      %v2464 = vadd.f32 0.0, %v2463
      %v2465 = vpop.f32.mrf.mxu0
      %2466 = vmatprep.mubr.f32.mxu0 0.0
      %2467 = vmatmul.mubr.f32.gmra.mxu0 %v2241
      %v2468 = vpop.f32.mrf.mxu0
      %v2469 = vadd.f32 0.0, %v2468
      %v2470 = vpop.f32.mrf.mxu0
      %2471 = vmatprep.mubr.f32.mxu0 0.0
      %2472 = vmatmul.mubr.f32.gmra.mxu0 %v2244
      %v2473 = vpop.f32.mrf.mxu0
      %v2474 = vadd.f32 0.0, %v2473
      %v2475 = vpop.f32.mrf.mxu0
      %2476 = vmatprep.mubr.f32.mxu0 0.0
      %2477 = vmatmul.mubr.f32.gmra.mxu0 %v2247
      %v2478 = vpop.f32.mrf.mxu0
      %v2479 = vadd.f32 0.0, %v2478
      %v2480 = vpop.f32.mrf.mxu0
      %2481 = vmatprep.mubr.f32.mxu0 0.0
      %2482 = vmatmul.mubr.f32.gmra.mxu0 %v2250
      %v2483 = vpop.f32.mrf.mxu0
      %v2484 = vadd.f32 0.0, %v2483
      %v2485 = vpop.f32.mrf.mxu0
      %2486 = vmatprep.mubr.f32.mxu0 0.0
      %2487 = vmatmul.mubr.f32.gmra.mxu0 %v2253
      %v2488 = vpop.f32.mrf.mxu0
      %v2489 = vadd.f32 0.0, %v2488
      %v2490 = vpop.f32.mrf.mxu0
      %2491 = vmatprep.mubr.f32.mxu0 0.0
      %2492 = vmatmul.mubr.f32.gmra.mxu0 %v2256
      %v2493 = vpop.f32.mrf.mxu0
      %v2494 = vadd.f32 0.0, %v2493
      %v2495 = vpop.f32.mrf.mxu0
      %2496 = vmatprep.mubr.f32.mxu0 0.0
      %2497 = vmatmul.mubr.f32.gmra.mxu0 %v2259
      %v2498 = vpop.f32.mrf.mxu0
      %v2499 = vadd.f32 0.0, %v2498
      %v2500 = vpop.f32.mrf.mxu0
      %2501 = vmatprep.mubr.f32.mxu0 0.0
      %2502 = vmatmul.mubr.f32.gmra.mxu0 %v2262
      %v2503 = vpop.f32.mrf.mxu0
      %v2504 = vadd.f32 0.0, %v2503
      %v2505 = vpop.f32.mrf.mxu0
      %2506 = vmatprep.mubr.f32.mxu0 0.0
      %2507 = vmatmul.mubr.f32.gmra.mxu0 %v2265
      %v2508 = vpop.f32.mrf.mxu0
      %v2509 = vadd.f32 0.0, %v2508
      %v2510 = vpop.f32.mrf.mxu0
      %2511 = vmatprep.mubr.f32.mxu0 0.0
      %2512 = vmatmul.mubr.f32.gmra.mxu0 %v2268
      %v2513 = vpop.f32.mrf.mxu0
      %v2514 = vadd.f32 0.0, %v2513
      %v2515 = vpop.f32.mrf.mxu0
      %2516 = vmatprep.mubr.f32.mxu0 0.0
      %2517 = vmatmul.mubr.f32.gmra.mxu0 %v2271
      %v2518 = vpop.f32.mrf.mxu0
      %v2519 = vadd.f32 0.0, %v2518
      %v2520 = vpop.f32.mrf.mxu0
      %2521 = vmatprep.mubr.f32.mxu0 0.0
      %2522 = vmatmul.mubr.f32.gmra.mxu0 %v2274
      %v2523 = vpop.f32.mrf.mxu0
      %v2524 = vadd.f32 0.0, %v2523
      %v2525 = vpop.f32.mrf.mxu0
      %2526 = vmatprep.mubr.f32.mxu0 0.0
      %2527 = vmatmul.mubr.f32.gmra.mxu0 %v2277
      %v2528 = vpop.f32.mrf.mxu0
      %v2529 = vadd.f32 0.0, %v2528
      %v2530 = vpop.f32.mrf.mxu0
      %2531 = vmatprep.mubr.f32.mxu0 0.0
      %2532 = vmatmul.mubr.f32.gmra.mxu0 %v2280
      %v2533 = vpop.f32.mrf.mxu0
      %v2534 = vadd.f32 0.0, %v2533
      %v2535 = vpop.f32.mrf.mxu0
      %2536 = vmatprep.mubr.f32.mxu0 0.0
      %2537 = vmatmul.mubr.f32.gmra.mxu0 %v2283
      %v2538 = vpop.f32.mrf.mxu0
      %v2539 = vadd.f32 0.0, %v2538
      %v2540 = vpop.f32.mrf.mxu0
      %2541 = vmatprep.mubr.f32.mxu0 0.0
      %2542 = vmatmul.mubr.f32.gmra.mxu0 %v2286
      %v2543 = vpop.f32.mrf.mxu0
      %v2544 = vadd.f32 0.0, %v2543
      %v2545 = vpop.f32.mrf.mxu0
      %2546 = vmatprep.mubr.f32.mxu0 0.0
      %2547 = vmatmul.mubr.f32.gmra.mxu0 %v2289
      %v2548 = vpop.f32.mrf.mxu0
      %v2549 = vadd.f32 0.0, %v2548
      %v2550 = vpop.f32.mrf.mxu0
      %2551 = vmatprep.mubr.f32.mxu0 0.0
      %2552 = vmatmul.mubr.f32.gmra.mxu0 %v2292
      %v2553 = vpop.f32.mrf.mxu0
      %v2554 = vadd.f32 0.0, %v2553
      %v2555 = vpop.f32.mrf.mxu0
      %2556 = vmatprep.mubr.f32.mxu0 0.0
      %2557 = vmatmul.mubr.f32.gmra.mxu0 %v2295
      %v2558 = vpop.f32.mrf.mxu0
      %v2559 = vadd.f32 0.0, %v2558
      %v2560 = vpop.f32.mrf.mxu0
      %2561 = vmatprep.mubr.f32.mxu0 0.0
      %2562 = vmatmul.mubr.f32.gmra.mxu0 %v2298
      %v2563 = vpop.f32.mrf.mxu0
      %v2564 = vadd.f32 0.0, %v2563
      %v2565 = vpop.f32.mrf.mxu0
      %2566 = vmatprep.mubr.f32.mxu0 0.0
      %2567 = vmatmul.mubr.f32.gmra.mxu0 %v2301
      %v2568 = vpop.f32.mrf.mxu0
      %v2569 = vadd.f32 0.0, %v2568
      %v2570 = vpop.f32.mrf.mxu0
      %2571 = vmatprep.mubr.f32.mxu0 0.0
      %2572 = vmatmul.mubr.f32.gmra.mxu0 %v2304
      %v2573 = vpop.f32.mrf.mxu0
      %v2574 = vadd.f32 0.0, %v2573
      %v2575 = vpop.f32.mrf.mxu0
      %2576 = vmatprep.mubr.f32.mxu0 0.0
      %2577 = vmatmul.mubr.f32.gmra.mxu0 %v2307
      %v2578 = vpop.f32.mrf.mxu0
      %v2579 = vadd.f32 0.0, %v2578
      %v2580 = vpop.f32.mrf.mxu0
      %2581 = vdwg.mxu0
      %v2582 = vadd.f32 %v2102, %v2379
      %v2583 = vadd.f32 %v2103, %v2384
      %v2584 = vadd.f32 %v2104, %v2389
      %v2585 = vadd.f32 %v2105, %v2394
      %v2586 = vadd.f32 %v2106, %v2399
      %v2587 = vadd.f32 %v2107, %v2404
      %v2588 = vadd.f32 %v2108, %v2409
      %v2589 = vadd.f32 %v2109, %v2414
      %v2590 = vadd.f32 %v2110, %v2419
      %v2591 = vadd.f32 %v2111, %v2424
      %v2592 = vadd.f32 %v2112, %v2429
      %v2593 = vadd.f32 %v2113, %v2434
      %v2594 = vadd.f32 %v2114, %v2439
      %v2595 = vadd.f32 %v2115, %v2444
      %v2596 = vadd.f32 %v2116, %v2449
      %v2597 = vadd.f32 %v2117, %v2454
      %v2598 = vadd.f32 %v2118, %v2459
      %v2599 = vadd.f32 %v2119, %v2464
      %v2600 = vadd.f32 %v2120, %v2469
      %v2601 = vadd.f32 %v2121, %v2474
      %v2602 = vadd.f32 %v2122, %v2479
      %v2603 = vadd.f32 %v2123, %v2484
      %v2604 = vadd.f32 %v2124, %v2489
      %v2605 = vadd.f32 %v2125, %v2494
      %v2606 = vadd.f32 %v2126, %v2499
      %v2607 = vadd.f32 %v2127, %v2504
      %v2608 = vadd.f32 %v2128, %v2509
      %v2609 = vadd.f32 %v2129, %v2514
      %v2610 = vadd.f32 %v2130, %v2519
      %v2611 = vadd.f32 %v2131, %v2524
      %v2612 = vadd.f32 %v2132, %v2529
      %v2613 = vadd.f32 %v2133, %v2534
      %v2614 = vadd.f32 %v2134, %v2539
      %v2615 = vadd.f32 %v2135, %v2544
      %v2616 = vadd.f32 %v2136, %v2549
      %v2617 = vadd.f32 %v2137, %v2554
      %v2618 = vadd.f32 %v2138, %v2559
      %v2619 = vadd.f32 %v2139, %v2564
      %v2620 = vadd.f32 %v2140, %v2569
      %v2621 = vadd.f32 %v2141, %v2574
      %v2622 = vadd.f32 %v2142, %v2579
      %v2623 = vld [vmem:[%s199 + $0x13] sm:$0xff]
      %v2624 = vld [vmem:[%s199 + $0x1b] sm:$0xff]
      %v2625 = vld [vmem:[%s199 + $0x23] sm:$0xff]
      %v2626 = vld [vmem:[%s199 + $0x2b] sm:$0xff]
      %v2627 = vld [vmem:[%s199 + $0x33] sm:$0xff]
      %v2628 = vld [vmem:[%s199 + $0x3b] sm:$0xff]
      %v2629 = vld [vmem:[%s199 + $0x43] sm:$0xff]
      %v2630 = vld [vmem:[%s199 + $0x4b] sm:$0xff]
      %v2631 = vld [vmem:[%s199 + $0x53] sm:$0xff]
      %v2632 = vld [vmem:[%s199 + $0x5b] sm:$0xff]
      %v2633 = vld [vmem:[%s199 + $0x63] sm:$0xff]
      %v2634 = vld [vmem:[%s199 + $0x6b] sm:$0xff]
      %v2635 = vld [vmem:[%s199 + $0x73] sm:$0xff]
      %v2636 = vld [vmem:[%s199 + $0x7b] sm:$0xff]
      %v2637 = vld [vmem:[%s199 + $0x83] sm:$0xff]
      %v2638 = vld [vmem:[%s199 + $0x8b] sm:$0xff]
      %v2639 = vld [vmem:[%s199 + $0x93] sm:$0xff]
      %v2640 = vld [vmem:[%s199 + $0x9b] sm:$0xff]
      %v2641 = vld [vmem:[%s199 + $0xa3] sm:$0xff]
      %v2642 = vld [vmem:[%s199 + $0xab] sm:$0xff]
      %v2643 = vld [vmem:[%s199 + $0xb3] sm:$0xff]
      %v2644 = vld [vmem:[%s199 + $0xbb] sm:$0xff]
      %v2645 = vld [vmem:[%s199 + $0xc3] sm:$0xff]
      %v2646 = vld [vmem:[%s199 + $0xcb] sm:$0xff]
      %v2647 = vld [vmem:[%s199 + $0xd3] sm:$0xff]
      %v2648 = vld [vmem:[%s199 + $0xdb] sm:$0xff]
      %v2649 = vld [vmem:[%s199 + $0xe3] sm:$0xff]
      %v2650 = vld [vmem:[%s199 + $0xeb] sm:$0xff]
      %v2651 = vld [vmem:[%s199 + $0xf3] sm:$0xff]
      %v2652 = vld [vmem:[%s199 + $0xfb] sm:$0xff]
      %v2653 = vld [vmem:[%s199 + $0x103] sm:$0xff]
      %v2654 = vld [vmem:[%s199 + $0x10b] sm:$0xff]
      %v2655 = vld [vmem:[%s199 + $0x113] sm:$0xff]
      %v2656 = vld [vmem:[%s199 + $0x11b] sm:$0xff]
      %v2657 = vld [vmem:[%s199 + $0x123] sm:$0xff]
      %v2658 = vld [vmem:[%s199 + $0x12b] sm:$0xff]
      %v2659 = vld [vmem:[%s199 + $0x133] sm:$0xff]
      %v2660 = vld [vmem:[%s199 + $0x13b] sm:$0xff]
      %v2661 = vld [vmem:[%s199 + $0x143] sm:$0xff]
      %v2662 = vld [vmem:[%s199 + $0x14b] sm:$0xff]
      %v2663 = vld [vmem:[%s199 + $0x153] sm:$0xf]
      %s2664 = scalar_lea.vmem %s1, 16
      %v2665 = vld [vmem:[%s2664] sm:$0xf]
      %v2667 = vsel %vm869, %v2623, 0
      %v2670 = vsel %vm869, %v2624, 0
      %v2673 = vsel %vm869, %v2625, 0
      %v2676 = vsel %vm869, %v2626, 0
      %v2679 = vsel %vm869, %v2627, 0
      %v2682 = vsel %vm869, %v2628, 0
      %v2685 = vsel %vm869, %v2629, 0
      %v2688 = vsel %vm869, %v2630, 0
      %v2691 = vsel %vm869, %v2631, 0
      %v2694 = vsel %vm869, %v2632, 0
      %v2697 = vsel %vm869, %v2633, 0
      %v2700 = vsel %vm869, %v2634, 0
      %v2703 = vsel %vm869, %v2635, 0
      %v2706 = vsel %vm869, %v2636, 0
      %v2709 = vsel %vm869, %v2637, 0
      %v2712 = vsel %vm869, %v2638, 0
      %v2715 = vsel %vm869, %v2639, 0
      %v2718 = vsel %vm869, %v2640, 0
      %v2721 = vsel %vm869, %v2641, 0
      %v2724 = vsel %vm869, %v2642, 0
      %v2727 = vsel %vm869, %v2643, 0
      %v2730 = vsel %vm869, %v2644, 0
      %v2733 = vsel %vm869, %v2645, 0
      %v2736 = vsel %vm869, %v2646, 0
      %v2739 = vsel %vm869, %v2647, 0
      %v2742 = vsel %vm869, %v2648, 0
      %v2745 = vsel %vm869, %v2649, 0
      %v2748 = vsel %vm869, %v2650, 0
      %v2751 = vsel %vm869, %v2651, 0
      %v2754 = vsel %vm869, %v2652, 0
      %v2757 = vsel %vm869, %v2653, 0
      %v2760 = vsel %vm869, %v2654, 0
      %v2763 = vsel %vm869, %v2655, 0
      %v2766 = vsel %vm869, %v2656, 0
      %v2769 = vsel %vm869, %v2657, 0
      %v2772 = vsel %vm869, %v2658, 0
      %v2775 = vsel %vm869, %v2659, 0
      %v2778 = vsel %vm869, %v2660, 0
      %v2781 = vsel %vm869, %v2661, 0
      %v2784 = vsel %vm869, %v2662, 0
      %v2787 = vsel %vm869, %v2663, 0
      %v2790 = vsel %vm993, %v2665, 0
      %2792 = vmatprep.subr.mxu0 0.0
      %2793 = vmatpush1.msra.mxu0 0.0
      %2794 = vmatprep.subr.mxu0 0.0
      %2795 = vmatpush1.msra.mxu0 0.0
      %2796 = vmatprep.subr.mxu0 0.0
      %2797 = vmatpush1.msra.mxu0 0.0
      %2798 = vmatprep.subr.mxu0 0.0
      %2799 = vmatpush1.msra.mxu0 0.0
      %2800 = vmatprep.subr.mxu0 0.0
      %2801 = vmatpush1.msra.mxu0 0.0
      %2802 = vmatprep.subr.mxu0 0.0
      %2803 = vmatpush1.msra.mxu0 0.0
      %2804 = vmatprep.subr.mxu0 0.0
      %2805 = vmatpush1.msra.mxu0 0.0
      %2806 = vmatprep.subr.mxu0 0.0
      %2807 = vmatpush1.msra.mxu0 0.0
      %2808 = vmatprep.subr.mxu0 0.0
      %2809 = vmatpush1.msra.mxu0 0.0
      %2810 = vmatprep.subr.mxu0 0.0
      %2811 = vmatpush1.msra.mxu0 0.0
      %2812 = vmatprep.subr.mxu0 0.0
      %2813 = vmatpush1.msra.mxu0 0.0
      %2814 = vmatprep.subr.mxu0 0.0
      %2815 = vmatpush1.msra.mxu0 0.0
      %2816 = vmatprep.subr.mxu0 0.0
      %2817 = vmatpush1.msra.mxu0 0.0
      %2818 = vmatprep.subr.mxu0 0.0
      %2819 = vmatpush1.msra.mxu0 0.0
      %2820 = vmatprep.subr.mxu0 0.0
      %2821 = vmatpush1.msra.mxu0 0.0
      %2822 = vmatprep.subr.mxu0 0.0
      %2823 = vmatpush1.msra.mxu0 %v2790
      %2824 = vmatprep.subr.mxu0 0.0
      %2825 = vmatpush2.msra.mxu0 0.0
      %2826 = vmatprep.subr.mxu0 0.0
      %2827 = vmatpush2.msra.mxu0 0.0
      %2828 = vmatprep.subr.mxu0 0.0
      %2829 = vmatpush2.msra.mxu0 0.0
      %2830 = vmatprep.subr.mxu0 0.0
      %2831 = vmatpush2.msra.mxu0 0.0
      %2832 = vmatprep.subr.mxu0 0.0
      %2833 = vmatpush2.msra.mxu0 0.0
      %2834 = vmatprep.subr.mxu0 0.0
      %2835 = vmatpush2.msra.mxu0 0.0
      %2836 = vmatprep.subr.mxu0 0.0
      %2837 = vmatpush2.msra.mxu0 0.0
      %2838 = vmatprep.subr.mxu0 0.0
      %2839 = vmatpush2.msra.mxu0 0.0
      %2840 = vmatprep.subr.mxu0 0.0
      %2841 = vmatpush2.msra.mxu0 0.0
      %2842 = vmatprep.subr.mxu0 0.0
      %2843 = vmatpush2.msra.mxu0 0.0
      %2844 = vmatprep.subr.mxu0 0.0
      %2845 = vmatpush2.msra.mxu0 0.0
      %2846 = vmatprep.subr.mxu0 0.0
      %2847 = vmatpush2.msra.mxu0 0.0
      %2848 = vmatprep.subr.mxu0 0.0
      %2849 = vmatpush2.msra.mxu0 0.0
      %2850 = vmatprep.subr.mxu0 0.0
      %2851 = vmatpush2.msra.mxu0 0.0
      %2852 = vmatprep.subr.mxu0 0.0
      %2853 = vmatpush2.msra.mxu0 0.0
      %2854 = vmatprep.subr.mxu0 0.0
      %2855 = vmatpush2.msra.mxu0 0.0
      %2856 = vmatprep.mubr.f32.mxu0 0.0
      %2857 = vmatmul.mubr.f32.gmra.mxu0 %v2667
      %v2858 = vpop.f32.mrf.mxu0
      %v2859 = vadd.f32 0.0, %v2858
      %v2860 = vpop.f32.mrf.mxu0
      %2861 = vmatprep.mubr.f32.mxu0 0.0
      %2862 = vmatmul.mubr.f32.gmra.mxu0 %v2670
      %v2863 = vpop.f32.mrf.mxu0
      %v2864 = vadd.f32 0.0, %v2863
      %v2865 = vpop.f32.mrf.mxu0
      %2866 = vmatprep.mubr.f32.mxu0 0.0
      %2867 = vmatmul.mubr.f32.gmra.mxu0 %v2673
      %v2868 = vpop.f32.mrf.mxu0
      %v2869 = vadd.f32 0.0, %v2868
      %v2870 = vpop.f32.mrf.mxu0
      %2871 = vmatprep.mubr.f32.mxu0 0.0
      %2872 = vmatmul.mubr.f32.gmra.mxu0 %v2676
      %v2873 = vpop.f32.mrf.mxu0
      %v2874 = vadd.f32 0.0, %v2873
      %v2875 = vpop.f32.mrf.mxu0
      %2876 = vmatprep.mubr.f32.mxu0 0.0
      %2877 = vmatmul.mubr.f32.gmra.mxu0 %v2679
      %v2878 = vpop.f32.mrf.mxu0
      %v2879 = vadd.f32 0.0, %v2878
      %v2880 = vpop.f32.mrf.mxu0
      %2881 = vmatprep.mubr.f32.mxu0 0.0
      %2882 = vmatmul.mubr.f32.gmra.mxu0 %v2682
      %v2883 = vpop.f32.mrf.mxu0
      %v2884 = vadd.f32 0.0, %v2883
      %v2885 = vpop.f32.mrf.mxu0
      %2886 = vmatprep.mubr.f32.mxu0 0.0
      %2887 = vmatmul.mubr.f32.gmra.mxu0 %v2685
      %v2888 = vpop.f32.mrf.mxu0
      %v2889 = vadd.f32 0.0, %v2888
      %v2890 = vpop.f32.mrf.mxu0
      %2891 = vmatprep.mubr.f32.mxu0 0.0
      %2892 = vmatmul.mubr.f32.gmra.mxu0 %v2688
      %v2893 = vpop.f32.mrf.mxu0
      %v2894 = vadd.f32 0.0, %v2893
      %v2895 = vpop.f32.mrf.mxu0
      %2896 = vmatprep.mubr.f32.mxu0 0.0
      %2897 = vmatmul.mubr.f32.gmra.mxu0 %v2691
      %v2898 = vpop.f32.mrf.mxu0
      %v2899 = vadd.f32 0.0, %v2898
      %v2900 = vpop.f32.mrf.mxu0
      %2901 = vmatprep.mubr.f32.mxu0 0.0
      %2902 = vmatmul.mubr.f32.gmra.mxu0 %v2694
      %v2903 = vpop.f32.mrf.mxu0
      %v2904 = vadd.f32 0.0, %v2903
      %v2905 = vpop.f32.mrf.mxu0
      %2906 = vmatprep.mubr.f32.mxu0 0.0
      %2907 = vmatmul.mubr.f32.gmra.mxu0 %v2697
      %v2908 = vpop.f32.mrf.mxu0
      %v2909 = vadd.f32 0.0, %v2908
      %v2910 = vpop.f32.mrf.mxu0
      %2911 = vmatprep.mubr.f32.mxu0 0.0
      %2912 = vmatmul.mubr.f32.gmra.mxu0 %v2700
      %v2913 = vpop.f32.mrf.mxu0
      %v2914 = vadd.f32 0.0, %v2913
      %v2915 = vpop.f32.mrf.mxu0
      %2916 = vmatprep.mubr.f32.mxu0 0.0
      %2917 = vmatmul.mubr.f32.gmra.mxu0 %v2703
      %v2918 = vpop.f32.mrf.mxu0
      %v2919 = vadd.f32 0.0, %v2918
      %v2920 = vpop.f32.mrf.mxu0
      %2921 = vmatprep.mubr.f32.mxu0 0.0
      %2922 = vmatmul.mubr.f32.gmra.mxu0 %v2706
      %v2923 = vpop.f32.mrf.mxu0
      %v2924 = vadd.f32 0.0, %v2923
      %v2925 = vpop.f32.mrf.mxu0
      %2926 = vmatprep.mubr.f32.mxu0 0.0
      %2927 = vmatmul.mubr.f32.gmra.mxu0 %v2709
      %v2928 = vpop.f32.mrf.mxu0
      %v2929 = vadd.f32 0.0, %v2928
      %v2930 = vpop.f32.mrf.mxu0
      %2931 = vmatprep.mubr.f32.mxu0 0.0
      %2932 = vmatmul.mubr.f32.gmra.mxu0 %v2712
      %v2933 = vpop.f32.mrf.mxu0
      %v2934 = vadd.f32 0.0, %v2933
      %v2935 = vpop.f32.mrf.mxu0
      %2936 = vmatprep.mubr.f32.mxu0 0.0
      %2937 = vmatmul.mubr.f32.gmra.mxu0 %v2715
      %v2938 = vpop.f32.mrf.mxu0
      %v2939 = vadd.f32 0.0, %v2938
      %v2940 = vpop.f32.mrf.mxu0
      %2941 = vmatprep.mubr.f32.mxu0 0.0
      %2942 = vmatmul.mubr.f32.gmra.mxu0 %v2718
      %v2943 = vpop.f32.mrf.mxu0
      %v2944 = vadd.f32 0.0, %v2943
      %v2945 = vpop.f32.mrf.mxu0
      %2946 = vmatprep.mubr.f32.mxu0 0.0
      %2947 = vmatmul.mubr.f32.gmra.mxu0 %v2721
      %v2948 = vpop.f32.mrf.mxu0
      %v2949 = vadd.f32 0.0, %v2948
      %v2950 = vpop.f32.mrf.mxu0
      %2951 = vmatprep.mubr.f32.mxu0 0.0
      %2952 = vmatmul.mubr.f32.gmra.mxu0 %v2724
      %v2953 = vpop.f32.mrf.mxu0
      %v2954 = vadd.f32 0.0, %v2953
      %v2955 = vpop.f32.mrf.mxu0
      %2956 = vmatprep.mubr.f32.mxu0 0.0
      %2957 = vmatmul.mubr.f32.gmra.mxu0 %v2727
      %v2958 = vpop.f32.mrf.mxu0
      %v2959 = vadd.f32 0.0, %v2958
      %v2960 = vpop.f32.mrf.mxu0
      %2961 = vmatprep.mubr.f32.mxu0 0.0
      %2962 = vmatmul.mubr.f32.gmra.mxu0 %v2730
      %v2963 = vpop.f32.mrf.mxu0
      %v2964 = vadd.f32 0.0, %v2963
      %v2965 = vpop.f32.mrf.mxu0
      %2966 = vmatprep.mubr.f32.mxu0 0.0
      %2967 = vmatmul.mubr.f32.gmra.mxu0 %v2733
      %v2968 = vpop.f32.mrf.mxu0
      %v2969 = vadd.f32 0.0, %v2968
      %v2970 = vpop.f32.mrf.mxu0
      %2971 = vmatprep.mubr.f32.mxu0 0.0
      %2972 = vmatmul.mubr.f32.gmra.mxu0 %v2736
      %v2973 = vpop.f32.mrf.mxu0
      %v2974 = vadd.f32 0.0, %v2973
      %v2975 = vpop.f32.mrf.mxu0
      %2976 = vmatprep.mubr.f32.mxu0 0.0
      %2977 = vmatmul.mubr.f32.gmra.mxu0 %v2739
      %v2978 = vpop.f32.mrf.mxu0
      %v2979 = vadd.f32 0.0, %v2978
      %v2980 = vpop.f32.mrf.mxu0
      %2981 = vmatprep.mubr.f32.mxu0 0.0
      %2982 = vmatmul.mubr.f32.gmra.mxu0 %v2742
      %v2983 = vpop.f32.mrf.mxu0
      %v2984 = vadd.f32 0.0, %v2983
      %v2985 = vpop.f32.mrf.mxu0
      %2986 = vmatprep.mubr.f32.mxu0 0.0
      %2987 = vmatmul.mubr.f32.gmra.mxu0 %v2745
      %v2988 = vpop.f32.mrf.mxu0
      %v2989 = vadd.f32 0.0, %v2988
      %v2990 = vpop.f32.mrf.mxu0
      %2991 = vmatprep.mubr.f32.mxu0 0.0
      %2992 = vmatmul.mubr.f32.gmra.mxu0 %v2748
      %v2993 = vpop.f32.mrf.mxu0
      %v2994 = vadd.f32 0.0, %v2993
      %v2995 = vpop.f32.mrf.mxu0
      %2996 = vmatprep.mubr.f32.mxu0 0.0
      %2997 = vmatmul.mubr.f32.gmra.mxu0 %v2751
      %v2998 = vpop.f32.mrf.mxu0
      %v2999 = vadd.f32 0.0, %v2998
      %v3000 = vpop.f32.mrf.mxu0
      %3001 = vmatprep.mubr.f32.mxu0 0.0
      %3002 = vmatmul.mubr.f32.gmra.mxu0 %v2754
      %v3003 = vpop.f32.mrf.mxu0
      %v3004 = vadd.f32 0.0, %v3003
      %v3005 = vpop.f32.mrf.mxu0
      %3006 = vmatprep.mubr.f32.mxu0 0.0
      %3007 = vmatmul.mubr.f32.gmra.mxu0 %v2757
      %v3008 = vpop.f32.mrf.mxu0
      %v3009 = vadd.f32 0.0, %v3008
      %v3010 = vpop.f32.mrf.mxu0
      %3011 = vmatprep.mubr.f32.mxu0 0.0
      %3012 = vmatmul.mubr.f32.gmra.mxu0 %v2760
      %v3013 = vpop.f32.mrf.mxu0
      %v3014 = vadd.f32 0.0, %v3013
      %v3015 = vpop.f32.mrf.mxu0
      %3016 = vmatprep.mubr.f32.mxu0 0.0
      %3017 = vmatmul.mubr.f32.gmra.mxu0 %v2763
      %v3018 = vpop.f32.mrf.mxu0
      %v3019 = vadd.f32 0.0, %v3018
      %v3020 = vpop.f32.mrf.mxu0
      %3021 = vmatprep.mubr.f32.mxu0 0.0
      %3022 = vmatmul.mubr.f32.gmra.mxu0 %v2766
      %v3023 = vpop.f32.mrf.mxu0
      %v3024 = vadd.f32 0.0, %v3023
      %v3025 = vpop.f32.mrf.mxu0
      %3026 = vmatprep.mubr.f32.mxu0 0.0
      %3027 = vmatmul.mubr.f32.gmra.mxu0 %v2769
      %v3028 = vpop.f32.mrf.mxu0
      %v3029 = vadd.f32 0.0, %v3028
      %v3030 = vpop.f32.mrf.mxu0
      %3031 = vmatprep.mubr.f32.mxu0 0.0
      %3032 = vmatmul.mubr.f32.gmra.mxu0 %v2772
      %v3033 = vpop.f32.mrf.mxu0
      %v3034 = vadd.f32 0.0, %v3033
      %v3035 = vpop.f32.mrf.mxu0
      %3036 = vmatprep.mubr.f32.mxu0 0.0
      %3037 = vmatmul.mubr.f32.gmra.mxu0 %v2775
      %v3038 = vpop.f32.mrf.mxu0
      %v3039 = vadd.f32 0.0, %v3038
      %v3040 = vpop.f32.mrf.mxu0
      %3041 = vmatprep.mubr.f32.mxu0 0.0
      %3042 = vmatmul.mubr.f32.gmra.mxu0 %v2778
      %v3043 = vpop.f32.mrf.mxu0
      %v3044 = vadd.f32 0.0, %v3043
      %v3045 = vpop.f32.mrf.mxu0
      %3046 = vmatprep.mubr.f32.mxu0 0.0
      %3047 = vmatmul.mubr.f32.gmra.mxu0 %v2781
      %v3048 = vpop.f32.mrf.mxu0
      %v3049 = vadd.f32 0.0, %v3048
      %v3050 = vpop.f32.mrf.mxu0
      %3051 = vmatprep.mubr.f32.mxu0 0.0
      %3052 = vmatmul.mubr.f32.gmra.mxu0 %v2784
      %v3053 = vpop.f32.mrf.mxu0
      %v3054 = vadd.f32 0.0, %v3053
      %v3055 = vpop.f32.mrf.mxu0
      %3056 = vmatprep.mubr.f32.mxu0 0.0
      %3057 = vmatmul.mubr.f32.gmra.mxu0 %v2787
      %v3058 = vpop.f32.mrf.mxu0
      %v3059 = vadd.f32 0.0, %v3058
      %v3060 = vpop.f32.mrf.mxu0
      %3061 = vdwg.mxu0
      %v3062 = vadd.f32 %v2582, %v2859
      %v3063 = vadd.f32 %v2583, %v2864
      %v3064 = vadd.f32 %v2584, %v2869
      %v3065 = vadd.f32 %v2585, %v2874
      %v3066 = vadd.f32 %v2586, %v2879
      %v3067 = vadd.f32 %v2587, %v2884
      %v3068 = vadd.f32 %v2588, %v2889
      %v3069 = vadd.f32 %v2589, %v2894
      %v3070 = vadd.f32 %v2590, %v2899
      %v3071 = vadd.f32 %v2591, %v2904
      %v3072 = vadd.f32 %v2592, %v2909
      %v3073 = vadd.f32 %v2593, %v2914
      %v3074 = vadd.f32 %v2594, %v2919
      %v3075 = vadd.f32 %v2595, %v2924
      %v3076 = vadd.f32 %v2596, %v2929
      %v3077 = vadd.f32 %v2597, %v2934
      %v3078 = vadd.f32 %v2598, %v2939
      %v3079 = vadd.f32 %v2599, %v2944
      %v3080 = vadd.f32 %v2600, %v2949
      %v3081 = vadd.f32 %v2601, %v2954
      %v3082 = vadd.f32 %v2602, %v2959
      %v3083 = vadd.f32 %v2603, %v2964
      %v3084 = vadd.f32 %v2604, %v2969
      %v3085 = vadd.f32 %v2605, %v2974
      %v3086 = vadd.f32 %v2606, %v2979
      %v3087 = vadd.f32 %v2607, %v2984
      %v3088 = vadd.f32 %v2608, %v2989
      %v3089 = vadd.f32 %v2609, %v2994
      %v3090 = vadd.f32 %v2610, %v2999
      %v3091 = vadd.f32 %v2611, %v3004
      %v3092 = vadd.f32 %v2612, %v3009
      %v3093 = vadd.f32 %v2613, %v3014
      %v3094 = vadd.f32 %v2614, %v3019
      %v3095 = vadd.f32 %v2615, %v3024
      %v3096 = vadd.f32 %v2616, %v3029
      %v3097 = vadd.f32 %v2617, %v3034
      %v3098 = vadd.f32 %v2618, %v3039
      %v3099 = vadd.f32 %v2619, %v3044
      %v3100 = vadd.f32 %v2620, %v3049
      %v3101 = vadd.f32 %v2621, %v3054
      %v3102 = vadd.f32 %v2622, %v3059
      %v3103 = vld [vmem:[%s199 + $0x14] sm:$0xff]
      %v3104 = vld [vmem:[%s199 + $0x1c] sm:$0xff]
      %v3105 = vld [vmem:[%s199 + $0x24] sm:$0xff]
      %v3106 = vld [vmem:[%s199 + $0x2c] sm:$0xff]
      %v3107 = vld [vmem:[%s199 + $0x34] sm:$0xff]
      %v3108 = vld [vmem:[%s199 + $0x3c] sm:$0xff]
      %v3109 = vld [vmem:[%s199 + $0x44] sm:$0xff]
      %v3110 = vld [vmem:[%s199 + $0x4c] sm:$0xff]
      %v3111 = vld [vmem:[%s199 + $0x54] sm:$0xff]
      %v3112 = vld [vmem:[%s199 + $0x5c] sm:$0xff]
      %v3113 = vld [vmem:[%s199 + $0x64] sm:$0xff]
      %v3114 = vld [vmem:[%s199 + $0x6c] sm:$0xff]
      %v3115 = vld [vmem:[%s199 + $0x74] sm:$0xff]
      %v3116 = vld [vmem:[%s199 + $0x7c] sm:$0xff]
      %v3117 = vld [vmem:[%s199 + $0x84] sm:$0xff]
      %v3118 = vld [vmem:[%s199 + $0x8c] sm:$0xff]
      %v3119 = vld [vmem:[%s199 + $0x94] sm:$0xff]
      %v3120 = vld [vmem:[%s199 + $0x9c] sm:$0xff]
      %v3121 = vld [vmem:[%s199 + $0xa4] sm:$0xff]
      %v3122 = vld [vmem:[%s199 + $0xac] sm:$0xff]
      %v3123 = vld [vmem:[%s199 + $0xb4] sm:$0xff]
      %v3124 = vld [vmem:[%s199 + $0xbc] sm:$0xff]
      %v3125 = vld [vmem:[%s199 + $0xc4] sm:$0xff]
      %v3126 = vld [vmem:[%s199 + $0xcc] sm:$0xff]
      %v3127 = vld [vmem:[%s199 + $0xd4] sm:$0xff]
      %v3128 = vld [vmem:[%s199 + $0xdc] sm:$0xff]
      %v3129 = vld [vmem:[%s199 + $0xe4] sm:$0xff]
      %v3130 = vld [vmem:[%s199 + $0xec] sm:$0xff]
      %v3131 = vld [vmem:[%s199 + $0xf4] sm:$0xff]
      %v3132 = vld [vmem:[%s199 + $0xfc] sm:$0xff]
      %v3133 = vld [vmem:[%s199 + $0x104] sm:$0xff]
      %v3134 = vld [vmem:[%s199 + $0x10c] sm:$0xff]
      %v3135 = vld [vmem:[%s199 + $0x114] sm:$0xff]
      %v3136 = vld [vmem:[%s199 + $0x11c] sm:$0xff]
      %v3137 = vld [vmem:[%s199 + $0x124] sm:$0xff]
      %v3138 = vld [vmem:[%s199 + $0x12c] sm:$0xff]
      %v3139 = vld [vmem:[%s199 + $0x134] sm:$0xff]
      %v3140 = vld [vmem:[%s199 + $0x13c] sm:$0xff]
      %v3141 = vld [vmem:[%s199 + $0x144] sm:$0xff]
      %v3142 = vld [vmem:[%s199 + $0x14c] sm:$0xff]
      %v3143 = vld [vmem:[%s199 + $0x154] sm:$0xf]
      %s3144 = scalar_lea.vmem %s1, 20
      %v3145 = vld [vmem:[%s3144] sm:$0xf]
      %v3147 = vsel %vm869, %v3103, 0
      %v3150 = vsel %vm869, %v3104, 0
      %v3153 = vsel %vm869, %v3105, 0
      %v3156 = vsel %vm869, %v3106, 0
      %v3159 = vsel %vm869, %v3107, 0
      %v3162 = vsel %vm869, %v3108, 0
      %v3165 = vsel %vm869, %v3109, 0
      %v3168 = vsel %vm869, %v3110, 0
      %v3171 = vsel %vm869, %v3111, 0
      %v3174 = vsel %vm869, %v3112, 0
      %v3177 = vsel %vm869, %v3113, 0
      %v3180 = vsel %vm869, %v3114, 0
      %v3183 = vsel %vm869, %v3115, 0
      %v3186 = vsel %vm869, %v3116, 0
      %v3189 = vsel %vm869, %v3117, 0
      %v3192 = vsel %vm869, %v3118, 0
      %v3195 = vsel %vm869, %v3119, 0
      %v3198 = vsel %vm869, %v3120, 0
      %v3201 = vsel %vm869, %v3121, 0
      %v3204 = vsel %vm869, %v3122, 0
      %v3207 = vsel %vm869, %v3123, 0
      %v3210 = vsel %vm869, %v3124, 0
      %v3213 = vsel %vm869, %v3125, 0
      %v3216 = vsel %vm869, %v3126, 0
      %v3219 = vsel %vm869, %v3127, 0
      %v3222 = vsel %vm869, %v3128, 0
      %v3225 = vsel %vm869, %v3129, 0
      %v3228 = vsel %vm869, %v3130, 0
      %v3231 = vsel %vm869, %v3131, 0
      %v3234 = vsel %vm869, %v3132, 0
      %v3237 = vsel %vm869, %v3133, 0
      %v3240 = vsel %vm869, %v3134, 0
      %v3243 = vsel %vm869, %v3135, 0
      %v3246 = vsel %vm869, %v3136, 0
      %v3249 = vsel %vm869, %v3137, 0
      %v3252 = vsel %vm869, %v3138, 0
      %v3255 = vsel %vm869, %v3139, 0
      %v3258 = vsel %vm869, %v3140, 0
      %v3261 = vsel %vm869, %v3141, 0
      %v3264 = vsel %vm869, %v3142, 0
      %v3267 = vsel %vm869, %v3143, 0
      %v3270 = vsel %vm993, %v3145, 0
      %3272 = vmatprep.subr.mxu0 0.0
      %3273 = vmatpush1.msra.mxu0 0.0
      %3274 = vmatprep.subr.mxu0 0.0
      %3275 = vmatpush1.msra.mxu0 0.0
      %3276 = vmatprep.subr.mxu0 0.0
      %3277 = vmatpush1.msra.mxu0 0.0
      %3278 = vmatprep.subr.mxu0 0.0
      %3279 = vmatpush1.msra.mxu0 0.0
      %3280 = vmatprep.subr.mxu0 0.0
      %3281 = vmatpush1.msra.mxu0 0.0
      %3282 = vmatprep.subr.mxu0 0.0
      %3283 = vmatpush1.msra.mxu0 0.0
      %3284 = vmatprep.subr.mxu0 0.0
      %3285 = vmatpush1.msra.mxu0 0.0
      %3286 = vmatprep.subr.mxu0 0.0
      %3287 = vmatpush1.msra.mxu0 0.0
      %3288 = vmatprep.subr.mxu0 0.0
      %3289 = vmatpush1.msra.mxu0 0.0
      %3290 = vmatprep.subr.mxu0 0.0
      %3291 = vmatpush1.msra.mxu0 0.0
      %3292 = vmatprep.subr.mxu0 0.0
      %3293 = vmatpush1.msra.mxu0 0.0
      %3294 = vmatprep.subr.mxu0 0.0
      %3295 = vmatpush1.msra.mxu0 0.0
      %3296 = vmatprep.subr.mxu0 0.0
      %3297 = vmatpush1.msra.mxu0 0.0
      %3298 = vmatprep.subr.mxu0 0.0
      %3299 = vmatpush1.msra.mxu0 0.0
      %3300 = vmatprep.subr.mxu0 0.0
      %3301 = vmatpush1.msra.mxu0 0.0
      %3302 = vmatprep.subr.mxu0 0.0
      %3303 = vmatpush1.msra.mxu0 %v3270
      %3304 = vmatprep.subr.mxu0 0.0
      %3305 = vmatpush2.msra.mxu0 0.0
      %3306 = vmatprep.subr.mxu0 0.0
      %3307 = vmatpush2.msra.mxu0 0.0
      %3308 = vmatprep.subr.mxu0 0.0
      %3309 = vmatpush2.msra.mxu0 0.0
      %3310 = vmatprep.subr.mxu0 0.0
      %3311 = vmatpush2.msra.mxu0 0.0
      %3312 = vmatprep.subr.mxu0 0.0
      %3313 = vmatpush2.msra.mxu0 0.0
      %3314 = vmatprep.subr.mxu0 0.0
      %3315 = vmatpush2.msra.mxu0 0.0
      %3316 = vmatprep.subr.mxu0 0.0
      %3317 = vmatpush2.msra.mxu0 0.0
      %3318 = vmatprep.subr.mxu0 0.0
      %3319 = vmatpush2.msra.mxu0 0.0
      %3320 = vmatprep.subr.mxu0 0.0
      %3321 = vmatpush2.msra.mxu0 0.0
      %3322 = vmatprep.subr.mxu0 0.0
      %3323 = vmatpush2.msra.mxu0 0.0
      %3324 = vmatprep.subr.mxu0 0.0
      %3325 = vmatpush2.msra.mxu0 0.0
      %3326 = vmatprep.subr.mxu0 0.0
      %3327 = vmatpush2.msra.mxu0 0.0
      %3328 = vmatprep.subr.mxu0 0.0
      %3329 = vmatpush2.msra.mxu0 0.0
      %3330 = vmatprep.subr.mxu0 0.0
      %3331 = vmatpush2.msra.mxu0 0.0
      %3332 = vmatprep.subr.mxu0 0.0
      %3333 = vmatpush2.msra.mxu0 0.0
      %3334 = vmatprep.subr.mxu0 0.0
      %3335 = vmatpush2.msra.mxu0 0.0
      %3336 = vmatprep.mubr.f32.mxu0 0.0
      %3337 = vmatmul.mubr.f32.gmra.mxu0 %v3147
      %v3338 = vpop.f32.mrf.mxu0
      %v3339 = vadd.f32 0.0, %v3338
      %v3340 = vpop.f32.mrf.mxu0
      %3341 = vmatprep.mubr.f32.mxu0 0.0
      %3342 = vmatmul.mubr.f32.gmra.mxu0 %v3150
      %v3343 = vpop.f32.mrf.mxu0
      %v3344 = vadd.f32 0.0, %v3343
      %v3345 = vpop.f32.mrf.mxu0
      %3346 = vmatprep.mubr.f32.mxu0 0.0
      %3347 = vmatmul.mubr.f32.gmra.mxu0 %v3153
      %v3348 = vpop.f32.mrf.mxu0
      %v3349 = vadd.f32 0.0, %v3348
      %v3350 = vpop.f32.mrf.mxu0
      %3351 = vmatprep.mubr.f32.mxu0 0.0
      %3352 = vmatmul.mubr.f32.gmra.mxu0 %v3156
      %v3353 = vpop.f32.mrf.mxu0
      %v3354 = vadd.f32 0.0, %v3353
      %v3355 = vpop.f32.mrf.mxu0
      %3356 = vmatprep.mubr.f32.mxu0 0.0
      %3357 = vmatmul.mubr.f32.gmra.mxu0 %v3159
      %v3358 = vpop.f32.mrf.mxu0
      %v3359 = vadd.f32 0.0, %v3358
      %v3360 = vpop.f32.mrf.mxu0
      %3361 = vmatprep.mubr.f32.mxu0 0.0
      %3362 = vmatmul.mubr.f32.gmra.mxu0 %v3162
      %v3363 = vpop.f32.mrf.mxu0
      %v3364 = vadd.f32 0.0, %v3363
      %v3365 = vpop.f32.mrf.mxu0
      %3366 = vmatprep.mubr.f32.mxu0 0.0
      %3367 = vmatmul.mubr.f32.gmra.mxu0 %v3165
      %v3368 = vpop.f32.mrf.mxu0
      %v3369 = vadd.f32 0.0, %v3368
      %v3370 = vpop.f32.mrf.mxu0
      %3371 = vmatprep.mubr.f32.mxu0 0.0
      %3372 = vmatmul.mubr.f32.gmra.mxu0 %v3168
      %v3373 = vpop.f32.mrf.mxu0
      %v3374 = vadd.f32 0.0, %v3373
      %v3375 = vpop.f32.mrf.mxu0
      %3376 = vmatprep.mubr.f32.mxu0 0.0
      %3377 = vmatmul.mubr.f32.gmra.mxu0 %v3171
      %v3378 = vpop.f32.mrf.mxu0
      %v3379 = vadd.f32 0.0, %v3378
      %v3380 = vpop.f32.mrf.mxu0
      %3381 = vmatprep.mubr.f32.mxu0 0.0
      %3382 = vmatmul.mubr.f32.gmra.mxu0 %v3174
      %v3383 = vpop.f32.mrf.mxu0
      %v3384 = vadd.f32 0.0, %v3383
      %v3385 = vpop.f32.mrf.mxu0
      %3386 = vmatprep.mubr.f32.mxu0 0.0
      %3387 = vmatmul.mubr.f32.gmra.mxu0 %v3177
      %v3388 = vpop.f32.mrf.mxu0
      %v3389 = vadd.f32 0.0, %v3388
      %v3390 = vpop.f32.mrf.mxu0
      %3391 = vmatprep.mubr.f32.mxu0 0.0
      %3392 = vmatmul.mubr.f32.gmra.mxu0 %v3180
      %v3393 = vpop.f32.mrf.mxu0
      %v3394 = vadd.f32 0.0, %v3393
      %v3395 = vpop.f32.mrf.mxu0
      %3396 = vmatprep.mubr.f32.mxu0 0.0
      %3397 = vmatmul.mubr.f32.gmra.mxu0 %v3183
      %v3398 = vpop.f32.mrf.mxu0
      %v3399 = vadd.f32 0.0, %v3398
      %v3400 = vpop.f32.mrf.mxu0
      %3401 = vmatprep.mubr.f32.mxu0 0.0
      %3402 = vmatmul.mubr.f32.gmra.mxu0 %v3186
      %v3403 = vpop.f32.mrf.mxu0
      %v3404 = vadd.f32 0.0, %v3403
      %v3405 = vpop.f32.mrf.mxu0
      %3406 = vmatprep.mubr.f32.mxu0 0.0
      %3407 = vmatmul.mubr.f32.gmra.mxu0 %v3189
      %v3408 = vpop.f32.mrf.mxu0
      %v3409 = vadd.f32 0.0, %v3408
      %v3410 = vpop.f32.mrf.mxu0
      %3411 = vmatprep.mubr.f32.mxu0 0.0
      %3412 = vmatmul.mubr.f32.gmra.mxu0 %v3192
      %v3413 = vpop.f32.mrf.mxu0
      %v3414 = vadd.f32 0.0, %v3413
      %v3415 = vpop.f32.mrf.mxu0
      %3416 = vmatprep.mubr.f32.mxu0 0.0
      %3417 = vmatmul.mubr.f32.gmra.mxu0 %v3195
      %v3418 = vpop.f32.mrf.mxu0
      %v3419 = vadd.f32 0.0, %v3418
      %v3420 = vpop.f32.mrf.mxu0
      %3421 = vmatprep.mubr.f32.mxu0 0.0
      %3422 = vmatmul.mubr.f32.gmra.mxu0 %v3198
      %v3423 = vpop.f32.mrf.mxu0
      %v3424 = vadd.f32 0.0, %v3423
      %v3425 = vpop.f32.mrf.mxu0
      %3426 = vmatprep.mubr.f32.mxu0 0.0
      %3427 = vmatmul.mubr.f32.gmra.mxu0 %v3201
      %v3428 = vpop.f32.mrf.mxu0
      %v3429 = vadd.f32 0.0, %v3428
      %v3430 = vpop.f32.mrf.mxu0
      %3431 = vmatprep.mubr.f32.mxu0 0.0
      %3432 = vmatmul.mubr.f32.gmra.mxu0 %v3204
      %v3433 = vpop.f32.mrf.mxu0
      %v3434 = vadd.f32 0.0, %v3433
      %v3435 = vpop.f32.mrf.mxu0
      %3436 = vmatprep.mubr.f32.mxu0 0.0
      %3437 = vmatmul.mubr.f32.gmra.mxu0 %v3207
      %v3438 = vpop.f32.mrf.mxu0
      %v3439 = vadd.f32 0.0, %v3438
      %v3440 = vpop.f32.mrf.mxu0
      %3441 = vmatprep.mubr.f32.mxu0 0.0
      %3442 = vmatmul.mubr.f32.gmra.mxu0 %v3210
      %v3443 = vpop.f32.mrf.mxu0
      %v3444 = vadd.f32 0.0, %v3443
      %v3445 = vpop.f32.mrf.mxu0
      %3446 = vmatprep.mubr.f32.mxu0 0.0
      %3447 = vmatmul.mubr.f32.gmra.mxu0 %v3213
      %v3448 = vpop.f32.mrf.mxu0
      %v3449 = vadd.f32 0.0, %v3448
      %v3450 = vpop.f32.mrf.mxu0
      %3451 = vmatprep.mubr.f32.mxu0 0.0
      %3452 = vmatmul.mubr.f32.gmra.mxu0 %v3216
      %v3453 = vpop.f32.mrf.mxu0
      %v3454 = vadd.f32 0.0, %v3453
      %v3455 = vpop.f32.mrf.mxu0
      %3456 = vmatprep.mubr.f32.mxu0 0.0
      %3457 = vmatmul.mubr.f32.gmra.mxu0 %v3219
      %v3458 = vpop.f32.mrf.mxu0
      %v3459 = vadd.f32 0.0, %v3458
      %v3460 = vpop.f32.mrf.mxu0
      %3461 = vmatprep.mubr.f32.mxu0 0.0
      %3462 = vmatmul.mubr.f32.gmra.mxu0 %v3222
      %v3463 = vpop.f32.mrf.mxu0
      %v3464 = vadd.f32 0.0, %v3463
      %v3465 = vpop.f32.mrf.mxu0
      %3466 = vmatprep.mubr.f32.mxu0 0.0
      %3467 = vmatmul.mubr.f32.gmra.mxu0 %v3225
      %v3468 = vpop.f32.mrf.mxu0
      %v3469 = vadd.f32 0.0, %v3468
      %v3470 = vpop.f32.mrf.mxu0
      %3471 = vmatprep.mubr.f32.mxu0 0.0
      %3472 = vmatmul.mubr.f32.gmra.mxu0 %v3228
      %v3473 = vpop.f32.mrf.mxu0
      %v3474 = vadd.f32 0.0, %v3473
      %v3475 = vpop.f32.mrf.mxu0
      %3476 = vmatprep.mubr.f32.mxu0 0.0
      %3477 = vmatmul.mubr.f32.gmra.mxu0 %v3231
      %v3478 = vpop.f32.mrf.mxu0
      %v3479 = vadd.f32 0.0, %v3478
      %v3480 = vpop.f32.mrf.mxu0
      %3481 = vmatprep.mubr.f32.mxu0 0.0
      %3482 = vmatmul.mubr.f32.gmra.mxu0 %v3234
      %v3483 = vpop.f32.mrf.mxu0
      %v3484 = vadd.f32 0.0, %v3483
      %v3485 = vpop.f32.mrf.mxu0
      %3486 = vmatprep.mubr.f32.mxu0 0.0
      %3487 = vmatmul.mubr.f32.gmra.mxu0 %v3237
      %v3488 = vpop.f32.mrf.mxu0
      %v3489 = vadd.f32 0.0, %v3488
      %v3490 = vpop.f32.mrf.mxu0
      %3491 = vmatprep.mubr.f32.mxu0 0.0
      %3492 = vmatmul.mubr.f32.gmra.mxu0 %v3240
      %v3493 = vpop.f32.mrf.mxu0
      %v3494 = vadd.f32 0.0, %v3493
      %v3495 = vpop.f32.mrf.mxu0
      %3496 = vmatprep.mubr.f32.mxu0 0.0
      %3497 = vmatmul.mubr.f32.gmra.mxu0 %v3243
      %v3498 = vpop.f32.mrf.mxu0
      %v3499 = vadd.f32 0.0, %v3498
      %v3500 = vpop.f32.mrf.mxu0
      %3501 = vmatprep.mubr.f32.mxu0 0.0
      %3502 = vmatmul.mubr.f32.gmra.mxu0 %v3246
      %v3503 = vpop.f32.mrf.mxu0
      %v3504 = vadd.f32 0.0, %v3503
      %v3505 = vpop.f32.mrf.mxu0
      %3506 = vmatprep.mubr.f32.mxu0 0.0
      %3507 = vmatmul.mubr.f32.gmra.mxu0 %v3249
      %v3508 = vpop.f32.mrf.mxu0
      %v3509 = vadd.f32 0.0, %v3508
      %v3510 = vpop.f32.mrf.mxu0
      %3511 = vmatprep.mubr.f32.mxu0 0.0
      %3512 = vmatmul.mubr.f32.gmra.mxu0 %v3252
      %v3513 = vpop.f32.mrf.mxu0
      %v3514 = vadd.f32 0.0, %v3513
      %v3515 = vpop.f32.mrf.mxu0
      %3516 = vmatprep.mubr.f32.mxu0 0.0
      %3517 = vmatmul.mubr.f32.gmra.mxu0 %v3255
      %v3518 = vpop.f32.mrf.mxu0
      %v3519 = vadd.f32 0.0, %v3518
      %v3520 = vpop.f32.mrf.mxu0
      %3521 = vmatprep.mubr.f32.mxu0 0.0
      %3522 = vmatmul.mubr.f32.gmra.mxu0 %v3258
      %v3523 = vpop.f32.mrf.mxu0
      %v3524 = vadd.f32 0.0, %v3523
      %v3525 = vpop.f32.mrf.mxu0
      %3526 = vmatprep.mubr.f32.mxu0 0.0
      %3527 = vmatmul.mubr.f32.gmra.mxu0 %v3261
      %v3528 = vpop.f32.mrf.mxu0
      %v3529 = vadd.f32 0.0, %v3528
      %v3530 = vpop.f32.mrf.mxu0
      %3531 = vmatprep.mubr.f32.mxu0 0.0
      %3532 = vmatmul.mubr.f32.gmra.mxu0 %v3264
      %v3533 = vpop.f32.mrf.mxu0
      %v3534 = vadd.f32 0.0, %v3533
      %v3535 = vpop.f32.mrf.mxu0
      %3536 = vmatprep.mubr.f32.mxu0 0.0
      %3537 = vmatmul.mubr.f32.gmra.mxu0 %v3267
      %v3538 = vpop.f32.mrf.mxu0
      %v3539 = vadd.f32 0.0, %v3538
      %v3540 = vpop.f32.mrf.mxu0
      %3541 = vdwg.mxu0
      %v3542 = vadd.f32 %v3062, %v3339
      %v3543 = vadd.f32 %v3063, %v3344
      %v3544 = vadd.f32 %v3064, %v3349
      %v3545 = vadd.f32 %v3065, %v3354
      %v3546 = vadd.f32 %v3066, %v3359
      %v3547 = vadd.f32 %v3067, %v3364
      %v3548 = vadd.f32 %v3068, %v3369
      %v3549 = vadd.f32 %v3069, %v3374
      %v3550 = vadd.f32 %v3070, %v3379
      %v3551 = vadd.f32 %v3071, %v3384
      %v3552 = vadd.f32 %v3072, %v3389
      %v3553 = vadd.f32 %v3073, %v3394
      %v3554 = vadd.f32 %v3074, %v3399
      %v3555 = vadd.f32 %v3075, %v3404
      %v3556 = vadd.f32 %v3076, %v3409
      %v3557 = vadd.f32 %v3077, %v3414
      %v3558 = vadd.f32 %v3078, %v3419
      %v3559 = vadd.f32 %v3079, %v3424
      %v3560 = vadd.f32 %v3080, %v3429
      %v3561 = vadd.f32 %v3081, %v3434
      %v3562 = vadd.f32 %v3082, %v3439
      %v3563 = vadd.f32 %v3083, %v3444
      %v3564 = vadd.f32 %v3084, %v3449
      %v3565 = vadd.f32 %v3085, %v3454
      %v3566 = vadd.f32 %v3086, %v3459
      %v3567 = vadd.f32 %v3087, %v3464
      %v3568 = vadd.f32 %v3088, %v3469
      %v3569 = vadd.f32 %v3089, %v3474
      %v3570 = vadd.f32 %v3090, %v3479
      %v3571 = vadd.f32 %v3091, %v3484
      %v3572 = vadd.f32 %v3092, %v3489
      %v3573 = vadd.f32 %v3093, %v3494
      %v3574 = vadd.f32 %v3094, %v3499
      %v3575 = vadd.f32 %v3095, %v3504
      %v3576 = vadd.f32 %v3096, %v3509
      %v3577 = vadd.f32 %v3097, %v3514
      %v3578 = vadd.f32 %v3098, %v3519
      %v3579 = vadd.f32 %v3099, %v3524
      %v3580 = vadd.f32 %v3100, %v3529
      %v3581 = vadd.f32 %v3101, %v3534
      %v3582 = vadd.f32 %v3102, %v3539
      %v3583 = vld [vmem:[%s199 + $0x24] sm:$0xff]
      %v3584 = vld [vmem:[%s199 + $0x2c] sm:$0xff]
      %v3585 = vld [vmem:[%s199 + $0x34] sm:$0xff]
      %v3586 = vld [vmem:[%s199 + $0x3c] sm:$0xff]
      %v3587 = vld [vmem:[%s199 + $0x44] sm:$0xff]
      %v3588 = vld [vmem:[%s199 + $0x4c] sm:$0xff]
      %v3589 = vld [vmem:[%s199 + $0x54] sm:$0xff]
      %v3590 = vld [vmem:[%s199 + $0x5c] sm:$0xff]
      %v3591 = vld [vmem:[%s199 + $0x64] sm:$0xff]
      %v3592 = vld [vmem:[%s199 + $0x6c] sm:$0xff]
      %v3593 = vld [vmem:[%s199 + $0x74] sm:$0xff]
      %v3594 = vld [vmem:[%s199 + $0x7c] sm:$0xff]
      %v3595 = vld [vmem:[%s199 + $0x84] sm:$0xff]
      %v3596 = vld [vmem:[%s199 + $0x8c] sm:$0xff]
      %v3597 = vld [vmem:[%s199 + $0x94] sm:$0xff]
      %v3598 = vld [vmem:[%s199 + $0x9c] sm:$0xff]
      %v3599 = vld [vmem:[%s199 + $0xa4] sm:$0xff]
      %v3600 = vld [vmem:[%s199 + $0xac] sm:$0xff]
      %v3601 = vld [vmem:[%s199 + $0xb4] sm:$0xff]
      %v3602 = vld [vmem:[%s199 + $0xbc] sm:$0xff]
      %v3603 = vld [vmem:[%s199 + $0xc4] sm:$0xff]
      %v3604 = vld [vmem:[%s199 + $0xcc] sm:$0xff]
      %v3605 = vld [vmem:[%s199 + $0xd4] sm:$0xff]
      %v3606 = vld [vmem:[%s199 + $0xdc] sm:$0xff]
      %v3607 = vld [vmem:[%s199 + $0xe4] sm:$0xff]
      %v3608 = vld [vmem:[%s199 + $0xec] sm:$0xff]
      %v3609 = vld [vmem:[%s199 + $0xf4] sm:$0xff]
      %v3610 = vld [vmem:[%s199 + $0xfc] sm:$0xff]
      %v3611 = vld [vmem:[%s199 + $0x104] sm:$0xff]
      %v3612 = vld [vmem:[%s199 + $0x10c] sm:$0xff]
      %v3613 = vld [vmem:[%s199 + $0x114] sm:$0xff]
      %v3614 = vld [vmem:[%s199 + $0x11c] sm:$0xff]
      %v3615 = vld [vmem:[%s199 + $0x124] sm:$0xff]
      %v3616 = vld [vmem:[%s199 + $0x12c] sm:$0xff]
      %v3617 = vld [vmem:[%s199 + $0x134] sm:$0xff]
      %v3618 = vld [vmem:[%s199 + $0x13c] sm:$0xff]
      %v3619 = vld [vmem:[%s199 + $0x144] sm:$0xff]
      %v3620 = vld [vmem:[%s199 + $0x14c] sm:$0xff]
      %v3621 = vld [vmem:[%s199 + $0x154] sm:$0xff]
      %v3622 = vld [vmem:[%s199 + $0x15c] sm:$0xff]
      %v3623 = vld [vmem:[%s199 + $0x164] sm:$0xf]
      %s3624 = scalar_lea.vmem %s1, 24
      %v3625 = vld [vmem:[%s3624] sm:$0xf]
      %v3627 = vsel %vm869, %v3583, 0
      %v3630 = vsel %vm869, %v3584, 0
      %v3633 = vsel %vm869, %v3585, 0
      %v3636 = vsel %vm869, %v3586, 0
      %v3639 = vsel %vm869, %v3587, 0
      %v3642 = vsel %vm869, %v3588, 0
      %v3645 = vsel %vm869, %v3589, 0
      %v3648 = vsel %vm869, %v3590, 0
      %v3651 = vsel %vm869, %v3591, 0
      %v3654 = vsel %vm869, %v3592, 0
      %v3657 = vsel %vm869, %v3593, 0
      %v3660 = vsel %vm869, %v3594, 0
      %v3663 = vsel %vm869, %v3595, 0
      %v3666 = vsel %vm869, %v3596, 0
      %v3669 = vsel %vm869, %v3597, 0
      %v3672 = vsel %vm869, %v3598, 0
      %v3675 = vsel %vm869, %v3599, 0
      %v3678 = vsel %vm869, %v3600, 0
      %v3681 = vsel %vm869, %v3601, 0
      %v3684 = vsel %vm869, %v3602, 0
      %v3687 = vsel %vm869, %v3603, 0
      %v3690 = vsel %vm869, %v3604, 0
      %v3693 = vsel %vm869, %v3605, 0
      %v3696 = vsel %vm869, %v3606, 0
      %v3699 = vsel %vm869, %v3607, 0
      %v3702 = vsel %vm869, %v3608, 0
      %v3705 = vsel %vm869, %v3609, 0
      %v3708 = vsel %vm869, %v3610, 0
      %v3711 = vsel %vm869, %v3611, 0
      %v3714 = vsel %vm869, %v3612, 0
      %v3717 = vsel %vm869, %v3613, 0
      %v3720 = vsel %vm869, %v3614, 0
      %v3723 = vsel %vm869, %v3615, 0
      %v3726 = vsel %vm869, %v3616, 0
      %v3729 = vsel %vm869, %v3617, 0
      %v3732 = vsel %vm869, %v3618, 0
      %v3735 = vsel %vm869, %v3619, 0
      %v3738 = vsel %vm869, %v3620, 0
      %v3741 = vsel %vm869, %v3621, 0
      %v3744 = vsel %vm869, %v3622, 0
      %v3747 = vsel %vm869, %v3623, 0
      %v3750 = vsel %vm993, %v3625, 0
      %3752 = vmatprep.subr.mxu0 0.0
      %3753 = vmatpush1.msra.mxu0 0.0
      %3754 = vmatprep.subr.mxu0 0.0
      %3755 = vmatpush1.msra.mxu0 0.0
      %3756 = vmatprep.subr.mxu0 0.0
      %3757 = vmatpush1.msra.mxu0 0.0
      %3758 = vmatprep.subr.mxu0 0.0
      %3759 = vmatpush1.msra.mxu0 0.0
      %3760 = vmatprep.subr.mxu0 0.0
      %3761 = vmatpush1.msra.mxu0 0.0
      %3762 = vmatprep.subr.mxu0 0.0
      %3763 = vmatpush1.msra.mxu0 0.0
      %3764 = vmatprep.subr.mxu0 0.0
      %3765 = vmatpush1.msra.mxu0 0.0
      %3766 = vmatprep.subr.mxu0 0.0
      %3767 = vmatpush1.msra.mxu0 0.0
      %3768 = vmatprep.subr.mxu0 0.0
      %3769 = vmatpush1.msra.mxu0 0.0
      %3770 = vmatprep.subr.mxu0 0.0
      %3771 = vmatpush1.msra.mxu0 0.0
      %3772 = vmatprep.subr.mxu0 0.0
      %3773 = vmatpush1.msra.mxu0 0.0
      %3774 = vmatprep.subr.mxu0 0.0
      %3775 = vmatpush1.msra.mxu0 0.0
      %3776 = vmatprep.subr.mxu0 0.0
      %3777 = vmatpush1.msra.mxu0 0.0
      %3778 = vmatprep.subr.mxu0 0.0
      %3779 = vmatpush1.msra.mxu0 0.0
      %3780 = vmatprep.subr.mxu0 0.0
      %3781 = vmatpush1.msra.mxu0 0.0
      %3782 = vmatprep.subr.mxu0 0.0
      %3783 = vmatpush1.msra.mxu0 %v3750
      %3784 = vmatprep.subr.mxu0 0.0
      %3785 = vmatpush2.msra.mxu0 0.0
      %3786 = vmatprep.subr.mxu0 0.0
      %3787 = vmatpush2.msra.mxu0 0.0
      %3788 = vmatprep.subr.mxu0 0.0
      %3789 = vmatpush2.msra.mxu0 0.0
      %3790 = vmatprep.subr.mxu0 0.0
      %3791 = vmatpush2.msra.mxu0 0.0
      %3792 = vmatprep.subr.mxu0 0.0
      %3793 = vmatpush2.msra.mxu0 0.0
      %3794 = vmatprep.subr.mxu0 0.0
      %3795 = vmatpush2.msra.mxu0 0.0
      %3796 = vmatprep.subr.mxu0 0.0
      %3797 = vmatpush2.msra.mxu0 0.0
      %3798 = vmatprep.subr.mxu0 0.0
      %3799 = vmatpush2.msra.mxu0 0.0
      %3800 = vmatprep.subr.mxu0 0.0
      %3801 = vmatpush2.msra.mxu0 0.0
      %3802 = vmatprep.subr.mxu0 0.0
      %3803 = vmatpush2.msra.mxu0 0.0
      %3804 = vmatprep.subr.mxu0 0.0
      %3805 = vmatpush2.msra.mxu0 0.0
      %3806 = vmatprep.subr.mxu0 0.0
      %3807 = vmatpush2.msra.mxu0 0.0
      %3808 = vmatprep.subr.mxu0 0.0
      %3809 = vmatpush2.msra.mxu0 0.0
      %3810 = vmatprep.subr.mxu0 0.0
      %3811 = vmatpush2.msra.mxu0 0.0
      %3812 = vmatprep.subr.mxu0 0.0
      %3813 = vmatpush2.msra.mxu0 0.0
      %3814 = vmatprep.subr.mxu0 0.0
      %3815 = vmatpush2.msra.mxu0 0.0
      %3816 = vmatprep.mubr.f32.mxu0 0.0
      %3817 = vmatmul.mubr.f32.gmra.mxu0 %v3627
      %v3818 = vpop.f32.mrf.mxu0
      %v3819 = vadd.f32 0.0, %v3818
      %v3820 = vpop.f32.mrf.mxu0
      %3821 = vmatprep.mubr.f32.mxu0 0.0
      %3822 = vmatmul.mubr.f32.gmra.mxu0 %v3630
      %v3823 = vpop.f32.mrf.mxu0
      %v3824 = vadd.f32 0.0, %v3823
      %v3825 = vpop.f32.mrf.mxu0
      %3826 = vmatprep.mubr.f32.mxu0 0.0
      %3827 = vmatmul.mubr.f32.gmra.mxu0 %v3633
      %v3828 = vpop.f32.mrf.mxu0
      %v3829 = vadd.f32 0.0, %v3828
      %v3830 = vpop.f32.mrf.mxu0
      %3831 = vmatprep.mubr.f32.mxu0 0.0
      %3832 = vmatmul.mubr.f32.gmra.mxu0 %v3636
      %v3833 = vpop.f32.mrf.mxu0
      %v3834 = vadd.f32 0.0, %v3833
      %v3835 = vpop.f32.mrf.mxu0
      %3836 = vmatprep.mubr.f32.mxu0 0.0
      %3837 = vmatmul.mubr.f32.gmra.mxu0 %v3639
      %v3838 = vpop.f32.mrf.mxu0
      %v3839 = vadd.f32 0.0, %v3838
      %v3840 = vpop.f32.mrf.mxu0
      %3841 = vmatprep.mubr.f32.mxu0 0.0
      %3842 = vmatmul.mubr.f32.gmra.mxu0 %v3642
      %v3843 = vpop.f32.mrf.mxu0
      %v3844 = vadd.f32 0.0, %v3843
      %v3845 = vpop.f32.mrf.mxu0
      %3846 = vmatprep.mubr.f32.mxu0 0.0
      %3847 = vmatmul.mubr.f32.gmra.mxu0 %v3645
      %v3848 = vpop.f32.mrf.mxu0
      %v3849 = vadd.f32 0.0, %v3848
      %v3850 = vpop.f32.mrf.mxu0
      %3851 = vmatprep.mubr.f32.mxu0 0.0
      %3852 = vmatmul.mubr.f32.gmra.mxu0 %v3648
      %v3853 = vpop.f32.mrf.mxu0
      %v3854 = vadd.f32 0.0, %v3853
      %v3855 = vpop.f32.mrf.mxu0
      %3856 = vmatprep.mubr.f32.mxu0 0.0
      %3857 = vmatmul.mubr.f32.gmra.mxu0 %v3651
      %v3858 = vpop.f32.mrf.mxu0
      %v3859 = vadd.f32 0.0, %v3858
      %v3860 = vpop.f32.mrf.mxu0
      %3861 = vmatprep.mubr.f32.mxu0 0.0
      %3862 = vmatmul.mubr.f32.gmra.mxu0 %v3654
      %v3863 = vpop.f32.mrf.mxu0
      %v3864 = vadd.f32 0.0, %v3863
      %v3865 = vpop.f32.mrf.mxu0
      %3866 = vmatprep.mubr.f32.mxu0 0.0
      %3867 = vmatmul.mubr.f32.gmra.mxu0 %v3657
      %v3868 = vpop.f32.mrf.mxu0
      %v3869 = vadd.f32 0.0, %v3868
      %v3870 = vpop.f32.mrf.mxu0
      %3871 = vmatprep.mubr.f32.mxu0 0.0
      %3872 = vmatmul.mubr.f32.gmra.mxu0 %v3660
      %v3873 = vpop.f32.mrf.mxu0
      %v3874 = vadd.f32 0.0, %v3873
      %v3875 = vpop.f32.mrf.mxu0
      %3876 = vmatprep.mubr.f32.mxu0 0.0
      %3877 = vmatmul.mubr.f32.gmra.mxu0 %v3663
      %v3878 = vpop.f32.mrf.mxu0
      %v3879 = vadd.f32 0.0, %v3878
      %v3880 = vpop.f32.mrf.mxu0
      %3881 = vmatprep.mubr.f32.mxu0 0.0
      %3882 = vmatmul.mubr.f32.gmra.mxu0 %v3666
      %v3883 = vpop.f32.mrf.mxu0
      %v3884 = vadd.f32 0.0, %v3883
      %v3885 = vpop.f32.mrf.mxu0
      %3886 = vmatprep.mubr.f32.mxu0 0.0
      %3887 = vmatmul.mubr.f32.gmra.mxu0 %v3669
      %v3888 = vpop.f32.mrf.mxu0
      %v3889 = vadd.f32 0.0, %v3888
      %v3890 = vpop.f32.mrf.mxu0
      %3891 = vmatprep.mubr.f32.mxu0 0.0
      %3892 = vmatmul.mubr.f32.gmra.mxu0 %v3672
      %v3893 = vpop.f32.mrf.mxu0
      %v3894 = vadd.f32 0.0, %v3893
      %v3895 = vpop.f32.mrf.mxu0
      %3896 = vmatprep.mubr.f32.mxu0 0.0
      %3897 = vmatmul.mubr.f32.gmra.mxu0 %v3675
      %v3898 = vpop.f32.mrf.mxu0
      %v3899 = vadd.f32 0.0, %v3898
      %v3900 = vpop.f32.mrf.mxu0
      %3901 = vmatprep.mubr.f32.mxu0 0.0
      %3902 = vmatmul.mubr.f32.gmra.mxu0 %v3678
      %v3903 = vpop.f32.mrf.mxu0
      %v3904 = vadd.f32 0.0, %v3903
      %v3905 = vpop.f32.mrf.mxu0
      %3906 = vmatprep.mubr.f32.mxu0 0.0
      %3907 = vmatmul.mubr.f32.gmra.mxu0 %v3681
      %v3908 = vpop.f32.mrf.mxu0
      %v3909 = vadd.f32 0.0, %v3908
      %v3910 = vpop.f32.mrf.mxu0
      %3911 = vmatprep.mubr.f32.mxu0 0.0
      %3912 = vmatmul.mubr.f32.gmra.mxu0 %v3684
      %v3913 = vpop.f32.mrf.mxu0
      %v3914 = vadd.f32 0.0, %v3913
      %v3915 = vpop.f32.mrf.mxu0
      %3916 = vmatprep.mubr.f32.mxu0 0.0
      %3917 = vmatmul.mubr.f32.gmra.mxu0 %v3687
      %v3918 = vpop.f32.mrf.mxu0
      %v3919 = vadd.f32 0.0, %v3918
      %v3920 = vpop.f32.mrf.mxu0
      %3921 = vmatprep.mubr.f32.mxu0 0.0
      %3922 = vmatmul.mubr.f32.gmra.mxu0 %v3690
      %v3923 = vpop.f32.mrf.mxu0
      %v3924 = vadd.f32 0.0, %v3923
      %v3925 = vpop.f32.mrf.mxu0
      %3926 = vmatprep.mubr.f32.mxu0 0.0
      %3927 = vmatmul.mubr.f32.gmra.mxu0 %v3693
      %v3928 = vpop.f32.mrf.mxu0
      %v3929 = vadd.f32 0.0, %v3928
      %v3930 = vpop.f32.mrf.mxu0
      %3931 = vmatprep.mubr.f32.mxu0 0.0
      %3932 = vmatmul.mubr.f32.gmra.mxu0 %v3696
      %v3933 = vpop.f32.mrf.mxu0
      %v3934 = vadd.f32 0.0, %v3933
      %v3935 = vpop.f32.mrf.mxu0
      %3936 = vmatprep.mubr.f32.mxu0 0.0
      %3937 = vmatmul.mubr.f32.gmra.mxu0 %v3699
      %v3938 = vpop.f32.mrf.mxu0
      %v3939 = vadd.f32 0.0, %v3938
      %v3940 = vpop.f32.mrf.mxu0
      %3941 = vmatprep.mubr.f32.mxu0 0.0
      %3942 = vmatmul.mubr.f32.gmra.mxu0 %v3702
      %v3943 = vpop.f32.mrf.mxu0
      %v3944 = vadd.f32 0.0, %v3943
      %v3945 = vpop.f32.mrf.mxu0
      %3946 = vmatprep.mubr.f32.mxu0 0.0
      %3947 = vmatmul.mubr.f32.gmra.mxu0 %v3705
      %v3948 = vpop.f32.mrf.mxu0
      %v3949 = vadd.f32 0.0, %v3948
      %v3950 = vpop.f32.mrf.mxu0
      %3951 = vmatprep.mubr.f32.mxu0 0.0
      %3952 = vmatmul.mubr.f32.gmra.mxu0 %v3708
      %v3953 = vpop.f32.mrf.mxu0
      %v3954 = vadd.f32 0.0, %v3953
      %v3955 = vpop.f32.mrf.mxu0
      %3956 = vmatprep.mubr.f32.mxu0 0.0
      %3957 = vmatmul.mubr.f32.gmra.mxu0 %v3711
      %v3958 = vpop.f32.mrf.mxu0
      %v3959 = vadd.f32 0.0, %v3958
      %v3960 = vpop.f32.mrf.mxu0
      %3961 = vmatprep.mubr.f32.mxu0 0.0
      %3962 = vmatmul.mubr.f32.gmra.mxu0 %v3714
      %v3963 = vpop.f32.mrf.mxu0
      %v3964 = vadd.f32 0.0, %v3963
      %v3965 = vpop.f32.mrf.mxu0
      %3966 = vmatprep.mubr.f32.mxu0 0.0
      %3967 = vmatmul.mubr.f32.gmra.mxu0 %v3717
      %v3968 = vpop.f32.mrf.mxu0
      %v3969 = vadd.f32 0.0, %v3968
      %v3970 = vpop.f32.mrf.mxu0
      %3971 = vmatprep.mubr.f32.mxu0 0.0
      %3972 = vmatmul.mubr.f32.gmra.mxu0 %v3720
      %v3973 = vpop.f32.mrf.mxu0
      %v3974 = vadd.f32 0.0, %v3973
      %v3975 = vpop.f32.mrf.mxu0
      %3976 = vmatprep.mubr.f32.mxu0 0.0
      %3977 = vmatmul.mubr.f32.gmra.mxu0 %v3723
      %v3978 = vpop.f32.mrf.mxu0
      %v3979 = vadd.f32 0.0, %v3978
      %v3980 = vpop.f32.mrf.mxu0
      %3981 = vmatprep.mubr.f32.mxu0 0.0
      %3982 = vmatmul.mubr.f32.gmra.mxu0 %v3726
      %v3983 = vpop.f32.mrf.mxu0
      %v3984 = vadd.f32 0.0, %v3983
      %v3985 = vpop.f32.mrf.mxu0
      %3986 = vmatprep.mubr.f32.mxu0 0.0
      %3987 = vmatmul.mubr.f32.gmra.mxu0 %v3729
      %v3988 = vpop.f32.mrf.mxu0
      %v3989 = vadd.f32 0.0, %v3988
      %v3990 = vpop.f32.mrf.mxu0
      %3991 = vmatprep.mubr.f32.mxu0 0.0
      %3992 = vmatmul.mubr.f32.gmra.mxu0 %v3732
      %v3993 = vpop.f32.mrf.mxu0
      %v3994 = vadd.f32 0.0, %v3993
      %v3995 = vpop.f32.mrf.mxu0
      %3996 = vmatprep.mubr.f32.mxu0 0.0
      %3997 = vmatmul.mubr.f32.gmra.mxu0 %v3735
      %v3998 = vpop.f32.mrf.mxu0
      %v3999 = vadd.f32 0.0, %v3998
      %v4000 = vpop.f32.mrf.mxu0
      %4001 = vmatprep.mubr.f32.mxu0 0.0
      %4002 = vmatmul.mubr.f32.gmra.mxu0 %v3738
      %v4003 = vpop.f32.mrf.mxu0
      %v4004 = vadd.f32 0.0, %v4003
      %v4005 = vpop.f32.mrf.mxu0
      %4006 = vmatprep.mubr.f32.mxu0 0.0
      %4007 = vmatmul.mubr.f32.gmra.mxu0 %v3741
      %v4008 = vpop.f32.mrf.mxu0
      %v4009 = vadd.f32 0.0, %v4008
      %v4010 = vpop.f32.mrf.mxu0
      %4011 = vmatprep.mubr.f32.mxu0 0.0
      %4012 = vmatmul.mubr.f32.gmra.mxu0 %v3744
      %v4013 = vpop.f32.mrf.mxu0
      %v4014 = vadd.f32 0.0, %v4013
      %v4015 = vpop.f32.mrf.mxu0
      %4016 = vmatprep.mubr.f32.mxu0 0.0
      %4017 = vmatmul.mubr.f32.gmra.mxu0 %v3747
      %v4018 = vpop.f32.mrf.mxu0
      %v4019 = vadd.f32 0.0, %v4018
      %v4020 = vpop.f32.mrf.mxu0
      %4021 = vdwg.mxu0
      %v4022 = vadd.f32 %v3542, %v3819
      %v4023 = vadd.f32 %v3543, %v3824
      %v4024 = vadd.f32 %v3544, %v3829
      %v4025 = vadd.f32 %v3545, %v3834
      %v4026 = vadd.f32 %v3546, %v3839
      %v4027 = vadd.f32 %v3547, %v3844
      %v4028 = vadd.f32 %v3548, %v3849
      %v4029 = vadd.f32 %v3549, %v3854
      %v4030 = vadd.f32 %v3550, %v3859
      %v4031 = vadd.f32 %v3551, %v3864
      %v4032 = vadd.f32 %v3552, %v3869
      %v4033 = vadd.f32 %v3553, %v3874
      %v4034 = vadd.f32 %v3554, %v3879
      %v4035 = vadd.f32 %v3555, %v3884
      %v4036 = vadd.f32 %v3556, %v3889
      %v4037 = vadd.f32 %v3557, %v3894
      %v4038 = vadd.f32 %v3558, %v3899
      %v4039 = vadd.f32 %v3559, %v3904
      %v4040 = vadd.f32 %v3560, %v3909
      %v4041 = vadd.f32 %v3561, %v3914
      %v4042 = vadd.f32 %v3562, %v3919
      %v4043 = vadd.f32 %v3563, %v3924
      %v4044 = vadd.f32 %v3564, %v3929
      %v4045 = vadd.f32 %v3565, %v3934
      %v4046 = vadd.f32 %v3566, %v3939
      %v4047 = vadd.f32 %v3567, %v3944
      %v4048 = vadd.f32 %v3568, %v3949
      %v4049 = vadd.f32 %v3569, %v3954
      %v4050 = vadd.f32 %v3570, %v3959
      %v4051 = vadd.f32 %v3571, %v3964
      %v4052 = vadd.f32 %v3572, %v3969
      %v4053 = vadd.f32 %v3573, %v3974
      %v4054 = vadd.f32 %v3574, %v3979
      %v4055 = vadd.f32 %v3575, %v3984
      %v4056 = vadd.f32 %v3576, %v3989
      %v4057 = vadd.f32 %v3577, %v3994
      %v4058 = vadd.f32 %v3578, %v3999
      %v4059 = vadd.f32 %v3579, %v4004
      %v4060 = vadd.f32 %v3580, %v4009
      %v4061 = vadd.f32 %v3581, %v4014
      %v4062 = vadd.f32 %v3582, %v4019
      %v4063 = vld [vmem:[%s199 + $0x25] sm:$0xff]
      %v4064 = vld [vmem:[%s199 + $0x2d] sm:$0xff]
      %v4065 = vld [vmem:[%s199 + $0x35] sm:$0xff]
      %v4066 = vld [vmem:[%s199 + $0x3d] sm:$0xff]
      %v4067 = vld [vmem:[%s199 + $0x45] sm:$0xff]
      %v4068 = vld [vmem:[%s199 + $0x4d] sm:$0xff]
      %v4069 = vld [vmem:[%s199 + $0x55] sm:$0xff]
      %v4070 = vld [vmem:[%s199 + $0x5d] sm:$0xff]
      %v4071 = vld [vmem:[%s199 + $0x65] sm:$0xff]
      %v4072 = vld [vmem:[%s199 + $0x6d] sm:$0xff]
      %v4073 = vld [vmem:[%s199 + $0x75] sm:$0xff]
      %v4074 = vld [vmem:[%s199 + $0x7d] sm:$0xff]
      %v4075 = vld [vmem:[%s199 + $0x85] sm:$0xff]
      %v4076 = vld [vmem:[%s199 + $0x8d] sm:$0xff]
      %v4077 = vld [vmem:[%s199 + $0x95] sm:$0xff]
      %v4078 = vld [vmem:[%s199 + $0x9d] sm:$0xff]
      %v4079 = vld [vmem:[%s199 + $0xa5] sm:$0xff]
      %v4080 = vld [vmem:[%s199 + $0xad] sm:$0xff]
      %v4081 = vld [vmem:[%s199 + $0xb5] sm:$0xff]
      %v4082 = vld [vmem:[%s199 + $0xbd] sm:$0xff]
      %v4083 = vld [vmem:[%s199 + $0xc5] sm:$0xff]
      %v4084 = vld [vmem:[%s199 + $0xcd] sm:$0xff]
      %v4085 = vld [vmem:[%s199 + $0xd5] sm:$0xff]
      %v4086 = vld [vmem:[%s199 + $0xdd] sm:$0xff]
      %v4087 = vld [vmem:[%s199 + $0xe5] sm:$0xff]
      %v4088 = vld [vmem:[%s199 + $0xed] sm:$0xff]
      %v4089 = vld [vmem:[%s199 + $0xf5] sm:$0xff]
      %v4090 = vld [vmem:[%s199 + $0xfd] sm:$0xff]
      %v4091 = vld [vmem:[%s199 + $0x105] sm:$0xff]
      %v4092 = vld [vmem:[%s199 + $0x10d] sm:$0xff]
      %v4093 = vld [vmem:[%s199 + $0x115] sm:$0xff]
      %v4094 = vld [vmem:[%s199 + $0x11d] sm:$0xff]
      %v4095 = vld [vmem:[%s199 + $0x125] sm:$0xff]
      %v4096 = vld [vmem:[%s199 + $0x12d] sm:$0xff]
      %v4097 = vld [vmem:[%s199 + $0x135] sm:$0xff]
      %v4098 = vld [vmem:[%s199 + $0x13d] sm:$0xff]
      %v4099 = vld [vmem:[%s199 + $0x145] sm:$0xff]
      %v4100 = vld [vmem:[%s199 + $0x14d] sm:$0xff]
      %v4101 = vld [vmem:[%s199 + $0x155] sm:$0xff]
      %v4102 = vld [vmem:[%s199 + $0x15d] sm:$0xff]
      %v4103 = vld [vmem:[%s199 + $0x165] sm:$0xf]
      %s4104 = scalar_lea.vmem %s1, 28
      %v4105 = vld [vmem:[%s4104] sm:$0xf]
      %v4107 = vsel %vm869, %v4063, 0
      %v4110 = vsel %vm869, %v4064, 0
      %v4113 = vsel %vm869, %v4065, 0
      %v4116 = vsel %vm869, %v4066, 0
      %v4119 = vsel %vm869, %v4067, 0
      %v4122 = vsel %vm869, %v4068, 0
      %v4125 = vsel %vm869, %v4069, 0
      %v4128 = vsel %vm869, %v4070, 0
      %v4131 = vsel %vm869, %v4071, 0
      %v4134 = vsel %vm869, %v4072, 0
      %v4137 = vsel %vm869, %v4073, 0
      %v4140 = vsel %vm869, %v4074, 0
      %v4143 = vsel %vm869, %v4075, 0
      %v4146 = vsel %vm869, %v4076, 0
      %v4149 = vsel %vm869, %v4077, 0
      %v4152 = vsel %vm869, %v4078, 0
      %v4155 = vsel %vm869, %v4079, 0
      %v4158 = vsel %vm869, %v4080, 0
      %v4161 = vsel %vm869, %v4081, 0
      %v4164 = vsel %vm869, %v4082, 0
      %v4167 = vsel %vm869, %v4083, 0
      %v4170 = vsel %vm869, %v4084, 0
      %v4173 = vsel %vm869, %v4085, 0
      %v4176 = vsel %vm869, %v4086, 0
      %v4179 = vsel %vm869, %v4087, 0
      %v4182 = vsel %vm869, %v4088, 0
      %v4185 = vsel %vm869, %v4089, 0
      %v4188 = vsel %vm869, %v4090, 0
      %v4191 = vsel %vm869, %v4091, 0
      %v4194 = vsel %vm869, %v4092, 0
      %v4197 = vsel %vm869, %v4093, 0
      %v4200 = vsel %vm869, %v4094, 0
      %v4203 = vsel %vm869, %v4095, 0
      %v4206 = vsel %vm869, %v4096, 0
      %v4209 = vsel %vm869, %v4097, 0
      %v4212 = vsel %vm869, %v4098, 0
      %v4215 = vsel %vm869, %v4099, 0
      %v4218 = vsel %vm869, %v4100, 0
      %v4221 = vsel %vm869, %v4101, 0
      %v4224 = vsel %vm869, %v4102, 0
      %v4227 = vsel %vm869, %v4103, 0
      %v4230 = vsel %vm993, %v4105, 0
      %4232 = vmatprep.subr.mxu0 0.0
      %4233 = vmatpush1.msra.mxu0 0.0
      %4234 = vmatprep.subr.mxu0 0.0
      %4235 = vmatpush1.msra.mxu0 0.0
      %4236 = vmatprep.subr.mxu0 0.0
      %4237 = vmatpush1.msra.mxu0 0.0
      %4238 = vmatprep.subr.mxu0 0.0
      %4239 = vmatpush1.msra.mxu0 0.0
      %4240 = vmatprep.subr.mxu0 0.0
      %4241 = vmatpush1.msra.mxu0 0.0
      %4242 = vmatprep.subr.mxu0 0.0
      %4243 = vmatpush1.msra.mxu0 0.0
      %4244 = vmatprep.subr.mxu0 0.0
      %4245 = vmatpush1.msra.mxu0 0.0
      %4246 = vmatprep.subr.mxu0 0.0
      %4247 = vmatpush1.msra.mxu0 0.0
      %4248 = vmatprep.subr.mxu0 0.0
      %4249 = vmatpush1.msra.mxu0 0.0
      %4250 = vmatprep.subr.mxu0 0.0
      %4251 = vmatpush1.msra.mxu0 0.0
      %4252 = vmatprep.subr.mxu0 0.0
      %4253 = vmatpush1.msra.mxu0 0.0
      %4254 = vmatprep.subr.mxu0 0.0
      %4255 = vmatpush1.msra.mxu0 0.0
      %4256 = vmatprep.subr.mxu0 0.0
      %4257 = vmatpush1.msra.mxu0 0.0
      %4258 = vmatprep.subr.mxu0 0.0
      %4259 = vmatpush1.msra.mxu0 0.0
      %4260 = vmatprep.subr.mxu0 0.0
      %4261 = vmatpush1.msra.mxu0 0.0
      %4262 = vmatprep.subr.mxu0 0.0
      %4263 = vmatpush1.msra.mxu0 %v4230
      %4264 = vmatprep.subr.mxu0 0.0
      %4265 = vmatpush2.msra.mxu0 0.0
      %4266 = vmatprep.subr.mxu0 0.0
      %4267 = vmatpush2.msra.mxu0 0.0
      %4268 = vmatprep.subr.mxu0 0.0
      %4269 = vmatpush2.msra.mxu0 0.0
      %4270 = vmatprep.subr.mxu0 0.0
      %4271 = vmatpush2.msra.mxu0 0.0
      %4272 = vmatprep.subr.mxu0 0.0
      %4273 = vmatpush2.msra.mxu0 0.0
      %4274 = vmatprep.subr.mxu0 0.0
      %4275 = vmatpush2.msra.mxu0 0.0
      %4276 = vmatprep.subr.mxu0 0.0
      %4277 = vmatpush2.msra.mxu0 0.0
      %4278 = vmatprep.subr.mxu0 0.0
      %4279 = vmatpush2.msra.mxu0 0.0
      %4280 = vmatprep.subr.mxu0 0.0
      %4281 = vmatpush2.msra.mxu0 0.0
      %4282 = vmatprep.subr.mxu0 0.0
      %4283 = vmatpush2.msra.mxu0 0.0
      %4284 = vmatprep.subr.mxu0 0.0
      %4285 = vmatpush2.msra.mxu0 0.0
      %4286 = vmatprep.subr.mxu0 0.0
      %4287 = vmatpush2.msra.mxu0 0.0
      %4288 = vmatprep.subr.mxu0 0.0
      %4289 = vmatpush2.msra.mxu0 0.0
      %4290 = vmatprep.subr.mxu0 0.0
      %4291 = vmatpush2.msra.mxu0 0.0
      %4292 = vmatprep.subr.mxu0 0.0
      %4293 = vmatpush2.msra.mxu0 0.0
      %4294 = vmatprep.subr.mxu0 0.0
      %4295 = vmatpush2.msra.mxu0 0.0
      %4296 = vmatprep.mubr.f32.mxu0 0.0
      %4297 = vmatmul.mubr.f32.gmra.mxu0 %v4107
      %v4298 = vpop.f32.mrf.mxu0
      %v4299 = vadd.f32 0.0, %v4298
      %v4300 = vpop.f32.mrf.mxu0
      %4301 = vmatprep.mubr.f32.mxu0 0.0
      %4302 = vmatmul.mubr.f32.gmra.mxu0 %v4110
      %v4303 = vpop.f32.mrf.mxu0
      %v4304 = vadd.f32 0.0, %v4303
      %v4305 = vpop.f32.mrf.mxu0
      %4306 = vmatprep.mubr.f32.mxu0 0.0
      %4307 = vmatmul.mubr.f32.gmra.mxu0 %v4113
      %v4308 = vpop.f32.mrf.mxu0
      %v4309 = vadd.f32 0.0, %v4308
      %v4310 = vpop.f32.mrf.mxu0
      %4311 = vmatprep.mubr.f32.mxu0 0.0
      %4312 = vmatmul.mubr.f32.gmra.mxu0 %v4116
      %v4313 = vpop.f32.mrf.mxu0
      %v4314 = vadd.f32 0.0, %v4313
      %v4315 = vpop.f32.mrf.mxu0
      %4316 = vmatprep.mubr.f32.mxu0 0.0
      %4317 = vmatmul.mubr.f32.gmra.mxu0 %v4119
      %v4318 = vpop.f32.mrf.mxu0
      %v4319 = vadd.f32 0.0, %v4318
      %v4320 = vpop.f32.mrf.mxu0
      %4321 = vmatprep.mubr.f32.mxu0 0.0
      %4322 = vmatmul.mubr.f32.gmra.mxu0 %v4122
      %v4323 = vpop.f32.mrf.mxu0
      %v4324 = vadd.f32 0.0, %v4323
      %v4325 = vpop.f32.mrf.mxu0
      %4326 = vmatprep.mubr.f32.mxu0 0.0
      %4327 = vmatmul.mubr.f32.gmra.mxu0 %v4125
      %v4328 = vpop.f32.mrf.mxu0
      %v4329 = vadd.f32 0.0, %v4328
      %v4330 = vpop.f32.mrf.mxu0
      %4331 = vmatprep.mubr.f32.mxu0 0.0
      %4332 = vmatmul.mubr.f32.gmra.mxu0 %v4128
      %v4333 = vpop.f32.mrf.mxu0
      %v4334 = vadd.f32 0.0, %v4333
      %v4335 = vpop.f32.mrf.mxu0
      %4336 = vmatprep.mubr.f32.mxu0 0.0
      %4337 = vmatmul.mubr.f32.gmra.mxu0 %v4131
      %v4338 = vpop.f32.mrf.mxu0
      %v4339 = vadd.f32 0.0, %v4338
      %v4340 = vpop.f32.mrf.mxu0
      %4341 = vmatprep.mubr.f32.mxu0 0.0
      %4342 = vmatmul.mubr.f32.gmra.mxu0 %v4134
      %v4343 = vpop.f32.mrf.mxu0
      %v4344 = vadd.f32 0.0, %v4343
      %v4345 = vpop.f32.mrf.mxu0
      %4346 = vmatprep.mubr.f32.mxu0 0.0
      %4347 = vmatmul.mubr.f32.gmra.mxu0 %v4137
      %v4348 = vpop.f32.mrf.mxu0
      %v4349 = vadd.f32 0.0, %v4348
      %v4350 = vpop.f32.mrf.mxu0
      %4351 = vmatprep.mubr.f32.mxu0 0.0
      %4352 = vmatmul.mubr.f32.gmra.mxu0 %v4140
      %v4353 = vpop.f32.mrf.mxu0
      %v4354 = vadd.f32 0.0, %v4353
      %v4355 = vpop.f32.mrf.mxu0
      %4356 = vmatprep.mubr.f32.mxu0 0.0
      %4357 = vmatmul.mubr.f32.gmra.mxu0 %v4143
      %v4358 = vpop.f32.mrf.mxu0
      %v4359 = vadd.f32 0.0, %v4358
      %v4360 = vpop.f32.mrf.mxu0
      %4361 = vmatprep.mubr.f32.mxu0 0.0
      %4362 = vmatmul.mubr.f32.gmra.mxu0 %v4146
      %v4363 = vpop.f32.mrf.mxu0
      %v4364 = vadd.f32 0.0, %v4363
      %v4365 = vpop.f32.mrf.mxu0
      %4366 = vmatprep.mubr.f32.mxu0 0.0
      %4367 = vmatmul.mubr.f32.gmra.mxu0 %v4149
      %v4368 = vpop.f32.mrf.mxu0
      %v4369 = vadd.f32 0.0, %v4368
      %v4370 = vpop.f32.mrf.mxu0
      %4371 = vmatprep.mubr.f32.mxu0 0.0
      %4372 = vmatmul.mubr.f32.gmra.mxu0 %v4152
      %v4373 = vpop.f32.mrf.mxu0
      %v4374 = vadd.f32 0.0, %v4373
      %v4375 = vpop.f32.mrf.mxu0
      %4376 = vmatprep.mubr.f32.mxu0 0.0
      %4377 = vmatmul.mubr.f32.gmra.mxu0 %v4155
      %v4378 = vpop.f32.mrf.mxu0
      %v4379 = vadd.f32 0.0, %v4378
      %v4380 = vpop.f32.mrf.mxu0
      %4381 = vmatprep.mubr.f32.mxu0 0.0
      %4382 = vmatmul.mubr.f32.gmra.mxu0 %v4158
      %v4383 = vpop.f32.mrf.mxu0
      %v4384 = vadd.f32 0.0, %v4383
      %v4385 = vpop.f32.mrf.mxu0
      %4386 = vmatprep.mubr.f32.mxu0 0.0
      %4387 = vmatmul.mubr.f32.gmra.mxu0 %v4161
      %v4388 = vpop.f32.mrf.mxu0
      %v4389 = vadd.f32 0.0, %v4388
      %v4390 = vpop.f32.mrf.mxu0
      %4391 = vmatprep.mubr.f32.mxu0 0.0
      %4392 = vmatmul.mubr.f32.gmra.mxu0 %v4164
      %v4393 = vpop.f32.mrf.mxu0
      %v4394 = vadd.f32 0.0, %v4393
      %v4395 = vpop.f32.mrf.mxu0
      %4396 = vmatprep.mubr.f32.mxu0 0.0
      %4397 = vmatmul.mubr.f32.gmra.mxu0 %v4167
      %v4398 = vpop.f32.mrf.mxu0
      %v4399 = vadd.f32 0.0, %v4398
      %v4400 = vpop.f32.mrf.mxu0
      %4401 = vmatprep.mubr.f32.mxu0 0.0
      %4402 = vmatmul.mubr.f32.gmra.mxu0 %v4170
      %v4403 = vpop.f32.mrf.mxu0
      %v4404 = vadd.f32 0.0, %v4403
      %v4405 = vpop.f32.mrf.mxu0
      %4406 = vmatprep.mubr.f32.mxu0 0.0
      %4407 = vmatmul.mubr.f32.gmra.mxu0 %v4173
      %v4408 = vpop.f32.mrf.mxu0
      %v4409 = vadd.f32 0.0, %v4408
      %v4410 = vpop.f32.mrf.mxu0
      %4411 = vmatprep.mubr.f32.mxu0 0.0
      %4412 = vmatmul.mubr.f32.gmra.mxu0 %v4176
      %v4413 = vpop.f32.mrf.mxu0
      %v4414 = vadd.f32 0.0, %v4413
      %v4415 = vpop.f32.mrf.mxu0
      %4416 = vmatprep.mubr.f32.mxu0 0.0
      %4417 = vmatmul.mubr.f32.gmra.mxu0 %v4179
      %v4418 = vpop.f32.mrf.mxu0
      %v4419 = vadd.f32 0.0, %v4418
      %v4420 = vpop.f32.mrf.mxu0
      %4421 = vmatprep.mubr.f32.mxu0 0.0
      %4422 = vmatmul.mubr.f32.gmra.mxu0 %v4182
      %v4423 = vpop.f32.mrf.mxu0
      %v4424 = vadd.f32 0.0, %v4423
      %v4425 = vpop.f32.mrf.mxu0
      %4426 = vmatprep.mubr.f32.mxu0 0.0
      %4427 = vmatmul.mubr.f32.gmra.mxu0 %v4185
      %v4428 = vpop.f32.mrf.mxu0
      %v4429 = vadd.f32 0.0, %v4428
      %v4430 = vpop.f32.mrf.mxu0
      %4431 = vmatprep.mubr.f32.mxu0 0.0
      %4432 = vmatmul.mubr.f32.gmra.mxu0 %v4188
      %v4433 = vpop.f32.mrf.mxu0
      %v4434 = vadd.f32 0.0, %v4433
      %v4435 = vpop.f32.mrf.mxu0
      %4436 = vmatprep.mubr.f32.mxu0 0.0
      %4437 = vmatmul.mubr.f32.gmra.mxu0 %v4191
      %v4438 = vpop.f32.mrf.mxu0
      %v4439 = vadd.f32 0.0, %v4438
      %v4440 = vpop.f32.mrf.mxu0
      %4441 = vmatprep.mubr.f32.mxu0 0.0
      %4442 = vmatmul.mubr.f32.gmra.mxu0 %v4194
      %v4443 = vpop.f32.mrf.mxu0
      %v4444 = vadd.f32 0.0, %v4443
      %v4445 = vpop.f32.mrf.mxu0
      %4446 = vmatprep.mubr.f32.mxu0 0.0
      %4447 = vmatmul.mubr.f32.gmra.mxu0 %v4197
      %v4448 = vpop.f32.mrf.mxu0
      %v4449 = vadd.f32 0.0, %v4448
      %v4450 = vpop.f32.mrf.mxu0
      %4451 = vmatprep.mubr.f32.mxu0 0.0
      %4452 = vmatmul.mubr.f32.gmra.mxu0 %v4200
      %v4453 = vpop.f32.mrf.mxu0
      %v4454 = vadd.f32 0.0, %v4453
      %v4455 = vpop.f32.mrf.mxu0
      %4456 = vmatprep.mubr.f32.mxu0 0.0
      %4457 = vmatmul.mubr.f32.gmra.mxu0 %v4203
      %v4458 = vpop.f32.mrf.mxu0
      %v4459 = vadd.f32 0.0, %v4458
      %v4460 = vpop.f32.mrf.mxu0
      %4461 = vmatprep.mubr.f32.mxu0 0.0
      %4462 = vmatmul.mubr.f32.gmra.mxu0 %v4206
      %v4463 = vpop.f32.mrf.mxu0
      %v4464 = vadd.f32 0.0, %v4463
      %v4465 = vpop.f32.mrf.mxu0
      %4466 = vmatprep.mubr.f32.mxu0 0.0
      %4467 = vmatmul.mubr.f32.gmra.mxu0 %v4209
      %v4468 = vpop.f32.mrf.mxu0
      %v4469 = vadd.f32 0.0, %v4468
      %v4470 = vpop.f32.mrf.mxu0
      %4471 = vmatprep.mubr.f32.mxu0 0.0
      %4472 = vmatmul.mubr.f32.gmra.mxu0 %v4212
      %v4473 = vpop.f32.mrf.mxu0
      %v4474 = vadd.f32 0.0, %v4473
      %v4475 = vpop.f32.mrf.mxu0
      %4476 = vmatprep.mubr.f32.mxu0 0.0
      %4477 = vmatmul.mubr.f32.gmra.mxu0 %v4215
      %v4478 = vpop.f32.mrf.mxu0
      %v4479 = vadd.f32 0.0, %v4478
      %v4480 = vpop.f32.mrf.mxu0
      %4481 = vmatprep.mubr.f32.mxu0 0.0
      %4482 = vmatmul.mubr.f32.gmra.mxu0 %v4218
      %v4483 = vpop.f32.mrf.mxu0
      %v4484 = vadd.f32 0.0, %v4483
      %v4485 = vpop.f32.mrf.mxu0
      %4486 = vmatprep.mubr.f32.mxu0 0.0
      %4487 = vmatmul.mubr.f32.gmra.mxu0 %v4221
      %v4488 = vpop.f32.mrf.mxu0
      %v4489 = vadd.f32 0.0, %v4488
      %v4490 = vpop.f32.mrf.mxu0
      %4491 = vmatprep.mubr.f32.mxu0 0.0
      %4492 = vmatmul.mubr.f32.gmra.mxu0 %v4224
      %v4493 = vpop.f32.mrf.mxu0
      %v4494 = vadd.f32 0.0, %v4493
      %v4495 = vpop.f32.mrf.mxu0
      %4496 = vmatprep.mubr.f32.mxu0 0.0
      %4497 = vmatmul.mubr.f32.gmra.mxu0 %v4227
      %v4498 = vpop.f32.mrf.mxu0
      %v4499 = vadd.f32 0.0, %v4498
      %v4500 = vpop.f32.mrf.mxu0
      %4501 = vdwg.mxu0
      %v4502 = vadd.f32 %v4022, %v4299
      %v4503 = vadd.f32 %v4023, %v4304
      %v4504 = vadd.f32 %v4024, %v4309
      %v4505 = vadd.f32 %v4025, %v4314
      %v4506 = vadd.f32 %v4026, %v4319
      %v4507 = vadd.f32 %v4027, %v4324
      %v4508 = vadd.f32 %v4028, %v4329
      %v4509 = vadd.f32 %v4029, %v4334
      %v4510 = vadd.f32 %v4030, %v4339
      %v4511 = vadd.f32 %v4031, %v4344
      %v4512 = vadd.f32 %v4032, %v4349
      %v4513 = vadd.f32 %v4033, %v4354
      %v4514 = vadd.f32 %v4034, %v4359
      %v4515 = vadd.f32 %v4035, %v4364
      %v4516 = vadd.f32 %v4036, %v4369
      %v4517 = vadd.f32 %v4037, %v4374
      %v4518 = vadd.f32 %v4038, %v4379
      %v4519 = vadd.f32 %v4039, %v4384
      %v4520 = vadd.f32 %v4040, %v4389
      %v4521 = vadd.f32 %v4041, %v4394
      %v4522 = vadd.f32 %v4042, %v4399
      %v4523 = vadd.f32 %v4043, %v4404
      %v4524 = vadd.f32 %v4044, %v4409
      %v4525 = vadd.f32 %v4045, %v4414
      %v4526 = vadd.f32 %v4046, %v4419
      %v4527 = vadd.f32 %v4047, %v4424
      %v4528 = vadd.f32 %v4048, %v4429
      %v4529 = vadd.f32 %v4049, %v4434
      %v4530 = vadd.f32 %v4050, %v4439
      %v4531 = vadd.f32 %v4051, %v4444
      %v4532 = vadd.f32 %v4052, %v4449
      %v4533 = vadd.f32 %v4053, %v4454
      %v4534 = vadd.f32 %v4054, %v4459
      %v4535 = vadd.f32 %v4055, %v4464
      %v4536 = vadd.f32 %v4056, %v4469
      %v4537 = vadd.f32 %v4057, %v4474
      %v4538 = vadd.f32 %v4058, %v4479
      %v4539 = vadd.f32 %v4059, %v4484
      %v4540 = vadd.f32 %v4060, %v4489
      %v4541 = vadd.f32 %v4061, %v4494
      %v4542 = vadd.f32 %v4062, %v4499
      %v4543 = vld [vmem:[%s199 + $0x26] sm:$0xff]
      %v4544 = vld [vmem:[%s199 + $0x2e] sm:$0xff]
      %v4545 = vld [vmem:[%s199 + $0x36] sm:$0xff]
      %v4546 = vld [vmem:[%s199 + $0x3e] sm:$0xff]
      %v4547 = vld [vmem:[%s199 + $0x46] sm:$0xff]
      %v4548 = vld [vmem:[%s199 + $0x4e] sm:$0xff]
      %v4549 = vld [vmem:[%s199 + $0x56] sm:$0xff]
      %v4550 = vld [vmem:[%s199 + $0x5e] sm:$0xff]
      %v4551 = vld [vmem:[%s199 + $0x66] sm:$0xff]
      %v4552 = vld [vmem:[%s199 + $0x6e] sm:$0xff]
      %v4553 = vld [vmem:[%s199 + $0x76] sm:$0xff]
      %v4554 = vld [vmem:[%s199 + $0x7e] sm:$0xff]
      %v4555 = vld [vmem:[%s199 + $0x86] sm:$0xff]
      %v4556 = vld [vmem:[%s199 + $0x8e] sm:$0xff]
      %v4557 = vld [vmem:[%s199 + $0x96] sm:$0xff]
      %v4558 = vld [vmem:[%s199 + $0x9e] sm:$0xff]
      %v4559 = vld [vmem:[%s199 + $0xa6] sm:$0xff]
      %v4560 = vld [vmem:[%s199 + $0xae] sm:$0xff]
      %v4561 = vld [vmem:[%s199 + $0xb6] sm:$0xff]
      %v4562 = vld [vmem:[%s199 + $0xbe] sm:$0xff]
      %v4563 = vld [vmem:[%s199 + $0xc6] sm:$0xff]
      %v4564 = vld [vmem:[%s199 + $0xce] sm:$0xff]
      %v4565 = vld [vmem:[%s199 + $0xd6] sm:$0xff]
      %v4566 = vld [vmem:[%s199 + $0xde] sm:$0xff]
      %v4567 = vld [vmem:[%s199 + $0xe6] sm:$0xff]
      %v4568 = vld [vmem:[%s199 + $0xee] sm:$0xff]
      %v4569 = vld [vmem:[%s199 + $0xf6] sm:$0xff]
      %v4570 = vld [vmem:[%s199 + $0xfe] sm:$0xff]
      %v4571 = vld [vmem:[%s199 + $0x106] sm:$0xff]
      %v4572 = vld [vmem:[%s199 + $0x10e] sm:$0xff]
      %v4573 = vld [vmem:[%s199 + $0x116] sm:$0xff]
      %v4574 = vld [vmem:[%s199 + $0x11e] sm:$0xff]
      %v4575 = vld [vmem:[%s199 + $0x126] sm:$0xff]
      %v4576 = vld [vmem:[%s199 + $0x12e] sm:$0xff]
      %v4577 = vld [vmem:[%s199 + $0x136] sm:$0xff]
      %v4578 = vld [vmem:[%s199 + $0x13e] sm:$0xff]
      %v4579 = vld [vmem:[%s199 + $0x146] sm:$0xff]
      %v4580 = vld [vmem:[%s199 + $0x14e] sm:$0xff]
      %v4581 = vld [vmem:[%s199 + $0x156] sm:$0xff]
      %v4582 = vld [vmem:[%s199 + $0x15e] sm:$0xff]
      %v4583 = vld [vmem:[%s199 + $0x166] sm:$0xf]
      %s4584 = scalar_lea.vmem %s1, 32
      %v4585 = vld [vmem:[%s4584] sm:$0xf]
      %v4587 = vsel %vm869, %v4543, 0
      %v4590 = vsel %vm869, %v4544, 0
      %v4593 = vsel %vm869, %v4545, 0
      %v4596 = vsel %vm869, %v4546, 0
      %v4599 = vsel %vm869, %v4547, 0
      %v4602 = vsel %vm869, %v4548, 0
      %v4605 = vsel %vm869, %v4549, 0
      %v4608 = vsel %vm869, %v4550, 0
      %v4611 = vsel %vm869, %v4551, 0
      %v4614 = vsel %vm869, %v4552, 0
      %v4617 = vsel %vm869, %v4553, 0
      %v4620 = vsel %vm869, %v4554, 0
      %v4623 = vsel %vm869, %v4555, 0
      %v4626 = vsel %vm869, %v4556, 0
      %v4629 = vsel %vm869, %v4557, 0
      %v4632 = vsel %vm869, %v4558, 0
      %v4635 = vsel %vm869, %v4559, 0
      %v4638 = vsel %vm869, %v4560, 0
      %v4641 = vsel %vm869, %v4561, 0
      %v4644 = vsel %vm869, %v4562, 0
      %v4647 = vsel %vm869, %v4563, 0
      %v4650 = vsel %vm869, %v4564, 0
      %v4653 = vsel %vm869, %v4565, 0
      %v4656 = vsel %vm869, %v4566, 0
      %v4659 = vsel %vm869, %v4567, 0
      %v4662 = vsel %vm869, %v4568, 0
      %v4665 = vsel %vm869, %v4569, 0
      %v4668 = vsel %vm869, %v4570, 0
      %v4671 = vsel %vm869, %v4571, 0
      %v4674 = vsel %vm869, %v4572, 0
      %v4677 = vsel %vm869, %v4573, 0
      %v4680 = vsel %vm869, %v4574, 0
      %v4683 = vsel %vm869, %v4575, 0
      %v4686 = vsel %vm869, %v4576, 0
      %v4689 = vsel %vm869, %v4577, 0
      %v4692 = vsel %vm869, %v4578, 0
      %v4695 = vsel %vm869, %v4579, 0
      %v4698 = vsel %vm869, %v4580, 0
      %v4701 = vsel %vm869, %v4581, 0
      %v4704 = vsel %vm869, %v4582, 0
      %v4707 = vsel %vm869, %v4583, 0
      %v4710 = vsel %vm993, %v4585, 0
      %4712 = vmatprep.subr.mxu0 0.0
      %4713 = vmatpush1.msra.mxu0 0.0
      %4714 = vmatprep.subr.mxu0 0.0
      %4715 = vmatpush1.msra.mxu0 0.0
      %4716 = vmatprep.subr.mxu0 0.0
      %4717 = vmatpush1.msra.mxu0 0.0
      %4718 = vmatprep.subr.mxu0 0.0
      %4719 = vmatpush1.msra.mxu0 0.0
      %4720 = vmatprep.subr.mxu0 0.0
      %4721 = vmatpush1.msra.mxu0 0.0
      %4722 = vmatprep.subr.mxu0 0.0
      %4723 = vmatpush1.msra.mxu0 0.0
      %4724 = vmatprep.subr.mxu0 0.0
      %4725 = vmatpush1.msra.mxu0 0.0
      %4726 = vmatprep.subr.mxu0 0.0
      %4727 = vmatpush1.msra.mxu0 0.0
      %4728 = vmatprep.subr.mxu0 0.0
      %4729 = vmatpush1.msra.mxu0 0.0
      %4730 = vmatprep.subr.mxu0 0.0
      %4731 = vmatpush1.msra.mxu0 0.0
      %4732 = vmatprep.subr.mxu0 0.0
      %4733 = vmatpush1.msra.mxu0 0.0
      %4734 = vmatprep.subr.mxu0 0.0
      %4735 = vmatpush1.msra.mxu0 0.0
      %4736 = vmatprep.subr.mxu0 0.0
      %4737 = vmatpush1.msra.mxu0 0.0
      %4738 = vmatprep.subr.mxu0 0.0
      %4739 = vmatpush1.msra.mxu0 0.0
      %4740 = vmatprep.subr.mxu0 0.0
      %4741 = vmatpush1.msra.mxu0 0.0
      %4742 = vmatprep.subr.mxu0 0.0
      %4743 = vmatpush1.msra.mxu0 %v4710
      %4744 = vmatprep.subr.mxu0 0.0
      %4745 = vmatpush2.msra.mxu0 0.0
      %4746 = vmatprep.subr.mxu0 0.0
      %4747 = vmatpush2.msra.mxu0 0.0
      %4748 = vmatprep.subr.mxu0 0.0
      %4749 = vmatpush2.msra.mxu0 0.0
      %4750 = vmatprep.subr.mxu0 0.0
      %4751 = vmatpush2.msra.mxu0 0.0
      %4752 = vmatprep.subr.mxu0 0.0
      %4753 = vmatpush2.msra.mxu0 0.0
      %4754 = vmatprep.subr.mxu0 0.0
      %4755 = vmatpush2.msra.mxu0 0.0
      %4756 = vmatprep.subr.mxu0 0.0
      %4757 = vmatpush2.msra.mxu0 0.0
      %4758 = vmatprep.subr.mxu0 0.0
      %4759 = vmatpush2.msra.mxu0 0.0
      %4760 = vmatprep.subr.mxu0 0.0
      %4761 = vmatpush2.msra.mxu0 0.0
      %4762 = vmatprep.subr.mxu0 0.0
      %4763 = vmatpush2.msra.mxu0 0.0
      %4764 = vmatprep.subr.mxu0 0.0
      %4765 = vmatpush2.msra.mxu0 0.0
      %4766 = vmatprep.subr.mxu0 0.0
      %4767 = vmatpush2.msra.mxu0 0.0
      %4768 = vmatprep.subr.mxu0 0.0
      %4769 = vmatpush2.msra.mxu0 0.0
      %4770 = vmatprep.subr.mxu0 0.0
      %4771 = vmatpush2.msra.mxu0 0.0
      %4772 = vmatprep.subr.mxu0 0.0
      %4773 = vmatpush2.msra.mxu0 0.0
      %4774 = vmatprep.subr.mxu0 0.0
      %4775 = vmatpush2.msra.mxu0 0.0
      %4776 = vmatprep.mubr.f32.mxu0 0.0
      %4777 = vmatmul.mubr.f32.gmra.mxu0 %v4587
      %v4778 = vpop.f32.mrf.mxu0
      %v4779 = vadd.f32 0.0, %v4778
      %v4780 = vpop.f32.mrf.mxu0
      %4781 = vmatprep.mubr.f32.mxu0 0.0
      %4782 = vmatmul.mubr.f32.gmra.mxu0 %v4590
      %v4783 = vpop.f32.mrf.mxu0
      %v4784 = vadd.f32 0.0, %v4783
      %v4785 = vpop.f32.mrf.mxu0
      %4786 = vmatprep.mubr.f32.mxu0 0.0
      %4787 = vmatmul.mubr.f32.gmra.mxu0 %v4593
      %v4788 = vpop.f32.mrf.mxu0
      %v4789 = vadd.f32 0.0, %v4788
      %v4790 = vpop.f32.mrf.mxu0
      %4791 = vmatprep.mubr.f32.mxu0 0.0
      %4792 = vmatmul.mubr.f32.gmra.mxu0 %v4596
      %v4793 = vpop.f32.mrf.mxu0
      %v4794 = vadd.f32 0.0, %v4793
      %v4795 = vpop.f32.mrf.mxu0
      %4796 = vmatprep.mubr.f32.mxu0 0.0
      %4797 = vmatmul.mubr.f32.gmra.mxu0 %v4599
      %v4798 = vpop.f32.mrf.mxu0
      %v4799 = vadd.f32 0.0, %v4798
      %v4800 = vpop.f32.mrf.mxu0
      %4801 = vmatprep.mubr.f32.mxu0 0.0
      %4802 = vmatmul.mubr.f32.gmra.mxu0 %v4602
      %v4803 = vpop.f32.mrf.mxu0
      %v4804 = vadd.f32 0.0, %v4803
      %v4805 = vpop.f32.mrf.mxu0
      %4806 = vmatprep.mubr.f32.mxu0 0.0
      %4807 = vmatmul.mubr.f32.gmra.mxu0 %v4605
      %v4808 = vpop.f32.mrf.mxu0
      %v4809 = vadd.f32 0.0, %v4808
      %v4810 = vpop.f32.mrf.mxu0
      %4811 = vmatprep.mubr.f32.mxu0 0.0
      %4812 = vmatmul.mubr.f32.gmra.mxu0 %v4608
      %v4813 = vpop.f32.mrf.mxu0
      %v4814 = vadd.f32 0.0, %v4813
      %v4815 = vpop.f32.mrf.mxu0
      %4816 = vmatprep.mubr.f32.mxu0 0.0
      %4817 = vmatmul.mubr.f32.gmra.mxu0 %v4611
      %v4818 = vpop.f32.mrf.mxu0
      %v4819 = vadd.f32 0.0, %v4818
      %v4820 = vpop.f32.mrf.mxu0
      %4821 = vmatprep.mubr.f32.mxu0 0.0
      %4822 = vmatmul.mubr.f32.gmra.mxu0 %v4614
      %v4823 = vpop.f32.mrf.mxu0
      %v4824 = vadd.f32 0.0, %v4823
      %v4825 = vpop.f32.mrf.mxu0
      %4826 = vmatprep.mubr.f32.mxu0 0.0
      %4827 = vmatmul.mubr.f32.gmra.mxu0 %v4617
      %v4828 = vpop.f32.mrf.mxu0
      %v4829 = vadd.f32 0.0, %v4828
      %v4830 = vpop.f32.mrf.mxu0
      %4831 = vmatprep.mubr.f32.mxu0 0.0
      %4832 = vmatmul.mubr.f32.gmra.mxu0 %v4620
      %v4833 = vpop.f32.mrf.mxu0
      %v4834 = vadd.f32 0.0, %v4833
      %v4835 = vpop.f32.mrf.mxu0
      %4836 = vmatprep.mubr.f32.mxu0 0.0
      %4837 = vmatmul.mubr.f32.gmra.mxu0 %v4623
      %v4838 = vpop.f32.mrf.mxu0
      %v4839 = vadd.f32 0.0, %v4838
      %v4840 = vpop.f32.mrf.mxu0
      %4841 = vmatprep.mubr.f32.mxu0 0.0
      %4842 = vmatmul.mubr.f32.gmra.mxu0 %v4626
      %v4843 = vpop.f32.mrf.mxu0
      %v4844 = vadd.f32 0.0, %v4843
      %v4845 = vpop.f32.mrf.mxu0
      %4846 = vmatprep.mubr.f32.mxu0 0.0
      %4847 = vmatmul.mubr.f32.gmra.mxu0 %v4629
      %v4848 = vpop.f32.mrf.mxu0
      %v4849 = vadd.f32 0.0, %v4848
      %v4850 = vpop.f32.mrf.mxu0
      %4851 = vmatprep.mubr.f32.mxu0 0.0
      %4852 = vmatmul.mubr.f32.gmra.mxu0 %v4632
      %v4853 = vpop.f32.mrf.mxu0
      %v4854 = vadd.f32 0.0, %v4853
      %v4855 = vpop.f32.mrf.mxu0
      %4856 = vmatprep.mubr.f32.mxu0 0.0
      %4857 = vmatmul.mubr.f32.gmra.mxu0 %v4635
      %v4858 = vpop.f32.mrf.mxu0
      %v4859 = vadd.f32 0.0, %v4858
      %v4860 = vpop.f32.mrf.mxu0
      %4861 = vmatprep.mubr.f32.mxu0 0.0
      %4862 = vmatmul.mubr.f32.gmra.mxu0 %v4638
      %v4863 = vpop.f32.mrf.mxu0
      %v4864 = vadd.f32 0.0, %v4863
      %v4865 = vpop.f32.mrf.mxu0
      %4866 = vmatprep.mubr.f32.mxu0 0.0
      %4867 = vmatmul.mubr.f32.gmra.mxu0 %v4641
      %v4868 = vpop.f32.mrf.mxu0
      %v4869 = vadd.f32 0.0, %v4868
      %v4870 = vpop.f32.mrf.mxu0
      %4871 = vmatprep.mubr.f32.mxu0 0.0
      %4872 = vmatmul.mubr.f32.gmra.mxu0 %v4644
      %v4873 = vpop.f32.mrf.mxu0
      %v4874 = vadd.f32 0.0, %v4873
      %v4875 = vpop.f32.mrf.mxu0
      %4876 = vmatprep.mubr.f32.mxu0 0.0
      %4877 = vmatmul.mubr.f32.gmra.mxu0 %v4647
      %v4878 = vpop.f32.mrf.mxu0
      %v4879 = vadd.f32 0.0, %v4878
      %v4880 = vpop.f32.mrf.mxu0
      %4881 = vmatprep.mubr.f32.mxu0 0.0
      %4882 = vmatmul.mubr.f32.gmra.mxu0 %v4650
      %v4883 = vpop.f32.mrf.mxu0
      %v4884 = vadd.f32 0.0, %v4883
      %v4885 = vpop.f32.mrf.mxu0
      %4886 = vmatprep.mubr.f32.mxu0 0.0
      %4887 = vmatmul.mubr.f32.gmra.mxu0 %v4653
      %v4888 = vpop.f32.mrf.mxu0
      %v4889 = vadd.f32 0.0, %v4888
      %v4890 = vpop.f32.mrf.mxu0
      %4891 = vmatprep.mubr.f32.mxu0 0.0
      %4892 = vmatmul.mubr.f32.gmra.mxu0 %v4656
      %v4893 = vpop.f32.mrf.mxu0
      %v4894 = vadd.f32 0.0, %v4893
      %v4895 = vpop.f32.mrf.mxu0
      %4896 = vmatprep.mubr.f32.mxu0 0.0
      %4897 = vmatmul.mubr.f32.gmra.mxu0 %v4659
      %v4898 = vpop.f32.mrf.mxu0
      %v4899 = vadd.f32 0.0, %v4898
      %v4900 = vpop.f32.mrf.mxu0
      %4901 = vmatprep.mubr.f32.mxu0 0.0
      %4902 = vmatmul.mubr.f32.gmra.mxu0 %v4662
      %v4903 = vpop.f32.mrf.mxu0
      %v4904 = vadd.f32 0.0, %v4903
      %v4905 = vpop.f32.mrf.mxu0
      %4906 = vmatprep.mubr.f32.mxu0 0.0
      %4907 = vmatmul.mubr.f32.gmra.mxu0 %v4665
      %v4908 = vpop.f32.mrf.mxu0
      %v4909 = vadd.f32 0.0, %v4908
      %v4910 = vpop.f32.mrf.mxu0
      %4911 = vmatprep.mubr.f32.mxu0 0.0
      %4912 = vmatmul.mubr.f32.gmra.mxu0 %v4668
      %v4913 = vpop.f32.mrf.mxu0
      %v4914 = vadd.f32 0.0, %v4913
      %v4915 = vpop.f32.mrf.mxu0
      %4916 = vmatprep.mubr.f32.mxu0 0.0
      %4917 = vmatmul.mubr.f32.gmra.mxu0 %v4671
      %v4918 = vpop.f32.mrf.mxu0
      %v4919 = vadd.f32 0.0, %v4918
      %v4920 = vpop.f32.mrf.mxu0
      %4921 = vmatprep.mubr.f32.mxu0 0.0
      %4922 = vmatmul.mubr.f32.gmra.mxu0 %v4674
      %v4923 = vpop.f32.mrf.mxu0
      %v4924 = vadd.f32 0.0, %v4923
      %v4925 = vpop.f32.mrf.mxu0
      %4926 = vmatprep.mubr.f32.mxu0 0.0
      %4927 = vmatmul.mubr.f32.gmra.mxu0 %v4677
      %v4928 = vpop.f32.mrf.mxu0
      %v4929 = vadd.f32 0.0, %v4928
      %v4930 = vpop.f32.mrf.mxu0
      %4931 = vmatprep.mubr.f32.mxu0 0.0
      %4932 = vmatmul.mubr.f32.gmra.mxu0 %v4680
      %v4933 = vpop.f32.mrf.mxu0
      %v4934 = vadd.f32 0.0, %v4933
      %v4935 = vpop.f32.mrf.mxu0
      %4936 = vmatprep.mubr.f32.mxu0 0.0
      %4937 = vmatmul.mubr.f32.gmra.mxu0 %v4683
      %v4938 = vpop.f32.mrf.mxu0
      %v4939 = vadd.f32 0.0, %v4938
      %v4940 = vpop.f32.mrf.mxu0
      %4941 = vmatprep.mubr.f32.mxu0 0.0
      %4942 = vmatmul.mubr.f32.gmra.mxu0 %v4686
      %v4943 = vpop.f32.mrf.mxu0
      %v4944 = vadd.f32 0.0, %v4943
      %v4945 = vpop.f32.mrf.mxu0
      %4946 = vmatprep.mubr.f32.mxu0 0.0
      %4947 = vmatmul.mubr.f32.gmra.mxu0 %v4689
      %v4948 = vpop.f32.mrf.mxu0
      %v4949 = vadd.f32 0.0, %v4948
      %v4950 = vpop.f32.mrf.mxu0
      %4951 = vmatprep.mubr.f32.mxu0 0.0
      %4952 = vmatmul.mubr.f32.gmra.mxu0 %v4692
      %v4953 = vpop.f32.mrf.mxu0
      %v4954 = vadd.f32 0.0, %v4953
      %v4955 = vpop.f32.mrf.mxu0
      %4956 = vmatprep.mubr.f32.mxu0 0.0
      %4957 = vmatmul.mubr.f32.gmra.mxu0 %v4695
      %v4958 = vpop.f32.mrf.mxu0
      %v4959 = vadd.f32 0.0, %v4958
      %v4960 = vpop.f32.mrf.mxu0
      %4961 = vmatprep.mubr.f32.mxu0 0.0
      %4962 = vmatmul.mubr.f32.gmra.mxu0 %v4698
      %v4963 = vpop.f32.mrf.mxu0
      %v4964 = vadd.f32 0.0, %v4963
      %v4965 = vpop.f32.mrf.mxu0
      %4966 = vmatprep.mubr.f32.mxu0 0.0
      %4967 = vmatmul.mubr.f32.gmra.mxu0 %v4701
      %v4968 = vpop.f32.mrf.mxu0
      %v4969 = vadd.f32 0.0, %v4968
      %v4970 = vpop.f32.mrf.mxu0
      %4971 = vmatprep.mubr.f32.mxu0 0.0
      %4972 = vmatmul.mubr.f32.gmra.mxu0 %v4704
      %v4973 = vpop.f32.mrf.mxu0
      %v4974 = vadd.f32 0.0, %v4973
      %v4975 = vpop.f32.mrf.mxu0
      %4976 = vmatprep.mubr.f32.mxu0 0.0
      %4977 = vmatmul.mubr.f32.gmra.mxu0 %v4707
      %v4978 = vpop.f32.mrf.mxu0
      %v4979 = vadd.f32 0.0, %v4978
      %v4980 = vpop.f32.mrf.mxu0
      %4981 = vdwg.mxu0
      %v4982 = vadd.f32 %v4502, %v4779
      %v4983 = vadd.f32 %v4503, %v4784
      %v4984 = vadd.f32 %v4504, %v4789
      %v4985 = vadd.f32 %v4505, %v4794
      %v4986 = vadd.f32 %v4506, %v4799
      %v4987 = vadd.f32 %v4507, %v4804
      %v4988 = vadd.f32 %v4508, %v4809
      %v4989 = vadd.f32 %v4509, %v4814
      %v4990 = vadd.f32 %v4510, %v4819
      %v4991 = vadd.f32 %v4511, %v4824
      %v4992 = vadd.f32 %v4512, %v4829
      %v4993 = vadd.f32 %v4513, %v4834
      %v4994 = vadd.f32 %v4514, %v4839
      %v4995 = vadd.f32 %v4515, %v4844
      %v4996 = vadd.f32 %v4516, %v4849
      %v4997 = vadd.f32 %v4517, %v4854
      %v4998 = vadd.f32 %v4518, %v4859
      %v4999 = vadd.f32 %v4519, %v4864
      %v5000 = vadd.f32 %v4520, %v4869
      %v5001 = vadd.f32 %v4521, %v4874
      %v5002 = vadd.f32 %v4522, %v4879
      %v5003 = vadd.f32 %v4523, %v4884
      %v5004 = vadd.f32 %v4524, %v4889
      %v5005 = vadd.f32 %v4525, %v4894
      %v5006 = vadd.f32 %v4526, %v4899
      %v5007 = vadd.f32 %v4527, %v4904
      %v5008 = vadd.f32 %v4528, %v4909
      %v5009 = vadd.f32 %v4529, %v4914
      %v5010 = vadd.f32 %v4530, %v4919
      %v5011 = vadd.f32 %v4531, %v4924
      %v5012 = vadd.f32 %v4532, %v4929
      %v5013 = vadd.f32 %v4533, %v4934
      %v5014 = vadd.f32 %v4534, %v4939
      %v5015 = vadd.f32 %v4535, %v4944
      %v5016 = vadd.f32 %v4536, %v4949
      %v5017 = vadd.f32 %v4537, %v4954
      %v5018 = vadd.f32 %v4538, %v4959
      %v5019 = vadd.f32 %v4539, %v4964
      %v5020 = vadd.f32 %v4540, %v4969
      %v5021 = vadd.f32 %v4541, %v4974
      %v5022 = vadd.f32 %v4542, %v4979
      %v5023 = vmul.f32 %v4982, %v743
      %v5024 = vmul.f32 %v4983, %v744
      %v5025 = vmul.f32 %v4984, %v745
      %v5026 = vmul.f32 %v4985, %v746
      %v5027 = vmul.f32 %v4986, %v747
      %v5028 = vmul.f32 %v4987, %v748
      %v5029 = vmul.f32 %v4988, %v749
      %v5030 = vmul.f32 %v4989, %v750
      %v5031 = vmul.f32 %v4990, %v751
      %v5032 = vmul.f32 %v4991, %v752
      %v5033 = vmul.f32 %v4992, %v753
      %v5034 = vmul.f32 %v4993, %v754
      %v5035 = vmul.f32 %v4994, %v755
      %v5036 = vmul.f32 %v4995, %v756
      %v5037 = vmul.f32 %v4996, %v757
      %v5038 = vmul.f32 %v4997, %v758
      %v5039 = vmul.f32 %v4998, %v759
      %v5040 = vmul.f32 %v4999, %v760
      %v5041 = vmul.f32 %v5000, %v761
      %v5042 = vmul.f32 %v5001, %v762
      %v5043 = vmul.f32 %v5002, %v763
      %v5044 = vmul.f32 %v5003, %v764
      %v5045 = vmul.f32 %v5004, %v765
      %v5046 = vmul.f32 %v5005, %v766
      %v5047 = vmul.f32 %v5006, %v767
      %v5048 = vmul.f32 %v5007, %v768
      %v5049 = vmul.f32 %v5008, %v769
      %v5050 = vmul.f32 %v5009, %v770
      %v5051 = vmul.f32 %v5010, %v771
      %v5052 = vmul.f32 %v5011, %v772
      %v5053 = vmul.f32 %v5012, %v773
      %v5054 = vmul.f32 %v5013, %v774
      %v5055 = vmul.f32 %v5014, %v775
      %v5056 = vmul.f32 %v5015, %v776
      %v5057 = vmul.f32 %v5016, %v777
      %v5058 = vmul.f32 %v5017, %v778
      %v5059 = vmul.f32 %v5018, %v779
      %v5060 = vmul.f32 %v5019, %v780
      %v5061 = vmul.f32 %v5020, %v781
      %v5062 = vmul.f32 %v5021, %v782
      %v5063 = vmul.f32 %v5022, %v783
      %v5064 = vadd.f32 %v5023, %v5024
      %v5065 = vadd.f32 %v5064, %v5025
      %v5066 = vadd.f32 %v5065, %v5026
      %v5067 = vadd.f32 %v5066, %v5027
      %v5068 = vadd.f32 %v5067, %v5028
      %v5069 = vadd.f32 %v5068, %v5029
      %v5070 = vadd.f32 %v5069, %v5030
      %v5071 = vadd.f32 %v5070, %v5031
      %v5072 = vadd.f32 %v5071, %v5032
      %v5073 = vadd.f32 %v5072, %v5033
      %v5074 = vadd.f32 %v5073, %v5034
      %v5075 = vadd.f32 %v5074, %v5035
      %v5076 = vadd.f32 %v5075, %v5036
      %v5077 = vadd.f32 %v5076, %v5037
      %v5078 = vadd.f32 %v5077, %v5038
      %v5079 = vadd.f32 %v5078, %v5039
      %v5080 = vadd.f32 %v5079, %v5040
      %v5081 = vadd.f32 %v5080, %v5041
      %v5082 = vadd.f32 %v5081, %v5042
      %v5083 = vadd.f32 %v5082, %v5043
      %v5084 = vadd.f32 %v5083, %v5044
      %v5085 = vadd.f32 %v5084, %v5045
      %v5086 = vadd.f32 %v5085, %v5046
      %v5087 = vadd.f32 %v5086, %v5047
      %v5088 = vadd.f32 %v5087, %v5048
      %v5089 = vadd.f32 %v5088, %v5049
      %v5090 = vadd.f32 %v5089, %v5050
      %v5091 = vadd.f32 %v5090, %v5051
      %v5092 = vadd.f32 %v5091, %v5052
      %v5093 = vadd.f32 %v5092, %v5053
      %v5094 = vadd.f32 %v5093, %v5054
      %v5095 = vadd.f32 %v5094, %v5055
      %v5096 = vadd.f32 %v5095, %v5056
      %v5097 = vadd.f32 %v5096, %v5057
      %v5098 = vadd.f32 %v5097, %v5058
      %v5099 = vadd.f32 %v5098, %v5059
      %v5100 = vadd.f32 %v5099, %v5060
      %v5101 = vadd.f32 %v5100, %v5061
      %v5102 = vadd.f32 %v5101, %v5062
      %v5103 = vsel %vm993, %v5063, 0.0
      %v5104 = vadd.f32 %v5102, %v5103
      %v5105 = vrot.slane %v5104, 4
      %v5106 = vadd.f32 %v5104, %v5105
      %v5107 = vrot.slane %v5106, 2
      %v5108 = vadd.f32 %v5106, %v5107
      %v5109 = vrot.slane %v5108, 1
      %v5110 = vadd.f32 %v5108, %v5109
      %5111 = vst [vmem:[%s208] sm:$0x1] %v5110
      %v5112 = vmul.f32 %v4982, %v5023
      %v5113 = vmul.f32 %v4983, %v5024
      %v5114 = vmul.f32 %v4984, %v5025
      %v5115 = vmul.f32 %v4985, %v5026
      %v5116 = vmul.f32 %v4986, %v5027
      %v5117 = vmul.f32 %v4987, %v5028
      %v5118 = vmul.f32 %v4988, %v5029
      %v5119 = vmul.f32 %v4989, %v5030
      %v5120 = vmul.f32 %v4990, %v5031
      %v5121 = vmul.f32 %v4991, %v5032
      %v5122 = vmul.f32 %v4992, %v5033
      %v5123 = vmul.f32 %v4993, %v5034
      %v5124 = vmul.f32 %v4994, %v5035
      %v5125 = vmul.f32 %v4995, %v5036
      %v5126 = vmul.f32 %v4996, %v5037
      %v5127 = vmul.f32 %v4997, %v5038
      %v5128 = vmul.f32 %v4998, %v5039
      %v5129 = vmul.f32 %v4999, %v5040
      %v5130 = vmul.f32 %v5000, %v5041
      %v5131 = vmul.f32 %v5001, %v5042
      %v5132 = vmul.f32 %v5002, %v5043
      %v5133 = vmul.f32 %v5003, %v5044
      %v5134 = vmul.f32 %v5004, %v5045
      %v5135 = vmul.f32 %v5005, %v5046
      %v5136 = vmul.f32 %v5006, %v5047
      %v5137 = vmul.f32 %v5007, %v5048
      %v5138 = vmul.f32 %v5008, %v5049
      %v5139 = vmul.f32 %v5009, %v5050
      %v5140 = vmul.f32 %v5010, %v5051
      %v5141 = vmul.f32 %v5011, %v5052
      %v5142 = vmul.f32 %v5012, %v5053
      %v5143 = vmul.f32 %v5013, %v5054
      %v5144 = vmul.f32 %v5014, %v5055
      %v5145 = vmul.f32 %v5015, %v5056
      %v5146 = vmul.f32 %v5016, %v5057
      %v5147 = vmul.f32 %v5017, %v5058
      %v5148 = vmul.f32 %v5018, %v5059
      %v5149 = vmul.f32 %v5019, %v5060
      %v5150 = vmul.f32 %v5020, %v5061
      %v5151 = vmul.f32 %v5021, %v5062
      %v5152 = vmul.f32 %v5022, %v5063
      %v5153 = vadd.f32 %v5112, %v5113
      %v5154 = vadd.f32 %v5153, %v5114
      %v5155 = vadd.f32 %v5154, %v5115
      %v5156 = vadd.f32 %v5155, %v5116
      %v5157 = vadd.f32 %v5156, %v5117
      %v5158 = vadd.f32 %v5157, %v5118
      %v5159 = vadd.f32 %v5158, %v5119
      %v5160 = vadd.f32 %v5159, %v5120
      %v5161 = vadd.f32 %v5160, %v5121
      %v5162 = vadd.f32 %v5161, %v5122
      %v5163 = vadd.f32 %v5162, %v5123
      %v5164 = vadd.f32 %v5163, %v5124
      %v5165 = vadd.f32 %v5164, %v5125
      %v5166 = vadd.f32 %v5165, %v5126
      %v5167 = vadd.f32 %v5166, %v5127
      %v5168 = vadd.f32 %v5167, %v5128
      %v5169 = vadd.f32 %v5168, %v5129
      %v5170 = vadd.f32 %v5169, %v5130
      %v5171 = vadd.f32 %v5170, %v5131
      %v5172 = vadd.f32 %v5171, %v5132
      %v5173 = vadd.f32 %v5172, %v5133
      %v5174 = vadd.f32 %v5173, %v5134
      %v5175 = vadd.f32 %v5174, %v5135
      %v5176 = vadd.f32 %v5175, %v5136
      %v5177 = vadd.f32 %v5176, %v5137
      %v5178 = vadd.f32 %v5177, %v5138
      %v5179 = vadd.f32 %v5178, %v5139
      %v5180 = vadd.f32 %v5179, %v5140
      %v5181 = vadd.f32 %v5180, %v5141
      %v5182 = vadd.f32 %v5181, %v5142
      %v5183 = vadd.f32 %v5182, %v5143
      %v5184 = vadd.f32 %v5183, %v5144
      %v5185 = vadd.f32 %v5184, %v5145
      %v5186 = vadd.f32 %v5185, %v5146
      %v5187 = vadd.f32 %v5186, %v5147
      %v5188 = vadd.f32 %v5187, %v5148
      %v5189 = vadd.f32 %v5188, %v5149
      %v5190 = vadd.f32 %v5189, %v5150
      %v5191 = vadd.f32 %v5190, %v5151
      %v5192 = vsel %vm993, %v5152, 0.0
      %v5193 = vadd.f32 %v5191, %v5192
      %v5194 = vrot.slane %v5193, 4
      %v5195 = vadd.f32 %v5193, %v5194
      %v5196 = vrot.slane %v5195, 2
      %v5197 = vadd.f32 %v5195, %v5196
      %v5198 = vrot.slane %v5197, 1
      %v5199 = vadd.f32 %v5197, %v5198
      %5200 = vst [vmem:[%s208 + $0x1] sm:$0x1] %v5199
      %v5201 = vld [vmem:[%s199 + $0x13] sm:$0xff]
      %v5202 = vld [vmem:[%s199 + $0x1b] sm:$0xff]
      %v5203 = vld [vmem:[%s199 + $0x23] sm:$0xff]
      %v5204 = vld [vmem:[%s199 + $0x2b] sm:$0xff]
      %v5205 = vld [vmem:[%s199 + $0x33] sm:$0xff]
      %v5206 = vld [vmem:[%s199 + $0x3b] sm:$0xff]
      %v5207 = vld [vmem:[%s199 + $0x43] sm:$0xff]
      %v5208 = vld [vmem:[%s199 + $0x4b] sm:$0xff]
      %v5209 = vld [vmem:[%s199 + $0x53] sm:$0xff]
      %v5210 = vld [vmem:[%s199 + $0x5b] sm:$0xff]
      %v5211 = vld [vmem:[%s199 + $0x63] sm:$0xff]
      %v5212 = vld [vmem:[%s199 + $0x6b] sm:$0xff]
      %v5213 = vld [vmem:[%s199 + $0x73] sm:$0xff]
      %v5214 = vld [vmem:[%s199 + $0x7b] sm:$0xff]
      %v5215 = vld [vmem:[%s199 + $0x83] sm:$0xff]
      %v5216 = vld [vmem:[%s199 + $0x8b] sm:$0xff]
      %v5217 = vld [vmem:[%s199 + $0x93] sm:$0xff]
      %v5218 = vld [vmem:[%s199 + $0x9b] sm:$0xff]
      %v5219 = vld [vmem:[%s199 + $0xa3] sm:$0xff]
      %v5220 = vld [vmem:[%s199 + $0xab] sm:$0xff]
      %v5221 = vld [vmem:[%s199 + $0xb3] sm:$0xff]
      %v5222 = vld [vmem:[%s199 + $0xbb] sm:$0xff]
      %v5223 = vld [vmem:[%s199 + $0xc3] sm:$0xff]
      %v5224 = vld [vmem:[%s199 + $0xcb] sm:$0xff]
      %v5225 = vld [vmem:[%s199 + $0xd3] sm:$0xff]
      %v5226 = vld [vmem:[%s199 + $0xdb] sm:$0xff]
      %v5227 = vld [vmem:[%s199 + $0xe3] sm:$0xff]
      %v5228 = vld [vmem:[%s199 + $0xeb] sm:$0xff]
      %v5229 = vld [vmem:[%s199 + $0xf3] sm:$0xff]
      %v5230 = vld [vmem:[%s199 + $0xfb] sm:$0xff]
      %v5231 = vld [vmem:[%s199 + $0x103] sm:$0xff]
      %v5232 = vld [vmem:[%s199 + $0x10b] sm:$0xff]
      %v5233 = vld [vmem:[%s199 + $0x113] sm:$0xff]
      %v5234 = vld [vmem:[%s199 + $0x11b] sm:$0xff]
      %v5235 = vld [vmem:[%s199 + $0x123] sm:$0xff]
      %v5236 = vld [vmem:[%s199 + $0x12b] sm:$0xff]
      %v5237 = vld [vmem:[%s199 + $0x133] sm:$0xff]
      %v5238 = vld [vmem:[%s199 + $0x13b] sm:$0xff]
      %v5239 = vld [vmem:[%s199 + $0x143] sm:$0xff]
      %v5240 = vld [vmem:[%s199 + $0x14b] sm:$0xff]
      %v5241 = vld [vmem:[%s199 + $0x153] sm:$0xf]
      %v5242 = vld [vmem:[%s2] sm:$0xf]
      %v5244 = vsel %vm869, %v5201, 0
      %v5247 = vsel %vm869, %v5202, 0
      %v5250 = vsel %vm869, %v5203, 0
      %v5253 = vsel %vm869, %v5204, 0
      %v5256 = vsel %vm869, %v5205, 0
      %v5259 = vsel %vm869, %v5206, 0
      %v5262 = vsel %vm869, %v5207, 0
      %v5265 = vsel %vm869, %v5208, 0
      %v5268 = vsel %vm869, %v5209, 0
      %v5271 = vsel %vm869, %v5210, 0
      %v5274 = vsel %vm869, %v5211, 0
      %v5277 = vsel %vm869, %v5212, 0
      %v5280 = vsel %vm869, %v5213, 0
      %v5283 = vsel %vm869, %v5214, 0
      %v5286 = vsel %vm869, %v5215, 0
      %v5289 = vsel %vm869, %v5216, 0
      %v5292 = vsel %vm869, %v5217, 0
      %v5295 = vsel %vm869, %v5218, 0
      %v5298 = vsel %vm869, %v5219, 0
      %v5301 = vsel %vm869, %v5220, 0
      %v5304 = vsel %vm869, %v5221, 0
      %v5307 = vsel %vm869, %v5222, 0
      %v5310 = vsel %vm869, %v5223, 0
      %v5313 = vsel %vm869, %v5224, 0
      %v5316 = vsel %vm869, %v5225, 0
      %v5319 = vsel %vm869, %v5226, 0
      %v5322 = vsel %vm869, %v5227, 0
      %v5325 = vsel %vm869, %v5228, 0
      %v5328 = vsel %vm869, %v5229, 0
      %v5331 = vsel %vm869, %v5230, 0
      %v5334 = vsel %vm869, %v5231, 0
      %v5337 = vsel %vm869, %v5232, 0
      %v5340 = vsel %vm869, %v5233, 0
      %v5343 = vsel %vm869, %v5234, 0
      %v5346 = vsel %vm869, %v5235, 0
      %v5349 = vsel %vm869, %v5236, 0
      %v5352 = vsel %vm869, %v5237, 0
      %v5355 = vsel %vm869, %v5238, 0
      %v5358 = vsel %vm869, %v5239, 0
      %v5361 = vsel %vm869, %v5240, 0
      %v5364 = vsel %vm869, %v5241, 0
      %v5367 = vsel %vm993, %v5242, 0
      %5369 = vmatprep.subr.mxu0 0.0
      %5370 = vmatpush1.msra.mxu0 0.0
      %5371 = vmatprep.subr.mxu0 0.0
      %5372 = vmatpush1.msra.mxu0 0.0
      %5373 = vmatprep.subr.mxu0 0.0
      %5374 = vmatpush1.msra.mxu0 0.0
      %5375 = vmatprep.subr.mxu0 0.0
      %5376 = vmatpush1.msra.mxu0 0.0
      %5377 = vmatprep.subr.mxu0 0.0
      %5378 = vmatpush1.msra.mxu0 0.0
      %5379 = vmatprep.subr.mxu0 0.0
      %5380 = vmatpush1.msra.mxu0 0.0
      %5381 = vmatprep.subr.mxu0 0.0
      %5382 = vmatpush1.msra.mxu0 0.0
      %5383 = vmatprep.subr.mxu0 0.0
      %5384 = vmatpush1.msra.mxu0 0.0
      %5385 = vmatprep.subr.mxu0 0.0
      %5386 = vmatpush1.msra.mxu0 0.0
      %5387 = vmatprep.subr.mxu0 0.0
      %5388 = vmatpush1.msra.mxu0 0.0
      %5389 = vmatprep.subr.mxu0 0.0
      %5390 = vmatpush1.msra.mxu0 0.0
      %5391 = vmatprep.subr.mxu0 0.0
      %5392 = vmatpush1.msra.mxu0 0.0
      %5393 = vmatprep.subr.mxu0 0.0
      %5394 = vmatpush1.msra.mxu0 0.0
      %5395 = vmatprep.subr.mxu0 0.0
      %5396 = vmatpush1.msra.mxu0 0.0
      %5397 = vmatprep.subr.mxu0 0.0
      %5398 = vmatpush1.msra.mxu0 0.0
      %5399 = vmatprep.subr.mxu0 0.0
      %5400 = vmatpush1.msra.mxu0 %v5367
      %5401 = vmatprep.subr.mxu0 0.0
      %5402 = vmatpush2.msra.mxu0 0.0
      %5403 = vmatprep.subr.mxu0 0.0
      %5404 = vmatpush2.msra.mxu0 0.0
      %5405 = vmatprep.subr.mxu0 0.0
      %5406 = vmatpush2.msra.mxu0 0.0
      %5407 = vmatprep.subr.mxu0 0.0
      %5408 = vmatpush2.msra.mxu0 0.0
      %5409 = vmatprep.subr.mxu0 0.0
      %5410 = vmatpush2.msra.mxu0 0.0
      %5411 = vmatprep.subr.mxu0 0.0
      %5412 = vmatpush2.msra.mxu0 0.0
      %5413 = vmatprep.subr.mxu0 0.0
      %5414 = vmatpush2.msra.mxu0 0.0
      %5415 = vmatprep.subr.mxu0 0.0
      %5416 = vmatpush2.msra.mxu0 0.0
      %5417 = vmatprep.subr.mxu0 0.0
      %5418 = vmatpush2.msra.mxu0 0.0
      %5419 = vmatprep.subr.mxu0 0.0
      %5420 = vmatpush2.msra.mxu0 0.0
      %5421 = vmatprep.subr.mxu0 0.0
      %5422 = vmatpush2.msra.mxu0 0.0
      %5423 = vmatprep.subr.mxu0 0.0
      %5424 = vmatpush2.msra.mxu0 0.0
      %5425 = vmatprep.subr.mxu0 0.0
      %5426 = vmatpush2.msra.mxu0 0.0
      %5427 = vmatprep.subr.mxu0 0.0
      %5428 = vmatpush2.msra.mxu0 0.0
      %5429 = vmatprep.subr.mxu0 0.0
      %5430 = vmatpush2.msra.mxu0 0.0
      %5431 = vmatprep.subr.mxu0 0.0
      %5432 = vmatpush2.msra.mxu0 0.0
      %5433 = vmatprep.mubr.f32.mxu0 0.0
      %5434 = vmatmul.mubr.f32.gmra.mxu0 %v5244
      %v5435 = vpop.f32.mrf.mxu0
      %v5436 = vadd.f32 0.0, %v5435
      %v5437 = vpop.f32.mrf.mxu0
      %5438 = vmatprep.mubr.f32.mxu0 0.0
      %5439 = vmatmul.mubr.f32.gmra.mxu0 %v5247
      %v5440 = vpop.f32.mrf.mxu0
      %v5441 = vadd.f32 0.0, %v5440
      %v5442 = vpop.f32.mrf.mxu0
      %5443 = vmatprep.mubr.f32.mxu0 0.0
      %5444 = vmatmul.mubr.f32.gmra.mxu0 %v5250
      %v5445 = vpop.f32.mrf.mxu0
      %v5446 = vadd.f32 0.0, %v5445
      %v5447 = vpop.f32.mrf.mxu0
      %5448 = vmatprep.mubr.f32.mxu0 0.0
      %5449 = vmatmul.mubr.f32.gmra.mxu0 %v5253
      %v5450 = vpop.f32.mrf.mxu0
      %v5451 = vadd.f32 0.0, %v5450
      %v5452 = vpop.f32.mrf.mxu0
      %5453 = vmatprep.mubr.f32.mxu0 0.0
      %5454 = vmatmul.mubr.f32.gmra.mxu0 %v5256
      %v5455 = vpop.f32.mrf.mxu0
      %v5456 = vadd.f32 0.0, %v5455
      %v5457 = vpop.f32.mrf.mxu0
      %5458 = vmatprep.mubr.f32.mxu0 0.0
      %5459 = vmatmul.mubr.f32.gmra.mxu0 %v5259
      %v5460 = vpop.f32.mrf.mxu0
      %v5461 = vadd.f32 0.0, %v5460
      %v5462 = vpop.f32.mrf.mxu0
      %5463 = vmatprep.mubr.f32.mxu0 0.0
      %5464 = vmatmul.mubr.f32.gmra.mxu0 %v5262
      %v5465 = vpop.f32.mrf.mxu0
      %v5466 = vadd.f32 0.0, %v5465
      %v5467 = vpop.f32.mrf.mxu0
      %5468 = vmatprep.mubr.f32.mxu0 0.0
      %5469 = vmatmul.mubr.f32.gmra.mxu0 %v5265
      %v5470 = vpop.f32.mrf.mxu0
      %v5471 = vadd.f32 0.0, %v5470
      %v5472 = vpop.f32.mrf.mxu0
      %5473 = vmatprep.mubr.f32.mxu0 0.0
      %5474 = vmatmul.mubr.f32.gmra.mxu0 %v5268
      %v5475 = vpop.f32.mrf.mxu0
      %v5476 = vadd.f32 0.0, %v5475
      %v5477 = vpop.f32.mrf.mxu0
      %5478 = vmatprep.mubr.f32.mxu0 0.0
      %5479 = vmatmul.mubr.f32.gmra.mxu0 %v5271
      %v5480 = vpop.f32.mrf.mxu0
      %v5481 = vadd.f32 0.0, %v5480
      %v5482 = vpop.f32.mrf.mxu0
      %5483 = vmatprep.mubr.f32.mxu0 0.0
      %5484 = vmatmul.mubr.f32.gmra.mxu0 %v5274
      %v5485 = vpop.f32.mrf.mxu0
      %v5486 = vadd.f32 0.0, %v5485
      %v5487 = vpop.f32.mrf.mxu0
      %5488 = vmatprep.mubr.f32.mxu0 0.0
      %5489 = vmatmul.mubr.f32.gmra.mxu0 %v5277
      %v5490 = vpop.f32.mrf.mxu0
      %v5491 = vadd.f32 0.0, %v5490
      %v5492 = vpop.f32.mrf.mxu0
      %5493 = vmatprep.mubr.f32.mxu0 0.0
      %5494 = vmatmul.mubr.f32.gmra.mxu0 %v5280
      %v5495 = vpop.f32.mrf.mxu0
      %v5496 = vadd.f32 0.0, %v5495
      %v5497 = vpop.f32.mrf.mxu0
      %5498 = vmatprep.mubr.f32.mxu0 0.0
      %5499 = vmatmul.mubr.f32.gmra.mxu0 %v5283
      %v5500 = vpop.f32.mrf.mxu0
      %v5501 = vadd.f32 0.0, %v5500
      %v5502 = vpop.f32.mrf.mxu0
      %5503 = vmatprep.mubr.f32.mxu0 0.0
      %5504 = vmatmul.mubr.f32.gmra.mxu0 %v5286
      %v5505 = vpop.f32.mrf.mxu0
      %v5506 = vadd.f32 0.0, %v5505
      %v5507 = vpop.f32.mrf.mxu0
      %5508 = vmatprep.mubr.f32.mxu0 0.0
      %5509 = vmatmul.mubr.f32.gmra.mxu0 %v5289
      %v5510 = vpop.f32.mrf.mxu0
      %v5511 = vadd.f32 0.0, %v5510
      %v5512 = vpop.f32.mrf.mxu0
      %5513 = vmatprep.mubr.f32.mxu0 0.0
      %5514 = vmatmul.mubr.f32.gmra.mxu0 %v5292
      %v5515 = vpop.f32.mrf.mxu0
      %v5516 = vadd.f32 0.0, %v5515
      %v5517 = vpop.f32.mrf.mxu0
      %5518 = vmatprep.mubr.f32.mxu0 0.0
      %5519 = vmatmul.mubr.f32.gmra.mxu0 %v5295
      %v5520 = vpop.f32.mrf.mxu0
      %v5521 = vadd.f32 0.0, %v5520
      %v5522 = vpop.f32.mrf.mxu0
      %5523 = vmatprep.mubr.f32.mxu0 0.0
      %5524 = vmatmul.mubr.f32.gmra.mxu0 %v5298
      %v5525 = vpop.f32.mrf.mxu0
      %v5526 = vadd.f32 0.0, %v5525
      %v5527 = vpop.f32.mrf.mxu0
      %5528 = vmatprep.mubr.f32.mxu0 0.0
      %5529 = vmatmul.mubr.f32.gmra.mxu0 %v5301
      %v5530 = vpop.f32.mrf.mxu0
      %v5531 = vadd.f32 0.0, %v5530
      %v5532 = vpop.f32.mrf.mxu0
      %5533 = vmatprep.mubr.f32.mxu0 0.0
      %5534 = vmatmul.mubr.f32.gmra.mxu0 %v5304
      %v5535 = vpop.f32.mrf.mxu0
      %v5536 = vadd.f32 0.0, %v5535
      %v5537 = vpop.f32.mrf.mxu0
      %5538 = vmatprep.mubr.f32.mxu0 0.0
      %5539 = vmatmul.mubr.f32.gmra.mxu0 %v5307
      %v5540 = vpop.f32.mrf.mxu0
      %v5541 = vadd.f32 0.0, %v5540
      %v5542 = vpop.f32.mrf.mxu0
      %5543 = vmatprep.mubr.f32.mxu0 0.0
      %5544 = vmatmul.mubr.f32.gmra.mxu0 %v5310
      %v5545 = vpop.f32.mrf.mxu0
      %v5546 = vadd.f32 0.0, %v5545
      %v5547 = vpop.f32.mrf.mxu0
      %5548 = vmatprep.mubr.f32.mxu0 0.0
      %5549 = vmatmul.mubr.f32.gmra.mxu0 %v5313
      %v5550 = vpop.f32.mrf.mxu0
      %v5551 = vadd.f32 0.0, %v5550
      %v5552 = vpop.f32.mrf.mxu0
      %5553 = vmatprep.mubr.f32.mxu0 0.0
      %5554 = vmatmul.mubr.f32.gmra.mxu0 %v5316
      %v5555 = vpop.f32.mrf.mxu0
      %v5556 = vadd.f32 0.0, %v5555
      %v5557 = vpop.f32.mrf.mxu0
      %5558 = vmatprep.mubr.f32.mxu0 0.0
      %5559 = vmatmul.mubr.f32.gmra.mxu0 %v5319
      %v5560 = vpop.f32.mrf.mxu0
      %v5561 = vadd.f32 0.0, %v5560
      %v5562 = vpop.f32.mrf.mxu0
      %5563 = vmatprep.mubr.f32.mxu0 0.0
      %5564 = vmatmul.mubr.f32.gmra.mxu0 %v5322
      %v5565 = vpop.f32.mrf.mxu0
      %v5566 = vadd.f32 0.0, %v5565
      %v5567 = vpop.f32.mrf.mxu0
      %5568 = vmatprep.mubr.f32.mxu0 0.0
      %5569 = vmatmul.mubr.f32.gmra.mxu0 %v5325
      %v5570 = vpop.f32.mrf.mxu0
      %v5571 = vadd.f32 0.0, %v5570
      %v5572 = vpop.f32.mrf.mxu0
      %5573 = vmatprep.mubr.f32.mxu0 0.0
      %5574 = vmatmul.mubr.f32.gmra.mxu0 %v5328
      %v5575 = vpop.f32.mrf.mxu0
      %v5576 = vadd.f32 0.0, %v5575
      %v5577 = vpop.f32.mrf.mxu0
      %5578 = vmatprep.mubr.f32.mxu0 0.0
      %5579 = vmatmul.mubr.f32.gmra.mxu0 %v5331
      %v5580 = vpop.f32.mrf.mxu0
      %v5581 = vadd.f32 0.0, %v5580
      %v5582 = vpop.f32.mrf.mxu0
      %5583 = vmatprep.mubr.f32.mxu0 0.0
      %5584 = vmatmul.mubr.f32.gmra.mxu0 %v5334
      %v5585 = vpop.f32.mrf.mxu0
      %v5586 = vadd.f32 0.0, %v5585
      %v5587 = vpop.f32.mrf.mxu0
      %5588 = vmatprep.mubr.f32.mxu0 0.0
      %5589 = vmatmul.mubr.f32.gmra.mxu0 %v5337
      %v5590 = vpop.f32.mrf.mxu0
      %v5591 = vadd.f32 0.0, %v5590
      %v5592 = vpop.f32.mrf.mxu0
      %5593 = vmatprep.mubr.f32.mxu0 0.0
      %5594 = vmatmul.mubr.f32.gmra.mxu0 %v5340
      %v5595 = vpop.f32.mrf.mxu0
      %v5596 = vadd.f32 0.0, %v5595
      %v5597 = vpop.f32.mrf.mxu0
      %5598 = vmatprep.mubr.f32.mxu0 0.0
      %5599 = vmatmul.mubr.f32.gmra.mxu0 %v5343
      %v5600 = vpop.f32.mrf.mxu0
      %v5601 = vadd.f32 0.0, %v5600
      %v5602 = vpop.f32.mrf.mxu0
      %5603 = vmatprep.mubr.f32.mxu0 0.0
      %5604 = vmatmul.mubr.f32.gmra.mxu0 %v5346
      %v5605 = vpop.f32.mrf.mxu0
      %v5606 = vadd.f32 0.0, %v5605
      %v5607 = vpop.f32.mrf.mxu0
      %5608 = vmatprep.mubr.f32.mxu0 0.0
      %5609 = vmatmul.mubr.f32.gmra.mxu0 %v5349
      %v5610 = vpop.f32.mrf.mxu0
      %v5611 = vadd.f32 0.0, %v5610
      %v5612 = vpop.f32.mrf.mxu0
      %5613 = vmatprep.mubr.f32.mxu0 0.0
      %5614 = vmatmul.mubr.f32.gmra.mxu0 %v5352
      %v5615 = vpop.f32.mrf.mxu0
      %v5616 = vadd.f32 0.0, %v5615
      %v5617 = vpop.f32.mrf.mxu0
      %5618 = vmatprep.mubr.f32.mxu0 0.0
      %5619 = vmatmul.mubr.f32.gmra.mxu0 %v5355
      %v5620 = vpop.f32.mrf.mxu0
      %v5621 = vadd.f32 0.0, %v5620
      %v5622 = vpop.f32.mrf.mxu0
      %5623 = vmatprep.mubr.f32.mxu0 0.0
      %5624 = vmatmul.mubr.f32.gmra.mxu0 %v5358
      %v5625 = vpop.f32.mrf.mxu0
      %v5626 = vadd.f32 0.0, %v5625
      %v5627 = vpop.f32.mrf.mxu0
      %5628 = vmatprep.mubr.f32.mxu0 0.0
      %5629 = vmatmul.mubr.f32.gmra.mxu0 %v5361
      %v5630 = vpop.f32.mrf.mxu0
      %v5631 = vadd.f32 0.0, %v5630
      %v5632 = vpop.f32.mrf.mxu0
      %5633 = vmatprep.mubr.f32.mxu0 0.0
      %5634 = vmatmul.mubr.f32.gmra.mxu0 %v5364
      %v5635 = vpop.f32.mrf.mxu0
      %v5636 = vadd.f32 0.0, %v5635
      %v5637 = vpop.f32.mrf.mxu0
      %5638 = vdwg.mxu0
      %v5639 = vmul.f32 %v5436, %v743
      %v5640 = vmul.f32 %v5441, %v744
      %v5641 = vmul.f32 %v5446, %v745
      %v5642 = vmul.f32 %v5451, %v746
      %v5643 = vmul.f32 %v5456, %v747
      %v5644 = vmul.f32 %v5461, %v748
      %v5645 = vmul.f32 %v5466, %v749
      %v5646 = vmul.f32 %v5471, %v750
      %v5647 = vmul.f32 %v5476, %v751
      %v5648 = vmul.f32 %v5481, %v752
      %v5649 = vmul.f32 %v5486, %v753
      %v5650 = vmul.f32 %v5491, %v754
      %v5651 = vmul.f32 %v5496, %v755
      %v5652 = vmul.f32 %v5501, %v756
      %v5653 = vmul.f32 %v5506, %v757
      %v5654 = vmul.f32 %v5511, %v758
      %v5655 = vmul.f32 %v5516, %v759
      %v5656 = vmul.f32 %v5521, %v760
      %v5657 = vmul.f32 %v5526, %v761
      %v5658 = vmul.f32 %v5531, %v762
      %v5659 = vmul.f32 %v5536, %v763
      %v5660 = vmul.f32 %v5541, %v764
      %v5661 = vmul.f32 %v5546, %v765
      %v5662 = vmul.f32 %v5551, %v766
      %v5663 = vmul.f32 %v5556, %v767
      %v5664 = vmul.f32 %v5561, %v768
      %v5665 = vmul.f32 %v5566, %v769
      %v5666 = vmul.f32 %v5571, %v770
      %v5667 = vmul.f32 %v5576, %v771
      %v5668 = vmul.f32 %v5581, %v772
      %v5669 = vmul.f32 %v5586, %v773
      %v5670 = vmul.f32 %v5591, %v774
      %v5671 = vmul.f32 %v5596, %v775
      %v5672 = vmul.f32 %v5601, %v776
      %v5673 = vmul.f32 %v5606, %v777
      %v5674 = vmul.f32 %v5611, %v778
      %v5675 = vmul.f32 %v5616, %v779
      %v5676 = vmul.f32 %v5621, %v780
      %v5677 = vmul.f32 %v5626, %v781
      %v5678 = vmul.f32 %v5631, %v782
      %v5679 = vmul.f32 %v5636, %v783
      %v5680 = vadd.f32 %v5639, %v5640
      %v5681 = vadd.f32 %v5680, %v5641
      %v5682 = vadd.f32 %v5681, %v5642
      %v5683 = vadd.f32 %v5682, %v5643
      %v5684 = vadd.f32 %v5683, %v5644
      %v5685 = vadd.f32 %v5684, %v5645
      %v5686 = vadd.f32 %v5685, %v5646
      %v5687 = vadd.f32 %v5686, %v5647
      %v5688 = vadd.f32 %v5687, %v5648
      %v5689 = vadd.f32 %v5688, %v5649
      %v5690 = vadd.f32 %v5689, %v5650
      %v5691 = vadd.f32 %v5690, %v5651
      %v5692 = vadd.f32 %v5691, %v5652
      %v5693 = vadd.f32 %v5692, %v5653
      %v5694 = vadd.f32 %v5693, %v5654
      %v5695 = vadd.f32 %v5694, %v5655
      %v5696 = vadd.f32 %v5695, %v5656
      %v5697 = vadd.f32 %v5696, %v5657
      %v5698 = vadd.f32 %v5697, %v5658
      %v5699 = vadd.f32 %v5698, %v5659
      %v5700 = vadd.f32 %v5699, %v5660
      %v5701 = vadd.f32 %v5700, %v5661
      %v5702 = vadd.f32 %v5701, %v5662
      %v5703 = vadd.f32 %v5702, %v5663
      %v5704 = vadd.f32 %v5703, %v5664
      %v5705 = vadd.f32 %v5704, %v5665
      %v5706 = vadd.f32 %v5705, %v5666
      %v5707 = vadd.f32 %v5706, %v5667
      %v5708 = vadd.f32 %v5707, %v5668
      %v5709 = vadd.f32 %v5708, %v5669
      %v5710 = vadd.f32 %v5709, %v5670
      %v5711 = vadd.f32 %v5710, %v5671
      %v5712 = vadd.f32 %v5711, %v5672
      %v5713 = vadd.f32 %v5712, %v5673
      %v5714 = vadd.f32 %v5713, %v5674
      %v5715 = vadd.f32 %v5714, %v5675
      %v5716 = vadd.f32 %v5715, %v5676
      %v5717 = vadd.f32 %v5716, %v5677
      %v5718 = vadd.f32 %v5717, %v5678
      %v5719 = vsel %vm993, %v5679, 0.0
      %v5720 = vadd.f32 %v5718, %v5719
      %v5721 = vrot.slane %v5720, 4
      %v5722 = vadd.f32 %v5720, %v5721
      %v5723 = vrot.slane %v5722, 2
      %v5724 = vadd.f32 %v5722, %v5723
      %v5725 = vrot.slane %v5724, 1
      %v5726 = vadd.f32 %v5724, %v5725
      %5727 = vst [vmem:[%s208 + $0x2] sm:$0x1] %v5726
      %v5728 = vmul.f32 %v5436, %v5639
      %v5729 = vmul.f32 %v5441, %v5640
      %v5730 = vmul.f32 %v5446, %v5641
      %v5731 = vmul.f32 %v5451, %v5642
      %v5732 = vmul.f32 %v5456, %v5643
      %v5733 = vmul.f32 %v5461, %v5644
      %v5734 = vmul.f32 %v5466, %v5645
      %v5735 = vmul.f32 %v5471, %v5646
      %v5736 = vmul.f32 %v5476, %v5647
      %v5737 = vmul.f32 %v5481, %v5648
      %v5738 = vmul.f32 %v5486, %v5649
      %v5739 = vmul.f32 %v5491, %v5650
      %v5740 = vmul.f32 %v5496, %v5651
      %v5741 = vmul.f32 %v5501, %v5652
      %v5742 = vmul.f32 %v5506, %v5653
      %v5743 = vmul.f32 %v5511, %v5654
      %v5744 = vmul.f32 %v5516, %v5655
      %v5745 = vmul.f32 %v5521, %v5656
      %v5746 = vmul.f32 %v5526, %v5657
      %v5747 = vmul.f32 %v5531, %v5658
      %v5748 = vmul.f32 %v5536, %v5659
      %v5749 = vmul.f32 %v5541, %v5660
      %v5750 = vmul.f32 %v5546, %v5661
      %v5751 = vmul.f32 %v5551, %v5662
      %v5752 = vmul.f32 %v5556, %v5663
      %v5753 = vmul.f32 %v5561, %v5664
      %v5754 = vmul.f32 %v5566, %v5665
      %v5755 = vmul.f32 %v5571, %v5666
      %v5756 = vmul.f32 %v5576, %v5667
      %v5757 = vmul.f32 %v5581, %v5668
      %v5758 = vmul.f32 %v5586, %v5669
      %v5759 = vmul.f32 %v5591, %v5670
      %v5760 = vmul.f32 %v5596, %v5671
      %v5761 = vmul.f32 %v5601, %v5672
      %v5762 = vmul.f32 %v5606, %v5673
      %v5763 = vmul.f32 %v5611, %v5674
      %v5764 = vmul.f32 %v5616, %v5675
      %v5765 = vmul.f32 %v5621, %v5676
      %v5766 = vmul.f32 %v5626, %v5677
      %v5767 = vmul.f32 %v5631, %v5678
      %v5768 = vmul.f32 %v5636, %v5679
      %v5769 = vadd.f32 %v5728, %v5729
      %v5770 = vadd.f32 %v5769, %v5730
      %v5771 = vadd.f32 %v5770, %v5731
      %v5772 = vadd.f32 %v5771, %v5732
      %v5773 = vadd.f32 %v5772, %v5733
      %v5774 = vadd.f32 %v5773, %v5734
      %v5775 = vadd.f32 %v5774, %v5735
      %v5776 = vadd.f32 %v5775, %v5736
      %v5777 = vadd.f32 %v5776, %v5737
      %v5778 = vadd.f32 %v5777, %v5738
      %v5779 = vadd.f32 %v5778, %v5739
      %v5780 = vadd.f32 %v5779, %v5740
      %v5781 = vadd.f32 %v5780, %v5741
      %v5782 = vadd.f32 %v5781, %v5742
      %v5783 = vadd.f32 %v5782, %v5743
      %v5784 = vadd.f32 %v5783, %v5744
      %v5785 = vadd.f32 %v5784, %v5745
      %v5786 = vadd.f32 %v5785, %v5746
      %v5787 = vadd.f32 %v5786, %v5747
      %v5788 = vadd.f32 %v5787, %v5748
      %v5789 = vadd.f32 %v5788, %v5749
      %v5790 = vadd.f32 %v5789, %v5750
      %v5791 = vadd.f32 %v5790, %v5751
      %v5792 = vadd.f32 %v5791, %v5752
      %v5793 = vadd.f32 %v5792, %v5753
      %v5794 = vadd.f32 %v5793, %v5754
      %v5795 = vadd.f32 %v5794, %v5755
      %v5796 = vadd.f32 %v5795, %v5756
      %v5797 = vadd.f32 %v5796, %v5757
      %v5798 = vadd.f32 %v5797, %v5758
      %v5799 = vadd.f32 %v5798, %v5759
      %v5800 = vadd.f32 %v5799, %v5760
      %v5801 = vadd.f32 %v5800, %v5761
      %v5802 = vadd.f32 %v5801, %v5762
      %v5803 = vadd.f32 %v5802, %v5763
      %v5804 = vadd.f32 %v5803, %v5764
      %v5805 = vadd.f32 %v5804, %v5765
      %v5806 = vadd.f32 %v5805, %v5766
      %v5807 = vadd.f32 %v5806, %v5767
      %v5808 = vsel %vm993, %v5768, 0.0
      %v5809 = vadd.f32 %v5807, %v5808
      %v5810 = vrot.slane %v5809, 4
      %v5811 = vadd.f32 %v5809, %v5810
      %v5812 = vrot.slane %v5811, 2
      %v5813 = vadd.f32 %v5811, %v5812
      %v5814 = vrot.slane %v5813, 1
      %v5815 = vadd.f32 %v5813, %v5814
      %5816 = vst [vmem:[%s208 + $0x3] sm:$0x1] %v5815
      %5817 = vst [vmem:[%s204] sm:$0xff] %v4982
      %5818 = vst [vmem:[%s204 + $0x8] sm:$0xff] %v4983
      %5819 = vst [vmem:[%s204 + $0x10] sm:$0xff] %v4984
      %5820 = vst [vmem:[%s204 + $0x18] sm:$0xff] %v4985
      %5821 = vst [vmem:[%s204 + $0x20] sm:$0xff] %v4986
      %5822 = vst [vmem:[%s204 + $0x28] sm:$0xff] %v4987
      %5823 = vst [vmem:[%s204 + $0x30] sm:$0xff] %v4988
      %5824 = vst [vmem:[%s204 + $0x38] sm:$0xff] %v4989
      %5825 = vst [vmem:[%s204 + $0x40] sm:$0xff] %v4990
      %5826 = vst [vmem:[%s204 + $0x48] sm:$0xff] %v4991
      %5827 = vst [vmem:[%s204 + $0x50] sm:$0xff] %v4992
      %5828 = vst [vmem:[%s204 + $0x58] sm:$0xff] %v4993
      %5829 = vst [vmem:[%s204 + $0x60] sm:$0xff] %v4994
      %5830 = vst [vmem:[%s204 + $0x68] sm:$0xff] %v4995
      %5831 = vst [vmem:[%s204 + $0x70] sm:$0xff] %v4996
      %5832 = vst [vmem:[%s204 + $0x78] sm:$0xff] %v4997
      %5833 = vst [vmem:[%s204 + $0x80] sm:$0xff] %v4998
      %5834 = vst [vmem:[%s204 + $0x88] sm:$0xff] %v4999
      %5835 = vst [vmem:[%s204 + $0x90] sm:$0xff] %v5000
      %5836 = vst [vmem:[%s204 + $0x98] sm:$0xff] %v5001
      %5837 = vst [vmem:[%s204 + $0xa0] sm:$0xff] %v5002
      %5838 = vst [vmem:[%s204 + $0xa8] sm:$0xff] %v5003
      %5839 = vst [vmem:[%s204 + $0xb0] sm:$0xff] %v5004
      %5840 = vst [vmem:[%s204 + $0xb8] sm:$0xff] %v5005
      %5841 = vst [vmem:[%s204 + $0xc0] sm:$0xff] %v5006
      %5842 = vst [vmem:[%s204 + $0xc8] sm:$0xff] %v5007
      %5843 = vst [vmem:[%s204 + $0xd0] sm:$0xff] %v5008
      %5844 = vst [vmem:[%s204 + $0xd8] sm:$0xff] %v5009
      %5845 = vst [vmem:[%s204 + $0xe0] sm:$0xff] %v5010
      %5846 = vst [vmem:[%s204 + $0xe8] sm:$0xff] %v5011
      %5847 = vst [vmem:[%s204 + $0xf0] sm:$0xff] %v5012
      %5848 = vst [vmem:[%s204 + $0xf8] sm:$0xff] %v5013
      %5849 = vst [vmem:[%s204 + $0x100] sm:$0xff] %v5014
      %5850 = vst [vmem:[%s204 + $0x108] sm:$0xff] %v5015
      %5851 = vst [vmem:[%s204 + $0x110] sm:$0xff] %v5016
      %5852 = vst [vmem:[%s204 + $0x118] sm:$0xff] %v5017
      %5853 = vst [vmem:[%s204 + $0x120] sm:$0xff] %v5018
      %5854 = vst [vmem:[%s204 + $0x128] sm:$0xff] %v5019
      %5855 = vst [vmem:[%s204 + $0x130] sm:$0xff] %v5020
      %5856 = vst [vmem:[%s204 + $0x138] sm:$0xff] %v5021
      %5857 = vst [vmem:[%s204 + $0x140] sm:$0xf] %v5022
      %p5858 = scmp.lt.s32.totalorder %s16, 1
      %s5859 = scalar_select %p5858, %s16, 1
      %s5860 = smul.addr %s5859, 41
      %s5861 = smul.addr %s5860, 8
      %s5862 = scalar_lea.vmem %s3, %s5861
      %p5863 = scmp.lt.s32.totalorder %s16, 1
      %s5864 = scalar_select %p5863, %s16, 1
      %s5865 = smul.addr %s5864, 4
      %s5866 = scalar_lea.vmem %s4, %s5865
      // Predicated region
      $region33: #{double_conv.3} parent=31 // pred_check
        %p5867 = pneg %p102
      $region34: #{double_conv.3} parent=31 // pred_check_branch
        %5869 = sbr.rel (%p5867) target = $region36
      $region35: #{double_conv.3} parent=31 // pred_region
        _
      $region36: #{double_conv.3} parent=31 // pred_fallthru
        _
      // Predicated region
      $region37: #{double_conv.3} parent=31 // pred_check
        %p5870 = pneg %p128
      $region38: #{double_conv.3} parent=31 // pred_check_branch
        %5872 = sbr.rel (%p5870) target = $region40
      $region39: #{double_conv.3} parent=31 // pred_region
        _
      $region40: #{double_conv.3} parent=31 // pred_fallthru
        _
    $region32: #{double_conv.3} parent=5 // pred_fallthru
      _
    %p5873 = scmp.le.s32.totalorder 2, %s11
    // Predicated region
    $region41: #{double_conv.3} parent=5 // pred_check
      %p5874 = pneg %p5873
    $region42: #{double_conv.3} parent=5 // pred_check_branch
      %5876 = sbr.rel (%p5874) target = $region44
    $region43: #{double_conv.3} parent=5 // pred_region
      %s5877 = ssub.s32 %s11, 2
      // Predicated region
      $region45: #{double_conv.3} parent=43 // pred_check
        %p5878 = pneg %p108
      $region46: #{double_conv.3} parent=43 // pred_check_branch
        %5880 = sbr.rel (%p5878) target = $region48
      $region47: #{double_conv.3} parent=43 // pred_region
        %p5881 = scmp.lt.s32.totalorder %s17, 1
        %s5882 = scalar_select %p5881, %s17, 1
        %s5883 = smul.addr %s5882, 41
        %s5884 = smul.addr %s5883, 8
        %s5885 = scalar_lea.vmem %s3, %s5884
      $region48: #{double_conv.3} parent=43 // pred_fallthru
        _
      // Predicated region
      $region49: #{double_conv.3} parent=43 // pred_check
        %p5886 = pneg %p134
      $region50: #{double_conv.3} parent=43 // pred_check_branch
        %5888 = sbr.rel (%p5886) target = $region52
      $region51: #{double_conv.3} parent=43 // pred_region
        %p5889 = scmp.lt.s32.totalorder %s17, 1
        %s5890 = scalar_select %p5889, %s17, 1
        %s5891 = smul.addr %s5890, 4
        %s5892 = scalar_lea.vmem %s4, %s5891
      $region52: #{double_conv.3} parent=43 // pred_fallthru
        _
    $region44: #{double_conv.3} parent=5 // pred_fallthru
      _
  $region6: #{double_conv.3} parent=0 // loop_footer
    %s15 = sadd.s32 1, %s11
  $region7: #{double_conv.3} parent=0 // loop_footer_branch
    %10 = sbr.rel target = $region3
  $region8: #{double_conv.3} parent=0 // loop_exit
    _

// kernel: double_conv.4
$region0: #{double_conv.4}
  #allocation0 [shape = 'u32[]', space=smem, size = 0x4, offset = 0x4, fixed_abs, tag = 'smem constant byte address 0x4 - core index']
  #allocation1 [shape = 'u32[144,128]{1,0:T(1,128)}', space=vmem, size = 0x12000, scoped, tag = 'internal scratch']
  #allocation2 [shape = 'f32[362,256]{1,0:T(8,128)}', space=vmem, size = 0x5c000, scoped, tag = 'scratch operand']
  %s0 = inlined_call_operand.vmem [shape: f32[2,324,128], index: 0, kind: input, shape index: {}]
  %s1 = inlined_call_operand.vmem [shape: f32[2,128], index: 1, kind: input, shape index: {}]
  %s2 = inlined_call_operand.vmem [shape: f32[3,256,128], index: 2, kind: input, shape index: {}]
  %s3 = inlined_call_operand.vmem [shape: f32[3,128,128], index: 3, kind: input, shape index: {}]
  %s4 = inlined_call_operand.vmem [shape: f32[2,324,128], index: 4, kind: output, shape index: {0}]
  %s5 = inlined_call_operand.vmem [shape: f32[2,2,128], index: 5, kind: output, shape index: {1}]
  %6 = xla_tuple %s4, %s5
  %s7 = sld [smem:[#allocation0]]
  $region57: #{double_conv.4} parent=0
    _
  %s9 = ssub.s32 1, %s7
  %s10 = scalar_select 0, %s9, %s7
  loop: start=0, step=1, limit=4
  $region2: #{double_conv.4} parent=0 // loop_pre_header
    _
  $region3: #{double_conv.4} parent=0 // loop_header
    %s12 = sphi 0, %s16
    %p13 = scmp.ge.s32.totalorder %s12, 4
    %s22 = sphi 0, %s24
    %s25 = sphi 0, %s22
    %s26 = sphi 0, %s25
    %s42 = sphi 0, %s26
    %s46 = sphi 0, %s46
    %s48 = sphi 0, %s46
    %s49 = sphi 0, %s48
    %s63 = sphi 0, %s49
    %s67 = sphi 0, %s67
    %s69 = sphi 0, %s67
    %s70 = sphi 0, %s69
    %s84 = sphi 0, %s70
    %s88 = sphi 0, %s88
    %s90 = sphi 0, %s88
    %s91 = sphi 0, %s90
    %s105 = sphi 0, %s91
    %s111 = sphi 0, %s113
    %s114 = sphi 0, %s111
    %s115 = sphi 0, %s114
    %s131 = sphi 0, %s115
    %s137 = sphi 0, %s139
    %s140 = sphi 0, %s137
    %s141 = sphi 0, %s140
    %s157 = sphi 0, %s141
  $region4: #{double_conv.4} parent=0 // loop_header_branch
    %15 = sbr.rel (%p13) target = $region8
  $region5: #{double_conv.4} parent=0 // loop_body
    %s17 = ssub.s32 %s12, 1
    %s18 = ssub.s32 %s12, 2
    %s19 = sadd.s32 %s12, 1
    %s20 = ssub.s32 %s12, %s19
    %p21 = scmp.eq.s32.totalorder %s20, 0
    %s23 = sadd.s32 %s22, 1
    %s24 = scalar_select %p21, %s22, %s23
    %p27 = pneg %p21
    %p28 = scmp.eq.s32.totalorder %s12, 1
    %p29 = por %p27, %p28
    %p30 = scmp.ne.s32.totalorder %s22, %s25
    %p31 = scmp.eq.s32.totalorder %s12, 0
    %p32 = por %p30, %p31
    %p33 = scmp.ne.s32.totalorder %s22, %s25
    %p34 = scmp.eq.s32.totalorder %s17, 1
    %p35 = por %p33, %p34
    %p36 = scmp.ne.s32.totalorder %s25, %s26
    %p37 = scmp.eq.s32.totalorder %s17, 0
    %p38 = por %p36, %p37
    %p39 = scmp.ne.s32.totalorder %s25, %s26
    %p40 = scmp.eq.s32.totalorder %s18, 1
    %p41 = por %p39, %p40
    %p43 = scmp.ne.s32.totalorder %s26, %s42
    %p44 = scmp.eq.s32.totalorder %s18, 0
    %p45 = por %p43, %p44
    %s47 = sadd.s32 %s46, 1
    %p50 = scmp.eq.s32.totalorder %s12, 1
    %p51 = scmp.ne.s32.totalorder %s46, %s48
    %p52 = scmp.eq.s32.totalorder %s12, 0
    %p53 = por %p51, %p52
    %p54 = scmp.ne.s32.totalorder %s46, %s48
    %p55 = scmp.eq.s32.totalorder %s17, 1
    %p56 = por %p54, %p55
    %p57 = scmp.ne.s32.totalorder %s48, %s49
    %p58 = scmp.eq.s32.totalorder %s17, 0
    %p59 = por %p57, %p58
    %p60 = scmp.ne.s32.totalorder %s48, %s49
    %p61 = scmp.eq.s32.totalorder %s18, 1
    %p62 = por %p60, %p61
    %p64 = scmp.ne.s32.totalorder %s49, %s63
    %p65 = scmp.eq.s32.totalorder %s18, 0
    %p66 = por %p64, %p65
    %s68 = sadd.s32 %s67, 1
    %p71 = scmp.eq.s32.totalorder %s12, 1
    %p72 = scmp.ne.s32.totalorder %s67, %s69
    %p73 = scmp.eq.s32.totalorder %s12, 0
    %p74 = por %p72, %p73
    %p75 = scmp.ne.s32.totalorder %s67, %s69
    %p76 = scmp.eq.s32.totalorder %s17, 1
    %p77 = por %p75, %p76
    %p78 = scmp.ne.s32.totalorder %s69, %s70
    %p79 = scmp.eq.s32.totalorder %s17, 0
    %p80 = por %p78, %p79
    %p81 = scmp.ne.s32.totalorder %s69, %s70
    %p82 = scmp.eq.s32.totalorder %s18, 1
    %p83 = por %p81, %p82
    %p85 = scmp.ne.s32.totalorder %s70, %s84
    %p86 = scmp.eq.s32.totalorder %s18, 0
    %p87 = por %p85, %p86
    %s89 = sadd.s32 %s88, 1
    %p92 = scmp.eq.s32.totalorder %s12, 1
    %p93 = scmp.ne.s32.totalorder %s88, %s90
    %p94 = scmp.eq.s32.totalorder %s12, 0
    %p95 = por %p93, %p94
    %p96 = scmp.ne.s32.totalorder %s88, %s90
    %p97 = scmp.eq.s32.totalorder %s17, 1
    %p98 = por %p96, %p97
    %p99 = scmp.ne.s32.totalorder %s90, %s91
    %p100 = scmp.eq.s32.totalorder %s17, 0
    %p101 = por %p99, %p100
    %p102 = scmp.ne.s32.totalorder %s90, %s91
    %p103 = scmp.eq.s32.totalorder %s18, 1
    %p104 = por %p102, %p103
    %p106 = scmp.ne.s32.totalorder %s91, %s105
    %p107 = scmp.eq.s32.totalorder %s18, 0
    %p108 = por %p106, %p107
    %s109 = ssub.s32 %s12, %s19
    %p110 = scmp.eq.s32.totalorder %s109, 0
    %s112 = sadd.s32 %s111, 1
    %s113 = scalar_select %p110, %s111, %s112
    %p116 = pneg %p110
    %p117 = scmp.eq.s32.totalorder %s12, 1
    %p118 = por %p116, %p117
    %p119 = scmp.ne.s32.totalorder %s111, %s114
    %p120 = scmp.eq.s32.totalorder %s12, 0
    %p121 = por %p119, %p120
    %p122 = scmp.ne.s32.totalorder %s111, %s114
    %p123 = scmp.eq.s32.totalorder %s17, 1
    %p124 = por %p122, %p123
    %p125 = scmp.ne.s32.totalorder %s114, %s115
    %p126 = scmp.eq.s32.totalorder %s17, 0
    %p127 = por %p125, %p126
    %p128 = scmp.ne.s32.totalorder %s114, %s115
    %p129 = scmp.eq.s32.totalorder %s18, 1
    %p130 = por %p128, %p129
    %p132 = scmp.ne.s32.totalorder %s115, %s131
    %p133 = scmp.eq.s32.totalorder %s18, 0
    %p134 = por %p132, %p133
    %s135 = ssub.s32 %s12, %s19
    %p136 = scmp.eq.s32.totalorder %s135, 0
    %s138 = sadd.s32 %s137, 1
    %s139 = scalar_select %p136, %s137, %s138
    %p142 = pneg %p136
    %p143 = scmp.eq.s32.totalorder %s12, 1
    %p144 = por %p142, %p143
    %p145 = scmp.ne.s32.totalorder %s137, %s140
    %p146 = scmp.eq.s32.totalorder %s12, 0
    %p147 = por %p145, %p146
    %p148 = scmp.ne.s32.totalorder %s137, %s140
    %p149 = scmp.eq.s32.totalorder %s17, 1
    %p150 = por %p148, %p149
    %p151 = scmp.ne.s32.totalorder %s140, %s141
    %p152 = scmp.eq.s32.totalorder %s17, 0
    %p153 = por %p151, %p152
    %p154 = scmp.ne.s32.totalorder %s140, %s141
    %p155 = scmp.eq.s32.totalorder %s18, 1
    %p156 = por %p154, %p155
    %p158 = scmp.ne.s32.totalorder %s141, %s157
    %p159 = scmp.eq.s32.totalorder %s18, 0
    %p160 = por %p158, %p159
    %p161 = scmp.le.s32.totalorder 1, %s12
    %p162 = scmp.lt.s32.totalorder %s12, 3
    %p163 = pnand %p161, %p162
    %p164 = pneg %p163
    // Predicated region
    $region9: #{double_conv.4} parent=5 // pred_check
      _
    $region10: #{double_conv.4} parent=5 // pred_check_branch
      %166 = sbr.rel (%p163) target = $region12
    $region11: #{double_conv.4} parent=5 // pred_region
      %s167 = ssub.s32 %s12, 1
      // Predicated region
      $region13: #{double_conv.4} parent=11 // pred_check
        %p168 = pneg %p59
      $region14: #{double_conv.4} parent=11 // pred_check_branch
        %170 = sbr.rel (%p168) target = $region16
      $region15: #{double_conv.4} parent=11 // pred_region
        _
      $region16: #{double_conv.4} parent=11 // pred_fallthru
        _
      // Predicated region
      $region17: #{double_conv.4} parent=11 // pred_check
        %p171 = pneg %p80
      $region18: #{double_conv.4} parent=11 // pred_check_branch
        %173 = sbr.rel (%p171) target = $region20
      $region19: #{double_conv.4} parent=11 // pred_region
        _
      $region20: #{double_conv.4} parent=11 // pred_fallthru
        _
      // Predicated region
      $region21: #{double_conv.4} parent=11 // pred_check
        %p174 = pneg %p101
      $region22: #{double_conv.4} parent=11 // pred_check_branch
        %176 = sbr.rel (%p174) target = $region24
      $region23: #{double_conv.4} parent=11 // pred_region
        _
      $region24: #{double_conv.4} parent=11 // pred_fallthru
        _
    $region12: #{double_conv.4} parent=5 // pred_fallthru
      _
    %p177 = scmp.lt.s32.totalorder %s12, 2
    // Predicated region
    $region25: #{double_conv.4} parent=5 // pred_check
      %p178 = pneg %p177
    $region26: #{double_conv.4} parent=5 // pred_check_branch
      %180 = sbr.rel (%p178) target = $region28
    $region27: #{double_conv.4} parent=5 // pred_region
      // Predicated region
      $region29: #{double_conv.4} parent=27 // pred_check
        %p181 = pneg %p32
      $region30: #{double_conv.4} parent=27 // pred_check_branch
        %183 = sbr.rel (%p181) target = $region32
      $region31: #{double_conv.4} parent=27 // pred_region
        %p184 = scmp.lt.s32.totalorder %s12, 1
        %s185 = scalar_select %p184, %s12, 1
        %s186 = smul.addr %s185, 41
        %s187 = smul.addr %s186, 8
        %s188 = scalar_lea.vmem %s0, %s187
      $region32: #{double_conv.4} parent=27 // pred_fallthru
        _
    $region28: #{double_conv.4} parent=5 // pred_fallthru
      _
    %p189 = scmp.le.s32.totalorder 1, %s12
    %p190 = scmp.lt.s32.totalorder %s12, 3
    %p191 = pnand %p189, %p190
    %p192 = pneg %p191
    // Predicated region
    $region33: #{double_conv.4} parent=5 // pred_check
      _
    $region34: #{double_conv.4} parent=5 // pred_check_branch
      %194 = sbr.rel (%p191) target = $region36
    $region35: #{double_conv.4} parent=5 // pred_region
      %s195 = ssub.s32 %s12, 1
      %p196 = scmp.lt.s32.totalorder %s17, 1
      %s197 = scalar_select %p196, %s17, 1
      %s198 = smul.addr %s197, 41
      %s199 = smul.addr %s198, 8
      %s200 = scalar_lea.vmem %s0, %s199
      %p201 = pneg %p38
      %p202 = pneg %p35
      %p203 = pneg %p59
      %p204 = pneg %p56
      %p205 = pneg %p80
      %p206 = pneg %p77
      %p207 = pneg %p101
      %p208 = pneg %p98
      %p209 = pneg %p127
      %p210 = pneg %p124
      %p211 = scmp.lt.s32.totalorder %s17, 1
      %s212 = scalar_select %p211, %s17, 1
      %s213 = smul.addr %s212, 41
      %s214 = smul.addr %s213, 8
      %s215 = scalar_lea.vmem %s4, %s214
      %p216 = pneg %p153
      %p217 = pneg %p150
      %p218 = scmp.lt.s32.totalorder %s17, 1
      %s219 = scalar_select %p218, %s17, 1
      %s220 = smul.addr %s219, 2
      %s221 = scalar_lea.vmem %s5, %s220
      %p222 = scmp.lt.s32.totalorder %s17, 1
      %s223 = scalar_select %p222, %s17, 1
      %s224 = smul.addr %s223, 41
      %s225 = smul.addr %s224, 8
      %s226 = scalar_lea.vmem %s0, %s225
      %p227 = scmp.lt.s32.totalorder %s17, 1
      %s228 = scalar_select %p227, %s17, 1
      %s229 = smul.addr %s228, 41
      %s230 = smul.addr %s229, 8
      %s231 = scalar_lea.vmem %s4, %s230
      %p232 = scmp.lt.s32.totalorder %s17, 1
      %s233 = scalar_select %p232, %s17, 1
      %s234 = smul.addr %s233, 2
      %s235 = scalar_lea.vmem %s5, %s234
      %v236 = vlaneseq
      %v237 = vshrl.u32 %v236, 7
      %v238 = vadd.s32 %v237, 8
      %v239 = vadd.s32 %v237, 16
      %v240 = vadd.s32 %v237, 24
      %v241 = vadd.s32 %v237, 32
      %v242 = vadd.s32 %v237, 40
      %v243 = vadd.s32 %v237, 48
      %v244 = vadd.s32 %v237, 56
      %v245 = vadd.s32 %v237, 64
      %v246 = vadd.s32 %v237, 72
      %v247 = vadd.s32 %v237, 80
      %v248 = vadd.s32 %v237, 88
      %v249 = vadd.s32 %v237, 96
      %v250 = vadd.s32 %v237, 104
      %v251 = vadd.s32 %v237, 112
      %v252 = vadd.s32 %v237, 120
      %v253 = vadd.s32 %v237, 128
      %v254 = vadd.s32 %v237, 136
      %v255 = vadd.s32 %v237, 144
      %v256 = vadd.s32 %v237, 152
      %v257 = vadd.s32 %v237, 160
      %v258 = vadd.s32 %v237, 168
      %v259 = vadd.s32 %v237, 176
      %v260 = vadd.s32 %v237, 184
      %v261 = vadd.s32 %v237, 192
      %v262 = vadd.s32 %v237, 200
      %v263 = vadd.s32 %v237, 208
      %v264 = vadd.s32 %v237, 216
      %v265 = vadd.s32 %v237, 224
      %v266 = vadd.s32 %v237, 232
      %v267 = vadd.s32 %v237, 240
      %v268 = vadd.s32 %v237, 248
      %v269 = vadd.s32 %v237, 256
      %v270 = vadd.s32 %v237, 264
      %v271 = vadd.s32 %v237, 272
      %v272 = vadd.s32 %v237, 280
      %v273 = vadd.s32 %v237, 288
      %v274 = vadd.s32 %v237, 296
      %v275 = vadd.s32 %v237, 304
      %v276 = vadd.s32 %v237, 312
      %v277 = vadd.s32 %v237, 320
      %v278 = vcvt.s32.f32 %v237
      %v279 = vcvt.s32.f32 %v238
      %v280 = vcvt.s32.f32 %v239
      %v281 = vcvt.s32.f32 %v240
      %v282 = vcvt.s32.f32 %v241
      %v283 = vcvt.s32.f32 %v242
      %v284 = vcvt.s32.f32 %v243
      %v285 = vcvt.s32.f32 %v244
      %v286 = vcvt.s32.f32 %v245
      %v287 = vcvt.s32.f32 %v246
      %v288 = vcvt.s32.f32 %v247
      %v289 = vcvt.s32.f32 %v248
      %v290 = vcvt.s32.f32 %v249
      %v291 = vcvt.s32.f32 %v250
      %v292 = vcvt.s32.f32 %v251
      %v293 = vcvt.s32.f32 %v252
      %v294 = vcvt.s32.f32 %v253
      %v295 = vcvt.s32.f32 %v254
      %v296 = vcvt.s32.f32 %v255
      %v297 = vcvt.s32.f32 %v256
      %v298 = vcvt.s32.f32 %v257
      %v299 = vcvt.s32.f32 %v258
      %v300 = vcvt.s32.f32 %v259
      %v301 = vcvt.s32.f32 %v260
      %v302 = vcvt.s32.f32 %v261
      %v303 = vcvt.s32.f32 %v262
      %v304 = vcvt.s32.f32 %v263
      %v305 = vcvt.s32.f32 %v264
      %v306 = vcvt.s32.f32 %v265
      %v307 = vcvt.s32.f32 %v266
      %v308 = vcvt.s32.f32 %v267
      %v309 = vcvt.s32.f32 %v268
      %v310 = vcvt.s32.f32 %v269
      %v311 = vcvt.s32.f32 %v270
      %v312 = vcvt.s32.f32 %v271
      %v313 = vcvt.s32.f32 %v272
      %v314 = vcvt.s32.f32 %v273
      %v315 = vcvt.s32.f32 %v274
      %v316 = vcvt.s32.f32 %v275
      %v317 = vcvt.s32.f32 %v276
      %v318 = vcvt.s32.f32 %v277
      %v319 = vmul.f32 %v278, 0.055555556
      %v320 = vmul.f32 %v279, 0.055555556
      %v321 = vmul.f32 %v280, 0.055555556
      %v322 = vmul.f32 %v281, 0.055555556
      %v323 = vmul.f32 %v282, 0.055555556
      %v324 = vmul.f32 %v283, 0.055555556
      %v325 = vmul.f32 %v284, 0.055555556
      %v326 = vmul.f32 %v285, 0.055555556
      %v327 = vmul.f32 %v286, 0.055555556
      %v328 = vmul.f32 %v287, 0.055555556
      %v329 = vmul.f32 %v288, 0.055555556
      %v330 = vmul.f32 %v289, 0.055555556
      %v331 = vmul.f32 %v290, 0.055555556
      %v332 = vmul.f32 %v291, 0.055555556
      %v333 = vmul.f32 %v292, 0.055555556
      %v334 = vmul.f32 %v293, 0.055555556
      %v335 = vmul.f32 %v294, 0.055555556
      %v336 = vmul.f32 %v295, 0.055555556
      %v337 = vmul.f32 %v296, 0.055555556
      %v338 = vmul.f32 %v297, 0.055555556
      %v339 = vmul.f32 %v298, 0.055555556
      %v340 = vmul.f32 %v299, 0.055555556
      %v341 = vmul.f32 %v300, 0.055555556
      %v342 = vmul.f32 %v301, 0.055555556
      %v343 = vmul.f32 %v302, 0.055555556
      %v344 = vmul.f32 %v303, 0.055555556
      %v345 = vmul.f32 %v304, 0.055555556
      %v346 = vmul.f32 %v305, 0.055555556
      %v347 = vmul.f32 %v306, 0.055555556
      %v348 = vmul.f32 %v307, 0.055555556
      %v349 = vmul.f32 %v308, 0.055555556
      %v350 = vmul.f32 %v309, 0.055555556
      %v351 = vmul.f32 %v310, 0.055555556
      %v352 = vmul.f32 %v311, 0.055555556
      %v353 = vmul.f32 %v312, 0.055555556
      %v354 = vmul.f32 %v313, 0.055555556
      %v355 = vmul.f32 %v314, 0.055555556
      %v356 = vmul.f32 %v315, 0.055555556
      %v357 = vmul.f32 %v316, 0.055555556
      %v358 = vmul.f32 %v317, 0.055555556
      %v359 = vmul.f32 %v318, 0.055555556
      %v360 = vfloor.f32 %v319
      %v361 = vfloor.f32 %v320
      %v362 = vfloor.f32 %v321
      %v363 = vfloor.f32 %v322
      %v364 = vfloor.f32 %v323
      %v365 = vfloor.f32 %v324
      %v366 = vfloor.f32 %v325
      %v367 = vfloor.f32 %v326
      %v368 = vfloor.f32 %v327
      %v369 = vfloor.f32 %v328
      %v370 = vfloor.f32 %v329
      %v371 = vfloor.f32 %v330
      %v372 = vfloor.f32 %v331
      %v373 = vfloor.f32 %v332
      %v374 = vfloor.f32 %v333
      %v375 = vfloor.f32 %v334
      %v376 = vfloor.f32 %v335
      %v377 = vfloor.f32 %v336
      %v378 = vfloor.f32 %v337
      %v379 = vfloor.f32 %v338
      %v380 = vfloor.f32 %v339
      %v381 = vfloor.f32 %v340
      %v382 = vfloor.f32 %v341
      %v383 = vfloor.f32 %v342
      %v384 = vfloor.f32 %v343
      %v385 = vfloor.f32 %v344
      %v386 = vfloor.f32 %v345
      %v387 = vfloor.f32 %v346
      %v388 = vfloor.f32 %v347
      %v389 = vfloor.f32 %v348
      %v390 = vfloor.f32 %v349
      %v391 = vfloor.f32 %v350
      %v392 = vfloor.f32 %v351
      %v393 = vfloor.f32 %v352
      %v394 = vfloor.f32 %v353
      %v395 = vfloor.f32 %v354
      %v396 = vfloor.f32 %v355
      %v397 = vfloor.f32 %v356
      %v398 = vfloor.f32 %v357
      %v399 = vfloor.f32 %v358
      %v400 = vfloor.f32 %v359
      %v401 = vmul.f32 %v360, 18.0
      %v402 = vmul.f32 %v361, 18.0
      %v403 = vmul.f32 %v362, 18.0
      %v404 = vmul.f32 %v363, 18.0
      %v405 = vmul.f32 %v364, 18.0
      %v406 = vmul.f32 %v365, 18.0
      %v407 = vmul.f32 %v366, 18.0
      %v408 = vmul.f32 %v367, 18.0
      %v409 = vmul.f32 %v368, 18.0
      %v410 = vmul.f32 %v369, 18.0
      %v411 = vmul.f32 %v370, 18.0
      %v412 = vmul.f32 %v371, 18.0
      %v413 = vmul.f32 %v372, 18.0
      %v414 = vmul.f32 %v373, 18.0
      %v415 = vmul.f32 %v374, 18.0
      %v416 = vmul.f32 %v375, 18.0
      %v417 = vmul.f32 %v376, 18.0
      %v418 = vmul.f32 %v377, 18.0
      %v419 = vmul.f32 %v378, 18.0
      %v420 = vmul.f32 %v379, 18.0
      %v421 = vmul.f32 %v380, 18.0
      %v422 = vmul.f32 %v381, 18.0
      %v423 = vmul.f32 %v382, 18.0
      %v424 = vmul.f32 %v383, 18.0
      %v425 = vmul.f32 %v384, 18.0
      %v426 = vmul.f32 %v385, 18.0
      %v427 = vmul.f32 %v386, 18.0
      %v428 = vmul.f32 %v387, 18.0
      %v429 = vmul.f32 %v388, 18.0
      %v430 = vmul.f32 %v389, 18.0
      %v431 = vmul.f32 %v390, 18.0
      %v432 = vmul.f32 %v391, 18.0
      %v433 = vmul.f32 %v392, 18.0
      %v434 = vmul.f32 %v393, 18.0
      %v435 = vmul.f32 %v394, 18.0
      %v436 = vmul.f32 %v395, 18.0
      %v437 = vmul.f32 %v396, 18.0
      %v438 = vmul.f32 %v397, 18.0
      %v439 = vmul.f32 %v398, 18.0
      %v440 = vmul.f32 %v399, 18.0
      %v441 = vmul.f32 %v400, 18.0
      %v442 = vsub.f32 %v278, %v401
      %v443 = vsub.f32 %v279, %v402
      %v444 = vsub.f32 %v280, %v403
      %v445 = vsub.f32 %v281, %v404
      %v446 = vsub.f32 %v282, %v405
      %v447 = vsub.f32 %v283, %v406
      %v448 = vsub.f32 %v284, %v407
      %v449 = vsub.f32 %v285, %v408
      %v450 = vsub.f32 %v286, %v409
      %v451 = vsub.f32 %v287, %v410
      %v452 = vsub.f32 %v288, %v411
      %v453 = vsub.f32 %v289, %v412
      %v454 = vsub.f32 %v290, %v413
      %v455 = vsub.f32 %v291, %v414
      %v456 = vsub.f32 %v292, %v415
      %v457 = vsub.f32 %v293, %v416
      %v458 = vsub.f32 %v294, %v417
      %v459 = vsub.f32 %v295, %v418
      %v460 = vsub.f32 %v296, %v419
      %v461 = vsub.f32 %v297, %v420
      %v462 = vsub.f32 %v298, %v421
      %v463 = vsub.f32 %v299, %v422
      %v464 = vsub.f32 %v300, %v423
      %v465 = vsub.f32 %v301, %v424
      %v466 = vsub.f32 %v302, %v425
      %v467 = vsub.f32 %v303, %v426
      %v468 = vsub.f32 %v304, %v427
      %v469 = vsub.f32 %v305, %v428
      %v470 = vsub.f32 %v306, %v429
      %v471 = vsub.f32 %v307, %v430
      %v472 = vsub.f32 %v308, %v431
      %v473 = vsub.f32 %v309, %v432
      %v474 = vsub.f32 %v310, %v433
      %v475 = vsub.f32 %v311, %v434
      %v476 = vsub.f32 %v312, %v435
      %v477 = vsub.f32 %v313, %v436
      %v478 = vsub.f32 %v314, %v437
      %v479 = vsub.f32 %v315, %v438
      %v480 = vsub.f32 %v316, %v439
      %v481 = vsub.f32 %v317, %v440
      %v482 = vsub.f32 %v318, %v441
      %vm483 = vcmp.gt.f32.partialorder %v360, 0.5
      %vm484 = vcmp.gt.f32.partialorder %v361, 0.5
      %vm485 = vcmp.gt.f32.partialorder %v362, 0.5
      %vm486 = vcmp.gt.f32.partialorder %v363, 0.5
      %vm487 = vcmp.gt.f32.partialorder %v364, 0.5
      %vm488 = vcmp.gt.f32.partialorder %v365, 0.5
      %vm489 = vcmp.gt.f32.partialorder %v366, 0.5
      %vm490 = vcmp.gt.f32.partialorder %v367, 0.5
      %vm491 = vcmp.gt.f32.partialorder %v368, 0.5
      %vm492 = vcmp.gt.f32.partialorder %v369, 0.5
      %vm493 = vcmp.gt.f32.partialorder %v370, 0.5
      %vm494 = vcmp.gt.f32.partialorder %v371, 0.5
      %vm495 = vcmp.gt.f32.partialorder %v372, 0.5
      %vm496 = vcmp.gt.f32.partialorder %v373, 0.5
      %vm497 = vcmp.gt.f32.partialorder %v374, 0.5
      %vm498 = vcmp.gt.f32.partialorder %v375, 0.5
      %vm499 = vcmp.gt.f32.partialorder %v376, 0.5
      %vm500 = vcmp.gt.f32.partialorder %v377, 0.5
      %vm501 = vcmp.gt.f32.partialorder %v378, 0.5
      %vm502 = vcmp.gt.f32.partialorder %v379, 0.5
      %vm503 = vcmp.gt.f32.partialorder %v380, 0.5
      %vm504 = vcmp.gt.f32.partialorder %v381, 0.5
      %vm505 = vcmp.gt.f32.partialorder %v382, 0.5
      %vm506 = vcmp.gt.f32.partialorder %v383, 0.5
      %vm507 = vcmp.gt.f32.partialorder %v384, 0.5
      %vm508 = vcmp.gt.f32.partialorder %v385, 0.5
      %vm509 = vcmp.gt.f32.partialorder %v386, 0.5
      %vm510 = vcmp.gt.f32.partialorder %v387, 0.5
      %vm511 = vcmp.gt.f32.partialorder %v388, 0.5
      %vm512 = vcmp.gt.f32.partialorder %v389, 0.5
      %vm513 = vcmp.gt.f32.partialorder %v390, 0.5
      %vm514 = vcmp.gt.f32.partialorder %v391, 0.5
      %vm515 = vcmp.gt.f32.partialorder %v392, 0.5
      %vm516 = vcmp.gt.f32.partialorder %v393, 0.5
      %vm517 = vcmp.gt.f32.partialorder %v394, 0.5
      %vm518 = vcmp.gt.f32.partialorder %v395, 0.5
      %vm519 = vcmp.gt.f32.partialorder %v396, 0.5
      %vm520 = vcmp.gt.f32.partialorder %v397, 0.5
      %vm521 = vcmp.gt.f32.partialorder %v398, 0.5
      %vm522 = vcmp.gt.f32.partialorder %v399, 0.5
      %vm523 = vcmp.gt.f32.partialorder %v400, 0.5
      %vm524 = vcmp.lt.f32.partialorder %v360, 16.5
      %vm525 = vcmp.lt.f32.partialorder %v361, 16.5
      %vm526 = vcmp.lt.f32.partialorder %v362, 16.5
      %vm527 = vcmp.lt.f32.partialorder %v363, 16.5
      %vm528 = vcmp.lt.f32.partialorder %v364, 16.5
      %vm529 = vcmp.lt.f32.partialorder %v365, 16.5
      %vm530 = vcmp.lt.f32.partialorder %v366, 16.5
      %vm531 = vcmp.lt.f32.partialorder %v367, 16.5
      %vm532 = vcmp.lt.f32.partialorder %v368, 16.5
      %vm533 = vcmp.lt.f32.partialorder %v369, 16.5
      %vm534 = vcmp.lt.f32.partialorder %v370, 16.5
      %vm535 = vcmp.lt.f32.partialorder %v371, 16.5
      %vm536 = vcmp.lt.f32.partialorder %v372, 16.5
      %vm537 = vcmp.lt.f32.partialorder %v373, 16.5
      %vm538 = vcmp.lt.f32.partialorder %v374, 16.5
      %vm539 = vcmp.lt.f32.partialorder %v375, 16.5
      %vm540 = vcmp.lt.f32.partialorder %v376, 16.5
      %vm541 = vcmp.lt.f32.partialorder %v377, 16.5
      %vm542 = vcmp.lt.f32.partialorder %v378, 16.5
      %vm543 = vcmp.lt.f32.partialorder %v379, 16.5
      %vm544 = vcmp.lt.f32.partialorder %v380, 16.5
      %vm545 = vcmp.lt.f32.partialorder %v381, 16.5
      %vm546 = vcmp.lt.f32.partialorder %v382, 16.5
      %vm547 = vcmp.lt.f32.partialorder %v383, 16.5
      %vm548 = vcmp.lt.f32.partialorder %v384, 16.5
      %vm549 = vcmp.lt.f32.partialorder %v385, 16.5
      %vm550 = vcmp.lt.f32.partialorder %v386, 16.5
      %vm551 = vcmp.lt.f32.partialorder %v387, 16.5
      %vm552 = vcmp.lt.f32.partialorder %v388, 16.5
      %vm553 = vcmp.lt.f32.partialorder %v389, 16.5
      %vm554 = vcmp.lt.f32.partialorder %v390, 16.5
      %vm555 = vcmp.lt.f32.partialorder %v391, 16.5
      %vm556 = vcmp.lt.f32.partialorder %v392, 16.5
      %vm557 = vcmp.lt.f32.partialorder %v393, 16.5
      %vm558 = vcmp.lt.f32.partialorder %v394, 16.5
      %vm559 = vcmp.lt.f32.partialorder %v395, 16.5
      %vm560 = vcmp.lt.f32.partialorder %v396, 16.5
      %vm561 = vcmp.lt.f32.partialorder %v397, 16.5
      %vm562 = vcmp.lt.f32.partialorder %v398, 16.5
      %vm563 = vcmp.lt.f32.partialorder %v399, 16.5
      %vm564 = vcmp.lt.f32.partialorder %v400, 16.5
      %vm565 = vmand %vm483, %vm524
      %vm566 = vmand %vm484, %vm525
      %vm567 = vmand %vm485, %vm526
      %vm568 = vmand %vm486, %vm527
      %vm569 = vmand %vm487, %vm528
      %vm570 = vmand %vm488, %vm529
      %vm571 = vmand %vm489, %vm530
      %vm572 = vmand %vm490, %vm531
      %vm573 = vmand %vm491, %vm532
      %vm574 = vmand %vm492, %vm533
      %vm575 = vmand %vm493, %vm534
      %vm576 = vmand %vm494, %vm535
      %vm577 = vmand %vm495, %vm536
      %vm578 = vmand %vm496, %vm537
      %vm579 = vmand %vm497, %vm538
      %vm580 = vmand %vm498, %vm539
      %vm581 = vmand %vm499, %vm540
      %vm582 = vmand %vm500, %vm541
      %vm583 = vmand %vm501, %vm542
      %vm584 = vmand %vm502, %vm543
      %vm585 = vmand %vm503, %vm544
      %vm586 = vmand %vm504, %vm545
      %vm587 = vmand %vm505, %vm546
      %vm588 = vmand %vm506, %vm547
      %vm589 = vmand %vm507, %vm548
      %vm590 = vmand %vm508, %vm549
      %vm591 = vmand %vm509, %vm550
      %vm592 = vmand %vm510, %vm551
      %vm593 = vmand %vm511, %vm552
      %vm594 = vmand %vm512, %vm553
      %vm595 = vmand %vm513, %vm554
      %vm596 = vmand %vm514, %vm555
      %vm597 = vmand %vm515, %vm556
      %vm598 = vmand %vm516, %vm557
      %vm599 = vmand %vm517, %vm558
      %vm600 = vmand %vm518, %vm559
      %vm601 = vmand %vm519, %vm560
      %vm602 = vmand %vm520, %vm561
      %vm603 = vmand %vm521, %vm562
      %vm604 = vmand %vm522, %vm563
      %vm605 = vmand %vm523, %vm564
      %vm606 = vcmp.gt.f32.partialorder %v442, 0.5
      %vm607 = vcmp.gt.f32.partialorder %v443, 0.5
      %vm608 = vcmp.gt.f32.partialorder %v444, 0.5
      %vm609 = vcmp.gt.f32.partialorder %v445, 0.5
      %vm610 = vcmp.gt.f32.partialorder %v446, 0.5
      %vm611 = vcmp.gt.f32.partialorder %v447, 0.5
      %vm612 = vcmp.gt.f32.partialorder %v448, 0.5
      %vm613 = vcmp.gt.f32.partialorder %v449, 0.5
      %vm614 = vcmp.gt.f32.partialorder %v450, 0.5
      %vm615 = vcmp.gt.f32.partialorder %v451, 0.5
      %vm616 = vcmp.gt.f32.partialorder %v452, 0.5
      %vm617 = vcmp.gt.f32.partialorder %v453, 0.5
      %vm618 = vcmp.gt.f32.partialorder %v454, 0.5
      %vm619 = vcmp.gt.f32.partialorder %v455, 0.5
      %vm620 = vcmp.gt.f32.partialorder %v456, 0.5
      %vm621 = vcmp.gt.f32.partialorder %v457, 0.5
      %vm622 = vcmp.gt.f32.partialorder %v458, 0.5
      %vm623 = vcmp.gt.f32.partialorder %v459, 0.5
      %vm624 = vcmp.gt.f32.partialorder %v460, 0.5
      %vm625 = vcmp.gt.f32.partialorder %v461, 0.5
      %vm626 = vcmp.gt.f32.partialorder %v462, 0.5
      %vm627 = vcmp.gt.f32.partialorder %v463, 0.5
      %vm628 = vcmp.gt.f32.partialorder %v464, 0.5
      %vm629 = vcmp.gt.f32.partialorder %v465, 0.5
      %vm630 = vcmp.gt.f32.partialorder %v466, 0.5
      %vm631 = vcmp.gt.f32.partialorder %v467, 0.5
      %vm632 = vcmp.gt.f32.partialorder %v468, 0.5
      %vm633 = vcmp.gt.f32.partialorder %v469, 0.5
      %vm634 = vcmp.gt.f32.partialorder %v470, 0.5
      %vm635 = vcmp.gt.f32.partialorder %v471, 0.5
      %vm636 = vcmp.gt.f32.partialorder %v472, 0.5
      %vm637 = vcmp.gt.f32.partialorder %v473, 0.5
      %vm638 = vcmp.gt.f32.partialorder %v474, 0.5
      %vm639 = vcmp.gt.f32.partialorder %v475, 0.5
      %vm640 = vcmp.gt.f32.partialorder %v476, 0.5
      %vm641 = vcmp.gt.f32.partialorder %v477, 0.5
      %vm642 = vcmp.gt.f32.partialorder %v478, 0.5
      %vm643 = vcmp.gt.f32.partialorder %v479, 0.5
      %vm644 = vcmp.gt.f32.partialorder %v480, 0.5
      %vm645 = vcmp.gt.f32.partialorder %v481, 0.5
      %vm646 = vcmp.gt.f32.partialorder %v482, 0.5
      %vm647 = vmand %vm565, %vm606
      %vm648 = vmand %vm566, %vm607
      %vm649 = vmand %vm567, %vm608
      %vm650 = vmand %vm568, %vm609
      %vm651 = vmand %vm569, %vm610
      %vm652 = vmand %vm570, %vm611
      %vm653 = vmand %vm571, %vm612
      %vm654 = vmand %vm572, %vm613
      %vm655 = vmand %vm573, %vm614
      %vm656 = vmand %vm574, %vm615
      %vm657 = vmand %vm575, %vm616
      %vm658 = vmand %vm576, %vm617
      %vm659 = vmand %vm577, %vm618
      %vm660 = vmand %vm578, %vm619
      %vm661 = vmand %vm579, %vm620
      %vm662 = vmand %vm580, %vm621
      %vm663 = vmand %vm581, %vm622
      %vm664 = vmand %vm582, %vm623
      %vm665 = vmand %vm583, %vm624
      %vm666 = vmand %vm584, %vm625
      %vm667 = vmand %vm585, %vm626
      %vm668 = vmand %vm586, %vm627
      %vm669 = vmand %vm587, %vm628
      %vm670 = vmand %vm588, %vm629
      %vm671 = vmand %vm589, %vm630
      %vm672 = vmand %vm590, %vm631
      %vm673 = vmand %vm591, %vm632
      %vm674 = vmand %vm592, %vm633
      %vm675 = vmand %vm593, %vm634
      %vm676 = vmand %vm594, %vm635
      %vm677 = vmand %vm595, %vm636
      %vm678 = vmand %vm596, %vm637
      %vm679 = vmand %vm597, %vm638
      %vm680 = vmand %vm598, %vm639
      %vm681 = vmand %vm599, %vm640
      %vm682 = vmand %vm600, %vm641
      %vm683 = vmand %vm601, %vm642
      %vm684 = vmand %vm602, %vm643
      %vm685 = vmand %vm603, %vm644
      %vm686 = vmand %vm604, %vm645
      %vm687 = vmand %vm605, %vm646
      %vm688 = vcmp.lt.f32.partialorder %v442, 16.5
      %vm689 = vcmp.lt.f32.partialorder %v443, 16.5
      %vm690 = vcmp.lt.f32.partialorder %v444, 16.5
      %vm691 = vcmp.lt.f32.partialorder %v445, 16.5
      %vm692 = vcmp.lt.f32.partialorder %v446, 16.5
      %vm693 = vcmp.lt.f32.partialorder %v447, 16.5
      %vm694 = vcmp.lt.f32.partialorder %v448, 16.5
      %vm695 = vcmp.lt.f32.partialorder %v449, 16.5
      %vm696 = vcmp.lt.f32.partialorder %v450, 16.5
      %vm697 = vcmp.lt.f32.partialorder %v451, 16.5
      %vm698 = vcmp.lt.f32.partialorder %v452, 16.5
      %vm699 = vcmp.lt.f32.partialorder %v453, 16.5
      %vm700 = vcmp.lt.f32.partialorder %v454, 16.5
      %vm701 = vcmp.lt.f32.partialorder %v455, 16.5
      %vm702 = vcmp.lt.f32.partialorder %v456, 16.5
      %vm703 = vcmp.lt.f32.partialorder %v457, 16.5
      %vm704 = vcmp.lt.f32.partialorder %v458, 16.5
      %vm705 = vcmp.lt.f32.partialorder %v459, 16.5
      %vm706 = vcmp.lt.f32.partialorder %v460, 16.5
      %vm707 = vcmp.lt.f32.partialorder %v461, 16.5
      %vm708 = vcmp.lt.f32.partialorder %v462, 16.5
      %vm709 = vcmp.lt.f32.partialorder %v463, 16.5
      %vm710 = vcmp.lt.f32.partialorder %v464, 16.5
      %vm711 = vcmp.lt.f32.partialorder %v465, 16.5
      %vm712 = vcmp.lt.f32.partialorder %v466, 16.5
      %vm713 = vcmp.lt.f32.partialorder %v467, 16.5
      %vm714 = vcmp.lt.f32.partialorder %v468, 16.5
      %vm715 = vcmp.lt.f32.partialorder %v469, 16.5
      %vm716 = vcmp.lt.f32.partialorder %v470, 16.5
      %vm717 = vcmp.lt.f32.partialorder %v471, 16.5
      %vm718 = vcmp.lt.f32.partialorder %v472, 16.5
      %vm719 = vcmp.lt.f32.partialorder %v473, 16.5
      %vm720 = vcmp.lt.f32.partialorder %v474, 16.5
      %vm721 = vcmp.lt.f32.partialorder %v475, 16.5
      %vm722 = vcmp.lt.f32.partialorder %v476, 16.5
      %vm723 = vcmp.lt.f32.partialorder %v477, 16.5
      %vm724 = vcmp.lt.f32.partialorder %v478, 16.5
      %vm725 = vcmp.lt.f32.partialorder %v479, 16.5
      %vm726 = vcmp.lt.f32.partialorder %v480, 16.5
      %vm727 = vcmp.lt.f32.partialorder %v481, 16.5
      %vm728 = vcmp.lt.f32.partialorder %v482, 16.5
      %vm729 = vmand %vm647, %vm688
      %vm730 = vmand %vm648, %vm689
      %vm731 = vmand %vm649, %vm690
      %vm732 = vmand %vm650, %vm691
      %vm733 = vmand %vm651, %vm692
      %vm734 = vmand %vm652, %vm693
      %vm735 = vmand %vm653, %vm694
      %vm736 = vmand %vm654, %vm695
      %vm737 = vmand %vm655, %vm696
      %vm738 = vmand %vm656, %vm697
      %vm739 = vmand %vm657, %vm698
      %vm740 = vmand %vm658, %vm699
      %vm741 = vmand %vm659, %vm700
      %vm742 = vmand %vm660, %vm701
      %vm743 = vmand %vm661, %vm702
      %vm744 = vmand %vm662, %vm703
      %vm745 = vmand %vm663, %vm704
      %vm746 = vmand %vm664, %vm705
      %vm747 = vmand %vm665, %vm706
      %vm748 = vmand %vm666, %vm707
      %vm749 = vmand %vm667, %vm708
      %vm750 = vmand %vm668, %vm709
      %vm751 = vmand %vm669, %vm710
      %vm752 = vmand %vm670, %vm711
      %vm753 = vmand %vm671, %vm712
      %vm754 = vmand %vm672, %vm713
      %vm755 = vmand %vm673, %vm714
      %vm756 = vmand %vm674, %vm715
      %vm757 = vmand %vm675, %vm716
      %vm758 = vmand %vm676, %vm717
      %vm759 = vmand %vm677, %vm718
      %vm760 = vmand %vm678, %vm719
      %vm761 = vmand %vm679, %vm720
      %vm762 = vmand %vm680, %vm721
      %vm763 = vmand %vm681, %vm722
      %vm764 = vmand %vm682, %vm723
      %vm765 = vmand %vm683, %vm724
      %vm766 = vmand %vm684, %vm725
      %vm767 = vmand %vm685, %vm726
      %vm768 = vmand %vm686, %vm727
      %vm769 = vmand %vm687, %vm728
      %v770 = vsel %vm729, 1.0, 0.0
      %v771 = vsel %vm730, 1.0, 0.0
      %v772 = vsel %vm731, 1.0, 0.0
      %v773 = vsel %vm732, 1.0, 0.0
      %v774 = vsel %vm733, 1.0, 0.0
      %v775 = vsel %vm734, 1.0, 0.0
      %v776 = vsel %vm735, 1.0, 0.0
      %v777 = vsel %vm736, 1.0, 0.0
      %v778 = vsel %vm737, 1.0, 0.0
      %v779 = vsel %vm738, 1.0, 0.0
      %v780 = vsel %vm739, 1.0, 0.0
      %v781 = vsel %vm740, 1.0, 0.0
      %v782 = vsel %vm741, 1.0, 0.0
      %v783 = vsel %vm742, 1.0, 0.0
      %v784 = vsel %vm743, 1.0, 0.0
      %v785 = vsel %vm744, 1.0, 0.0
      %v786 = vsel %vm745, 1.0, 0.0
      %v787 = vsel %vm746, 1.0, 0.0
      %v788 = vsel %vm747, 1.0, 0.0
      %v789 = vsel %vm748, 1.0, 0.0
      %v790 = vsel %vm749, 1.0, 0.0
      %v791 = vsel %vm750, 1.0, 0.0
      %v792 = vsel %vm751, 1.0, 0.0
      %v793 = vsel %vm752, 1.0, 0.0
      %v794 = vsel %vm753, 1.0, 0.0
      %v795 = vsel %vm754, 1.0, 0.0
      %v796 = vsel %vm755, 1.0, 0.0
      %v797 = vsel %vm756, 1.0, 0.0
      %v798 = vsel %vm757, 1.0, 0.0
      %v799 = vsel %vm758, 1.0, 0.0
      %v800 = vsel %vm759, 1.0, 0.0
      %v801 = vsel %vm760, 1.0, 0.0
      %v802 = vsel %vm761, 1.0, 0.0
      %v803 = vsel %vm762, 1.0, 0.0
      %v804 = vsel %vm763, 1.0, 0.0
      %v805 = vsel %vm764, 1.0, 0.0
      %v806 = vsel %vm765, 1.0, 0.0
      %v807 = vsel %vm766, 1.0, 0.0
      %v808 = vsel %vm767, 1.0, 0.0
      %v809 = vsel %vm768, 1.0, 0.0
      %v810 = vsel %vm769, 1.0, 0.0
      %v811 = vld [vmem:[%s1] sm:$0x1]
      %v812 = vld [vmem:[%s1 + $0x1] sm:$0x1]
      %v813 = vld [vmem:[%s226] sm:$0xff]
      %v814 = vld [vmem:[%s226 + $0x8] sm:$0xff]
      %v815 = vld [vmem:[%s226 + $0x10] sm:$0xff]
      %v816 = vld [vmem:[%s226 + $0x18] sm:$0xff]
      %v817 = vld [vmem:[%s226 + $0x20] sm:$0xff]
      %v818 = vld [vmem:[%s226 + $0x28] sm:$0xff]
      %v819 = vld [vmem:[%s226 + $0x30] sm:$0xff]
      %v820 = vld [vmem:[%s226 + $0x38] sm:$0xff]
      %v821 = vld [vmem:[%s226 + $0x40] sm:$0xff]
      %v822 = vld [vmem:[%s226 + $0x48] sm:$0xff]
      %v823 = vld [vmem:[%s226 + $0x50] sm:$0xff]
      %v824 = vld [vmem:[%s226 + $0x58] sm:$0xff]
      %v825 = vld [vmem:[%s226 + $0x60] sm:$0xff]
      %v826 = vld [vmem:[%s226 + $0x68] sm:$0xff]
      %v827 = vld [vmem:[%s226 + $0x70] sm:$0xff]
      %v828 = vld [vmem:[%s226 + $0x78] sm:$0xff]
      %v829 = vld [vmem:[%s226 + $0x80] sm:$0xff]
      %v830 = vld [vmem:[%s226 + $0x88] sm:$0xff]
      %v831 = vld [vmem:[%s226 + $0x90] sm:$0xff]
      %v832 = vld [vmem:[%s226 + $0x98] sm:$0xff]
      %v833 = vld [vmem:[%s226 + $0xa0] sm:$0xff]
      %v834 = vld [vmem:[%s226 + $0xa8] sm:$0xff]
      %v835 = vld [vmem:[%s226 + $0xb0] sm:$0xff]
      %v836 = vld [vmem:[%s226 + $0xb8] sm:$0xff]
      %v837 = vld [vmem:[%s226 + $0xc0] sm:$0xff]
      %v838 = vld [vmem:[%s226 + $0xc8] sm:$0xff]
      %v839 = vld [vmem:[%s226 + $0xd0] sm:$0xff]
      %v840 = vld [vmem:[%s226 + $0xd8] sm:$0xff]
      %v841 = vld [vmem:[%s226 + $0xe0] sm:$0xff]
      %v842 = vld [vmem:[%s226 + $0xe8] sm:$0xff]
      %v843 = vld [vmem:[%s226 + $0xf0] sm:$0xff]
      %v844 = vld [vmem:[%s226 + $0xf8] sm:$0xff]
      %v845 = vld [vmem:[%s226 + $0x100] sm:$0xff]
      %v846 = vld [vmem:[%s226 + $0x108] sm:$0xff]
      %v847 = vld [vmem:[%s226 + $0x110] sm:$0xff]
      %v848 = vld [vmem:[%s226 + $0x118] sm:$0xff]
      %v849 = vld [vmem:[%s226 + $0x120] sm:$0xff]
      %v850 = vld [vmem:[%s226 + $0x128] sm:$0xff]
      %v851 = vld [vmem:[%s226 + $0x130] sm:$0xff]
      %v852 = vld [vmem:[%s226 + $0x138] sm:$0xff]
      %v853 = vld [vmem:[%s226 + $0x140] sm:$0xf]
      %v854 = vlaneseq
      %v855 = vshrl.u32 %v854, 7
      %v856 = vsub.s32 0, %v855
      %v857 = vrot.slane %v811, %v856
      %v858 = vmul.f32 %v813, %v857
      %v859 = vmul.f32 %v814, %v857
      %v860 = vmul.f32 %v815, %v857
      %v861 = vmul.f32 %v816, %v857
      %v862 = vmul.f32 %v817, %v857
      %v863 = vmul.f32 %v818, %v857
      %v864 = vmul.f32 %v819, %v857
      %v865 = vmul.f32 %v820, %v857
      %v866 = vmul.f32 %v821, %v857
      %v867 = vmul.f32 %v822, %v857
      %v868 = vmul.f32 %v823, %v857
      %v869 = vmul.f32 %v824, %v857
      %v870 = vmul.f32 %v825, %v857
      %v871 = vmul.f32 %v826, %v857
      %v872 = vmul.f32 %v827, %v857
      %v873 = vmul.f32 %v828, %v857
      %v874 = vmul.f32 %v829, %v857
      %v875 = vmul.f32 %v830, %v857
      %v876 = vmul.f32 %v831, %v857
      %v877 = vmul.f32 %v832, %v857
      %v878 = vmul.f32 %v833, %v857
      %v879 = vmul.f32 %v834, %v857
      %v880 = vmul.f32 %v835, %v857
      %v881 = vmul.f32 %v836, %v857
      %v882 = vmul.f32 %v837, %v857
      %v883 = vmul.f32 %v838, %v857
      %v884 = vmul.f32 %v839, %v857
      %v885 = vmul.f32 %v840, %v857
      %v886 = vmul.f32 %v841, %v857
      %v887 = vmul.f32 %v842, %v857
      %v888 = vmul.f32 %v843, %v857
      %v889 = vmul.f32 %v844, %v857
      %v890 = vmul.f32 %v845, %v857
      %v891 = vmul.f32 %v846, %v857
      %v892 = vmul.f32 %v847, %v857
      %v893 = vmul.f32 %v848, %v857
      %v894 = vmul.f32 %v849, %v857
      %v895 = vmul.f32 %v850, %v857
      %v896 = vmul.f32 %v851, %v857
      %v897 = vmul.f32 %v852, %v857
      %v898 = vmul.f32 %v853, %v857
      %v899 = vlaneseq
      %v900 = vshrl.u32 %v899, 7
      %v901 = vsub.s32 0, %v900
      %v902 = vrot.slane %v812, %v901
      %v903 = vadd.f32 %v858, %v902
      %v904 = vadd.f32 %v859, %v902
      %v905 = vadd.f32 %v860, %v902
      %v906 = vadd.f32 %v861, %v902
      %v907 = vadd.f32 %v862, %v902
      %v908 = vadd.f32 %v863, %v902
      %v909 = vadd.f32 %v864, %v902
      %v910 = vadd.f32 %v865, %v902
      %v911 = vadd.f32 %v866, %v902
      %v912 = vadd.f32 %v867, %v902
      %v913 = vadd.f32 %v868, %v902
      %v914 = vadd.f32 %v869, %v902
      %v915 = vadd.f32 %v870, %v902
      %v916 = vadd.f32 %v871, %v902
      %v917 = vadd.f32 %v872, %v902
      %v918 = vadd.f32 %v873, %v902
      %v919 = vadd.f32 %v874, %v902
      %v920 = vadd.f32 %v875, %v902
      %v921 = vadd.f32 %v876, %v902
      %v922 = vadd.f32 %v877, %v902
      %v923 = vadd.f32 %v878, %v902
      %v924 = vadd.f32 %v879, %v902
      %v925 = vadd.f32 %v880, %v902
      %v926 = vadd.f32 %v881, %v902
      %v927 = vadd.f32 %v882, %v902
      %v928 = vadd.f32 %v883, %v902
      %v929 = vadd.f32 %v884, %v902
      %v930 = vadd.f32 %v885, %v902
      %v931 = vadd.f32 %v886, %v902
      %v932 = vadd.f32 %v887, %v902
      %v933 = vadd.f32 %v888, %v902
      %v934 = vadd.f32 %v889, %v902
      %v935 = vadd.f32 %v890, %v902
      %v936 = vadd.f32 %v891, %v902
      %v937 = vadd.f32 %v892, %v902
      %v938 = vadd.f32 %v893, %v902
      %v939 = vadd.f32 %v894, %v902
      %v940 = vadd.f32 %v895, %v902
      %v941 = vadd.f32 %v896, %v902
      %v942 = vadd.f32 %v897, %v902
      %v943 = vadd.f32 %v898, %v902
      %v944 = vmax.f32 %v903, 0.0
      %v945 = vmax.f32 %v904, 0.0
      %v946 = vmax.f32 %v905, 0.0
      %v947 = vmax.f32 %v906, 0.0
      %v948 = vmax.f32 %v907, 0.0
      %v949 = vmax.f32 %v908, 0.0
      %v950 = vmax.f32 %v909, 0.0
      %v951 = vmax.f32 %v910, 0.0
      %v952 = vmax.f32 %v911, 0.0
      %v953 = vmax.f32 %v912, 0.0
      %v954 = vmax.f32 %v913, 0.0
      %v955 = vmax.f32 %v914, 0.0
      %v956 = vmax.f32 %v915, 0.0
      %v957 = vmax.f32 %v916, 0.0
      %v958 = vmax.f32 %v917, 0.0
      %v959 = vmax.f32 %v918, 0.0
      %v960 = vmax.f32 %v919, 0.0
      %v961 = vmax.f32 %v920, 0.0
      %v962 = vmax.f32 %v921, 0.0
      %v963 = vmax.f32 %v922, 0.0
      %v964 = vmax.f32 %v923, 0.0
      %v965 = vmax.f32 %v924, 0.0
      %v966 = vmax.f32 %v925, 0.0
      %v967 = vmax.f32 %v926, 0.0
      %v968 = vmax.f32 %v927, 0.0
      %v969 = vmax.f32 %v928, 0.0
      %v970 = vmax.f32 %v929, 0.0
      %v971 = vmax.f32 %v930, 0.0
      %v972 = vmax.f32 %v931, 0.0
      %v973 = vmax.f32 %v932, 0.0
      %v974 = vmax.f32 %v933, 0.0
      %v975 = vmax.f32 %v934, 0.0
      %v976 = vmax.f32 %v935, 0.0
      %v977 = vmax.f32 %v936, 0.0
      %v978 = vmax.f32 %v937, 0.0
      %v979 = vmax.f32 %v938, 0.0
      %v980 = vmax.f32 %v939, 0.0
      %v981 = vmax.f32 %v940, 0.0
      %v982 = vmax.f32 %v941, 0.0
      %v983 = vmax.f32 %v942, 0.0
      %v984 = vmax.f32 %v943, 0.0
      %v985 = vmul.f32 %v944, %v770
      %v986 = vmul.f32 %v945, %v771
      %v987 = vmul.f32 %v946, %v772
      %v988 = vmul.f32 %v947, %v773
      %v989 = vmul.f32 %v948, %v774
      %v990 = vmul.f32 %v949, %v775
      %v991 = vmul.f32 %v950, %v776
      %v992 = vmul.f32 %v951, %v777
      %v993 = vmul.f32 %v952, %v778
      %v994 = vmul.f32 %v953, %v779
      %v995 = vmul.f32 %v954, %v780
      %v996 = vmul.f32 %v955, %v781
      %v997 = vmul.f32 %v956, %v782
      %v998 = vmul.f32 %v957, %v783
      %v999 = vmul.f32 %v958, %v784
      %v1000 = vmul.f32 %v959, %v785
      %v1001 = vmul.f32 %v960, %v786
      %v1002 = vmul.f32 %v961, %v787
      %v1003 = vmul.f32 %v962, %v788
      %v1004 = vmul.f32 %v963, %v789
      %v1005 = vmul.f32 %v964, %v790
      %v1006 = vmul.f32 %v965, %v791
      %v1007 = vmul.f32 %v966, %v792
      %v1008 = vmul.f32 %v967, %v793
      %v1009 = vmul.f32 %v968, %v794
      %v1010 = vmul.f32 %v969, %v795
      %v1011 = vmul.f32 %v970, %v796
      %v1012 = vmul.f32 %v971, %v797
      %v1013 = vmul.f32 %v972, %v798
      %v1014 = vmul.f32 %v973, %v799
      %v1015 = vmul.f32 %v974, %v800
      %v1016 = vmul.f32 %v975, %v801
      %v1017 = vmul.f32 %v976, %v802
      %v1018 = vmul.f32 %v977, %v803
      %v1019 = vmul.f32 %v978, %v804
      %v1020 = vmul.f32 %v979, %v805
      %v1021 = vmul.f32 %v980, %v806
      %v1022 = vmul.f32 %v981, %v807
      %v1023 = vmul.f32 %v982, %v808
      %v1024 = vmul.f32 %v983, %v809
      %v1025 = vmul.f32 %v984, %v810
      %1026 = vst [vmem:[#allocation2] sm:$0xff] 0.0
      %1027 = vst [vmem:[#allocation2 + $0x8] sm:$0xff] 0.0
      %1028 = vst [vmem:[#allocation2 + $0x10] sm:$0xff] 0.0
      %1029 = vst [vmem:[#allocation2 + $0x18] sm:$0xff] 0.0
      %1030 = vst [vmem:[#allocation2 + $0x20] sm:$0xf] 0.0
      %1031 = vst [vmem:[#allocation2 + $0x28] sm:$0xf] 0.0
      %1032 = vst [vmem:[#allocation2 + $0x2a0] sm:$0x80] 0.0
      %1033 = vst [vmem:[#allocation2 + $0x2a8] sm:$0x80] 0.0
      %1034 = vst [vmem:[#allocation2 + $0x2b0] sm:$0xff] 0.0
      %1035 = vst [vmem:[#allocation2 + $0x2b8] sm:$0xff] 0.0
      %1036 = vst [vmem:[#allocation2 + $0x2c0] sm:$0xff] 0.0
      %1037 = vst [vmem:[#allocation2 + $0x2c8] sm:$0xff] 0.0
      %1038 = vst [vmem:[#allocation2 + $0x2d0] sm:$0x3] 0.0
      %1039 = vst [vmem:[#allocation2 + $0x2d8] sm:$0x3] 0.0
      %vm1081 = vcmask 1042432
      %v1082 = vrot.slane %v985, 5
      %v1083 = vrot.slane %v986, 5
      %v1084 = vsel %vm1081, %v1082, %v1083
      %v1085 = vrot.slane %v987, 5
      %v1086 = vsel %vm1081, %v1083, %v1085
      %v1087 = vrot.slane %v988, 5
      %v1088 = vsel %vm1081, %v1085, %v1087
      %v1089 = vrot.slane %v989, 5
      %v1090 = vsel %vm1081, %v1087, %v1089
      %v1091 = vrot.slane %v990, 5
      %v1092 = vsel %vm1081, %v1089, %v1091
      %v1093 = vrot.slane %v991, 5
      %v1094 = vsel %vm1081, %v1091, %v1093
      %v1095 = vrot.slane %v992, 5
      %v1096 = vsel %vm1081, %v1093, %v1095
      %v1097 = vrot.slane %v993, 5
      %v1098 = vsel %vm1081, %v1095, %v1097
      %v1099 = vrot.slane %v994, 5
      %v1100 = vsel %vm1081, %v1097, %v1099
      %v1101 = vrot.slane %v995, 5
      %v1102 = vsel %vm1081, %v1099, %v1101
      %v1103 = vrot.slane %v996, 5
      %v1104 = vsel %vm1081, %v1101, %v1103
      %v1105 = vrot.slane %v997, 5
      %v1106 = vsel %vm1081, %v1103, %v1105
      %v1107 = vrot.slane %v998, 5
      %v1108 = vsel %vm1081, %v1105, %v1107
      %v1109 = vrot.slane %v999, 5
      %v1110 = vsel %vm1081, %v1107, %v1109
      %v1111 = vrot.slane %v1000, 5
      %v1112 = vsel %vm1081, %v1109, %v1111
      %v1113 = vrot.slane %v1001, 5
      %v1114 = vsel %vm1081, %v1111, %v1113
      %v1115 = vrot.slane %v1002, 5
      %v1116 = vsel %vm1081, %v1113, %v1115
      %v1117 = vrot.slane %v1003, 5
      %v1118 = vsel %vm1081, %v1115, %v1117
      %v1119 = vrot.slane %v1004, 5
      %v1120 = vsel %vm1081, %v1117, %v1119
      %v1121 = vrot.slane %v1005, 5
      %v1122 = vsel %vm1081, %v1119, %v1121
      %v1123 = vrot.slane %v1006, 5
      %v1124 = vsel %vm1081, %v1121, %v1123
      %v1125 = vrot.slane %v1007, 5
      %v1126 = vsel %vm1081, %v1123, %v1125
      %v1127 = vrot.slane %v1008, 5
      %v1128 = vsel %vm1081, %v1125, %v1127
      %v1129 = vrot.slane %v1009, 5
      %v1130 = vsel %vm1081, %v1127, %v1129
      %v1131 = vrot.slane %v1010, 5
      %v1132 = vsel %vm1081, %v1129, %v1131
      %v1133 = vrot.slane %v1011, 5
      %v1134 = vsel %vm1081, %v1131, %v1133
      %v1135 = vrot.slane %v1012, 5
      %v1136 = vsel %vm1081, %v1133, %v1135
      %v1137 = vrot.slane %v1013, 5
      %v1138 = vsel %vm1081, %v1135, %v1137
      %v1139 = vrot.slane %v1014, 5
      %v1140 = vsel %vm1081, %v1137, %v1139
      %v1141 = vrot.slane %v1015, 5
      %v1142 = vsel %vm1081, %v1139, %v1141
      %v1143 = vrot.slane %v1016, 5
      %v1144 = vsel %vm1081, %v1141, %v1143
      %v1145 = vrot.slane %v1017, 5
      %v1146 = vsel %vm1081, %v1143, %v1145
      %v1147 = vrot.slane %v1018, 5
      %v1148 = vsel %vm1081, %v1145, %v1147
      %v1149 = vrot.slane %v1019, 5
      %v1150 = vsel %vm1081, %v1147, %v1149
      %v1151 = vrot.slane %v1020, 5
      %v1152 = vsel %vm1081, %v1149, %v1151
      %v1153 = vrot.slane %v1021, 5
      %v1154 = vsel %vm1081, %v1151, %v1153
      %v1155 = vrot.slane %v1022, 5
      %v1156 = vsel %vm1081, %v1153, %v1155
      %v1157 = vrot.slane %v1023, 5
      %v1158 = vsel %vm1081, %v1155, %v1157
      %v1159 = vrot.slane %v1024, 5
      %v1160 = vsel %vm1081, %v1157, %v1159
      %v1161 = vrot.slane %v1025, 5
      %v1162 = vsel %vm1081, %v1159, %v1161
      %1204 = vst [vmem:[#allocation2 + $0x20] sm:$0xf8] %v1082
      %1205 = vst [vmem:[#allocation2 + $0x30] sm:$0xff] %v1084
      %1206 = vst [vmem:[#allocation2 + $0x40] sm:$0xff] %v1086
      %1207 = vst [vmem:[#allocation2 + $0x50] sm:$0xff] %v1088
      %1208 = vst [vmem:[#allocation2 + $0x60] sm:$0xff] %v1090
      %1209 = vst [vmem:[#allocation2 + $0x70] sm:$0xff] %v1092
      %1210 = vst [vmem:[#allocation2 + $0x80] sm:$0xff] %v1094
      %1211 = vst [vmem:[#allocation2 + $0x90] sm:$0xff] %v1096
      %1212 = vst [vmem:[#allocation2 + $0xa0] sm:$0xff] %v1098
      %1213 = vst [vmem:[#allocation2 + $0xb0] sm:$0xff] %v1100
      %1214 = vst [vmem:[#allocation2 + $0xc0] sm:$0xff] %v1102
      %1215 = vst [vmem:[#allocation2 + $0xd0] sm:$0xff] %v1104
      %1216 = vst [vmem:[#allocation2 + $0xe0] sm:$0xff] %v1106
      %1217 = vst [vmem:[#allocation2 + $0xf0] sm:$0xff] %v1108
      %1218 = vst [vmem:[#allocation2 + $0x100] sm:$0xff] %v1110
      %1219 = vst [vmem:[#allocation2 + $0x110] sm:$0xff] %v1112
      %1220 = vst [vmem:[#allocation2 + $0x120] sm:$0xff] %v1114
      %1221 = vst [vmem:[#allocation2 + $0x130] sm:$0xff] %v1116
      %1222 = vst [vmem:[#allocation2 + $0x140] sm:$0xff] %v1118
      %1223 = vst [vmem:[#allocation2 + $0x150] sm:$0xff] %v1120
      %1224 = vst [vmem:[#allocation2 + $0x160] sm:$0xff] %v1122
      %1225 = vst [vmem:[#allocation2 + $0x170] sm:$0xff] %v1124
      %1226 = vst [vmem:[#allocation2 + $0x180] sm:$0xff] %v1126
      %1227 = vst [vmem:[#allocation2 + $0x190] sm:$0xff] %v1128
      %1228 = vst [vmem:[#allocation2 + $0x1a0] sm:$0xff] %v1130
      %1229 = vst [vmem:[#allocation2 + $0x1b0] sm:$0xff] %v1132
      %1230 = vst [vmem:[#allocation2 + $0x1c0] sm:$0xff] %v1134
      %1231 = vst [vmem:[#allocation2 + $0x1d0] sm:$0xff] %v1136
      %1232 = vst [vmem:[#allocation2 + $0x1e0] sm:$0xff] %v1138
      %1233 = vst [vmem:[#allocation2 + $0x1f0] sm:$0xff] %v1140
      %1234 = vst [vmem:[#allocation2 + $0x200] sm:$0xff] %v1142
      %1235 = vst [vmem:[#allocation2 + $0x210] sm:$0xff] %v1144
      %1236 = vst [vmem:[#allocation2 + $0x220] sm:$0xff] %v1146
      %1237 = vst [vmem:[#allocation2 + $0x230] sm:$0xff] %v1148
      %1238 = vst [vmem:[#allocation2 + $0x240] sm:$0xff] %v1150
      %1239 = vst [vmem:[#allocation2 + $0x250] sm:$0xff] %v1152
      %1240 = vst [vmem:[#allocation2 + $0x260] sm:$0xff] %v1154
      %1241 = vst [vmem:[#allocation2 + $0x270] sm:$0xff] %v1156
      %1242 = vst [vmem:[#allocation2 + $0x280] sm:$0xff] %v1158
      %1243 = vst [vmem:[#allocation2 + $0x290] sm:$0xff] %v1160
      %1244 = vst [vmem:[#allocation2 + $0x2a0] sm:$0x7f] %v1162
      %vm1245 = vcmask 1043456
      %v1246 = vrot.slane %v985, 4
      %v1247 = vrot.slane %v986, 4
      %v1248 = vsel %vm1245, %v1246, %v1247
      %v1249 = vrot.slane %v987, 4
      %v1250 = vsel %vm1245, %v1247, %v1249
      %v1251 = vrot.slane %v988, 4
      %v1252 = vsel %vm1245, %v1249, %v1251
      %v1253 = vrot.slane %v989, 4
      %v1254 = vsel %vm1245, %v1251, %v1253
      %v1255 = vrot.slane %v990, 4
      %v1256 = vsel %vm1245, %v1253, %v1255
      %v1257 = vrot.slane %v991, 4
      %v1258 = vsel %vm1245, %v1255, %v1257
      %v1259 = vrot.slane %v992, 4
      %v1260 = vsel %vm1245, %v1257, %v1259
      %v1261 = vrot.slane %v993, 4
      %v1262 = vsel %vm1245, %v1259, %v1261
      %v1263 = vrot.slane %v994, 4
      %v1264 = vsel %vm1245, %v1261, %v1263
      %v1265 = vrot.slane %v995, 4
      %v1266 = vsel %vm1245, %v1263, %v1265
      %v1267 = vrot.slane %v996, 4
      %v1268 = vsel %vm1245, %v1265, %v1267
      %v1269 = vrot.slane %v997, 4
      %v1270 = vsel %vm1245, %v1267, %v1269
      %v1271 = vrot.slane %v998, 4
      %v1272 = vsel %vm1245, %v1269, %v1271
      %v1273 = vrot.slane %v999, 4
      %v1274 = vsel %vm1245, %v1271, %v1273
      %v1275 = vrot.slane %v1000, 4
      %v1276 = vsel %vm1245, %v1273, %v1275
      %v1277 = vrot.slane %v1001, 4
      %v1278 = vsel %vm1245, %v1275, %v1277
      %v1279 = vrot.slane %v1002, 4
      %v1280 = vsel %vm1245, %v1277, %v1279
      %v1281 = vrot.slane %v1003, 4
      %v1282 = vsel %vm1245, %v1279, %v1281
      %v1283 = vrot.slane %v1004, 4
      %v1284 = vsel %vm1245, %v1281, %v1283
      %v1285 = vrot.slane %v1005, 4
      %v1286 = vsel %vm1245, %v1283, %v1285
      %v1287 = vrot.slane %v1006, 4
      %v1288 = vsel %vm1245, %v1285, %v1287
      %v1289 = vrot.slane %v1007, 4
      %v1290 = vsel %vm1245, %v1287, %v1289
      %v1291 = vrot.slane %v1008, 4
      %v1292 = vsel %vm1245, %v1289, %v1291
      %v1293 = vrot.slane %v1009, 4
      %v1294 = vsel %vm1245, %v1291, %v1293
      %v1295 = vrot.slane %v1010, 4
      %v1296 = vsel %vm1245, %v1293, %v1295
      %v1297 = vrot.slane %v1011, 4
      %v1298 = vsel %vm1245, %v1295, %v1297
      %v1299 = vrot.slane %v1012, 4
      %v1300 = vsel %vm1245, %v1297, %v1299
      %v1301 = vrot.slane %v1013, 4
      %v1302 = vsel %vm1245, %v1299, %v1301
      %v1303 = vrot.slane %v1014, 4
      %v1304 = vsel %vm1245, %v1301, %v1303
      %v1305 = vrot.slane %v1015, 4
      %v1306 = vsel %vm1245, %v1303, %v1305
      %v1307 = vrot.slane %v1016, 4
      %v1308 = vsel %vm1245, %v1305, %v1307
      %v1309 = vrot.slane %v1017, 4
      %v1310 = vsel %vm1245, %v1307, %v1309
      %v1311 = vrot.slane %v1018, 4
      %v1312 = vsel %vm1245, %v1309, %v1311
      %v1313 = vrot.slane %v1019, 4
      %v1314 = vsel %vm1245, %v1311, %v1313
      %v1315 = vrot.slane %v1020, 4
      %v1316 = vsel %vm1245, %v1313, %v1315
      %v1317 = vrot.slane %v1021, 4
      %v1318 = vsel %vm1245, %v1315, %v1317
      %v1319 = vrot.slane %v1022, 4
      %v1320 = vsel %vm1245, %v1317, %v1319
      %v1321 = vrot.slane %v1023, 4
      %v1322 = vsel %vm1245, %v1319, %v1321
      %v1323 = vrot.slane %v1024, 4
      %v1324 = vsel %vm1245, %v1321, %v1323
      %v1325 = vrot.slane %v1025, 4
      %v1326 = vsel %vm1245, %v1323, %v1325
      %1368 = vst [vmem:[#allocation2 + $0x28] sm:$0xf0] %v1246
      %1369 = vst [vmem:[#allocation2 + $0x38] sm:$0xff] %v1248
      %1370 = vst [vmem:[#allocation2 + $0x48] sm:$0xff] %v1250
      %1371 = vst [vmem:[#allocation2 + $0x58] sm:$0xff] %v1252
      %1372 = vst [vmem:[#allocation2 + $0x68] sm:$0xff] %v1254
      %1373 = vst [vmem:[#allocation2 + $0x78] sm:$0xff] %v1256
      %1374 = vst [vmem:[#allocation2 + $0x88] sm:$0xff] %v1258
      %1375 = vst [vmem:[#allocation2 + $0x98] sm:$0xff] %v1260
      %1376 = vst [vmem:[#allocation2 + $0xa8] sm:$0xff] %v1262
      %1377 = vst [vmem:[#allocation2 + $0xb8] sm:$0xff] %v1264
      %1378 = vst [vmem:[#allocation2 + $0xc8] sm:$0xff] %v1266
      %1379 = vst [vmem:[#allocation2 + $0xd8] sm:$0xff] %v1268
      %1380 = vst [vmem:[#allocation2 + $0xe8] sm:$0xff] %v1270
      %1381 = vst [vmem:[#allocation2 + $0xf8] sm:$0xff] %v1272
      %1382 = vst [vmem:[#allocation2 + $0x108] sm:$0xff] %v1274
      %1383 = vst [vmem:[#allocation2 + $0x118] sm:$0xff] %v1276
      %1384 = vst [vmem:[#allocation2 + $0x128] sm:$0xff] %v1278
      %1385 = vst [vmem:[#allocation2 + $0x138] sm:$0xff] %v1280
      %1386 = vst [vmem:[#allocation2 + $0x148] sm:$0xff] %v1282
      %1387 = vst [vmem:[#allocation2 + $0x158] sm:$0xff] %v1284
      %1388 = vst [vmem:[#allocation2 + $0x168] sm:$0xff] %v1286
      %1389 = vst [vmem:[#allocation2 + $0x178] sm:$0xff] %v1288
      %1390 = vst [vmem:[#allocation2 + $0x188] sm:$0xff] %v1290
      %1391 = vst [vmem:[#allocation2 + $0x198] sm:$0xff] %v1292
      %1392 = vst [vmem:[#allocation2 + $0x1a8] sm:$0xff] %v1294
      %1393 = vst [vmem:[#allocation2 + $0x1b8] sm:$0xff] %v1296
      %1394 = vst [vmem:[#allocation2 + $0x1c8] sm:$0xff] %v1298
      %1395 = vst [vmem:[#allocation2 + $0x1d8] sm:$0xff] %v1300
      %1396 = vst [vmem:[#allocation2 + $0x1e8] sm:$0xff] %v1302
      %1397 = vst [vmem:[#allocation2 + $0x1f8] sm:$0xff] %v1304
      %1398 = vst [vmem:[#allocation2 + $0x208] sm:$0xff] %v1306
      %1399 = vst [vmem:[#allocation2 + $0x218] sm:$0xff] %v1308
      %1400 = vst [vmem:[#allocation2 + $0x228] sm:$0xff] %v1310
      %1401 = vst [vmem:[#allocation2 + $0x238] sm:$0xff] %v1312
      %1402 = vst [vmem:[#allocation2 + $0x248] sm:$0xff] %v1314
      %1403 = vst [vmem:[#allocation2 + $0x258] sm:$0xff] %v1316
      %1404 = vst [vmem:[#allocation2 + $0x268] sm:$0xff] %v1318
      %1405 = vst [vmem:[#allocation2 + $0x278] sm:$0xff] %v1320
      %1406 = vst [vmem:[#allocation2 + $0x288] sm:$0xff] %v1322
      %1407 = vst [vmem:[#allocation2 + $0x298] sm:$0xff] %v1324
      %1408 = vst [vmem:[#allocation2 + $0x2a8] sm:$0xff] %v1326
      %v1409 = vld [vmem:[#allocation2] sm:$0xfc]
      %v1410 = vld [vmem:[#allocation2 + $0x8] sm:$0xfc]
      %v1411 = vld [vmem:[#allocation2 + $0x10] sm:$0xff]
      %v1412 = vld [vmem:[#allocation2 + $0x18] sm:$0xff]
      %v1413 = vld [vmem:[#allocation2 + $0x20] sm:$0xff]
      %v1414 = vld [vmem:[#allocation2 + $0x28] sm:$0xff]
      %v1415 = vld [vmem:[#allocation2 + $0x30] sm:$0xff]
      %v1416 = vld [vmem:[#allocation2 + $0x38] sm:$0xff]
      %v1417 = vld [vmem:[#allocation2 + $0x40] sm:$0xff]
      %v1418 = vld [vmem:[#allocation2 + $0x48] sm:$0xff]
      %v1419 = vld [vmem:[#allocation2 + $0x50] sm:$0xff]
      %v1420 = vld [vmem:[#allocation2 + $0x58] sm:$0xff]
      %v1421 = vld [vmem:[#allocation2 + $0x60] sm:$0xff]
      %v1422 = vld [vmem:[#allocation2 + $0x68] sm:$0xff]
      %v1423 = vld [vmem:[#allocation2 + $0x70] sm:$0xff]
      %v1424 = vld [vmem:[#allocation2 + $0x78] sm:$0xff]
      %v1425 = vld [vmem:[#allocation2 + $0x80] sm:$0xff]
      %v1426 = vld [vmem:[#allocation2 + $0x88] sm:$0xff]
      %v1427 = vld [vmem:[#allocation2 + $0x90] sm:$0xff]
      %v1428 = vld [vmem:[#allocation2 + $0x98] sm:$0xff]
      %v1429 = vld [vmem:[#allocation2 + $0xa0] sm:$0xff]
      %v1430 = vld [vmem:[#allocation2 + $0xa8] sm:$0xff]
      %v1431 = vld [vmem:[#allocation2 + $0xb0] sm:$0xff]
      %v1432 = vld [vmem:[#allocation2 + $0xb8] sm:$0xff]
      %v1433 = vld [vmem:[#allocation2 + $0xc0] sm:$0xff]
      %v1434 = vld [vmem:[#allocation2 + $0xc8] sm:$0xff]
      %v1435 = vld [vmem:[#allocation2 + $0xd0] sm:$0xff]
      %v1436 = vld [vmem:[#allocation2 + $0xd8] sm:$0xff]
      %v1437 = vld [vmem:[#allocation2 + $0xe0] sm:$0xff]
      %v1438 = vld [vmem:[#allocation2 + $0xe8] sm:$0xff]
      %v1439 = vld [vmem:[#allocation2 + $0xf0] sm:$0xff]
      %v1440 = vld [vmem:[#allocation2 + $0xf8] sm:$0xff]
      %v1441 = vld [vmem:[#allocation2 + $0x100] sm:$0xff]
      %v1442 = vld [vmem:[#allocation2 + $0x108] sm:$0xff]
      %v1443 = vld [vmem:[#allocation2 + $0x110] sm:$0xff]
      %v1444 = vld [vmem:[#allocation2 + $0x118] sm:$0xff]
      %v1445 = vld [vmem:[#allocation2 + $0x120] sm:$0xff]
      %v1446 = vld [vmem:[#allocation2 + $0x128] sm:$0xff]
      %v1447 = vld [vmem:[#allocation2 + $0x130] sm:$0xff]
      %v1448 = vld [vmem:[#allocation2 + $0x138] sm:$0xff]
      %v1449 = vld [vmem:[#allocation2 + $0x140] sm:$0xff]
      %v1450 = vld [vmem:[#allocation2 + $0x148] sm:$0xff]
      %v1451 = vld [vmem:[#allocation2 + $0x150] sm:$0xff]
      %v1452 = vld [vmem:[#allocation2 + $0x158] sm:$0xff]
      %v1453 = vld [vmem:[#allocation2 + $0x160] sm:$0xff]
      %v1454 = vld [vmem:[#allocation2 + $0x168] sm:$0xff]
      %v1455 = vld [vmem:[#allocation2 + $0x170] sm:$0xff]
      %v1456 = vld [vmem:[#allocation2 + $0x178] sm:$0xff]
      %v1457 = vld [vmem:[#allocation2 + $0x180] sm:$0xff]
      %v1458 = vld [vmem:[#allocation2 + $0x188] sm:$0xff]
      %v1459 = vld [vmem:[#allocation2 + $0x190] sm:$0xff]
      %v1460 = vld [vmem:[#allocation2 + $0x198] sm:$0xff]
      %v1461 = vld [vmem:[#allocation2 + $0x1a0] sm:$0xff]
      %v1462 = vld [vmem:[#allocation2 + $0x1a8] sm:$0xff]
      %v1463 = vld [vmem:[#allocation2 + $0x1b0] sm:$0xff]
      %v1464 = vld [vmem:[#allocation2 + $0x1b8] sm:$0xff]
      %v1465 = vld [vmem:[#allocation2 + $0x1c0] sm:$0xff]
      %v1466 = vld [vmem:[#allocation2 + $0x1c8] sm:$0xff]
      %v1467 = vld [vmem:[#allocation2 + $0x1d0] sm:$0xff]
      %v1468 = vld [vmem:[#allocation2 + $0x1d8] sm:$0xff]
      %v1469 = vld [vmem:[#allocation2 + $0x1e0] sm:$0xff]
      %v1470 = vld [vmem:[#allocation2 + $0x1e8] sm:$0xff]
      %v1471 = vld [vmem:[#allocation2 + $0x1f0] sm:$0xff]
      %v1472 = vld [vmem:[#allocation2 + $0x1f8] sm:$0xff]
      %v1473 = vld [vmem:[#allocation2 + $0x200] sm:$0xff]
      %v1474 = vld [vmem:[#allocation2 + $0x208] sm:$0xff]
      %v1475 = vld [vmem:[#allocation2 + $0x210] sm:$0xff]
      %v1476 = vld [vmem:[#allocation2 + $0x218] sm:$0xff]
      %v1477 = vld [vmem:[#allocation2 + $0x220] sm:$0xff]
      %v1478 = vld [vmem:[#allocation2 + $0x228] sm:$0xff]
      %v1479 = vld [vmem:[#allocation2 + $0x230] sm:$0xff]
      %v1480 = vld [vmem:[#allocation2 + $0x238] sm:$0xff]
      %v1481 = vld [vmem:[#allocation2 + $0x240] sm:$0xff]
      %v1482 = vld [vmem:[#allocation2 + $0x248] sm:$0xff]
      %v1483 = vld [vmem:[#allocation2 + $0x250] sm:$0xff]
      %v1484 = vld [vmem:[#allocation2 + $0x258] sm:$0xff]
      %v1485 = vld [vmem:[#allocation2 + $0x260] sm:$0xff]
      %v1486 = vld [vmem:[#allocation2 + $0x268] sm:$0xff]
      %v1487 = vld [vmem:[#allocation2 + $0x270] sm:$0xff]
      %v1488 = vld [vmem:[#allocation2 + $0x278] sm:$0xff]
      %v1489 = vld [vmem:[#allocation2 + $0x280] sm:$0x3f]
      %v1490 = vld [vmem:[#allocation2 + $0x288] sm:$0x3f]
      %v1491 = vld [vmem:[%s2] sm:$0xff]
      %v1492 = vld [vmem:[%s2 + $0x8] sm:$0xff]
      %v1493 = vld [vmem:[%s2 + $0x10] sm:$0xff]
      %v1494 = vld [vmem:[%s2 + $0x18] sm:$0xff]
      %v1495 = vld [vmem:[%s2 + $0x20] sm:$0xff]
      %v1496 = vld [vmem:[%s2 + $0x28] sm:$0xff]
      %v1497 = vld [vmem:[%s2 + $0x30] sm:$0xff]
      %v1498 = vld [vmem:[%s2 + $0x38] sm:$0xff]
      %v1499 = vld [vmem:[%s2 + $0x40] sm:$0xff]
      %v1500 = vld [vmem:[%s2 + $0x48] sm:$0xff]
      %v1501 = vld [vmem:[%s2 + $0x50] sm:$0xff]
      %v1502 = vld [vmem:[%s2 + $0x58] sm:$0xff]
      %v1503 = vld [vmem:[%s2 + $0x60] sm:$0xff]
      %v1504 = vld [vmem:[%s2 + $0x68] sm:$0xff]
      %v1505 = vld [vmem:[%s2 + $0x70] sm:$0xff]
      %v1506 = vld [vmem:[%s2 + $0x78] sm:$0xff]
      %v1507 = vld [vmem:[%s2 + $0x80] sm:$0xff]
      %v1508 = vld [vmem:[%s2 + $0x88] sm:$0xff]
      %v1509 = vld [vmem:[%s2 + $0x90] sm:$0xff]
      %v1510 = vld [vmem:[%s2 + $0x98] sm:$0xff]
      %v1511 = vld [vmem:[%s2 + $0xa0] sm:$0xff]
      %v1512 = vld [vmem:[%s2 + $0xa8] sm:$0xff]
      %v1513 = vld [vmem:[%s2 + $0xb0] sm:$0xff]
      %v1514 = vld [vmem:[%s2 + $0xb8] sm:$0xff]
      %v1515 = vld [vmem:[%s2 + $0xc0] sm:$0xff]
      %v1516 = vld [vmem:[%s2 + $0xc8] sm:$0xff]
      %v1517 = vld [vmem:[%s2 + $0xd0] sm:$0xff]
      %v1518 = vld [vmem:[%s2 + $0xd8] sm:$0xff]
      %v1519 = vld [vmem:[%s2 + $0xe0] sm:$0xff]
      %v1520 = vld [vmem:[%s2 + $0xe8] sm:$0xff]
      %v1521 = vld [vmem:[%s2 + $0xf0] sm:$0xff]
      %v1522 = vld [vmem:[%s2 + $0xf8] sm:$0xff]
      %v1523 = vld [vmem:[#allocation2 + $0x20] sm:$0xf0]
      %v1524 = vld [vmem:[#allocation2 + $0x28] sm:$0xf0]
      %v1525 = vld [vmem:[#allocation2 + $0x280] sm:$0xff]
      %v1526 = vld [vmem:[#allocation2 + $0x288] sm:$0xff]
      %v1527 = vld [vmem:[#allocation2 + $0x290] sm:$0xff]
      %v1528 = vld [vmem:[#allocation2 + $0x298] sm:$0xff]
      %v1529 = vld [vmem:[#allocation2 + $0x2a0] sm:$0xff]
      %v1530 = vld [vmem:[#allocation2 + $0x2a8] sm:$0xff]
      %s1531 = scalar_lea.vmem %s2, 256
      %v1532 = vld [vmem:[%s1531] sm:$0xff]
      %v1533 = vld [vmem:[%s1531 + $0x8] sm:$0xff]
      %v1534 = vld [vmem:[%s1531 + $0x10] sm:$0xff]
      %v1535 = vld [vmem:[%s1531 + $0x18] sm:$0xff]
      %v1536 = vld [vmem:[%s1531 + $0x20] sm:$0xff]
      %v1537 = vld [vmem:[%s1531 + $0x28] sm:$0xff]
      %v1538 = vld [vmem:[%s1531 + $0x30] sm:$0xff]
      %v1539 = vld [vmem:[%s1531 + $0x38] sm:$0xff]
      %v1540 = vld [vmem:[%s1531 + $0x40] sm:$0xff]
      %v1541 = vld [vmem:[%s1531 + $0x48] sm:$0xff]
      %v1542 = vld [vmem:[%s1531 + $0x50] sm:$0xff]
      %v1543 = vld [vmem:[%s1531 + $0x58] sm:$0xff]
      %v1544 = vld [vmem:[%s1531 + $0x60] sm:$0xff]
      %v1545 = vld [vmem:[%s1531 + $0x68] sm:$0xff]
      %v1546 = vld [vmem:[%s1531 + $0x70] sm:$0xff]
      %v1547 = vld [vmem:[%s1531 + $0x78] sm:$0xff]
      %v1548 = vld [vmem:[%s1531 + $0x80] sm:$0xff]
      %v1549 = vld [vmem:[%s1531 + $0x88] sm:$0xff]
      %v1550 = vld [vmem:[%s1531 + $0x90] sm:$0xff]
      %v1551 = vld [vmem:[%s1531 + $0x98] sm:$0xff]
      %v1552 = vld [vmem:[%s1531 + $0xa0] sm:$0xff]
      %v1553 = vld [vmem:[%s1531 + $0xa8] sm:$0xff]
      %v1554 = vld [vmem:[%s1531 + $0xb0] sm:$0xff]
      %v1555 = vld [vmem:[%s1531 + $0xb8] sm:$0xff]
      %v1556 = vld [vmem:[%s1531 + $0xc0] sm:$0xff]
      %v1557 = vld [vmem:[%s1531 + $0xc8] sm:$0xff]
      %v1558 = vld [vmem:[%s1531 + $0xd0] sm:$0xff]
      %v1559 = vld [vmem:[%s1531 + $0xd8] sm:$0xff]
      %v1560 = vld [vmem:[%s1531 + $0xe0] sm:$0xff]
      %v1561 = vld [vmem:[%s1531 + $0xe8] sm:$0xff]
      %v1562 = vld [vmem:[%s1531 + $0xf0] sm:$0xff]
      %v1563 = vld [vmem:[%s1531 + $0xf8] sm:$0xff]
      %v1646 = vrot.slane %v1523, 4
      %v1647 = vrot.slane %v1415, 4
      %v1648 = vsel %vm1245, %v1646, %v1647
      %v1649 = vrot.slane %v1524, 4
      %v1650 = vrot.slane %v1416, 4
      %v1651 = vsel %vm1245, %v1649, %v1650
      %v1652 = vrot.slane %v1417, 4
      %v1653 = vsel %vm1245, %v1647, %v1652
      %v1654 = vrot.slane %v1418, 4
      %v1655 = vsel %vm1245, %v1650, %v1654
      %v1656 = vrot.slane %v1419, 4
      %v1657 = vsel %vm1245, %v1652, %v1656
      %v1658 = vrot.slane %v1420, 4
      %v1659 = vsel %vm1245, %v1654, %v1658
      %v1660 = vrot.slane %v1421, 4
      %v1661 = vsel %vm1245, %v1656, %v1660
      %v1662 = vrot.slane %v1422, 4
      %v1663 = vsel %vm1245, %v1658, %v1662
      %v1664 = vrot.slane %v1423, 4
      %v1665 = vsel %vm1245, %v1660, %v1664
      %v1666 = vrot.slane %v1424, 4
      %v1667 = vsel %vm1245, %v1662, %v1666
      %v1668 = vrot.slane %v1425, 4
      %v1669 = vsel %vm1245, %v1664, %v1668
      %v1670 = vrot.slane %v1426, 4
      %v1671 = vsel %vm1245, %v1666, %v1670
      %v1672 = vrot.slane %v1427, 4
      %v1673 = vsel %vm1245, %v1668, %v1672
      %v1674 = vrot.slane %v1428, 4
      %v1675 = vsel %vm1245, %v1670, %v1674
      %v1676 = vrot.slane %v1429, 4
      %v1677 = vsel %vm1245, %v1672, %v1676
      %v1678 = vrot.slane %v1430, 4
      %v1679 = vsel %vm1245, %v1674, %v1678
      %v1680 = vrot.slane %v1431, 4
      %v1681 = vsel %vm1245, %v1676, %v1680
      %v1682 = vrot.slane %v1432, 4
      %v1683 = vsel %vm1245, %v1678, %v1682
      %v1684 = vrot.slane %v1433, 4
      %v1685 = vsel %vm1245, %v1680, %v1684
      %v1686 = vrot.slane %v1434, 4
      %v1687 = vsel %vm1245, %v1682, %v1686
      %v1688 = vrot.slane %v1435, 4
      %v1689 = vsel %vm1245, %v1684, %v1688
      %v1690 = vrot.slane %v1436, 4
      %v1691 = vsel %vm1245, %v1686, %v1690
      %v1692 = vrot.slane %v1437, 4
      %v1693 = vsel %vm1245, %v1688, %v1692
      %v1694 = vrot.slane %v1438, 4
      %v1695 = vsel %vm1245, %v1690, %v1694
      %v1696 = vrot.slane %v1439, 4
      %v1697 = vsel %vm1245, %v1692, %v1696
      %v1698 = vrot.slane %v1440, 4
      %v1699 = vsel %vm1245, %v1694, %v1698
      %v1700 = vrot.slane %v1441, 4
      %v1701 = vsel %vm1245, %v1696, %v1700
      %v1702 = vrot.slane %v1442, 4
      %v1703 = vsel %vm1245, %v1698, %v1702
      %v1704 = vrot.slane %v1443, 4
      %v1705 = vsel %vm1245, %v1700, %v1704
      %v1706 = vrot.slane %v1444, 4
      %v1707 = vsel %vm1245, %v1702, %v1706
      %v1708 = vrot.slane %v1445, 4
      %v1709 = vsel %vm1245, %v1704, %v1708
      %v1710 = vrot.slane %v1446, 4
      %v1711 = vsel %vm1245, %v1706, %v1710
      %v1712 = vrot.slane %v1447, 4
      %v1713 = vsel %vm1245, %v1708, %v1712
      %v1714 = vrot.slane %v1448, 4
      %v1715 = vsel %vm1245, %v1710, %v1714
      %v1716 = vrot.slane %v1449, 4
      %v1717 = vsel %vm1245, %v1712, %v1716
      %v1718 = vrot.slane %v1450, 4
      %v1719 = vsel %vm1245, %v1714, %v1718
      %v1720 = vrot.slane %v1451, 4
      %v1721 = vsel %vm1245, %v1716, %v1720
      %v1722 = vrot.slane %v1452, 4
      %v1723 = vsel %vm1245, %v1718, %v1722
      %v1724 = vrot.slane %v1453, 4
      %v1725 = vsel %vm1245, %v1720, %v1724
      %v1726 = vrot.slane %v1454, 4
      %v1727 = vsel %vm1245, %v1722, %v1726
      %v1728 = vrot.slane %v1455, 4
      %v1729 = vsel %vm1245, %v1724, %v1728
      %v1730 = vrot.slane %v1456, 4
      %v1731 = vsel %vm1245, %v1726, %v1730
      %v1732 = vrot.slane %v1457, 4
      %v1733 = vsel %vm1245, %v1728, %v1732
      %v1734 = vrot.slane %v1458, 4
      %v1735 = vsel %vm1245, %v1730, %v1734
      %v1736 = vrot.slane %v1459, 4
      %v1737 = vsel %vm1245, %v1732, %v1736
      %v1738 = vrot.slane %v1460, 4
      %v1739 = vsel %vm1245, %v1734, %v1738
      %v1740 = vrot.slane %v1461, 4
      %v1741 = vsel %vm1245, %v1736, %v1740
      %v1742 = vrot.slane %v1462, 4
      %v1743 = vsel %vm1245, %v1738, %v1742
      %v1744 = vrot.slane %v1463, 4
      %v1745 = vsel %vm1245, %v1740, %v1744
      %v1746 = vrot.slane %v1464, 4
      %v1747 = vsel %vm1245, %v1742, %v1746
      %v1748 = vrot.slane %v1465, 4
      %v1749 = vsel %vm1245, %v1744, %v1748
      %v1750 = vrot.slane %v1466, 4
      %v1751 = vsel %vm1245, %v1746, %v1750
      %v1752 = vrot.slane %v1467, 4
      %v1753 = vsel %vm1245, %v1748, %v1752
      %v1754 = vrot.slane %v1468, 4
      %v1755 = vsel %vm1245, %v1750, %v1754
      %v1756 = vrot.slane %v1469, 4
      %v1757 = vsel %vm1245, %v1752, %v1756
      %v1758 = vrot.slane %v1470, 4
      %v1759 = vsel %vm1245, %v1754, %v1758
      %v1760 = vrot.slane %v1471, 4
      %v1761 = vsel %vm1245, %v1756, %v1760
      %v1762 = vrot.slane %v1472, 4
      %v1763 = vsel %vm1245, %v1758, %v1762
      %v1764 = vrot.slane %v1473, 4
      %v1765 = vsel %vm1245, %v1760, %v1764
      %v1766 = vrot.slane %v1474, 4
      %v1767 = vsel %vm1245, %v1762, %v1766
      %v1768 = vrot.slane %v1475, 4
      %v1769 = vsel %vm1245, %v1764, %v1768
      %v1770 = vrot.slane %v1476, 4
      %v1771 = vsel %vm1245, %v1766, %v1770
      %v1772 = vrot.slane %v1477, 4
      %v1773 = vsel %vm1245, %v1768, %v1772
      %v1774 = vrot.slane %v1478, 4
      %v1775 = vsel %vm1245, %v1770, %v1774
      %v1776 = vrot.slane %v1479, 4
      %v1777 = vsel %vm1245, %v1772, %v1776
      %v1778 = vrot.slane %v1480, 4
      %v1779 = vsel %vm1245, %v1774, %v1778
      %v1780 = vrot.slane %v1481, 4
      %v1781 = vsel %vm1245, %v1776, %v1780
      %v1782 = vrot.slane %v1482, 4
      %v1783 = vsel %vm1245, %v1778, %v1782
      %v1784 = vrot.slane %v1483, 4
      %v1785 = vsel %vm1245, %v1780, %v1784
      %v1786 = vrot.slane %v1484, 4
      %v1787 = vsel %vm1245, %v1782, %v1786
      %v1788 = vrot.slane %v1485, 4
      %v1789 = vsel %vm1245, %v1784, %v1788
      %v1790 = vrot.slane %v1486, 4
      %v1791 = vsel %vm1245, %v1786, %v1790
      %v1792 = vrot.slane %v1487, 4
      %v1793 = vsel %vm1245, %v1788, %v1792
      %v1794 = vrot.slane %v1488, 4
      %v1795 = vsel %vm1245, %v1790, %v1794
      %v1796 = vrot.slane %v1525, 4
      %v1797 = vsel %vm1245, %v1792, %v1796
      %v1798 = vrot.slane %v1526, 4
      %v1799 = vsel %vm1245, %v1794, %v1798
      %v1800 = vrot.slane %v1527, 4
      %v1801 = vsel %vm1245, %v1796, %v1800
      %v1802 = vrot.slane %v1528, 4
      %v1803 = vsel %vm1245, %v1798, %v1802
      %v1804 = vrot.slane %v1529, 4
      %v1805 = vsel %vm1245, %v1800, %v1804
      %v1806 = vrot.slane %v1530, 4
      %v1807 = vsel %vm1245, %v1802, %v1806
      %1890 = vmatprep.subr.mxu0 0.0
      %1891 = vmatpush1.msra.mxu0 %v1547
      %1892 = vmatprep.subr.mxu0 0.0
      %1893 = vmatpush1.msra.mxu0 %v1546
      %1894 = vmatprep.subr.mxu0 0.0
      %1895 = vmatpush1.msra.mxu0 %v1545
      %1896 = vmatprep.subr.mxu0 0.0
      %1897 = vmatpush1.msra.mxu0 %v1544
      %1898 = vmatprep.subr.mxu0 0.0
      %1899 = vmatpush1.msra.mxu0 %v1543
      %1900 = vmatprep.subr.mxu0 0.0
      %1901 = vmatpush1.msra.mxu0 %v1542
      %1902 = vmatprep.subr.mxu0 0.0
      %1903 = vmatpush1.msra.mxu0 %v1541
      %1904 = vmatprep.subr.mxu0 0.0
      %1905 = vmatpush1.msra.mxu0 %v1540
      %1906 = vmatprep.subr.mxu0 0.0
      %1907 = vmatpush1.msra.mxu0 %v1539
      %1908 = vmatprep.subr.mxu0 0.0
      %1909 = vmatpush1.msra.mxu0 %v1538
      %1910 = vmatprep.subr.mxu0 0.0
      %1911 = vmatpush1.msra.mxu0 %v1537
      %1912 = vmatprep.subr.mxu0 0.0
      %1913 = vmatpush1.msra.mxu0 %v1536
      %1914 = vmatprep.subr.mxu0 0.0
      %1915 = vmatpush1.msra.mxu0 %v1535
      %1916 = vmatprep.subr.mxu0 0.0
      %1917 = vmatpush1.msra.mxu0 %v1534
      %1918 = vmatprep.subr.mxu0 0.0
      %1919 = vmatpush1.msra.mxu0 %v1533
      %1920 = vmatprep.subr.mxu0 0.0
      %1921 = vmatpush1.msra.mxu0 %v1532
      %1922 = vmatprep.subr.mxu0 0.0
      %1923 = vmatpush2.msra.mxu0 %v1563
      %1924 = vmatprep.subr.mxu0 0.0
      %1925 = vmatpush2.msra.mxu0 %v1562
      %1926 = vmatprep.subr.mxu0 0.0
      %1927 = vmatpush2.msra.mxu0 %v1561
      %1928 = vmatprep.subr.mxu0 0.0
      %1929 = vmatpush2.msra.mxu0 %v1560
      %1930 = vmatprep.subr.mxu0 0.0
      %1931 = vmatpush2.msra.mxu0 %v1559
      %1932 = vmatprep.subr.mxu0 0.0
      %1933 = vmatpush2.msra.mxu0 %v1558
      %1934 = vmatprep.subr.mxu0 0.0
      %1935 = vmatpush2.msra.mxu0 %v1557
      %1936 = vmatprep.subr.mxu0 0.0
      %1937 = vmatpush2.msra.mxu0 %v1556
      %1938 = vmatprep.subr.mxu0 0.0
      %1939 = vmatpush2.msra.mxu0 %v1555
      %1940 = vmatprep.subr.mxu0 0.0
      %1941 = vmatpush2.msra.mxu0 %v1554
      %1942 = vmatprep.subr.mxu0 0.0
      %1943 = vmatpush2.msra.mxu0 %v1553
      %1944 = vmatprep.subr.mxu0 0.0
      %1945 = vmatpush2.msra.mxu0 %v1552
      %1946 = vmatprep.subr.mxu0 0.0
      %1947 = vmatpush2.msra.mxu0 %v1551
      %1948 = vmatprep.subr.mxu0 0.0
      %1949 = vmatpush2.msra.mxu0 %v1550
      %1950 = vmatprep.subr.mxu0 0.0
      %1951 = vmatpush2.msra.mxu0 %v1549
      %1952 = vmatprep.subr.mxu0 0.0
      %1953 = vmatpush2.msra.mxu0 %v1548
      %1954 = vmatprep.mubr.f32.mxu0 %v1651
      %1955 = vmatmul.mubr.f32.gmra.mxu0 %v1648
      %v1956 = vpop.f32.mrf.mxu0
      %v1957 = vadd.f32 0.0, %v1956
      %v1958 = vpop.f32.mrf.mxu0
      %1959 = vmatprep.mubr.f32.mxu0 %v1655
      %1960 = vmatmul.mubr.f32.gmra.mxu0 %v1653
      %v1961 = vpop.f32.mrf.mxu0
      %v1962 = vadd.f32 0.0, %v1961
      %v1963 = vpop.f32.mrf.mxu0
      %1964 = vmatprep.mubr.f32.mxu0 %v1659
      %1965 = vmatmul.mubr.f32.gmra.mxu0 %v1657
      %v1966 = vpop.f32.mrf.mxu0
      %v1967 = vadd.f32 0.0, %v1966
      %v1968 = vpop.f32.mrf.mxu0
      %1969 = vmatprep.mubr.f32.mxu0 %v1663
      %1970 = vmatmul.mubr.f32.gmra.mxu0 %v1661
      %v1971 = vpop.f32.mrf.mxu0
      %v1972 = vadd.f32 0.0, %v1971
      %v1973 = vpop.f32.mrf.mxu0
      %1974 = vmatprep.mubr.f32.mxu0 %v1667
      %1975 = vmatmul.mubr.f32.gmra.mxu0 %v1665
      %v1976 = vpop.f32.mrf.mxu0
      %v1977 = vadd.f32 0.0, %v1976
      %v1978 = vpop.f32.mrf.mxu0
      %1979 = vmatprep.mubr.f32.mxu0 %v1671
      %1980 = vmatmul.mubr.f32.gmra.mxu0 %v1669
      %v1981 = vpop.f32.mrf.mxu0
      %v1982 = vadd.f32 0.0, %v1981
      %v1983 = vpop.f32.mrf.mxu0
      %1984 = vmatprep.mubr.f32.mxu0 %v1675
      %1985 = vmatmul.mubr.f32.gmra.mxu0 %v1673
      %v1986 = vpop.f32.mrf.mxu0
      %v1987 = vadd.f32 0.0, %v1986
      %v1988 = vpop.f32.mrf.mxu0
      %1989 = vmatprep.mubr.f32.mxu0 %v1679
      %1990 = vmatmul.mubr.f32.gmra.mxu0 %v1677
      %v1991 = vpop.f32.mrf.mxu0
      %v1992 = vadd.f32 0.0, %v1991
      %v1993 = vpop.f32.mrf.mxu0
      %1994 = vmatprep.mubr.f32.mxu0 %v1683
      %1995 = vmatmul.mubr.f32.gmra.mxu0 %v1681
      %v1996 = vpop.f32.mrf.mxu0
      %v1997 = vadd.f32 0.0, %v1996
      %v1998 = vpop.f32.mrf.mxu0
      %1999 = vmatprep.mubr.f32.mxu0 %v1687
      %2000 = vmatmul.mubr.f32.gmra.mxu0 %v1685
      %v2001 = vpop.f32.mrf.mxu0
      %v2002 = vadd.f32 0.0, %v2001
      %v2003 = vpop.f32.mrf.mxu0
      %2004 = vmatprep.mubr.f32.mxu0 %v1691
      %2005 = vmatmul.mubr.f32.gmra.mxu0 %v1689
      %v2006 = vpop.f32.mrf.mxu0
      %v2007 = vadd.f32 0.0, %v2006
      %v2008 = vpop.f32.mrf.mxu0
      %2009 = vmatprep.mubr.f32.mxu0 %v1695
      %2010 = vmatmul.mubr.f32.gmra.mxu0 %v1693
      %v2011 = vpop.f32.mrf.mxu0
      %v2012 = vadd.f32 0.0, %v2011
      %v2013 = vpop.f32.mrf.mxu0
      %2014 = vmatprep.mubr.f32.mxu0 %v1699
      %2015 = vmatmul.mubr.f32.gmra.mxu0 %v1697
      %v2016 = vpop.f32.mrf.mxu0
      %v2017 = vadd.f32 0.0, %v2016
      %v2018 = vpop.f32.mrf.mxu0
      %2019 = vmatprep.mubr.f32.mxu0 %v1703
      %2020 = vmatmul.mubr.f32.gmra.mxu0 %v1701
      %v2021 = vpop.f32.mrf.mxu0
      %v2022 = vadd.f32 0.0, %v2021
      %v2023 = vpop.f32.mrf.mxu0
      %2024 = vmatprep.mubr.f32.mxu0 %v1707
      %2025 = vmatmul.mubr.f32.gmra.mxu0 %v1705
      %v2026 = vpop.f32.mrf.mxu0
      %v2027 = vadd.f32 0.0, %v2026
      %v2028 = vpop.f32.mrf.mxu0
      %2029 = vmatprep.mubr.f32.mxu0 %v1711
      %2030 = vmatmul.mubr.f32.gmra.mxu0 %v1709
      %v2031 = vpop.f32.mrf.mxu0
      %v2032 = vadd.f32 0.0, %v2031
      %v2033 = vpop.f32.mrf.mxu0
      %2034 = vmatprep.mubr.f32.mxu0 %v1715
      %2035 = vmatmul.mubr.f32.gmra.mxu0 %v1713
      %v2036 = vpop.f32.mrf.mxu0
      %v2037 = vadd.f32 0.0, %v2036
      %v2038 = vpop.f32.mrf.mxu0
      %2039 = vmatprep.mubr.f32.mxu0 %v1719
      %2040 = vmatmul.mubr.f32.gmra.mxu0 %v1717
      %v2041 = vpop.f32.mrf.mxu0
      %v2042 = vadd.f32 0.0, %v2041
      %v2043 = vpop.f32.mrf.mxu0
      %2044 = vmatprep.mubr.f32.mxu0 %v1723
      %2045 = vmatmul.mubr.f32.gmra.mxu0 %v1721
      %v2046 = vpop.f32.mrf.mxu0
      %v2047 = vadd.f32 0.0, %v2046
      %v2048 = vpop.f32.mrf.mxu0
      %2049 = vmatprep.mubr.f32.mxu0 %v1727
      %2050 = vmatmul.mubr.f32.gmra.mxu0 %v1725
      %v2051 = vpop.f32.mrf.mxu0
      %v2052 = vadd.f32 0.0, %v2051
      %v2053 = vpop.f32.mrf.mxu0
      %2054 = vmatprep.mubr.f32.mxu0 %v1731
      %2055 = vmatmul.mubr.f32.gmra.mxu0 %v1729
      %v2056 = vpop.f32.mrf.mxu0
      %v2057 = vadd.f32 0.0, %v2056
      %v2058 = vpop.f32.mrf.mxu0
      %2059 = vmatprep.mubr.f32.mxu0 %v1735
      %2060 = vmatmul.mubr.f32.gmra.mxu0 %v1733
      %v2061 = vpop.f32.mrf.mxu0
      %v2062 = vadd.f32 0.0, %v2061
      %v2063 = vpop.f32.mrf.mxu0
      %2064 = vmatprep.mubr.f32.mxu0 %v1739
      %2065 = vmatmul.mubr.f32.gmra.mxu0 %v1737
      %v2066 = vpop.f32.mrf.mxu0
      %v2067 = vadd.f32 0.0, %v2066
      %v2068 = vpop.f32.mrf.mxu0
      %2069 = vmatprep.mubr.f32.mxu0 %v1743
      %2070 = vmatmul.mubr.f32.gmra.mxu0 %v1741
      %v2071 = vpop.f32.mrf.mxu0
      %v2072 = vadd.f32 0.0, %v2071
      %v2073 = vpop.f32.mrf.mxu0
      %2074 = vmatprep.mubr.f32.mxu0 %v1747
      %2075 = vmatmul.mubr.f32.gmra.mxu0 %v1745
      %v2076 = vpop.f32.mrf.mxu0
      %v2077 = vadd.f32 0.0, %v2076
      %v2078 = vpop.f32.mrf.mxu0
      %2079 = vmatprep.mubr.f32.mxu0 %v1751
      %2080 = vmatmul.mubr.f32.gmra.mxu0 %v1749
      %v2081 = vpop.f32.mrf.mxu0
      %v2082 = vadd.f32 0.0, %v2081
      %v2083 = vpop.f32.mrf.mxu0
      %2084 = vmatprep.mubr.f32.mxu0 %v1755
      %2085 = vmatmul.mubr.f32.gmra.mxu0 %v1753
      %v2086 = vpop.f32.mrf.mxu0
      %v2087 = vadd.f32 0.0, %v2086
      %v2088 = vpop.f32.mrf.mxu0
      %2089 = vmatprep.mubr.f32.mxu0 %v1759
      %2090 = vmatmul.mubr.f32.gmra.mxu0 %v1757
      %v2091 = vpop.f32.mrf.mxu0
      %v2092 = vadd.f32 0.0, %v2091
      %v2093 = vpop.f32.mrf.mxu0
      %2094 = vmatprep.mubr.f32.mxu0 %v1763
      %2095 = vmatmul.mubr.f32.gmra.mxu0 %v1761
      %v2096 = vpop.f32.mrf.mxu0
      %v2097 = vadd.f32 0.0, %v2096
      %v2098 = vpop.f32.mrf.mxu0
      %2099 = vmatprep.mubr.f32.mxu0 %v1767
      %2100 = vmatmul.mubr.f32.gmra.mxu0 %v1765
      %v2101 = vpop.f32.mrf.mxu0
      %v2102 = vadd.f32 0.0, %v2101
      %v2103 = vpop.f32.mrf.mxu0
      %2104 = vmatprep.mubr.f32.mxu0 %v1771
      %2105 = vmatmul.mubr.f32.gmra.mxu0 %v1769
      %v2106 = vpop.f32.mrf.mxu0
      %v2107 = vadd.f32 0.0, %v2106
      %v2108 = vpop.f32.mrf.mxu0
      %2109 = vmatprep.mubr.f32.mxu0 %v1775
      %2110 = vmatmul.mubr.f32.gmra.mxu0 %v1773
      %v2111 = vpop.f32.mrf.mxu0
      %v2112 = vadd.f32 0.0, %v2111
      %v2113 = vpop.f32.mrf.mxu0
      %2114 = vmatprep.mubr.f32.mxu0 %v1779
      %2115 = vmatmul.mubr.f32.gmra.mxu0 %v1777
      %v2116 = vpop.f32.mrf.mxu0
      %v2117 = vadd.f32 0.0, %v2116
      %v2118 = vpop.f32.mrf.mxu0
      %2119 = vmatprep.mubr.f32.mxu0 %v1783
      %2120 = vmatmul.mubr.f32.gmra.mxu0 %v1781
      %v2121 = vpop.f32.mrf.mxu0
      %v2122 = vadd.f32 0.0, %v2121
      %v2123 = vpop.f32.mrf.mxu0
      %2124 = vmatprep.mubr.f32.mxu0 %v1787
      %2125 = vmatmul.mubr.f32.gmra.mxu0 %v1785
      %v2126 = vpop.f32.mrf.mxu0
      %v2127 = vadd.f32 0.0, %v2126
      %v2128 = vpop.f32.mrf.mxu0
      %2129 = vmatprep.mubr.f32.mxu0 %v1791
      %2130 = vmatmul.mubr.f32.gmra.mxu0 %v1789
      %v2131 = vpop.f32.mrf.mxu0
      %v2132 = vadd.f32 0.0, %v2131
      %v2133 = vpop.f32.mrf.mxu0
      %2134 = vmatprep.mubr.f32.mxu0 %v1795
      %2135 = vmatmul.mubr.f32.gmra.mxu0 %v1793
      %v2136 = vpop.f32.mrf.mxu0
      %v2137 = vadd.f32 0.0, %v2136
      %v2138 = vpop.f32.mrf.mxu0
      %2139 = vmatprep.mubr.f32.mxu0 %v1799
      %2140 = vmatmul.mubr.f32.gmra.mxu0 %v1797
      %v2141 = vpop.f32.mrf.mxu0
      %v2142 = vadd.f32 0.0, %v2141
      %v2143 = vpop.f32.mrf.mxu0
      %2144 = vmatprep.mubr.f32.mxu0 %v1803
      %2145 = vmatmul.mubr.f32.gmra.mxu0 %v1801
      %v2146 = vpop.f32.mrf.mxu0
      %v2147 = vadd.f32 0.0, %v2146
      %v2148 = vpop.f32.mrf.mxu0
      %2149 = vmatprep.mubr.f32.mxu0 %v1807
      %2150 = vmatmul.mubr.f32.gmra.mxu0 %v1805
      %v2151 = vpop.f32.mrf.mxu0
      %v2152 = vadd.f32 0.0, %v2151
      %v2153 = vpop.f32.mrf.mxu0
      %2154 = vmatprep.mubr.f32.mxu0 %v1806
      %2155 = vmatmul.mubr.f32.gmra.mxu0 %v1804
      %v2156 = vpop.f32.mrf.mxu0
      %v2157 = vadd.f32 0.0, %v2156
      %v2158 = vpop.f32.mrf.mxu0
      %2159 = vdwg.mxu0
      %vm2168 = vcmask 1045504
      %v2169 = vrot.slane %v1409, 2
      %v2170 = vrot.slane %v1411, 2
      %v2171 = vsel %vm2168, %v2169, %v2170
      %v2172 = vrot.slane %v1410, 2
      %v2173 = vrot.slane %v1412, 2
      %v2174 = vsel %vm2168, %v2172, %v2173
      %v2175 = vrot.slane %v1413, 2
      %v2176 = vsel %vm2168, %v2170, %v2175
      %v2177 = vrot.slane %v1414, 2
      %v2178 = vsel %vm2168, %v2173, %v2177
      %v2179 = vrot.slane %v1415, 2
      %v2180 = vsel %vm2168, %v2175, %v2179
      %v2181 = vrot.slane %v1416, 2
      %v2182 = vsel %vm2168, %v2177, %v2181
      %v2183 = vrot.slane %v1417, 2
      %v2184 = vsel %vm2168, %v2179, %v2183
      %v2185 = vrot.slane %v1418, 2
      %v2186 = vsel %vm2168, %v2181, %v2185
      %v2187 = vrot.slane %v1419, 2
      %v2188 = vsel %vm2168, %v2183, %v2187
      %v2189 = vrot.slane %v1420, 2
      %v2190 = vsel %vm2168, %v2185, %v2189
      %v2191 = vrot.slane %v1421, 2
      %v2192 = vsel %vm2168, %v2187, %v2191
      %v2193 = vrot.slane %v1422, 2
      %v2194 = vsel %vm2168, %v2189, %v2193
      %v2195 = vrot.slane %v1423, 2
      %v2196 = vsel %vm2168, %v2191, %v2195
      %v2197 = vrot.slane %v1424, 2
      %v2198 = vsel %vm2168, %v2193, %v2197
      %v2199 = vrot.slane %v1425, 2
      %v2200 = vsel %vm2168, %v2195, %v2199
      %v2201 = vrot.slane %v1426, 2
      %v2202 = vsel %vm2168, %v2197, %v2201
      %v2203 = vrot.slane %v1427, 2
      %v2204 = vsel %vm2168, %v2199, %v2203
      %v2205 = vrot.slane %v1428, 2
      %v2206 = vsel %vm2168, %v2201, %v2205
      %v2207 = vrot.slane %v1429, 2
      %v2208 = vsel %vm2168, %v2203, %v2207
      %v2209 = vrot.slane %v1430, 2
      %v2210 = vsel %vm2168, %v2205, %v2209
      %v2211 = vrot.slane %v1431, 2
      %v2212 = vsel %vm2168, %v2207, %v2211
      %v2213 = vrot.slane %v1432, 2
      %v2214 = vsel %vm2168, %v2209, %v2213
      %v2215 = vrot.slane %v1433, 2
      %v2216 = vsel %vm2168, %v2211, %v2215
      %v2217 = vrot.slane %v1434, 2
      %v2218 = vsel %vm2168, %v2213, %v2217
      %v2219 = vrot.slane %v1435, 2
      %v2220 = vsel %vm2168, %v2215, %v2219
      %v2221 = vrot.slane %v1436, 2
      %v2222 = vsel %vm2168, %v2217, %v2221
      %v2223 = vrot.slane %v1437, 2
      %v2224 = vsel %vm2168, %v2219, %v2223
      %v2225 = vrot.slane %v1438, 2
      %v2226 = vsel %vm2168, %v2221, %v2225
      %v2227 = vrot.slane %v1439, 2
      %v2228 = vsel %vm2168, %v2223, %v2227
      %v2229 = vrot.slane %v1440, 2
      %v2230 = vsel %vm2168, %v2225, %v2229
      %v2231 = vrot.slane %v1441, 2
      %v2232 = vsel %vm2168, %v2227, %v2231
      %v2233 = vrot.slane %v1442, 2
      %v2234 = vsel %vm2168, %v2229, %v2233
      %v2235 = vrot.slane %v1443, 2
      %v2236 = vsel %vm2168, %v2231, %v2235
      %v2237 = vrot.slane %v1444, 2
      %v2238 = vsel %vm2168, %v2233, %v2237
      %v2239 = vrot.slane %v1445, 2
      %v2240 = vsel %vm2168, %v2235, %v2239
      %v2241 = vrot.slane %v1446, 2
      %v2242 = vsel %vm2168, %v2237, %v2241
      %v2243 = vrot.slane %v1447, 2
      %v2244 = vsel %vm2168, %v2239, %v2243
      %v2245 = vrot.slane %v1448, 2
      %v2246 = vsel %vm2168, %v2241, %v2245
      %v2247 = vrot.slane %v1449, 2
      %v2248 = vsel %vm2168, %v2243, %v2247
      %v2249 = vrot.slane %v1450, 2
      %v2250 = vsel %vm2168, %v2245, %v2249
      %v2251 = vrot.slane %v1451, 2
      %v2252 = vsel %vm2168, %v2247, %v2251
      %v2253 = vrot.slane %v1452, 2
      %v2254 = vsel %vm2168, %v2249, %v2253
      %v2255 = vrot.slane %v1453, 2
      %v2256 = vsel %vm2168, %v2251, %v2255
      %v2257 = vrot.slane %v1454, 2
      %v2258 = vsel %vm2168, %v2253, %v2257
      %v2259 = vrot.slane %v1455, 2
      %v2260 = vsel %vm2168, %v2255, %v2259
      %v2261 = vrot.slane %v1456, 2
      %v2262 = vsel %vm2168, %v2257, %v2261
      %v2263 = vrot.slane %v1457, 2
      %v2264 = vsel %vm2168, %v2259, %v2263
      %v2265 = vrot.slane %v1458, 2
      %v2266 = vsel %vm2168, %v2261, %v2265
      %v2267 = vrot.slane %v1459, 2
      %v2268 = vsel %vm2168, %v2263, %v2267
      %v2269 = vrot.slane %v1460, 2
      %v2270 = vsel %vm2168, %v2265, %v2269
      %v2271 = vrot.slane %v1461, 2
      %v2272 = vsel %vm2168, %v2267, %v2271
      %v2273 = vrot.slane %v1462, 2
      %v2274 = vsel %vm2168, %v2269, %v2273
      %v2275 = vrot.slane %v1463, 2
      %v2276 = vsel %vm2168, %v2271, %v2275
      %v2277 = vrot.slane %v1464, 2
      %v2278 = vsel %vm2168, %v2273, %v2277
      %v2279 = vrot.slane %v1465, 2
      %v2280 = vsel %vm2168, %v2275, %v2279
      %v2281 = vrot.slane %v1466, 2
      %v2282 = vsel %vm2168, %v2277, %v2281
      %v2283 = vrot.slane %v1467, 2
      %v2284 = vsel %vm2168, %v2279, %v2283
      %v2285 = vrot.slane %v1468, 2
      %v2286 = vsel %vm2168, %v2281, %v2285
      %v2287 = vrot.slane %v1469, 2
      %v2288 = vsel %vm2168, %v2283, %v2287
      %v2289 = vrot.slane %v1470, 2
      %v2290 = vsel %vm2168, %v2285, %v2289
      %v2291 = vrot.slane %v1471, 2
      %v2292 = vsel %vm2168, %v2287, %v2291
      %v2293 = vrot.slane %v1472, 2
      %v2294 = vsel %vm2168, %v2289, %v2293
      %v2295 = vrot.slane %v1473, 2
      %v2296 = vsel %vm2168, %v2291, %v2295
      %v2297 = vrot.slane %v1474, 2
      %v2298 = vsel %vm2168, %v2293, %v2297
      %v2299 = vrot.slane %v1475, 2
      %v2300 = vsel %vm2168, %v2295, %v2299
      %v2301 = vrot.slane %v1476, 2
      %v2302 = vsel %vm2168, %v2297, %v2301
      %v2303 = vrot.slane %v1477, 2
      %v2304 = vsel %vm2168, %v2299, %v2303
      %v2305 = vrot.slane %v1478, 2
      %v2306 = vsel %vm2168, %v2301, %v2305
      %v2307 = vrot.slane %v1479, 2
      %v2308 = vsel %vm2168, %v2303, %v2307
      %v2309 = vrot.slane %v1480, 2
      %v2310 = vsel %vm2168, %v2305, %v2309
      %v2311 = vrot.slane %v1481, 2
      %v2312 = vsel %vm2168, %v2307, %v2311
      %v2313 = vrot.slane %v1482, 2
      %v2314 = vsel %vm2168, %v2309, %v2313
      %v2315 = vrot.slane %v1483, 2
      %v2316 = vsel %vm2168, %v2311, %v2315
      %v2317 = vrot.slane %v1484, 2
      %v2318 = vsel %vm2168, %v2313, %v2317
      %v2319 = vrot.slane %v1485, 2
      %v2320 = vsel %vm2168, %v2315, %v2319
      %v2321 = vrot.slane %v1486, 2
      %v2322 = vsel %vm2168, %v2317, %v2321
      %v2323 = vrot.slane %v1487, 2
      %v2324 = vsel %vm2168, %v2319, %v2323
      %v2325 = vrot.slane %v1488, 2
      %v2326 = vsel %vm2168, %v2321, %v2325
      %v2327 = vrot.slane %v1489, 2
      %v2328 = vsel %vm2168, %v2323, %v2327
      %v2329 = vrot.slane %v1490, 2
      %v2330 = vsel %vm2168, %v2325, %v2329
      %2413 = vmatprep.subr.mxu0 0.0
      %2414 = vmatpush1.msra.mxu0 %v1506
      %2415 = vmatprep.subr.mxu0 0.0
      %2416 = vmatpush1.msra.mxu0 %v1505
      %2417 = vmatprep.subr.mxu0 0.0
      %2418 = vmatpush1.msra.mxu0 %v1504
      %2419 = vmatprep.subr.mxu0 0.0
      %2420 = vmatpush1.msra.mxu0 %v1503
      %2421 = vmatprep.subr.mxu0 0.0
      %2422 = vmatpush1.msra.mxu0 %v1502
      %2423 = vmatprep.subr.mxu0 0.0
      %2424 = vmatpush1.msra.mxu0 %v1501
      %2425 = vmatprep.subr.mxu0 0.0
      %2426 = vmatpush1.msra.mxu0 %v1500
      %2427 = vmatprep.subr.mxu0 0.0
      %2428 = vmatpush1.msra.mxu0 %v1499
      %2429 = vmatprep.subr.mxu0 0.0
      %2430 = vmatpush1.msra.mxu0 %v1498
      %2431 = vmatprep.subr.mxu0 0.0
      %2432 = vmatpush1.msra.mxu0 %v1497
      %2433 = vmatprep.subr.mxu0 0.0
      %2434 = vmatpush1.msra.mxu0 %v1496
      %2435 = vmatprep.subr.mxu0 0.0
      %2436 = vmatpush1.msra.mxu0 %v1495
      %2437 = vmatprep.subr.mxu0 0.0
      %2438 = vmatpush1.msra.mxu0 %v1494
      %2439 = vmatprep.subr.mxu0 0.0
      %2440 = vmatpush1.msra.mxu0 %v1493
      %2441 = vmatprep.subr.mxu0 0.0
      %2442 = vmatpush1.msra.mxu0 %v1492
      %2443 = vmatprep.subr.mxu0 0.0
      %2444 = vmatpush1.msra.mxu0 %v1491
      %2445 = vmatprep.subr.mxu0 0.0
      %2446 = vmatpush2.msra.mxu0 %v1522
      %2447 = vmatprep.subr.mxu0 0.0
      %2448 = vmatpush2.msra.mxu0 %v1521
      %2449 = vmatprep.subr.mxu0 0.0
      %2450 = vmatpush2.msra.mxu0 %v1520
      %2451 = vmatprep.subr.mxu0 0.0
      %2452 = vmatpush2.msra.mxu0 %v1519
      %2453 = vmatprep.subr.mxu0 0.0
      %2454 = vmatpush2.msra.mxu0 %v1518
      %2455 = vmatprep.subr.mxu0 0.0
      %2456 = vmatpush2.msra.mxu0 %v1517
      %2457 = vmatprep.subr.mxu0 0.0
      %2458 = vmatpush2.msra.mxu0 %v1516
      %2459 = vmatprep.subr.mxu0 0.0
      %2460 = vmatpush2.msra.mxu0 %v1515
      %2461 = vmatprep.subr.mxu0 0.0
      %2462 = vmatpush2.msra.mxu0 %v1514
      %2463 = vmatprep.subr.mxu0 0.0
      %2464 = vmatpush2.msra.mxu0 %v1513
      %2465 = vmatprep.subr.mxu0 0.0
      %2466 = vmatpush2.msra.mxu0 %v1512
      %2467 = vmatprep.subr.mxu0 0.0
      %2468 = vmatpush2.msra.mxu0 %v1511
      %2469 = vmatprep.subr.mxu0 0.0
      %2470 = vmatpush2.msra.mxu0 %v1510
      %2471 = vmatprep.subr.mxu0 0.0
      %2472 = vmatpush2.msra.mxu0 %v1509
      %2473 = vmatprep.subr.mxu0 0.0
      %2474 = vmatpush2.msra.mxu0 %v1508
      %2475 = vmatprep.subr.mxu0 0.0
      %2476 = vmatpush2.msra.mxu0 %v1507
      %2477 = vmatprep.mubr.f32.mxu0 %v2174
      %2478 = vmatmul.mubr.f32.gmra.mxu0 %v2171
      %v2479 = vpop.f32.mrf.mxu0
      %v2480 = vadd.f32 %v1957, %v2479
      %v2481 = vpop.f32.mrf.mxu0
      %2482 = vmatprep.mubr.f32.mxu0 %v2178
      %2483 = vmatmul.mubr.f32.gmra.mxu0 %v2176
      %v2484 = vpop.f32.mrf.mxu0
      %v2485 = vadd.f32 %v1962, %v2484
      %v2486 = vpop.f32.mrf.mxu0
      %2487 = vmatprep.mubr.f32.mxu0 %v2182
      %2488 = vmatmul.mubr.f32.gmra.mxu0 %v2180
      %v2489 = vpop.f32.mrf.mxu0
      %v2490 = vadd.f32 %v1967, %v2489
      %v2491 = vpop.f32.mrf.mxu0
      %2492 = vmatprep.mubr.f32.mxu0 %v2186
      %2493 = vmatmul.mubr.f32.gmra.mxu0 %v2184
      %v2494 = vpop.f32.mrf.mxu0
      %v2495 = vadd.f32 %v1972, %v2494
      %v2496 = vpop.f32.mrf.mxu0
      %2497 = vmatprep.mubr.f32.mxu0 %v2190
      %2498 = vmatmul.mubr.f32.gmra.mxu0 %v2188
      %v2499 = vpop.f32.mrf.mxu0
      %v2500 = vadd.f32 %v1977, %v2499
      %v2501 = vpop.f32.mrf.mxu0
      %2502 = vmatprep.mubr.f32.mxu0 %v2194
      %2503 = vmatmul.mubr.f32.gmra.mxu0 %v2192
      %v2504 = vpop.f32.mrf.mxu0
      %v2505 = vadd.f32 %v1982, %v2504
      %v2506 = vpop.f32.mrf.mxu0
      %2507 = vmatprep.mubr.f32.mxu0 %v2198
      %2508 = vmatmul.mubr.f32.gmra.mxu0 %v2196
      %v2509 = vpop.f32.mrf.mxu0
      %v2510 = vadd.f32 %v1987, %v2509
      %v2511 = vpop.f32.mrf.mxu0
      %2512 = vmatprep.mubr.f32.mxu0 %v2202
      %2513 = vmatmul.mubr.f32.gmra.mxu0 %v2200
      %v2514 = vpop.f32.mrf.mxu0
      %v2515 = vadd.f32 %v1992, %v2514
      %v2516 = vpop.f32.mrf.mxu0
      %2517 = vmatprep.mubr.f32.mxu0 %v2206
      %2518 = vmatmul.mubr.f32.gmra.mxu0 %v2204
      %v2519 = vpop.f32.mrf.mxu0
      %v2520 = vadd.f32 %v1997, %v2519
      %v2521 = vpop.f32.mrf.mxu0
      %2522 = vmatprep.mubr.f32.mxu0 %v2210
      %2523 = vmatmul.mubr.f32.gmra.mxu0 %v2208
      %v2524 = vpop.f32.mrf.mxu0
      %v2525 = vadd.f32 %v2002, %v2524
      %v2526 = vpop.f32.mrf.mxu0
      %2527 = vmatprep.mubr.f32.mxu0 %v2214
      %2528 = vmatmul.mubr.f32.gmra.mxu0 %v2212
      %v2529 = vpop.f32.mrf.mxu0
      %v2530 = vadd.f32 %v2007, %v2529
      %v2531 = vpop.f32.mrf.mxu0
      %2532 = vmatprep.mubr.f32.mxu0 %v2218
      %2533 = vmatmul.mubr.f32.gmra.mxu0 %v2216
      %v2534 = vpop.f32.mrf.mxu0
      %v2535 = vadd.f32 %v2012, %v2534
      %v2536 = vpop.f32.mrf.mxu0
      %2537 = vmatprep.mubr.f32.mxu0 %v2222
      %2538 = vmatmul.mubr.f32.gmra.mxu0 %v2220
      %v2539 = vpop.f32.mrf.mxu0
      %v2540 = vadd.f32 %v2017, %v2539
      %v2541 = vpop.f32.mrf.mxu0
      %2542 = vmatprep.mubr.f32.mxu0 %v2226
      %2543 = vmatmul.mubr.f32.gmra.mxu0 %v2224
      %v2544 = vpop.f32.mrf.mxu0
      %v2545 = vadd.f32 %v2022, %v2544
      %v2546 = vpop.f32.mrf.mxu0
      %2547 = vmatprep.mubr.f32.mxu0 %v2230
      %2548 = vmatmul.mubr.f32.gmra.mxu0 %v2228
      %v2549 = vpop.f32.mrf.mxu0
      %v2550 = vadd.f32 %v2027, %v2549
      %v2551 = vpop.f32.mrf.mxu0
      %2552 = vmatprep.mubr.f32.mxu0 %v2234
      %2553 = vmatmul.mubr.f32.gmra.mxu0 %v2232
      %v2554 = vpop.f32.mrf.mxu0
      %v2555 = vadd.f32 %v2032, %v2554
      %v2556 = vpop.f32.mrf.mxu0
      %2557 = vmatprep.mubr.f32.mxu0 %v2238
      %2558 = vmatmul.mubr.f32.gmra.mxu0 %v2236
      %v2559 = vpop.f32.mrf.mxu0
      %v2560 = vadd.f32 %v2037, %v2559
      %v2561 = vpop.f32.mrf.mxu0
      %2562 = vmatprep.mubr.f32.mxu0 %v2242
      %2563 = vmatmul.mubr.f32.gmra.mxu0 %v2240
      %v2564 = vpop.f32.mrf.mxu0
      %v2565 = vadd.f32 %v2042, %v2564
      %v2566 = vpop.f32.mrf.mxu0
      %2567 = vmatprep.mubr.f32.mxu0 %v2246
      %2568 = vmatmul.mubr.f32.gmra.mxu0 %v2244
      %v2569 = vpop.f32.mrf.mxu0
      %v2570 = vadd.f32 %v2047, %v2569
      %v2571 = vpop.f32.mrf.mxu0
      %2572 = vmatprep.mubr.f32.mxu0 %v2250
      %2573 = vmatmul.mubr.f32.gmra.mxu0 %v2248
      %v2574 = vpop.f32.mrf.mxu0
      %v2575 = vadd.f32 %v2052, %v2574
      %v2576 = vpop.f32.mrf.mxu0
      %2577 = vmatprep.mubr.f32.mxu0 %v2254
      %2578 = vmatmul.mubr.f32.gmra.mxu0 %v2252
      %v2579 = vpop.f32.mrf.mxu0
      %v2580 = vadd.f32 %v2057, %v2579
      %v2581 = vpop.f32.mrf.mxu0
      %2582 = vmatprep.mubr.f32.mxu0 %v2258
      %2583 = vmatmul.mubr.f32.gmra.mxu0 %v2256
      %v2584 = vpop.f32.mrf.mxu0
      %v2585 = vadd.f32 %v2062, %v2584
      %v2586 = vpop.f32.mrf.mxu0
      %2587 = vmatprep.mubr.f32.mxu0 %v2262
      %2588 = vmatmul.mubr.f32.gmra.mxu0 %v2260
      %v2589 = vpop.f32.mrf.mxu0
      %v2590 = vadd.f32 %v2067, %v2589
      %v2591 = vpop.f32.mrf.mxu0
      %2592 = vmatprep.mubr.f32.mxu0 %v2266
      %2593 = vmatmul.mubr.f32.gmra.mxu0 %v2264
      %v2594 = vpop.f32.mrf.mxu0
      %v2595 = vadd.f32 %v2072, %v2594
      %v2596 = vpop.f32.mrf.mxu0
      %2597 = vmatprep.mubr.f32.mxu0 %v2270
      %2598 = vmatmul.mubr.f32.gmra.mxu0 %v2268
      %v2599 = vpop.f32.mrf.mxu0
      %v2600 = vadd.f32 %v2077, %v2599
      %v2601 = vpop.f32.mrf.mxu0
      %2602 = vmatprep.mubr.f32.mxu0 %v2274
      %2603 = vmatmul.mubr.f32.gmra.mxu0 %v2272
      %v2604 = vpop.f32.mrf.mxu0
      %v2605 = vadd.f32 %v2082, %v2604
      %v2606 = vpop.f32.mrf.mxu0
      %2607 = vmatprep.mubr.f32.mxu0 %v2278
      %2608 = vmatmul.mubr.f32.gmra.mxu0 %v2276
      %v2609 = vpop.f32.mrf.mxu0
      %v2610 = vadd.f32 %v2087, %v2609
      %v2611 = vpop.f32.mrf.mxu0
      %2612 = vmatprep.mubr.f32.mxu0 %v2282
      %2613 = vmatmul.mubr.f32.gmra.mxu0 %v2280
      %v2614 = vpop.f32.mrf.mxu0
      %v2615 = vadd.f32 %v2092, %v2614
      %v2616 = vpop.f32.mrf.mxu0
      %2617 = vmatprep.mubr.f32.mxu0 %v2286
      %2618 = vmatmul.mubr.f32.gmra.mxu0 %v2284
      %v2619 = vpop.f32.mrf.mxu0
      %v2620 = vadd.f32 %v2097, %v2619
      %v2621 = vpop.f32.mrf.mxu0
      %2622 = vmatprep.mubr.f32.mxu0 %v2290
      %2623 = vmatmul.mubr.f32.gmra.mxu0 %v2288
      %v2624 = vpop.f32.mrf.mxu0
      %v2625 = vadd.f32 %v2102, %v2624
      %v2626 = vpop.f32.mrf.mxu0
      %2627 = vmatprep.mubr.f32.mxu0 %v2294
      %2628 = vmatmul.mubr.f32.gmra.mxu0 %v2292
      %v2629 = vpop.f32.mrf.mxu0
      %v2630 = vadd.f32 %v2107, %v2629
      %v2631 = vpop.f32.mrf.mxu0
      %2632 = vmatprep.mubr.f32.mxu0 %v2298
      %2633 = vmatmul.mubr.f32.gmra.mxu0 %v2296
      %v2634 = vpop.f32.mrf.mxu0
      %v2635 = vadd.f32 %v2112, %v2634
      %v2636 = vpop.f32.mrf.mxu0
      %2637 = vmatprep.mubr.f32.mxu0 %v2302
      %2638 = vmatmul.mubr.f32.gmra.mxu0 %v2300
      %v2639 = vpop.f32.mrf.mxu0
      %v2640 = vadd.f32 %v2117, %v2639
      %v2641 = vpop.f32.mrf.mxu0
      %2642 = vmatprep.mubr.f32.mxu0 %v2306
      %2643 = vmatmul.mubr.f32.gmra.mxu0 %v2304
      %v2644 = vpop.f32.mrf.mxu0
      %v2645 = vadd.f32 %v2122, %v2644
      %v2646 = vpop.f32.mrf.mxu0
      %2647 = vmatprep.mubr.f32.mxu0 %v2310
      %2648 = vmatmul.mubr.f32.gmra.mxu0 %v2308
      %v2649 = vpop.f32.mrf.mxu0
      %v2650 = vadd.f32 %v2127, %v2649
      %v2651 = vpop.f32.mrf.mxu0
      %2652 = vmatprep.mubr.f32.mxu0 %v2314
      %2653 = vmatmul.mubr.f32.gmra.mxu0 %v2312
      %v2654 = vpop.f32.mrf.mxu0
      %v2655 = vadd.f32 %v2132, %v2654
      %v2656 = vpop.f32.mrf.mxu0
      %2657 = vmatprep.mubr.f32.mxu0 %v2318
      %2658 = vmatmul.mubr.f32.gmra.mxu0 %v2316
      %v2659 = vpop.f32.mrf.mxu0
      %v2660 = vadd.f32 %v2137, %v2659
      %v2661 = vpop.f32.mrf.mxu0
      %2662 = vmatprep.mubr.f32.mxu0 %v2322
      %2663 = vmatmul.mubr.f32.gmra.mxu0 %v2320
      %v2664 = vpop.f32.mrf.mxu0
      %v2665 = vadd.f32 %v2142, %v2664
      %v2666 = vpop.f32.mrf.mxu0
      %2667 = vmatprep.mubr.f32.mxu0 %v2326
      %2668 = vmatmul.mubr.f32.gmra.mxu0 %v2324
      %v2669 = vpop.f32.mrf.mxu0
      %v2670 = vadd.f32 %v2147, %v2669
      %v2671 = vpop.f32.mrf.mxu0
      %2672 = vmatprep.mubr.f32.mxu0 %v2330
      %2673 = vmatmul.mubr.f32.gmra.mxu0 %v2328
      %v2674 = vpop.f32.mrf.mxu0
      %v2675 = vadd.f32 %v2152, %v2674
      %v2676 = vpop.f32.mrf.mxu0
      %2677 = vmatprep.mubr.f32.mxu0 %v2329
      %2678 = vmatmul.mubr.f32.gmra.mxu0 %v2327
      %v2679 = vpop.f32.mrf.mxu0
      %v2680 = vadd.f32 %v2157, %v2679
      %v2681 = vpop.f32.mrf.mxu0
      %2682 = vdwg.mxu0
      %v2683 = vld [vmem:[#allocation2 + $0x40] sm:$0xc0]
      %v2684 = vld [vmem:[#allocation2 + $0x48] sm:$0xc0]
      %v2685 = vld [vmem:[#allocation2 + $0x50] sm:$0xff]
      %v2686 = vld [vmem:[#allocation2 + $0x58] sm:$0xff]
      %v2687 = vld [vmem:[#allocation2 + $0x60] sm:$0xff]
      %v2688 = vld [vmem:[#allocation2 + $0x68] sm:$0xff]
      %v2689 = vld [vmem:[#allocation2 + $0x70] sm:$0xff]
      %v2690 = vld [vmem:[#allocation2 + $0x78] sm:$0xff]
      %v2691 = vld [vmem:[#allocation2 + $0x80] sm:$0xff]
      %v2692 = vld [vmem:[#allocation2 + $0x88] sm:$0xff]
      %v2693 = vld [vmem:[#allocation2 + $0x90] sm:$0xff]
      %v2694 = vld [vmem:[#allocation2 + $0x98] sm:$0xff]
      %v2695 = vld [vmem:[#allocation2 + $0xa0] sm:$0xff]
      %v2696 = vld [vmem:[#allocation2 + $0xa8] sm:$0xff]
      %v2697 = vld [vmem:[#allocation2 + $0xb0] sm:$0xff]
      %v2698 = vld [vmem:[#allocation2 + $0xb8] sm:$0xff]
      %v2699 = vld [vmem:[#allocation2 + $0xc0] sm:$0xff]
      %v2700 = vld [vmem:[#allocation2 + $0xc8] sm:$0xff]
      %v2701 = vld [vmem:[#allocation2 + $0xd0] sm:$0xff]
      %v2702 = vld [vmem:[#allocation2 + $0xd8] sm:$0xff]
      %v2703 = vld [vmem:[#allocation2 + $0xe0] sm:$0xff]
      %v2704 = vld [vmem:[#allocation2 + $0xe8] sm:$0xff]
      %v2705 = vld [vmem:[#allocation2 + $0xf0] sm:$0xff]
      %v2706 = vld [vmem:[#allocation2 + $0xf8] sm:$0xff]
      %v2707 = vld [vmem:[#allocation2 + $0x100] sm:$0xff]
      %v2708 = vld [vmem:[#allocation2 + $0x108] sm:$0xff]
      %v2709 = vld [vmem:[#allocation2 + $0x110] sm:$0xff]
      %v2710 = vld [vmem:[#allocation2 + $0x118] sm:$0xff]
      %v2711 = vld [vmem:[#allocation2 + $0x120] sm:$0xff]
      %v2712 = vld [vmem:[#allocation2 + $0x128] sm:$0xff]
      %v2713 = vld [vmem:[#allocation2 + $0x130] sm:$0xff]
      %v2714 = vld [vmem:[#allocation2 + $0x138] sm:$0xff]
      %v2715 = vld [vmem:[#allocation2 + $0x140] sm:$0xff]
      %v2716 = vld [vmem:[#allocation2 + $0x148] sm:$0xff]
      %v2717 = vld [vmem:[#allocation2 + $0x150] sm:$0xff]
      %v2718 = vld [vmem:[#allocation2 + $0x158] sm:$0xff]
      %v2719 = vld [vmem:[#allocation2 + $0x160] sm:$0xff]
      %v2720 = vld [vmem:[#allocation2 + $0x168] sm:$0xff]
      %v2721 = vld [vmem:[#allocation2 + $0x170] sm:$0xff]
      %v2722 = vld [vmem:[#allocation2 + $0x178] sm:$0xff]
      %v2723 = vld [vmem:[#allocation2 + $0x180] sm:$0xff]
      %v2724 = vld [vmem:[#allocation2 + $0x188] sm:$0xff]
      %v2725 = vld [vmem:[#allocation2 + $0x190] sm:$0xff]
      %v2726 = vld [vmem:[#allocation2 + $0x198] sm:$0xff]
      %v2727 = vld [vmem:[#allocation2 + $0x1a0] sm:$0xff]
      %v2728 = vld [vmem:[#allocation2 + $0x1a8] sm:$0xff]
      %v2729 = vld [vmem:[#allocation2 + $0x1b0] sm:$0xff]
      %v2730 = vld [vmem:[#allocation2 + $0x1b8] sm:$0xff]
      %v2731 = vld [vmem:[#allocation2 + $0x1c0] sm:$0xff]
      %v2732 = vld [vmem:[#allocation2 + $0x1c8] sm:$0xff]
      %v2733 = vld [vmem:[#allocation2 + $0x1d0] sm:$0xff]
      %v2734 = vld [vmem:[#allocation2 + $0x1d8] sm:$0xff]
      %v2735 = vld [vmem:[#allocation2 + $0x1e0] sm:$0xff]
      %v2736 = vld [vmem:[#allocation2 + $0x1e8] sm:$0xff]
      %v2737 = vld [vmem:[#allocation2 + $0x1f0] sm:$0xff]
      %v2738 = vld [vmem:[#allocation2 + $0x1f8] sm:$0xff]
      %v2739 = vld [vmem:[#allocation2 + $0x200] sm:$0xff]
      %v2740 = vld [vmem:[#allocation2 + $0x208] sm:$0xff]
      %v2741 = vld [vmem:[#allocation2 + $0x210] sm:$0xff]
      %v2742 = vld [vmem:[#allocation2 + $0x218] sm:$0xff]
      %v2743 = vld [vmem:[#allocation2 + $0x220] sm:$0xff]
      %v2744 = vld [vmem:[#allocation2 + $0x228] sm:$0xff]
      %v2745 = vld [vmem:[#allocation2 + $0x230] sm:$0xff]
      %v2746 = vld [vmem:[#allocation2 + $0x238] sm:$0xff]
      %v2747 = vld [vmem:[#allocation2 + $0x240] sm:$0xff]
      %v2748 = vld [vmem:[#allocation2 + $0x248] sm:$0xff]
      %v2749 = vld [vmem:[#allocation2 + $0x250] sm:$0xff]
      %v2750 = vld [vmem:[#allocation2 + $0x258] sm:$0xff]
      %v2751 = vld [vmem:[#allocation2 + $0x260] sm:$0xff]
      %v2752 = vld [vmem:[#allocation2 + $0x268] sm:$0xff]
      %v2753 = vld [vmem:[#allocation2 + $0x270] sm:$0xff]
      %v2754 = vld [vmem:[#allocation2 + $0x278] sm:$0xff]
      %v2755 = vld [vmem:[#allocation2 + $0x280] sm:$0xff]
      %v2756 = vld [vmem:[#allocation2 + $0x288] sm:$0xff]
      %v2757 = vld [vmem:[#allocation2 + $0x290] sm:$0xff]
      %v2758 = vld [vmem:[#allocation2 + $0x298] sm:$0xff]
      %v2759 = vld [vmem:[#allocation2 + $0x2a0] sm:$0xff]
      %v2760 = vld [vmem:[#allocation2 + $0x2a8] sm:$0xff]
      %v2761 = vld [vmem:[#allocation2 + $0x2b0] sm:$0xff]
      %v2762 = vld [vmem:[#allocation2 + $0x2b8] sm:$0xff]
      %v2763 = vld [vmem:[#allocation2 + $0x2c0] sm:$0xff]
      %v2764 = vld [vmem:[#allocation2 + $0x2c8] sm:$0xff]
      %v2765 = vld [vmem:[#allocation2 + $0x2d0] sm:$0x3]
      %v2766 = vld [vmem:[#allocation2 + $0x2d8] sm:$0x3]
      %s2767 = scalar_lea.vmem %s2, 512
      %v2768 = vld [vmem:[%s2767] sm:$0xff]
      %v2769 = vld [vmem:[%s2767 + $0x8] sm:$0xff]
      %v2770 = vld [vmem:[%s2767 + $0x10] sm:$0xff]
      %v2771 = vld [vmem:[%s2767 + $0x18] sm:$0xff]
      %v2772 = vld [vmem:[%s2767 + $0x20] sm:$0xff]
      %v2773 = vld [vmem:[%s2767 + $0x28] sm:$0xff]
      %v2774 = vld [vmem:[%s2767 + $0x30] sm:$0xff]
      %v2775 = vld [vmem:[%s2767 + $0x38] sm:$0xff]
      %v2776 = vld [vmem:[%s2767 + $0x40] sm:$0xff]
      %v2777 = vld [vmem:[%s2767 + $0x48] sm:$0xff]
      %v2778 = vld [vmem:[%s2767 + $0x50] sm:$0xff]
      %v2779 = vld [vmem:[%s2767 + $0x58] sm:$0xff]
      %v2780 = vld [vmem:[%s2767 + $0x60] sm:$0xff]
      %v2781 = vld [vmem:[%s2767 + $0x68] sm:$0xff]
      %v2782 = vld [vmem:[%s2767 + $0x70] sm:$0xff]
      %v2783 = vld [vmem:[%s2767 + $0x78] sm:$0xff]
      %v2784 = vld [vmem:[%s2767 + $0x80] sm:$0xff]
      %v2785 = vld [vmem:[%s2767 + $0x88] sm:$0xff]
      %v2786 = vld [vmem:[%s2767 + $0x90] sm:$0xff]
      %v2787 = vld [vmem:[%s2767 + $0x98] sm:$0xff]
      %v2788 = vld [vmem:[%s2767 + $0xa0] sm:$0xff]
      %v2789 = vld [vmem:[%s2767 + $0xa8] sm:$0xff]
      %v2790 = vld [vmem:[%s2767 + $0xb0] sm:$0xff]
      %v2791 = vld [vmem:[%s2767 + $0xb8] sm:$0xff]
      %v2792 = vld [vmem:[%s2767 + $0xc0] sm:$0xff]
      %v2793 = vld [vmem:[%s2767 + $0xc8] sm:$0xff]
      %v2794 = vld [vmem:[%s2767 + $0xd0] sm:$0xff]
      %v2795 = vld [vmem:[%s2767 + $0xd8] sm:$0xff]
      %v2796 = vld [vmem:[%s2767 + $0xe0] sm:$0xff]
      %v2797 = vld [vmem:[%s2767 + $0xe8] sm:$0xff]
      %v2798 = vld [vmem:[%s2767 + $0xf0] sm:$0xff]
      %v2799 = vld [vmem:[%s2767 + $0xf8] sm:$0xff]
      %vm2884 = vcmask 1041408
      %v2885 = vrot.slane %v2683, 6
      %v2886 = vrot.slane %v2685, 6
      %v2887 = vsel %vm2884, %v2885, %v2886
      %v2888 = vrot.slane %v2684, 6
      %v2889 = vrot.slane %v2686, 6
      %v2890 = vsel %vm2884, %v2888, %v2889
      %v2891 = vrot.slane %v2687, 6
      %v2892 = vsel %vm2884, %v2886, %v2891
      %v2893 = vrot.slane %v2688, 6
      %v2894 = vsel %vm2884, %v2889, %v2893
      %v2895 = vrot.slane %v2689, 6
      %v2896 = vsel %vm2884, %v2891, %v2895
      %v2897 = vrot.slane %v2690, 6
      %v2898 = vsel %vm2884, %v2893, %v2897
      %v2899 = vrot.slane %v2691, 6
      %v2900 = vsel %vm2884, %v2895, %v2899
      %v2901 = vrot.slane %v2692, 6
      %v2902 = vsel %vm2884, %v2897, %v2901
      %v2903 = vrot.slane %v2693, 6
      %v2904 = vsel %vm2884, %v2899, %v2903
      %v2905 = vrot.slane %v2694, 6
      %v2906 = vsel %vm2884, %v2901, %v2905
      %v2907 = vrot.slane %v2695, 6
      %v2908 = vsel %vm2884, %v2903, %v2907
      %v2909 = vrot.slane %v2696, 6
      %v2910 = vsel %vm2884, %v2905, %v2909
      %v2911 = vrot.slane %v2697, 6
      %v2912 = vsel %vm2884, %v2907, %v2911
      %v2913 = vrot.slane %v2698, 6
      %v2914 = vsel %vm2884, %v2909, %v2913
      %v2915 = vrot.slane %v2699, 6
      %v2916 = vsel %vm2884, %v2911, %v2915
      %v2917 = vrot.slane %v2700, 6
      %v2918 = vsel %vm2884, %v2913, %v2917
      %v2919 = vrot.slane %v2701, 6
      %v2920 = vsel %vm2884, %v2915, %v2919
      %v2921 = vrot.slane %v2702, 6
      %v2922 = vsel %vm2884, %v2917, %v2921
      %v2923 = vrot.slane %v2703, 6
      %v2924 = vsel %vm2884, %v2919, %v2923
      %v2925 = vrot.slane %v2704, 6
      %v2926 = vsel %vm2884, %v2921, %v2925
      %v2927 = vrot.slane %v2705, 6
      %v2928 = vsel %vm2884, %v2923, %v2927
      %v2929 = vrot.slane %v2706, 6
      %v2930 = vsel %vm2884, %v2925, %v2929
      %v2931 = vrot.slane %v2707, 6
      %v2932 = vsel %vm2884, %v2927, %v2931
      %v2933 = vrot.slane %v2708, 6
      %v2934 = vsel %vm2884, %v2929, %v2933
      %v2935 = vrot.slane %v2709, 6
      %v2936 = vsel %vm2884, %v2931, %v2935
      %v2937 = vrot.slane %v2710, 6
      %v2938 = vsel %vm2884, %v2933, %v2937
      %v2939 = vrot.slane %v2711, 6
      %v2940 = vsel %vm2884, %v2935, %v2939
      %v2941 = vrot.slane %v2712, 6
      %v2942 = vsel %vm2884, %v2937, %v2941
      %v2943 = vrot.slane %v2713, 6
      %v2944 = vsel %vm2884, %v2939, %v2943
      %v2945 = vrot.slane %v2714, 6
      %v2946 = vsel %vm2884, %v2941, %v2945
      %v2947 = vrot.slane %v2715, 6
      %v2948 = vsel %vm2884, %v2943, %v2947
      %v2949 = vrot.slane %v2716, 6
      %v2950 = vsel %vm2884, %v2945, %v2949
      %v2951 = vrot.slane %v2717, 6
      %v2952 = vsel %vm2884, %v2947, %v2951
      %v2953 = vrot.slane %v2718, 6
      %v2954 = vsel %vm2884, %v2949, %v2953
      %v2955 = vrot.slane %v2719, 6
      %v2956 = vsel %vm2884, %v2951, %v2955
      %v2957 = vrot.slane %v2720, 6
      %v2958 = vsel %vm2884, %v2953, %v2957
      %v2959 = vrot.slane %v2721, 6
      %v2960 = vsel %vm2884, %v2955, %v2959
      %v2961 = vrot.slane %v2722, 6
      %v2962 = vsel %vm2884, %v2957, %v2961
      %v2963 = vrot.slane %v2723, 6
      %v2964 = vsel %vm2884, %v2959, %v2963
      %v2965 = vrot.slane %v2724, 6
      %v2966 = vsel %vm2884, %v2961, %v2965
      %v2967 = vrot.slane %v2725, 6
      %v2968 = vsel %vm2884, %v2963, %v2967
      %v2969 = vrot.slane %v2726, 6
      %v2970 = vsel %vm2884, %v2965, %v2969
      %v2971 = vrot.slane %v2727, 6
      %v2972 = vsel %vm2884, %v2967, %v2971
      %v2973 = vrot.slane %v2728, 6
      %v2974 = vsel %vm2884, %v2969, %v2973
      %v2975 = vrot.slane %v2729, 6
      %v2976 = vsel %vm2884, %v2971, %v2975
      %v2977 = vrot.slane %v2730, 6
      %v2978 = vsel %vm2884, %v2973, %v2977
      %v2979 = vrot.slane %v2731, 6
      %v2980 = vsel %vm2884, %v2975, %v2979
      %v2981 = vrot.slane %v2732, 6
      %v2982 = vsel %vm2884, %v2977, %v2981
      %v2983 = vrot.slane %v2733, 6
      %v2984 = vsel %vm2884, %v2979, %v2983
      %v2985 = vrot.slane %v2734, 6
      %v2986 = vsel %vm2884, %v2981, %v2985
      %v2987 = vrot.slane %v2735, 6
      %v2988 = vsel %vm2884, %v2983, %v2987
      %v2989 = vrot.slane %v2736, 6
      %v2990 = vsel %vm2884, %v2985, %v2989
      %v2991 = vrot.slane %v2737, 6
      %v2992 = vsel %vm2884, %v2987, %v2991
      %v2993 = vrot.slane %v2738, 6
      %v2994 = vsel %vm2884, %v2989, %v2993
      %v2995 = vrot.slane %v2739, 6
      %v2996 = vsel %vm2884, %v2991, %v2995
      %v2997 = vrot.slane %v2740, 6
      %v2998 = vsel %vm2884, %v2993, %v2997
      %v2999 = vrot.slane %v2741, 6
      %v3000 = vsel %vm2884, %v2995, %v2999
      %v3001 = vrot.slane %v2742, 6
      %v3002 = vsel %vm2884, %v2997, %v3001
      %v3003 = vrot.slane %v2743, 6
      %v3004 = vsel %vm2884, %v2999, %v3003
      %v3005 = vrot.slane %v2744, 6
      %v3006 = vsel %vm2884, %v3001, %v3005
      %v3007 = vrot.slane %v2745, 6
      %v3008 = vsel %vm2884, %v3003, %v3007
      %v3009 = vrot.slane %v2746, 6
      %v3010 = vsel %vm2884, %v3005, %v3009
      %v3011 = vrot.slane %v2747, 6
      %v3012 = vsel %vm2884, %v3007, %v3011
      %v3013 = vrot.slane %v2748, 6
      %v3014 = vsel %vm2884, %v3009, %v3013
      %v3015 = vrot.slane %v2749, 6
      %v3016 = vsel %vm2884, %v3011, %v3015
      %v3017 = vrot.slane %v2750, 6
      %v3018 = vsel %vm2884, %v3013, %v3017
      %v3019 = vrot.slane %v2751, 6
      %v3020 = vsel %vm2884, %v3015, %v3019
      %v3021 = vrot.slane %v2752, 6
      %v3022 = vsel %vm2884, %v3017, %v3021
      %v3023 = vrot.slane %v2753, 6
      %v3024 = vsel %vm2884, %v3019, %v3023
      %v3025 = vrot.slane %v2754, 6
      %v3026 = vsel %vm2884, %v3021, %v3025
      %v3027 = vrot.slane %v2755, 6
      %v3028 = vsel %vm2884, %v3023, %v3027
      %v3029 = vrot.slane %v2756, 6
      %v3030 = vsel %vm2884, %v3025, %v3029
      %v3031 = vrot.slane %v2757, 6
      %v3032 = vsel %vm2884, %v3027, %v3031
      %v3033 = vrot.slane %v2758, 6
      %v3034 = vsel %vm2884, %v3029, %v3033
      %v3035 = vrot.slane %v2759, 6
      %v3036 = vsel %vm2884, %v3031, %v3035
      %v3037 = vrot.slane %v2760, 6
      %v3038 = vsel %vm2884, %v3033, %v3037
      %v3039 = vrot.slane %v2761, 6
      %v3040 = vsel %vm2884, %v3035, %v3039
      %v3041 = vrot.slane %v2762, 6
      %v3042 = vsel %vm2884, %v3037, %v3041
      %v3043 = vrot.slane %v2763, 6
      %v3044 = vsel %vm2884, %v3039, %v3043
      %v3045 = vrot.slane %v2764, 6
      %v3046 = vsel %vm2884, %v3041, %v3045
      %v3047 = vrot.slane %v2765, 6
      %v3048 = vsel %vm2884, %v3043, %v3047
      %v3049 = vrot.slane %v2766, 6
      %v3050 = vsel %vm2884, %v3045, %v3049
      %3133 = vmatprep.subr.mxu0 0.0
      %3134 = vmatpush1.msra.mxu0 %v2783
      %3135 = vmatprep.subr.mxu0 0.0
      %3136 = vmatpush1.msra.mxu0 %v2782
      %3137 = vmatprep.subr.mxu0 0.0
      %3138 = vmatpush1.msra.mxu0 %v2781
      %3139 = vmatprep.subr.mxu0 0.0
      %3140 = vmatpush1.msra.mxu0 %v2780
      %3141 = vmatprep.subr.mxu0 0.0
      %3142 = vmatpush1.msra.mxu0 %v2779
      %3143 = vmatprep.subr.mxu0 0.0
      %3144 = vmatpush1.msra.mxu0 %v2778
      %3145 = vmatprep.subr.mxu0 0.0
      %3146 = vmatpush1.msra.mxu0 %v2777
      %3147 = vmatprep.subr.mxu0 0.0
      %3148 = vmatpush1.msra.mxu0 %v2776
      %3149 = vmatprep.subr.mxu0 0.0
      %3150 = vmatpush1.msra.mxu0 %v2775
      %3151 = vmatprep.subr.mxu0 0.0
      %3152 = vmatpush1.msra.mxu0 %v2774
      %3153 = vmatprep.subr.mxu0 0.0
      %3154 = vmatpush1.msra.mxu0 %v2773
      %3155 = vmatprep.subr.mxu0 0.0
      %3156 = vmatpush1.msra.mxu0 %v2772
      %3157 = vmatprep.subr.mxu0 0.0
      %3158 = vmatpush1.msra.mxu0 %v2771
      %3159 = vmatprep.subr.mxu0 0.0
      %3160 = vmatpush1.msra.mxu0 %v2770
      %3161 = vmatprep.subr.mxu0 0.0
      %3162 = vmatpush1.msra.mxu0 %v2769
      %3163 = vmatprep.subr.mxu0 0.0
      %3164 = vmatpush1.msra.mxu0 %v2768
      %3165 = vmatprep.subr.mxu0 0.0
      %3166 = vmatpush2.msra.mxu0 %v2799
      %3167 = vmatprep.subr.mxu0 0.0
      %3168 = vmatpush2.msra.mxu0 %v2798
      %3169 = vmatprep.subr.mxu0 0.0
      %3170 = vmatpush2.msra.mxu0 %v2797
      %3171 = vmatprep.subr.mxu0 0.0
      %3172 = vmatpush2.msra.mxu0 %v2796
      %3173 = vmatprep.subr.mxu0 0.0
      %3174 = vmatpush2.msra.mxu0 %v2795
      %3175 = vmatprep.subr.mxu0 0.0
      %3176 = vmatpush2.msra.mxu0 %v2794
      %3177 = vmatprep.subr.mxu0 0.0
      %3178 = vmatpush2.msra.mxu0 %v2793
      %3179 = vmatprep.subr.mxu0 0.0
      %3180 = vmatpush2.msra.mxu0 %v2792
      %3181 = vmatprep.subr.mxu0 0.0
      %3182 = vmatpush2.msra.mxu0 %v2791
      %3183 = vmatprep.subr.mxu0 0.0
      %3184 = vmatpush2.msra.mxu0 %v2790
      %3185 = vmatprep.subr.mxu0 0.0
      %3186 = vmatpush2.msra.mxu0 %v2789
      %3187 = vmatprep.subr.mxu0 0.0
      %3188 = vmatpush2.msra.mxu0 %v2788
      %3189 = vmatprep.subr.mxu0 0.0
      %3190 = vmatpush2.msra.mxu0 %v2787
      %3191 = vmatprep.subr.mxu0 0.0
      %3192 = vmatpush2.msra.mxu0 %v2786
      %3193 = vmatprep.subr.mxu0 0.0
      %3194 = vmatpush2.msra.mxu0 %v2785
      %3195 = vmatprep.subr.mxu0 0.0
      %3196 = vmatpush2.msra.mxu0 %v2784
      %3197 = vmatprep.mubr.f32.mxu0 %v2890
      %3198 = vmatmul.mubr.f32.gmra.mxu0 %v2887
      %v3199 = vpop.f32.mrf.mxu0
      %v3200 = vadd.f32 0.0, %v3199
      %v3201 = vpop.f32.mrf.mxu0
      %3202 = vmatprep.mubr.f32.mxu0 %v2894
      %3203 = vmatmul.mubr.f32.gmra.mxu0 %v2892
      %v3204 = vpop.f32.mrf.mxu0
      %v3205 = vadd.f32 0.0, %v3204
      %v3206 = vpop.f32.mrf.mxu0
      %3207 = vmatprep.mubr.f32.mxu0 %v2898
      %3208 = vmatmul.mubr.f32.gmra.mxu0 %v2896
      %v3209 = vpop.f32.mrf.mxu0
      %v3210 = vadd.f32 0.0, %v3209
      %v3211 = vpop.f32.mrf.mxu0
      %3212 = vmatprep.mubr.f32.mxu0 %v2902
      %3213 = vmatmul.mubr.f32.gmra.mxu0 %v2900
      %v3214 = vpop.f32.mrf.mxu0
      %v3215 = vadd.f32 0.0, %v3214
      %v3216 = vpop.f32.mrf.mxu0
      %3217 = vmatprep.mubr.f32.mxu0 %v2906
      %3218 = vmatmul.mubr.f32.gmra.mxu0 %v2904
      %v3219 = vpop.f32.mrf.mxu0
      %v3220 = vadd.f32 0.0, %v3219
      %v3221 = vpop.f32.mrf.mxu0
      %3222 = vmatprep.mubr.f32.mxu0 %v2910
      %3223 = vmatmul.mubr.f32.gmra.mxu0 %v2908
      %v3224 = vpop.f32.mrf.mxu0
      %v3225 = vadd.f32 0.0, %v3224
      %v3226 = vpop.f32.mrf.mxu0
      %3227 = vmatprep.mubr.f32.mxu0 %v2914
      %3228 = vmatmul.mubr.f32.gmra.mxu0 %v2912
      %v3229 = vpop.f32.mrf.mxu0
      %v3230 = vadd.f32 0.0, %v3229
      %v3231 = vpop.f32.mrf.mxu0
      %3232 = vmatprep.mubr.f32.mxu0 %v2918
      %3233 = vmatmul.mubr.f32.gmra.mxu0 %v2916
      %v3234 = vpop.f32.mrf.mxu0
      %v3235 = vadd.f32 0.0, %v3234
      %v3236 = vpop.f32.mrf.mxu0
      %3237 = vmatprep.mubr.f32.mxu0 %v2922
      %3238 = vmatmul.mubr.f32.gmra.mxu0 %v2920
      %v3239 = vpop.f32.mrf.mxu0
      %v3240 = vadd.f32 0.0, %v3239
      %v3241 = vpop.f32.mrf.mxu0
      %3242 = vmatprep.mubr.f32.mxu0 %v2926
      %3243 = vmatmul.mubr.f32.gmra.mxu0 %v2924
      %v3244 = vpop.f32.mrf.mxu0
      %v3245 = vadd.f32 0.0, %v3244
      %v3246 = vpop.f32.mrf.mxu0
      %3247 = vmatprep.mubr.f32.mxu0 %v2930
      %3248 = vmatmul.mubr.f32.gmra.mxu0 %v2928
      %v3249 = vpop.f32.mrf.mxu0
      %v3250 = vadd.f32 0.0, %v3249
      %v3251 = vpop.f32.mrf.mxu0
      %3252 = vmatprep.mubr.f32.mxu0 %v2934
      %3253 = vmatmul.mubr.f32.gmra.mxu0 %v2932
      %v3254 = vpop.f32.mrf.mxu0
      %v3255 = vadd.f32 0.0, %v3254
      %v3256 = vpop.f32.mrf.mxu0
      %3257 = vmatprep.mubr.f32.mxu0 %v2938
      %3258 = vmatmul.mubr.f32.gmra.mxu0 %v2936
      %v3259 = vpop.f32.mrf.mxu0
      %v3260 = vadd.f32 0.0, %v3259
      %v3261 = vpop.f32.mrf.mxu0
      %3262 = vmatprep.mubr.f32.mxu0 %v2942
      %3263 = vmatmul.mubr.f32.gmra.mxu0 %v2940
      %v3264 = vpop.f32.mrf.mxu0
      %v3265 = vadd.f32 0.0, %v3264
      %v3266 = vpop.f32.mrf.mxu0
      %3267 = vmatprep.mubr.f32.mxu0 %v2946
      %3268 = vmatmul.mubr.f32.gmra.mxu0 %v2944
      %v3269 = vpop.f32.mrf.mxu0
      %v3270 = vadd.f32 0.0, %v3269
      %v3271 = vpop.f32.mrf.mxu0
      %3272 = vmatprep.mubr.f32.mxu0 %v2950
      %3273 = vmatmul.mubr.f32.gmra.mxu0 %v2948
      %v3274 = vpop.f32.mrf.mxu0
      %v3275 = vadd.f32 0.0, %v3274
      %v3276 = vpop.f32.mrf.mxu0
      %3277 = vmatprep.mubr.f32.mxu0 %v2954
      %3278 = vmatmul.mubr.f32.gmra.mxu0 %v2952
      %v3279 = vpop.f32.mrf.mxu0
      %v3280 = vadd.f32 0.0, %v3279
      %v3281 = vpop.f32.mrf.mxu0
      %3282 = vmatprep.mubr.f32.mxu0 %v2958
      %3283 = vmatmul.mubr.f32.gmra.mxu0 %v2956
      %v3284 = vpop.f32.mrf.mxu0
      %v3285 = vadd.f32 0.0, %v3284
      %v3286 = vpop.f32.mrf.mxu0
      %3287 = vmatprep.mubr.f32.mxu0 %v2962
      %3288 = vmatmul.mubr.f32.gmra.mxu0 %v2960
      %v3289 = vpop.f32.mrf.mxu0
      %v3290 = vadd.f32 0.0, %v3289
      %v3291 = vpop.f32.mrf.mxu0
      %3292 = vmatprep.mubr.f32.mxu0 %v2966
      %3293 = vmatmul.mubr.f32.gmra.mxu0 %v2964
      %v3294 = vpop.f32.mrf.mxu0
      %v3295 = vadd.f32 0.0, %v3294
      %v3296 = vpop.f32.mrf.mxu0
      %3297 = vmatprep.mubr.f32.mxu0 %v2970
      %3298 = vmatmul.mubr.f32.gmra.mxu0 %v2968
      %v3299 = vpop.f32.mrf.mxu0
      %v3300 = vadd.f32 0.0, %v3299
      %v3301 = vpop.f32.mrf.mxu0
      %3302 = vmatprep.mubr.f32.mxu0 %v2974
      %3303 = vmatmul.mubr.f32.gmra.mxu0 %v2972
      %v3304 = vpop.f32.mrf.mxu0
      %v3305 = vadd.f32 0.0, %v3304
      %v3306 = vpop.f32.mrf.mxu0
      %3307 = vmatprep.mubr.f32.mxu0 %v2978
      %3308 = vmatmul.mubr.f32.gmra.mxu0 %v2976
      %v3309 = vpop.f32.mrf.mxu0
      %v3310 = vadd.f32 0.0, %v3309
      %v3311 = vpop.f32.mrf.mxu0
      %3312 = vmatprep.mubr.f32.mxu0 %v2982
      %3313 = vmatmul.mubr.f32.gmra.mxu0 %v2980
      %v3314 = vpop.f32.mrf.mxu0
      %v3315 = vadd.f32 0.0, %v3314
      %v3316 = vpop.f32.mrf.mxu0
      %3317 = vmatprep.mubr.f32.mxu0 %v2986
      %3318 = vmatmul.mubr.f32.gmra.mxu0 %v2984
      %v3319 = vpop.f32.mrf.mxu0
      %v3320 = vadd.f32 0.0, %v3319
      %v3321 = vpop.f32.mrf.mxu0
      %3322 = vmatprep.mubr.f32.mxu0 %v2990
      %3323 = vmatmul.mubr.f32.gmra.mxu0 %v2988
      %v3324 = vpop.f32.mrf.mxu0
      %v3325 = vadd.f32 0.0, %v3324
      %v3326 = vpop.f32.mrf.mxu0
      %3327 = vmatprep.mubr.f32.mxu0 %v2994
      %3328 = vmatmul.mubr.f32.gmra.mxu0 %v2992
      %v3329 = vpop.f32.mrf.mxu0
      %v3330 = vadd.f32 0.0, %v3329
      %v3331 = vpop.f32.mrf.mxu0
      %3332 = vmatprep.mubr.f32.mxu0 %v2998
      %3333 = vmatmul.mubr.f32.gmra.mxu0 %v2996
      %v3334 = vpop.f32.mrf.mxu0
      %v3335 = vadd.f32 0.0, %v3334
      %v3336 = vpop.f32.mrf.mxu0
      %3337 = vmatprep.mubr.f32.mxu0 %v3002
      %3338 = vmatmul.mubr.f32.gmra.mxu0 %v3000
      %v3339 = vpop.f32.mrf.mxu0
      %v3340 = vadd.f32 0.0, %v3339
      %v3341 = vpop.f32.mrf.mxu0
      %3342 = vmatprep.mubr.f32.mxu0 %v3006
      %3343 = vmatmul.mubr.f32.gmra.mxu0 %v3004
      %v3344 = vpop.f32.mrf.mxu0
      %v3345 = vadd.f32 0.0, %v3344
      %v3346 = vpop.f32.mrf.mxu0
      %3347 = vmatprep.mubr.f32.mxu0 %v3010
      %3348 = vmatmul.mubr.f32.gmra.mxu0 %v3008
      %v3349 = vpop.f32.mrf.mxu0
      %v3350 = vadd.f32 0.0, %v3349
      %v3351 = vpop.f32.mrf.mxu0
      %3352 = vmatprep.mubr.f32.mxu0 %v3014
      %3353 = vmatmul.mubr.f32.gmra.mxu0 %v3012
      %v3354 = vpop.f32.mrf.mxu0
      %v3355 = vadd.f32 0.0, %v3354
      %v3356 = vpop.f32.mrf.mxu0
      %3357 = vmatprep.mubr.f32.mxu0 %v3018
      %3358 = vmatmul.mubr.f32.gmra.mxu0 %v3016
      %v3359 = vpop.f32.mrf.mxu0
      %v3360 = vadd.f32 0.0, %v3359
      %v3361 = vpop.f32.mrf.mxu0
      %3362 = vmatprep.mubr.f32.mxu0 %v3022
      %3363 = vmatmul.mubr.f32.gmra.mxu0 %v3020
      %v3364 = vpop.f32.mrf.mxu0
      %v3365 = vadd.f32 0.0, %v3364
      %v3366 = vpop.f32.mrf.mxu0
      %3367 = vmatprep.mubr.f32.mxu0 %v3026
      %3368 = vmatmul.mubr.f32.gmra.mxu0 %v3024
      %v3369 = vpop.f32.mrf.mxu0
      %v3370 = vadd.f32 0.0, %v3369
      %v3371 = vpop.f32.mrf.mxu0
      %3372 = vmatprep.mubr.f32.mxu0 %v3030
      %3373 = vmatmul.mubr.f32.gmra.mxu0 %v3028
      %v3374 = vpop.f32.mrf.mxu0
      %v3375 = vadd.f32 0.0, %v3374
      %v3376 = vpop.f32.mrf.mxu0
      %3377 = vmatprep.mubr.f32.mxu0 %v3034
      %3378 = vmatmul.mubr.f32.gmra.mxu0 %v3032
      %v3379 = vpop.f32.mrf.mxu0
      %v3380 = vadd.f32 0.0, %v3379
      %v3381 = vpop.f32.mrf.mxu0
      %3382 = vmatprep.mubr.f32.mxu0 %v3038
      %3383 = vmatmul.mubr.f32.gmra.mxu0 %v3036
      %v3384 = vpop.f32.mrf.mxu0
      %v3385 = vadd.f32 0.0, %v3384
      %v3386 = vpop.f32.mrf.mxu0
      %3387 = vmatprep.mubr.f32.mxu0 %v3042
      %3388 = vmatmul.mubr.f32.gmra.mxu0 %v3040
      %v3389 = vpop.f32.mrf.mxu0
      %v3390 = vadd.f32 0.0, %v3389
      %v3391 = vpop.f32.mrf.mxu0
      %3392 = vmatprep.mubr.f32.mxu0 %v3046
      %3393 = vmatmul.mubr.f32.gmra.mxu0 %v3044
      %v3394 = vpop.f32.mrf.mxu0
      %v3395 = vadd.f32 0.0, %v3394
      %v3396 = vpop.f32.mrf.mxu0
      %3397 = vmatprep.mubr.f32.mxu0 %v3050
      %3398 = vmatmul.mubr.f32.gmra.mxu0 %v3048
      %v3399 = vpop.f32.mrf.mxu0
      %v3400 = vadd.f32 0.0, %v3399
      %v3401 = vpop.f32.mrf.mxu0
      %3402 = vdwg.mxu0
      %v3403 = vadd.f32 %v2480, %v3200
      %v3404 = vadd.f32 %v2485, %v3205
      %v3405 = vadd.f32 %v2490, %v3210
      %v3406 = vadd.f32 %v2495, %v3215
      %v3407 = vadd.f32 %v2500, %v3220
      %v3408 = vadd.f32 %v2505, %v3225
      %v3409 = vadd.f32 %v2510, %v3230
      %v3410 = vadd.f32 %v2515, %v3235
      %v3411 = vadd.f32 %v2520, %v3240
      %v3412 = vadd.f32 %v2525, %v3245
      %v3413 = vadd.f32 %v2530, %v3250
      %v3414 = vadd.f32 %v2535, %v3255
      %v3415 = vadd.f32 %v2540, %v3260
      %v3416 = vadd.f32 %v2545, %v3265
      %v3417 = vadd.f32 %v2550, %v3270
      %v3418 = vadd.f32 %v2555, %v3275
      %v3419 = vadd.f32 %v2560, %v3280
      %v3420 = vadd.f32 %v2565, %v3285
      %v3421 = vadd.f32 %v2570, %v3290
      %v3422 = vadd.f32 %v2575, %v3295
      %v3423 = vadd.f32 %v2580, %v3300
      %v3424 = vadd.f32 %v2585, %v3305
      %v3425 = vadd.f32 %v2590, %v3310
      %v3426 = vadd.f32 %v2595, %v3315
      %v3427 = vadd.f32 %v2600, %v3320
      %v3428 = vadd.f32 %v2605, %v3325
      %v3429 = vadd.f32 %v2610, %v3330
      %v3430 = vadd.f32 %v2615, %v3335
      %v3431 = vadd.f32 %v2620, %v3340
      %v3432 = vadd.f32 %v2625, %v3345
      %v3433 = vadd.f32 %v2630, %v3350
      %v3434 = vadd.f32 %v2635, %v3355
      %v3435 = vadd.f32 %v2640, %v3360
      %v3436 = vadd.f32 %v2645, %v3365
      %v3437 = vadd.f32 %v2650, %v3370
      %v3438 = vadd.f32 %v2655, %v3375
      %v3439 = vadd.f32 %v2660, %v3380
      %v3440 = vadd.f32 %v2665, %v3385
      %v3441 = vadd.f32 %v2670, %v3390
      %v3442 = vadd.f32 %v2675, %v3395
      %v3443 = vadd.f32 %v2680, %v3400
      %v3444 = vld [vmem:[#allocation2] sm:$0xff]
      %v3445 = vld [vmem:[#allocation2 + $0x10] sm:$0xff]
      %v3446 = vld [vmem:[#allocation2 + $0x20] sm:$0xff]
      %v3447 = vld [vmem:[#allocation2 + $0x30] sm:$0xff]
      %v3448 = vld [vmem:[#allocation2 + $0x40] sm:$0xff]
      %v3449 = vld [vmem:[#allocation2 + $0x50] sm:$0xff]
      %v3450 = vld [vmem:[#allocation2 + $0x60] sm:$0xff]
      %v3451 = vld [vmem:[#allocation2 + $0x70] sm:$0xff]
      %v3452 = vld [vmem:[#allocation2 + $0x80] sm:$0xff]
      %v3453 = vld [vmem:[#allocation2 + $0x90] sm:$0xff]
      %v3454 = vld [vmem:[#allocation2 + $0xa0] sm:$0xff]
      %v3455 = vld [vmem:[#allocation2 + $0xb0] sm:$0xff]
      %v3456 = vld [vmem:[#allocation2 + $0xc0] sm:$0xff]
      %v3457 = vld [vmem:[#allocation2 + $0xd0] sm:$0xff]
      %v3458 = vld [vmem:[#allocation2 + $0xe0] sm:$0xff]
      %v3459 = vld [vmem:[#allocation2 + $0xf0] sm:$0xff]
      %v3460 = vld [vmem:[#allocation2 + $0x100] sm:$0xff]
      %v3461 = vld [vmem:[#allocation2 + $0x110] sm:$0xff]
      %v3462 = vld [vmem:[#allocation2 + $0x120] sm:$0xff]
      %v3463 = vld [vmem:[#allocation2 + $0x130] sm:$0xff]
      %v3464 = vld [vmem:[#allocation2 + $0x140] sm:$0xff]
      %v3465 = vld [vmem:[#allocation2 + $0x150] sm:$0xff]
      %v3466 = vld [vmem:[#allocation2 + $0x160] sm:$0xff]
      %v3467 = vld [vmem:[#allocation2 + $0x170] sm:$0xff]
      %v3468 = vld [vmem:[#allocation2 + $0x180] sm:$0xff]
      %v3469 = vld [vmem:[#allocation2 + $0x190] sm:$0xff]
      %v3470 = vld [vmem:[#allocation2 + $0x1a0] sm:$0xff]
      %v3471 = vld [vmem:[#allocation2 + $0x1b0] sm:$0xff]
      %v3472 = vld [vmem:[#allocation2 + $0x1c0] sm:$0xff]
      %v3473 = vld [vmem:[#allocation2 + $0x1d0] sm:$0xff]
      %v3474 = vld [vmem:[#allocation2 + $0x1e0] sm:$0xff]
      %v3475 = vld [vmem:[#allocation2 + $0x1f0] sm:$0xff]
      %v3476 = vld [vmem:[#allocation2 + $0x200] sm:$0xff]
      %v3477 = vld [vmem:[#allocation2 + $0x210] sm:$0xff]
      %v3478 = vld [vmem:[#allocation2 + $0x220] sm:$0xff]
      %v3479 = vld [vmem:[#allocation2 + $0x230] sm:$0xff]
      %v3480 = vld [vmem:[#allocation2 + $0x240] sm:$0xff]
      %v3481 = vld [vmem:[#allocation2 + $0x250] sm:$0xff]
      %v3482 = vld [vmem:[#allocation2 + $0x260] sm:$0xff]
      %v3483 = vld [vmem:[#allocation2 + $0x270] sm:$0xff]
      %v3484 = vld [vmem:[#allocation2 + $0x280] sm:$0xf]
      %v3485 = vld [vmem:[%s3] sm:$0xff]
      %v3486 = vld [vmem:[%s3 + $0x8] sm:$0xff]
      %v3487 = vld [vmem:[%s3 + $0x10] sm:$0xff]
      %v3488 = vld [vmem:[%s3 + $0x18] sm:$0xff]
      %v3489 = vld [vmem:[%s3 + $0x20] sm:$0xff]
      %v3490 = vld [vmem:[%s3 + $0x28] sm:$0xff]
      %v3491 = vld [vmem:[%s3 + $0x30] sm:$0xff]
      %v3492 = vld [vmem:[%s3 + $0x38] sm:$0xff]
      %v3493 = vld [vmem:[%s3 + $0x40] sm:$0xff]
      %v3494 = vld [vmem:[%s3 + $0x48] sm:$0xff]
      %v3495 = vld [vmem:[%s3 + $0x50] sm:$0xff]
      %v3496 = vld [vmem:[%s3 + $0x58] sm:$0xff]
      %v3497 = vld [vmem:[%s3 + $0x60] sm:$0xff]
      %v3498 = vld [vmem:[%s3 + $0x68] sm:$0xff]
      %v3499 = vld [vmem:[%s3 + $0x70] sm:$0xff]
      %v3500 = vld [vmem:[%s3 + $0x78] sm:$0xff]
      %3501 = vmatprep.subr.mxu0 0.0
      %3502 = vmatpush1.msra.mxu0 %v3500
      %3503 = vmatprep.subr.mxu0 0.0
      %3504 = vmatpush1.msra.mxu0 %v3499
      %3505 = vmatprep.subr.mxu0 0.0
      %3506 = vmatpush1.msra.mxu0 %v3498
      %3507 = vmatprep.subr.mxu0 0.0
      %3508 = vmatpush1.msra.mxu0 %v3497
      %3509 = vmatprep.subr.mxu0 0.0
      %3510 = vmatpush1.msra.mxu0 %v3496
      %3511 = vmatprep.subr.mxu0 0.0
      %3512 = vmatpush1.msra.mxu0 %v3495
      %3513 = vmatprep.subr.mxu0 0.0
      %3514 = vmatpush1.msra.mxu0 %v3494
      %3515 = vmatprep.subr.mxu0 0.0
      %3516 = vmatpush1.msra.mxu0 %v3493
      %3517 = vmatprep.subr.mxu0 0.0
      %3518 = vmatpush1.msra.mxu0 %v3492
      %3519 = vmatprep.subr.mxu0 0.0
      %3520 = vmatpush1.msra.mxu0 %v3491
      %3521 = vmatprep.subr.mxu0 0.0
      %3522 = vmatpush1.msra.mxu0 %v3490
      %3523 = vmatprep.subr.mxu0 0.0
      %3524 = vmatpush1.msra.mxu0 %v3489
      %3525 = vmatprep.subr.mxu0 0.0
      %3526 = vmatpush1.msra.mxu0 %v3488
      %3527 = vmatprep.subr.mxu0 0.0
      %3528 = vmatpush1.msra.mxu0 %v3487
      %3529 = vmatprep.subr.mxu0 0.0
      %3530 = vmatpush1.msra.mxu0 %v3486
      %3531 = vmatprep.subr.mxu0 0.0
      %3532 = vmatpush1.msra.mxu0 %v3485
      %3533 = vmatprep.subr.mxu0 0.0
      %3534 = vmatpush2.msra.mxu0 0.0
      %3535 = vmatprep.subr.mxu0 0.0
      %3536 = vmatpush2.msra.mxu0 0.0
      %3537 = vmatprep.subr.mxu0 0.0
      %3538 = vmatpush2.msra.mxu0 0.0
      %3539 = vmatprep.subr.mxu0 0.0
      %3540 = vmatpush2.msra.mxu0 0.0
      %3541 = vmatprep.subr.mxu0 0.0
      %3542 = vmatpush2.msra.mxu0 0.0
      %3543 = vmatprep.subr.mxu0 0.0
      %3544 = vmatpush2.msra.mxu0 0.0
      %3545 = vmatprep.subr.mxu0 0.0
      %3546 = vmatpush2.msra.mxu0 0.0
      %3547 = vmatprep.subr.mxu0 0.0
      %3548 = vmatpush2.msra.mxu0 0.0
      %3549 = vmatprep.subr.mxu0 0.0
      %3550 = vmatpush2.msra.mxu0 0.0
      %3551 = vmatprep.subr.mxu0 0.0
      %3552 = vmatpush2.msra.mxu0 0.0
      %3553 = vmatprep.subr.mxu0 0.0
      %3554 = vmatpush2.msra.mxu0 0.0
      %3555 = vmatprep.subr.mxu0 0.0
      %3556 = vmatpush2.msra.mxu0 0.0
      %3557 = vmatprep.subr.mxu0 0.0
      %3558 = vmatpush2.msra.mxu0 0.0
      %3559 = vmatprep.subr.mxu0 0.0
      %3560 = vmatpush2.msra.mxu0 0.0
      %3561 = vmatprep.subr.mxu0 0.0
      %3562 = vmatpush2.msra.mxu0 0.0
      %3563 = vmatprep.subr.mxu0 0.0
      %3564 = vmatpush2.msra.mxu0 0.0
      %3565 = vmatprep.mubr.f32.mxu0 0.0
      %3566 = vmatmul.mubr.f32.gmra.mxu0 %v3444
      %v3567 = vpop.f32.mrf.mxu0
      %v3568 = vadd.f32 0.0, %v3567
      %v3569 = vpop.f32.mrf.mxu0
      %3570 = vmatprep.mubr.f32.mxu0 0.0
      %3571 = vmatmul.mubr.f32.gmra.mxu0 %v3445
      %v3572 = vpop.f32.mrf.mxu0
      %v3573 = vadd.f32 0.0, %v3572
      %v3574 = vpop.f32.mrf.mxu0
      %3575 = vmatprep.mubr.f32.mxu0 0.0
      %3576 = vmatmul.mubr.f32.gmra.mxu0 %v3446
      %v3577 = vpop.f32.mrf.mxu0
      %v3578 = vadd.f32 0.0, %v3577
      %v3579 = vpop.f32.mrf.mxu0
      %3580 = vmatprep.mubr.f32.mxu0 0.0
      %3581 = vmatmul.mubr.f32.gmra.mxu0 %v3447
      %v3582 = vpop.f32.mrf.mxu0
      %v3583 = vadd.f32 0.0, %v3582
      %v3584 = vpop.f32.mrf.mxu0
      %3585 = vmatprep.mubr.f32.mxu0 0.0
      %3586 = vmatmul.mubr.f32.gmra.mxu0 %v3448
      %v3587 = vpop.f32.mrf.mxu0
      %v3588 = vadd.f32 0.0, %v3587
      %v3589 = vpop.f32.mrf.mxu0
      %3590 = vmatprep.mubr.f32.mxu0 0.0
      %3591 = vmatmul.mubr.f32.gmra.mxu0 %v3449
      %v3592 = vpop.f32.mrf.mxu0
      %v3593 = vadd.f32 0.0, %v3592
      %v3594 = vpop.f32.mrf.mxu0
      %3595 = vmatprep.mubr.f32.mxu0 0.0
      %3596 = vmatmul.mubr.f32.gmra.mxu0 %v3450
      %v3597 = vpop.f32.mrf.mxu0
      %v3598 = vadd.f32 0.0, %v3597
      %v3599 = vpop.f32.mrf.mxu0
      %3600 = vmatprep.mubr.f32.mxu0 0.0
      %3601 = vmatmul.mubr.f32.gmra.mxu0 %v3451
      %v3602 = vpop.f32.mrf.mxu0
      %v3603 = vadd.f32 0.0, %v3602
      %v3604 = vpop.f32.mrf.mxu0
      %3605 = vmatprep.mubr.f32.mxu0 0.0
      %3606 = vmatmul.mubr.f32.gmra.mxu0 %v3452
      %v3607 = vpop.f32.mrf.mxu0
      %v3608 = vadd.f32 0.0, %v3607
      %v3609 = vpop.f32.mrf.mxu0
      %3610 = vmatprep.mubr.f32.mxu0 0.0
      %3611 = vmatmul.mubr.f32.gmra.mxu0 %v3453
      %v3612 = vpop.f32.mrf.mxu0
      %v3613 = vadd.f32 0.0, %v3612
      %v3614 = vpop.f32.mrf.mxu0
      %3615 = vmatprep.mubr.f32.mxu0 0.0
      %3616 = vmatmul.mubr.f32.gmra.mxu0 %v3454
      %v3617 = vpop.f32.mrf.mxu0
      %v3618 = vadd.f32 0.0, %v3617
      %v3619 = vpop.f32.mrf.mxu0
      %3620 = vmatprep.mubr.f32.mxu0 0.0
      %3621 = vmatmul.mubr.f32.gmra.mxu0 %v3455
      %v3622 = vpop.f32.mrf.mxu0
      %v3623 = vadd.f32 0.0, %v3622
      %v3624 = vpop.f32.mrf.mxu0
      %3625 = vmatprep.mubr.f32.mxu0 0.0
      %3626 = vmatmul.mubr.f32.gmra.mxu0 %v3456
      %v3627 = vpop.f32.mrf.mxu0
      %v3628 = vadd.f32 0.0, %v3627
      %v3629 = vpop.f32.mrf.mxu0
      %3630 = vmatprep.mubr.f32.mxu0 0.0
      %3631 = vmatmul.mubr.f32.gmra.mxu0 %v3457
      %v3632 = vpop.f32.mrf.mxu0
      %v3633 = vadd.f32 0.0, %v3632
      %v3634 = vpop.f32.mrf.mxu0
      %3635 = vmatprep.mubr.f32.mxu0 0.0
      %3636 = vmatmul.mubr.f32.gmra.mxu0 %v3458
      %v3637 = vpop.f32.mrf.mxu0
      %v3638 = vadd.f32 0.0, %v3637
      %v3639 = vpop.f32.mrf.mxu0
      %3640 = vmatprep.mubr.f32.mxu0 0.0
      %3641 = vmatmul.mubr.f32.gmra.mxu0 %v3459
      %v3642 = vpop.f32.mrf.mxu0
      %v3643 = vadd.f32 0.0, %v3642
      %v3644 = vpop.f32.mrf.mxu0
      %3645 = vmatprep.mubr.f32.mxu0 0.0
      %3646 = vmatmul.mubr.f32.gmra.mxu0 %v3460
      %v3647 = vpop.f32.mrf.mxu0
      %v3648 = vadd.f32 0.0, %v3647
      %v3649 = vpop.f32.mrf.mxu0
      %3650 = vmatprep.mubr.f32.mxu0 0.0
      %3651 = vmatmul.mubr.f32.gmra.mxu0 %v3461
      %v3652 = vpop.f32.mrf.mxu0
      %v3653 = vadd.f32 0.0, %v3652
      %v3654 = vpop.f32.mrf.mxu0
      %3655 = vmatprep.mubr.f32.mxu0 0.0
      %3656 = vmatmul.mubr.f32.gmra.mxu0 %v3462
      %v3657 = vpop.f32.mrf.mxu0
      %v3658 = vadd.f32 0.0, %v3657
      %v3659 = vpop.f32.mrf.mxu0
      %3660 = vmatprep.mubr.f32.mxu0 0.0
      %3661 = vmatmul.mubr.f32.gmra.mxu0 %v3463
      %v3662 = vpop.f32.mrf.mxu0
      %v3663 = vadd.f32 0.0, %v3662
      %v3664 = vpop.f32.mrf.mxu0
      %3665 = vmatprep.mubr.f32.mxu0 0.0
      %3666 = vmatmul.mubr.f32.gmra.mxu0 %v3464
      %v3667 = vpop.f32.mrf.mxu0
      %v3668 = vadd.f32 0.0, %v3667
      %v3669 = vpop.f32.mrf.mxu0
      %3670 = vmatprep.mubr.f32.mxu0 0.0
      %3671 = vmatmul.mubr.f32.gmra.mxu0 %v3465
      %v3672 = vpop.f32.mrf.mxu0
      %v3673 = vadd.f32 0.0, %v3672
      %v3674 = vpop.f32.mrf.mxu0
      %3675 = vmatprep.mubr.f32.mxu0 0.0
      %3676 = vmatmul.mubr.f32.gmra.mxu0 %v3466
      %v3677 = vpop.f32.mrf.mxu0
      %v3678 = vadd.f32 0.0, %v3677
      %v3679 = vpop.f32.mrf.mxu0
      %3680 = vmatprep.mubr.f32.mxu0 0.0
      %3681 = vmatmul.mubr.f32.gmra.mxu0 %v3467
      %v3682 = vpop.f32.mrf.mxu0
      %v3683 = vadd.f32 0.0, %v3682
      %v3684 = vpop.f32.mrf.mxu0
      %3685 = vmatprep.mubr.f32.mxu0 0.0
      %3686 = vmatmul.mubr.f32.gmra.mxu0 %v3468
      %v3687 = vpop.f32.mrf.mxu0
      %v3688 = vadd.f32 0.0, %v3687
      %v3689 = vpop.f32.mrf.mxu0
      %3690 = vmatprep.mubr.f32.mxu0 0.0
      %3691 = vmatmul.mubr.f32.gmra.mxu0 %v3469
      %v3692 = vpop.f32.mrf.mxu0
      %v3693 = vadd.f32 0.0, %v3692
      %v3694 = vpop.f32.mrf.mxu0
      %3695 = vmatprep.mubr.f32.mxu0 0.0
      %3696 = vmatmul.mubr.f32.gmra.mxu0 %v3470
      %v3697 = vpop.f32.mrf.mxu0
      %v3698 = vadd.f32 0.0, %v3697
      %v3699 = vpop.f32.mrf.mxu0
      %3700 = vmatprep.mubr.f32.mxu0 0.0
      %3701 = vmatmul.mubr.f32.gmra.mxu0 %v3471
      %v3702 = vpop.f32.mrf.mxu0
      %v3703 = vadd.f32 0.0, %v3702
      %v3704 = vpop.f32.mrf.mxu0
      %3705 = vmatprep.mubr.f32.mxu0 0.0
      %3706 = vmatmul.mubr.f32.gmra.mxu0 %v3472
      %v3707 = vpop.f32.mrf.mxu0
      %v3708 = vadd.f32 0.0, %v3707
      %v3709 = vpop.f32.mrf.mxu0
      %3710 = vmatprep.mubr.f32.mxu0 0.0
      %3711 = vmatmul.mubr.f32.gmra.mxu0 %v3473
      %v3712 = vpop.f32.mrf.mxu0
      %v3713 = vadd.f32 0.0, %v3712
      %v3714 = vpop.f32.mrf.mxu0
      %3715 = vmatprep.mubr.f32.mxu0 0.0
      %3716 = vmatmul.mubr.f32.gmra.mxu0 %v3474
      %v3717 = vpop.f32.mrf.mxu0
      %v3718 = vadd.f32 0.0, %v3717
      %v3719 = vpop.f32.mrf.mxu0
      %3720 = vmatprep.mubr.f32.mxu0 0.0
      %3721 = vmatmul.mubr.f32.gmra.mxu0 %v3475
      %v3722 = vpop.f32.mrf.mxu0
      %v3723 = vadd.f32 0.0, %v3722
      %v3724 = vpop.f32.mrf.mxu0
      %3725 = vmatprep.mubr.f32.mxu0 0.0
      %3726 = vmatmul.mubr.f32.gmra.mxu0 %v3476
      %v3727 = vpop.f32.mrf.mxu0
      %v3728 = vadd.f32 0.0, %v3727
      %v3729 = vpop.f32.mrf.mxu0
      %3730 = vmatprep.mubr.f32.mxu0 0.0
      %3731 = vmatmul.mubr.f32.gmra.mxu0 %v3477
      %v3732 = vpop.f32.mrf.mxu0
      %v3733 = vadd.f32 0.0, %v3732
      %v3734 = vpop.f32.mrf.mxu0
      %3735 = vmatprep.mubr.f32.mxu0 0.0
      %3736 = vmatmul.mubr.f32.gmra.mxu0 %v3478
      %v3737 = vpop.f32.mrf.mxu0
      %v3738 = vadd.f32 0.0, %v3737
      %v3739 = vpop.f32.mrf.mxu0
      %3740 = vmatprep.mubr.f32.mxu0 0.0
      %3741 = vmatmul.mubr.f32.gmra.mxu0 %v3479
      %v3742 = vpop.f32.mrf.mxu0
      %v3743 = vadd.f32 0.0, %v3742
      %v3744 = vpop.f32.mrf.mxu0
      %3745 = vmatprep.mubr.f32.mxu0 0.0
      %3746 = vmatmul.mubr.f32.gmra.mxu0 %v3480
      %v3747 = vpop.f32.mrf.mxu0
      %v3748 = vadd.f32 0.0, %v3747
      %v3749 = vpop.f32.mrf.mxu0
      %3750 = vmatprep.mubr.f32.mxu0 0.0
      %3751 = vmatmul.mubr.f32.gmra.mxu0 %v3481
      %v3752 = vpop.f32.mrf.mxu0
      %v3753 = vadd.f32 0.0, %v3752
      %v3754 = vpop.f32.mrf.mxu0
      %3755 = vmatprep.mubr.f32.mxu0 0.0
      %3756 = vmatmul.mubr.f32.gmra.mxu0 %v3482
      %v3757 = vpop.f32.mrf.mxu0
      %v3758 = vadd.f32 0.0, %v3757
      %v3759 = vpop.f32.mrf.mxu0
      %3760 = vmatprep.mubr.f32.mxu0 0.0
      %3761 = vmatmul.mubr.f32.gmra.mxu0 %v3483
      %v3762 = vpop.f32.mrf.mxu0
      %v3763 = vadd.f32 0.0, %v3762
      %v3764 = vpop.f32.mrf.mxu0
      %3765 = vmatprep.mubr.f32.mxu0 0.0
      %3766 = vmatmul.mubr.f32.gmra.mxu0 %v3484
      %v3767 = vpop.f32.mrf.mxu0
      %v3768 = vadd.f32 0.0, %v3767
      %v3769 = vpop.f32.mrf.mxu0
      %3770 = vdwg.mxu0
      %v3771 = vadd.f32 %v3403, %v3568
      %v3772 = vadd.f32 %v3404, %v3573
      %v3773 = vadd.f32 %v3405, %v3578
      %v3774 = vadd.f32 %v3406, %v3583
      %v3775 = vadd.f32 %v3407, %v3588
      %v3776 = vadd.f32 %v3408, %v3593
      %v3777 = vadd.f32 %v3409, %v3598
      %v3778 = vadd.f32 %v3410, %v3603
      %v3779 = vadd.f32 %v3411, %v3608
      %v3780 = vadd.f32 %v3412, %v3613
      %v3781 = vadd.f32 %v3413, %v3618
      %v3782 = vadd.f32 %v3414, %v3623
      %v3783 = vadd.f32 %v3415, %v3628
      %v3784 = vadd.f32 %v3416, %v3633
      %v3785 = vadd.f32 %v3417, %v3638
      %v3786 = vadd.f32 %v3418, %v3643
      %v3787 = vadd.f32 %v3419, %v3648
      %v3788 = vadd.f32 %v3420, %v3653
      %v3789 = vadd.f32 %v3421, %v3658
      %v3790 = vadd.f32 %v3422, %v3663
      %v3791 = vadd.f32 %v3423, %v3668
      %v3792 = vadd.f32 %v3424, %v3673
      %v3793 = vadd.f32 %v3425, %v3678
      %v3794 = vadd.f32 %v3426, %v3683
      %v3795 = vadd.f32 %v3427, %v3688
      %v3796 = vadd.f32 %v3428, %v3693
      %v3797 = vadd.f32 %v3429, %v3698
      %v3798 = vadd.f32 %v3430, %v3703
      %v3799 = vadd.f32 %v3431, %v3708
      %v3800 = vadd.f32 %v3432, %v3713
      %v3801 = vadd.f32 %v3433, %v3718
      %v3802 = vadd.f32 %v3434, %v3723
      %v3803 = vadd.f32 %v3435, %v3728
      %v3804 = vadd.f32 %v3436, %v3733
      %v3805 = vadd.f32 %v3437, %v3738
      %v3806 = vadd.f32 %v3438, %v3743
      %v3807 = vadd.f32 %v3439, %v3748
      %v3808 = vadd.f32 %v3440, %v3753
      %v3809 = vadd.f32 %v3441, %v3758
      %v3810 = vadd.f32 %v3442, %v3763
      %v3811 = vadd.f32 %v3443, %v3768
      %v3812 = vld [vmem:[#allocation2 + $0x20] sm:$0xfc]
      %v3813 = vld [vmem:[#allocation2 + $0x30] sm:$0xff]
      %v3814 = vld [vmem:[#allocation2 + $0x40] sm:$0xff]
      %v3815 = vld [vmem:[#allocation2 + $0x50] sm:$0xff]
      %v3816 = vld [vmem:[#allocation2 + $0x60] sm:$0xff]
      %v3817 = vld [vmem:[#allocation2 + $0x70] sm:$0xff]
      %v3818 = vld [vmem:[#allocation2 + $0x80] sm:$0xff]
      %v3819 = vld [vmem:[#allocation2 + $0x90] sm:$0xff]
      %v3820 = vld [vmem:[#allocation2 + $0xa0] sm:$0xff]
      %v3821 = vld [vmem:[#allocation2 + $0xb0] sm:$0xff]
      %v3822 = vld [vmem:[#allocation2 + $0xc0] sm:$0xff]
      %v3823 = vld [vmem:[#allocation2 + $0xd0] sm:$0xff]
      %v3824 = vld [vmem:[#allocation2 + $0xe0] sm:$0xff]
      %v3825 = vld [vmem:[#allocation2 + $0xf0] sm:$0xff]
      %v3826 = vld [vmem:[#allocation2 + $0x100] sm:$0xff]
      %v3827 = vld [vmem:[#allocation2 + $0x110] sm:$0xff]
      %v3828 = vld [vmem:[#allocation2 + $0x120] sm:$0xff]
      %v3829 = vld [vmem:[#allocation2 + $0x130] sm:$0xff]
      %v3830 = vld [vmem:[#allocation2 + $0x140] sm:$0xff]
      %v3831 = vld [vmem:[#allocation2 + $0x150] sm:$0xff]
      %v3832 = vld [vmem:[#allocation2 + $0x160] sm:$0xff]
      %v3833 = vld [vmem:[#allocation2 + $0x170] sm:$0xff]
      %v3834 = vld [vmem:[#allocation2 + $0x180] sm:$0xff]
      %v3835 = vld [vmem:[#allocation2 + $0x190] sm:$0xff]
      %v3836 = vld [vmem:[#allocation2 + $0x1a0] sm:$0xff]
      %v3837 = vld [vmem:[#allocation2 + $0x1b0] sm:$0xff]
      %v3838 = vld [vmem:[#allocation2 + $0x1c0] sm:$0xff]
      %v3839 = vld [vmem:[#allocation2 + $0x1d0] sm:$0xff]
      %v3840 = vld [vmem:[#allocation2 + $0x1e0] sm:$0xff]
      %v3841 = vld [vmem:[#allocation2 + $0x1f0] sm:$0xff]
      %v3842 = vld [vmem:[#allocation2 + $0x200] sm:$0xff]
      %v3843 = vld [vmem:[#allocation2 + $0x210] sm:$0xff]
      %v3844 = vld [vmem:[#allocation2 + $0x220] sm:$0xff]
      %v3845 = vld [vmem:[#allocation2 + $0x230] sm:$0xff]
      %v3846 = vld [vmem:[#allocation2 + $0x240] sm:$0xff]
      %v3847 = vld [vmem:[#allocation2 + $0x250] sm:$0xff]
      %v3848 = vld [vmem:[#allocation2 + $0x260] sm:$0xff]
      %v3849 = vld [vmem:[#allocation2 + $0x270] sm:$0xff]
      %v3850 = vld [vmem:[#allocation2 + $0x280] sm:$0xff]
      %v3851 = vld [vmem:[#allocation2 + $0x290] sm:$0xff]
      %v3852 = vld [vmem:[#allocation2 + $0x2a0] sm:$0x3f]
      %s3853 = scalar_lea.vmem %s3, 128
      %v3854 = vld [vmem:[%s3853] sm:$0xff]
      %v3855 = vld [vmem:[%s3853 + $0x8] sm:$0xff]
      %v3856 = vld [vmem:[%s3853 + $0x10] sm:$0xff]
      %v3857 = vld [vmem:[%s3853 + $0x18] sm:$0xff]
      %v3858 = vld [vmem:[%s3853 + $0x20] sm:$0xff]
      %v3859 = vld [vmem:[%s3853 + $0x28] sm:$0xff]
      %v3860 = vld [vmem:[%s3853 + $0x30] sm:$0xff]
      %v3861 = vld [vmem:[%s3853 + $0x38] sm:$0xff]
      %v3862 = vld [vmem:[%s3853 + $0x40] sm:$0xff]
      %v3863 = vld [vmem:[%s3853 + $0x48] sm:$0xff]
      %v3864 = vld [vmem:[%s3853 + $0x50] sm:$0xff]
      %v3865 = vld [vmem:[%s3853 + $0x58] sm:$0xff]
      %v3866 = vld [vmem:[%s3853 + $0x60] sm:$0xff]
      %v3867 = vld [vmem:[%s3853 + $0x68] sm:$0xff]
      %v3868 = vld [vmem:[%s3853 + $0x70] sm:$0xff]
      %v3869 = vld [vmem:[%s3853 + $0x78] sm:$0xff]
      %v3911 = vrot.slane %v3812, 2
      %v3912 = vrot.slane %v3813, 2
      %v3913 = vsel %vm2168, %v3911, %v3912
      %v3914 = vrot.slane %v3814, 2
      %v3915 = vsel %vm2168, %v3912, %v3914
      %v3916 = vrot.slane %v3815, 2
      %v3917 = vsel %vm2168, %v3914, %v3916
      %v3918 = vrot.slane %v3816, 2
      %v3919 = vsel %vm2168, %v3916, %v3918
      %v3920 = vrot.slane %v3817, 2
      %v3921 = vsel %vm2168, %v3918, %v3920
      %v3922 = vrot.slane %v3818, 2
      %v3923 = vsel %vm2168, %v3920, %v3922
      %v3924 = vrot.slane %v3819, 2
      %v3925 = vsel %vm2168, %v3922, %v3924
      %v3926 = vrot.slane %v3820, 2
      %v3927 = vsel %vm2168, %v3924, %v3926
      %v3928 = vrot.slane %v3821, 2
      %v3929 = vsel %vm2168, %v3926, %v3928
      %v3930 = vrot.slane %v3822, 2
      %v3931 = vsel %vm2168, %v3928, %v3930
      %v3932 = vrot.slane %v3823, 2
      %v3933 = vsel %vm2168, %v3930, %v3932
      %v3934 = vrot.slane %v3824, 2
      %v3935 = vsel %vm2168, %v3932, %v3934
      %v3936 = vrot.slane %v3825, 2
      %v3937 = vsel %vm2168, %v3934, %v3936
      %v3938 = vrot.slane %v3826, 2
      %v3939 = vsel %vm2168, %v3936, %v3938
      %v3940 = vrot.slane %v3827, 2
      %v3941 = vsel %vm2168, %v3938, %v3940
      %v3942 = vrot.slane %v3828, 2
      %v3943 = vsel %vm2168, %v3940, %v3942
      %v3944 = vrot.slane %v3829, 2
      %v3945 = vsel %vm2168, %v3942, %v3944
      %v3946 = vrot.slane %v3830, 2
      %v3947 = vsel %vm2168, %v3944, %v3946
      %v3948 = vrot.slane %v3831, 2
      %v3949 = vsel %vm2168, %v3946, %v3948
      %v3950 = vrot.slane %v3832, 2
      %v3951 = vsel %vm2168, %v3948, %v3950
      %v3952 = vrot.slane %v3833, 2
      %v3953 = vsel %vm2168, %v3950, %v3952
      %v3954 = vrot.slane %v3834, 2
      %v3955 = vsel %vm2168, %v3952, %v3954
      %v3956 = vrot.slane %v3835, 2
      %v3957 = vsel %vm2168, %v3954, %v3956
      %v3958 = vrot.slane %v3836, 2
      %v3959 = vsel %vm2168, %v3956, %v3958
      %v3960 = vrot.slane %v3837, 2
      %v3961 = vsel %vm2168, %v3958, %v3960
      %v3962 = vrot.slane %v3838, 2
      %v3963 = vsel %vm2168, %v3960, %v3962
      %v3964 = vrot.slane %v3839, 2
      %v3965 = vsel %vm2168, %v3962, %v3964
      %v3966 = vrot.slane %v3840, 2
      %v3967 = vsel %vm2168, %v3964, %v3966
      %v3968 = vrot.slane %v3841, 2
      %v3969 = vsel %vm2168, %v3966, %v3968
      %v3970 = vrot.slane %v3842, 2
      %v3971 = vsel %vm2168, %v3968, %v3970
      %v3972 = vrot.slane %v3843, 2
      %v3973 = vsel %vm2168, %v3970, %v3972
      %v3974 = vrot.slane %v3844, 2
      %v3975 = vsel %vm2168, %v3972, %v3974
      %v3976 = vrot.slane %v3845, 2
      %v3977 = vsel %vm2168, %v3974, %v3976
      %v3978 = vrot.slane %v3846, 2
      %v3979 = vsel %vm2168, %v3976, %v3978
      %v3980 = vrot.slane %v3847, 2
      %v3981 = vsel %vm2168, %v3978, %v3980
      %v3982 = vrot.slane %v3848, 2
      %v3983 = vsel %vm2168, %v3980, %v3982
      %v3984 = vrot.slane %v3849, 2
      %v3985 = vsel %vm2168, %v3982, %v3984
      %v3986 = vrot.slane %v3850, 2
      %v3987 = vsel %vm2168, %v3984, %v3986
      %v3988 = vrot.slane %v3851, 2
      %v3989 = vsel %vm2168, %v3986, %v3988
      %v3990 = vrot.slane %v3852, 2
      %v3991 = vsel %vm2168, %v3988, %v3990
      %4033 = vmatprep.subr.mxu0 0.0
      %4034 = vmatpush1.msra.mxu0 %v3869
      %4035 = vmatprep.subr.mxu0 0.0
      %4036 = vmatpush1.msra.mxu0 %v3868
      %4037 = vmatprep.subr.mxu0 0.0
      %4038 = vmatpush1.msra.mxu0 %v3867
      %4039 = vmatprep.subr.mxu0 0.0
      %4040 = vmatpush1.msra.mxu0 %v3866
      %4041 = vmatprep.subr.mxu0 0.0
      %4042 = vmatpush1.msra.mxu0 %v3865
      %4043 = vmatprep.subr.mxu0 0.0
      %4044 = vmatpush1.msra.mxu0 %v3864
      %4045 = vmatprep.subr.mxu0 0.0
      %4046 = vmatpush1.msra.mxu0 %v3863
      %4047 = vmatprep.subr.mxu0 0.0
      %4048 = vmatpush1.msra.mxu0 %v3862
      %4049 = vmatprep.subr.mxu0 0.0
      %4050 = vmatpush1.msra.mxu0 %v3861
      %4051 = vmatprep.subr.mxu0 0.0
      %4052 = vmatpush1.msra.mxu0 %v3860
      %4053 = vmatprep.subr.mxu0 0.0
      %4054 = vmatpush1.msra.mxu0 %v3859
      %4055 = vmatprep.subr.mxu0 0.0
      %4056 = vmatpush1.msra.mxu0 %v3858
      %4057 = vmatprep.subr.mxu0 0.0
      %4058 = vmatpush1.msra.mxu0 %v3857
      %4059 = vmatprep.subr.mxu0 0.0
      %4060 = vmatpush1.msra.mxu0 %v3856
      %4061 = vmatprep.subr.mxu0 0.0
      %4062 = vmatpush1.msra.mxu0 %v3855
      %4063 = vmatprep.subr.mxu0 0.0
      %4064 = vmatpush1.msra.mxu0 %v3854
      %4065 = vmatprep.subr.mxu0 0.0
      %4066 = vmatpush2.msra.mxu0 0.0
      %4067 = vmatprep.subr.mxu0 0.0
      %4068 = vmatpush2.msra.mxu0 0.0
      %4069 = vmatprep.subr.mxu0 0.0
      %4070 = vmatpush2.msra.mxu0 0.0
      %4071 = vmatprep.subr.mxu0 0.0
      %4072 = vmatpush2.msra.mxu0 0.0
      %4073 = vmatprep.subr.mxu0 0.0
      %4074 = vmatpush2.msra.mxu0 0.0
      %4075 = vmatprep.subr.mxu0 0.0
      %4076 = vmatpush2.msra.mxu0 0.0
      %4077 = vmatprep.subr.mxu0 0.0
      %4078 = vmatpush2.msra.mxu0 0.0
      %4079 = vmatprep.subr.mxu0 0.0
      %4080 = vmatpush2.msra.mxu0 0.0
      %4081 = vmatprep.subr.mxu0 0.0
      %4082 = vmatpush2.msra.mxu0 0.0
      %4083 = vmatprep.subr.mxu0 0.0
      %4084 = vmatpush2.msra.mxu0 0.0
      %4085 = vmatprep.subr.mxu0 0.0
      %4086 = vmatpush2.msra.mxu0 0.0
      %4087 = vmatprep.subr.mxu0 0.0
      %4088 = vmatpush2.msra.mxu0 0.0
      %4089 = vmatprep.subr.mxu0 0.0
      %4090 = vmatpush2.msra.mxu0 0.0
      %4091 = vmatprep.subr.mxu0 0.0
      %4092 = vmatpush2.msra.mxu0 0.0
      %4093 = vmatprep.subr.mxu0 0.0
      %4094 = vmatpush2.msra.mxu0 0.0
      %4095 = vmatprep.subr.mxu0 0.0
      %4096 = vmatpush2.msra.mxu0 0.0
      %4097 = vmatprep.mubr.f32.mxu0 0.0
      %4098 = vmatmul.mubr.f32.gmra.mxu0 %v3913
      %v4099 = vpop.f32.mrf.mxu0
      %v4100 = vadd.f32 0.0, %v4099
      %v4101 = vpop.f32.mrf.mxu0
      %4102 = vmatprep.mubr.f32.mxu0 0.0
      %4103 = vmatmul.mubr.f32.gmra.mxu0 %v3915
      %v4104 = vpop.f32.mrf.mxu0
      %v4105 = vadd.f32 0.0, %v4104
      %v4106 = vpop.f32.mrf.mxu0
      %4107 = vmatprep.mubr.f32.mxu0 0.0
      %4108 = vmatmul.mubr.f32.gmra.mxu0 %v3917
      %v4109 = vpop.f32.mrf.mxu0
      %v4110 = vadd.f32 0.0, %v4109
      %v4111 = vpop.f32.mrf.mxu0
      %4112 = vmatprep.mubr.f32.mxu0 0.0
      %4113 = vmatmul.mubr.f32.gmra.mxu0 %v3919
      %v4114 = vpop.f32.mrf.mxu0
      %v4115 = vadd.f32 0.0, %v4114
      %v4116 = vpop.f32.mrf.mxu0
      %4117 = vmatprep.mubr.f32.mxu0 0.0
      %4118 = vmatmul.mubr.f32.gmra.mxu0 %v3921
      %v4119 = vpop.f32.mrf.mxu0
      %v4120 = vadd.f32 0.0, %v4119
      %v4121 = vpop.f32.mrf.mxu0
      %4122 = vmatprep.mubr.f32.mxu0 0.0
      %4123 = vmatmul.mubr.f32.gmra.mxu0 %v3923
      %v4124 = vpop.f32.mrf.mxu0
      %v4125 = vadd.f32 0.0, %v4124
      %v4126 = vpop.f32.mrf.mxu0
      %4127 = vmatprep.mubr.f32.mxu0 0.0
      %4128 = vmatmul.mubr.f32.gmra.mxu0 %v3925
      %v4129 = vpop.f32.mrf.mxu0
      %v4130 = vadd.f32 0.0, %v4129
      %v4131 = vpop.f32.mrf.mxu0
      %4132 = vmatprep.mubr.f32.mxu0 0.0
      %4133 = vmatmul.mubr.f32.gmra.mxu0 %v3927
      %v4134 = vpop.f32.mrf.mxu0
      %v4135 = vadd.f32 0.0, %v4134
      %v4136 = vpop.f32.mrf.mxu0
      %4137 = vmatprep.mubr.f32.mxu0 0.0
      %4138 = vmatmul.mubr.f32.gmra.mxu0 %v3929
      %v4139 = vpop.f32.mrf.mxu0
      %v4140 = vadd.f32 0.0, %v4139
      %v4141 = vpop.f32.mrf.mxu0
      %4142 = vmatprep.mubr.f32.mxu0 0.0
      %4143 = vmatmul.mubr.f32.gmra.mxu0 %v3931
      %v4144 = vpop.f32.mrf.mxu0
      %v4145 = vadd.f32 0.0, %v4144
      %v4146 = vpop.f32.mrf.mxu0
      %4147 = vmatprep.mubr.f32.mxu0 0.0
      %4148 = vmatmul.mubr.f32.gmra.mxu0 %v3933
      %v4149 = vpop.f32.mrf.mxu0
      %v4150 = vadd.f32 0.0, %v4149
      %v4151 = vpop.f32.mrf.mxu0
      %4152 = vmatprep.mubr.f32.mxu0 0.0
      %4153 = vmatmul.mubr.f32.gmra.mxu0 %v3935
      %v4154 = vpop.f32.mrf.mxu0
      %v4155 = vadd.f32 0.0, %v4154
      %v4156 = vpop.f32.mrf.mxu0
      %4157 = vmatprep.mubr.f32.mxu0 0.0
      %4158 = vmatmul.mubr.f32.gmra.mxu0 %v3937
      %v4159 = vpop.f32.mrf.mxu0
      %v4160 = vadd.f32 0.0, %v4159
      %v4161 = vpop.f32.mrf.mxu0
      %4162 = vmatprep.mubr.f32.mxu0 0.0
      %4163 = vmatmul.mubr.f32.gmra.mxu0 %v3939
      %v4164 = vpop.f32.mrf.mxu0
      %v4165 = vadd.f32 0.0, %v4164
      %v4166 = vpop.f32.mrf.mxu0
      %4167 = vmatprep.mubr.f32.mxu0 0.0
      %4168 = vmatmul.mubr.f32.gmra.mxu0 %v3941
      %v4169 = vpop.f32.mrf.mxu0
      %v4170 = vadd.f32 0.0, %v4169
      %v4171 = vpop.f32.mrf.mxu0
      %4172 = vmatprep.mubr.f32.mxu0 0.0
      %4173 = vmatmul.mubr.f32.gmra.mxu0 %v3943
      %v4174 = vpop.f32.mrf.mxu0
      %v4175 = vadd.f32 0.0, %v4174
      %v4176 = vpop.f32.mrf.mxu0
      %4177 = vmatprep.mubr.f32.mxu0 0.0
      %4178 = vmatmul.mubr.f32.gmra.mxu0 %v3945
      %v4179 = vpop.f32.mrf.mxu0
      %v4180 = vadd.f32 0.0, %v4179
      %v4181 = vpop.f32.mrf.mxu0
      %4182 = vmatprep.mubr.f32.mxu0 0.0
      %4183 = vmatmul.mubr.f32.gmra.mxu0 %v3947
      %v4184 = vpop.f32.mrf.mxu0
      %v4185 = vadd.f32 0.0, %v4184
      %v4186 = vpop.f32.mrf.mxu0
      %4187 = vmatprep.mubr.f32.mxu0 0.0
      %4188 = vmatmul.mubr.f32.gmra.mxu0 %v3949
      %v4189 = vpop.f32.mrf.mxu0
      %v4190 = vadd.f32 0.0, %v4189
      %v4191 = vpop.f32.mrf.mxu0
      %4192 = vmatprep.mubr.f32.mxu0 0.0
      %4193 = vmatmul.mubr.f32.gmra.mxu0 %v3951
      %v4194 = vpop.f32.mrf.mxu0
      %v4195 = vadd.f32 0.0, %v4194
      %v4196 = vpop.f32.mrf.mxu0
      %4197 = vmatprep.mubr.f32.mxu0 0.0
      %4198 = vmatmul.mubr.f32.gmra.mxu0 %v3953
      %v4199 = vpop.f32.mrf.mxu0
      %v4200 = vadd.f32 0.0, %v4199
      %v4201 = vpop.f32.mrf.mxu0
      %4202 = vmatprep.mubr.f32.mxu0 0.0
      %4203 = vmatmul.mubr.f32.gmra.mxu0 %v3955
      %v4204 = vpop.f32.mrf.mxu0
      %v4205 = vadd.f32 0.0, %v4204
      %v4206 = vpop.f32.mrf.mxu0
      %4207 = vmatprep.mubr.f32.mxu0 0.0
      %4208 = vmatmul.mubr.f32.gmra.mxu0 %v3957
      %v4209 = vpop.f32.mrf.mxu0
      %v4210 = vadd.f32 0.0, %v4209
      %v4211 = vpop.f32.mrf.mxu0
      %4212 = vmatprep.mubr.f32.mxu0 0.0
      %4213 = vmatmul.mubr.f32.gmra.mxu0 %v3959
      %v4214 = vpop.f32.mrf.mxu0
      %v4215 = vadd.f32 0.0, %v4214
      %v4216 = vpop.f32.mrf.mxu0
      %4217 = vmatprep.mubr.f32.mxu0 0.0
      %4218 = vmatmul.mubr.f32.gmra.mxu0 %v3961
      %v4219 = vpop.f32.mrf.mxu0
      %v4220 = vadd.f32 0.0, %v4219
      %v4221 = vpop.f32.mrf.mxu0
      %4222 = vmatprep.mubr.f32.mxu0 0.0
      %4223 = vmatmul.mubr.f32.gmra.mxu0 %v3963
      %v4224 = vpop.f32.mrf.mxu0
      %v4225 = vadd.f32 0.0, %v4224
      %v4226 = vpop.f32.mrf.mxu0
      %4227 = vmatprep.mubr.f32.mxu0 0.0
      %4228 = vmatmul.mubr.f32.gmra.mxu0 %v3965
      %v4229 = vpop.f32.mrf.mxu0
      %v4230 = vadd.f32 0.0, %v4229
      %v4231 = vpop.f32.mrf.mxu0
      %4232 = vmatprep.mubr.f32.mxu0 0.0
      %4233 = vmatmul.mubr.f32.gmra.mxu0 %v3967
      %v4234 = vpop.f32.mrf.mxu0
      %v4235 = vadd.f32 0.0, %v4234
      %v4236 = vpop.f32.mrf.mxu0
      %4237 = vmatprep.mubr.f32.mxu0 0.0
      %4238 = vmatmul.mubr.f32.gmra.mxu0 %v3969
      %v4239 = vpop.f32.mrf.mxu0
      %v4240 = vadd.f32 0.0, %v4239
      %v4241 = vpop.f32.mrf.mxu0
      %4242 = vmatprep.mubr.f32.mxu0 0.0
      %4243 = vmatmul.mubr.f32.gmra.mxu0 %v3971
      %v4244 = vpop.f32.mrf.mxu0
      %v4245 = vadd.f32 0.0, %v4244
      %v4246 = vpop.f32.mrf.mxu0
      %4247 = vmatprep.mubr.f32.mxu0 0.0
      %4248 = vmatmul.mubr.f32.gmra.mxu0 %v3973
      %v4249 = vpop.f32.mrf.mxu0
      %v4250 = vadd.f32 0.0, %v4249
      %v4251 = vpop.f32.mrf.mxu0
      %4252 = vmatprep.mubr.f32.mxu0 0.0
      %4253 = vmatmul.mubr.f32.gmra.mxu0 %v3975
      %v4254 = vpop.f32.mrf.mxu0
      %v4255 = vadd.f32 0.0, %v4254
      %v4256 = vpop.f32.mrf.mxu0
      %4257 = vmatprep.mubr.f32.mxu0 0.0
      %4258 = vmatmul.mubr.f32.gmra.mxu0 %v3977
      %v4259 = vpop.f32.mrf.mxu0
      %v4260 = vadd.f32 0.0, %v4259
      %v4261 = vpop.f32.mrf.mxu0
      %4262 = vmatprep.mubr.f32.mxu0 0.0
      %4263 = vmatmul.mubr.f32.gmra.mxu0 %v3979
      %v4264 = vpop.f32.mrf.mxu0
      %v4265 = vadd.f32 0.0, %v4264
      %v4266 = vpop.f32.mrf.mxu0
      %4267 = vmatprep.mubr.f32.mxu0 0.0
      %4268 = vmatmul.mubr.f32.gmra.mxu0 %v3981
      %v4269 = vpop.f32.mrf.mxu0
      %v4270 = vadd.f32 0.0, %v4269
      %v4271 = vpop.f32.mrf.mxu0
      %4272 = vmatprep.mubr.f32.mxu0 0.0
      %4273 = vmatmul.mubr.f32.gmra.mxu0 %v3983
      %v4274 = vpop.f32.mrf.mxu0
      %v4275 = vadd.f32 0.0, %v4274
      %v4276 = vpop.f32.mrf.mxu0
      %4277 = vmatprep.mubr.f32.mxu0 0.0
      %4278 = vmatmul.mubr.f32.gmra.mxu0 %v3985
      %v4279 = vpop.f32.mrf.mxu0
      %v4280 = vadd.f32 0.0, %v4279
      %v4281 = vpop.f32.mrf.mxu0
      %4282 = vmatprep.mubr.f32.mxu0 0.0
      %4283 = vmatmul.mubr.f32.gmra.mxu0 %v3987
      %v4284 = vpop.f32.mrf.mxu0
      %v4285 = vadd.f32 0.0, %v4284
      %v4286 = vpop.f32.mrf.mxu0
      %4287 = vmatprep.mubr.f32.mxu0 0.0
      %4288 = vmatmul.mubr.f32.gmra.mxu0 %v3989
      %v4289 = vpop.f32.mrf.mxu0
      %v4290 = vadd.f32 0.0, %v4289
      %v4291 = vpop.f32.mrf.mxu0
      %4292 = vmatprep.mubr.f32.mxu0 0.0
      %4293 = vmatmul.mubr.f32.gmra.mxu0 %v3991
      %v4294 = vpop.f32.mrf.mxu0
      %v4295 = vadd.f32 0.0, %v4294
      %v4296 = vpop.f32.mrf.mxu0
      %4297 = vmatprep.mubr.f32.mxu0 0.0
      %4298 = vmatmul.mubr.f32.gmra.mxu0 %v3990
      %v4299 = vpop.f32.mrf.mxu0
      %v4300 = vadd.f32 0.0, %v4299
      %v4301 = vpop.f32.mrf.mxu0
      %4302 = vdwg.mxu0
      %v4303 = vadd.f32 %v3771, %v4100
      %v4304 = vadd.f32 %v3772, %v4105
      %v4305 = vadd.f32 %v3773, %v4110
      %v4306 = vadd.f32 %v3774, %v4115
      %v4307 = vadd.f32 %v3775, %v4120
      %v4308 = vadd.f32 %v3776, %v4125
      %v4309 = vadd.f32 %v3777, %v4130
      %v4310 = vadd.f32 %v3778, %v4135
      %v4311 = vadd.f32 %v3779, %v4140
      %v4312 = vadd.f32 %v3780, %v4145
      %v4313 = vadd.f32 %v3781, %v4150
      %v4314 = vadd.f32 %v3782, %v4155
      %v4315 = vadd.f32 %v3783, %v4160
      %v4316 = vadd.f32 %v3784, %v4165
      %v4317 = vadd.f32 %v3785, %v4170
      %v4318 = vadd.f32 %v3786, %v4175
      %v4319 = vadd.f32 %v3787, %v4180
      %v4320 = vadd.f32 %v3788, %v4185
      %v4321 = vadd.f32 %v3789, %v4190
      %v4322 = vadd.f32 %v3790, %v4195
      %v4323 = vadd.f32 %v3791, %v4200
      %v4324 = vadd.f32 %v3792, %v4205
      %v4325 = vadd.f32 %v3793, %v4210
      %v4326 = vadd.f32 %v3794, %v4215
      %v4327 = vadd.f32 %v3795, %v4220
      %v4328 = vadd.f32 %v3796, %v4225
      %v4329 = vadd.f32 %v3797, %v4230
      %v4330 = vadd.f32 %v3798, %v4235
      %v4331 = vadd.f32 %v3799, %v4240
      %v4332 = vadd.f32 %v3800, %v4245
      %v4333 = vadd.f32 %v3801, %v4250
      %v4334 = vadd.f32 %v3802, %v4255
      %v4335 = vadd.f32 %v3803, %v4260
      %v4336 = vadd.f32 %v3804, %v4265
      %v4337 = vadd.f32 %v3805, %v4270
      %v4338 = vadd.f32 %v3806, %v4275
      %v4339 = vadd.f32 %v3807, %v4280
      %v4340 = vadd.f32 %v3808, %v4285
      %v4341 = vadd.f32 %v3809, %v4290
      %v4342 = vadd.f32 %v3810, %v4295
      %v4343 = vadd.f32 %v3811, %v4300
      %v4344 = vld [vmem:[#allocation2 + $0x40] sm:$0xf0]
      %v4345 = vld [vmem:[#allocation2 + $0x50] sm:$0xff]
      %v4346 = vld [vmem:[#allocation2 + $0x60] sm:$0xff]
      %v4347 = vld [vmem:[#allocation2 + $0x70] sm:$0xff]
      %v4348 = vld [vmem:[#allocation2 + $0x80] sm:$0xff]
      %v4349 = vld [vmem:[#allocation2 + $0x90] sm:$0xff]
      %v4350 = vld [vmem:[#allocation2 + $0xa0] sm:$0xff]
      %v4351 = vld [vmem:[#allocation2 + $0xb0] sm:$0xff]
      %v4352 = vld [vmem:[#allocation2 + $0xc0] sm:$0xff]
      %v4353 = vld [vmem:[#allocation2 + $0xd0] sm:$0xff]
      %v4354 = vld [vmem:[#allocation2 + $0xe0] sm:$0xff]
      %v4355 = vld [vmem:[#allocation2 + $0xf0] sm:$0xff]
      %v4356 = vld [vmem:[#allocation2 + $0x100] sm:$0xff]
      %v4357 = vld [vmem:[#allocation2 + $0x110] sm:$0xff]
      %v4358 = vld [vmem:[#allocation2 + $0x120] sm:$0xff]
      %v4359 = vld [vmem:[#allocation2 + $0x130] sm:$0xff]
      %v4360 = vld [vmem:[#allocation2 + $0x140] sm:$0xff]
      %v4361 = vld [vmem:[#allocation2 + $0x150] sm:$0xff]
      %v4362 = vld [vmem:[#allocation2 + $0x160] sm:$0xff]
      %v4363 = vld [vmem:[#allocation2 + $0x170] sm:$0xff]
      %v4364 = vld [vmem:[#allocation2 + $0x180] sm:$0xff]
      %v4365 = vld [vmem:[#allocation2 + $0x190] sm:$0xff]
      %v4366 = vld [vmem:[#allocation2 + $0x1a0] sm:$0xff]
      %v4367 = vld [vmem:[#allocation2 + $0x1b0] sm:$0xff]
      %v4368 = vld [vmem:[#allocation2 + $0x1c0] sm:$0xff]
      %v4369 = vld [vmem:[#allocation2 + $0x1d0] sm:$0xff]
      %v4370 = vld [vmem:[#allocation2 + $0x1e0] sm:$0xff]
      %v4371 = vld [vmem:[#allocation2 + $0x1f0] sm:$0xff]
      %v4372 = vld [vmem:[#allocation2 + $0x200] sm:$0xff]
      %v4373 = vld [vmem:[#allocation2 + $0x210] sm:$0xff]
      %v4374 = vld [vmem:[#allocation2 + $0x220] sm:$0xff]
      %v4375 = vld [vmem:[#allocation2 + $0x230] sm:$0xff]
      %v4376 = vld [vmem:[#allocation2 + $0x240] sm:$0xff]
      %v4377 = vld [vmem:[#allocation2 + $0x250] sm:$0xff]
      %v4378 = vld [vmem:[#allocation2 + $0x260] sm:$0xff]
      %v4379 = vld [vmem:[#allocation2 + $0x270] sm:$0xff]
      %v4380 = vld [vmem:[#allocation2 + $0x280] sm:$0xff]
      %v4381 = vld [vmem:[#allocation2 + $0x290] sm:$0xff]
      %v4382 = vld [vmem:[#allocation2 + $0x2a0] sm:$0xff]
      %v4383 = vld [vmem:[#allocation2 + $0x2b0] sm:$0xff]
      %v4384 = vld [vmem:[#allocation2 + $0x2c0] sm:$0xff]
      %s4385 = scalar_lea.vmem %s3, 256
      %v4386 = vld [vmem:[%s4385] sm:$0xff]
      %v4387 = vld [vmem:[%s4385 + $0x8] sm:$0xff]
      %v4388 = vld [vmem:[%s4385 + $0x10] sm:$0xff]
      %v4389 = vld [vmem:[%s4385 + $0x18] sm:$0xff]
      %v4390 = vld [vmem:[%s4385 + $0x20] sm:$0xff]
      %v4391 = vld [vmem:[%s4385 + $0x28] sm:$0xff]
      %v4392 = vld [vmem:[%s4385 + $0x30] sm:$0xff]
      %v4393 = vld [vmem:[%s4385 + $0x38] sm:$0xff]
      %v4394 = vld [vmem:[%s4385 + $0x40] sm:$0xff]
      %v4395 = vld [vmem:[%s4385 + $0x48] sm:$0xff]
      %v4396 = vld [vmem:[%s4385 + $0x50] sm:$0xff]
      %v4397 = vld [vmem:[%s4385 + $0x58] sm:$0xff]
      %v4398 = vld [vmem:[%s4385 + $0x60] sm:$0xff]
      %v4399 = vld [vmem:[%s4385 + $0x68] sm:$0xff]
      %v4400 = vld [vmem:[%s4385 + $0x70] sm:$0xff]
      %v4401 = vld [vmem:[%s4385 + $0x78] sm:$0xff]
      %v4443 = vrot.slane %v4344, 4
      %v4444 = vrot.slane %v4345, 4
      %v4445 = vsel %vm1245, %v4443, %v4444
      %v4446 = vrot.slane %v4346, 4
      %v4447 = vsel %vm1245, %v4444, %v4446
      %v4448 = vrot.slane %v4347, 4
      %v4449 = vsel %vm1245, %v4446, %v4448
      %v4450 = vrot.slane %v4348, 4
      %v4451 = vsel %vm1245, %v4448, %v4450
      %v4452 = vrot.slane %v4349, 4
      %v4453 = vsel %vm1245, %v4450, %v4452
      %v4454 = vrot.slane %v4350, 4
      %v4455 = vsel %vm1245, %v4452, %v4454
      %v4456 = vrot.slane %v4351, 4
      %v4457 = vsel %vm1245, %v4454, %v4456
      %v4458 = vrot.slane %v4352, 4
      %v4459 = vsel %vm1245, %v4456, %v4458
      %v4460 = vrot.slane %v4353, 4
      %v4461 = vsel %vm1245, %v4458, %v4460
      %v4462 = vrot.slane %v4354, 4
      %v4463 = vsel %vm1245, %v4460, %v4462
      %v4464 = vrot.slane %v4355, 4
      %v4465 = vsel %vm1245, %v4462, %v4464
      %v4466 = vrot.slane %v4356, 4
      %v4467 = vsel %vm1245, %v4464, %v4466
      %v4468 = vrot.slane %v4357, 4
      %v4469 = vsel %vm1245, %v4466, %v4468
      %v4470 = vrot.slane %v4358, 4
      %v4471 = vsel %vm1245, %v4468, %v4470
      %v4472 = vrot.slane %v4359, 4
      %v4473 = vsel %vm1245, %v4470, %v4472
      %v4474 = vrot.slane %v4360, 4
      %v4475 = vsel %vm1245, %v4472, %v4474
      %v4476 = vrot.slane %v4361, 4
      %v4477 = vsel %vm1245, %v4474, %v4476
      %v4478 = vrot.slane %v4362, 4
      %v4479 = vsel %vm1245, %v4476, %v4478
      %v4480 = vrot.slane %v4363, 4
      %v4481 = vsel %vm1245, %v4478, %v4480
      %v4482 = vrot.slane %v4364, 4
      %v4483 = vsel %vm1245, %v4480, %v4482
      %v4484 = vrot.slane %v4365, 4
      %v4485 = vsel %vm1245, %v4482, %v4484
      %v4486 = vrot.slane %v4366, 4
      %v4487 = vsel %vm1245, %v4484, %v4486
      %v4488 = vrot.slane %v4367, 4
      %v4489 = vsel %vm1245, %v4486, %v4488
      %v4490 = vrot.slane %v4368, 4
      %v4491 = vsel %vm1245, %v4488, %v4490
      %v4492 = vrot.slane %v4369, 4
      %v4493 = vsel %vm1245, %v4490, %v4492
      %v4494 = vrot.slane %v4370, 4
      %v4495 = vsel %vm1245, %v4492, %v4494
      %v4496 = vrot.slane %v4371, 4
      %v4497 = vsel %vm1245, %v4494, %v4496
      %v4498 = vrot.slane %v4372, 4
      %v4499 = vsel %vm1245, %v4496, %v4498
      %v4500 = vrot.slane %v4373, 4
      %v4501 = vsel %vm1245, %v4498, %v4500
      %v4502 = vrot.slane %v4374, 4
      %v4503 = vsel %vm1245, %v4500, %v4502
      %v4504 = vrot.slane %v4375, 4
      %v4505 = vsel %vm1245, %v4502, %v4504
      %v4506 = vrot.slane %v4376, 4
      %v4507 = vsel %vm1245, %v4504, %v4506
      %v4508 = vrot.slane %v4377, 4
      %v4509 = vsel %vm1245, %v4506, %v4508
      %v4510 = vrot.slane %v4378, 4
      %v4511 = vsel %vm1245, %v4508, %v4510
      %v4512 = vrot.slane %v4379, 4
      %v4513 = vsel %vm1245, %v4510, %v4512
      %v4514 = vrot.slane %v4380, 4
      %v4515 = vsel %vm1245, %v4512, %v4514
      %v4516 = vrot.slane %v4381, 4
      %v4517 = vsel %vm1245, %v4514, %v4516
      %v4518 = vrot.slane %v4382, 4
      %v4519 = vsel %vm1245, %v4516, %v4518
      %v4520 = vrot.slane %v4383, 4
      %v4521 = vsel %vm1245, %v4518, %v4520
      %v4522 = vrot.slane %v4384, 4
      %v4523 = vsel %vm1245, %v4520, %v4522
      %4565 = vmatprep.subr.mxu0 0.0
      %4566 = vmatpush1.msra.mxu0 %v4401
      %4567 = vmatprep.subr.mxu0 0.0
      %4568 = vmatpush1.msra.mxu0 %v4400
      %4569 = vmatprep.subr.mxu0 0.0
      %4570 = vmatpush1.msra.mxu0 %v4399
      %4571 = vmatprep.subr.mxu0 0.0
      %4572 = vmatpush1.msra.mxu0 %v4398
      %4573 = vmatprep.subr.mxu0 0.0
      %4574 = vmatpush1.msra.mxu0 %v4397
      %4575 = vmatprep.subr.mxu0 0.0
      %4576 = vmatpush1.msra.mxu0 %v4396
      %4577 = vmatprep.subr.mxu0 0.0
      %4578 = vmatpush1.msra.mxu0 %v4395
      %4579 = vmatprep.subr.mxu0 0.0
      %4580 = vmatpush1.msra.mxu0 %v4394
      %4581 = vmatprep.subr.mxu0 0.0
      %4582 = vmatpush1.msra.mxu0 %v4393
      %4583 = vmatprep.subr.mxu0 0.0
      %4584 = vmatpush1.msra.mxu0 %v4392
      %4585 = vmatprep.subr.mxu0 0.0
      %4586 = vmatpush1.msra.mxu0 %v4391
      %4587 = vmatprep.subr.mxu0 0.0
      %4588 = vmatpush1.msra.mxu0 %v4390
      %4589 = vmatprep.subr.mxu0 0.0
      %4590 = vmatpush1.msra.mxu0 %v4389
      %4591 = vmatprep.subr.mxu0 0.0
      %4592 = vmatpush1.msra.mxu0 %v4388
      %4593 = vmatprep.subr.mxu0 0.0
      %4594 = vmatpush1.msra.mxu0 %v4387
      %4595 = vmatprep.subr.mxu0 0.0
      %4596 = vmatpush1.msra.mxu0 %v4386
      %4597 = vmatprep.subr.mxu0 0.0
      %4598 = vmatpush2.msra.mxu0 0.0
      %4599 = vmatprep.subr.mxu0 0.0
      %4600 = vmatpush2.msra.mxu0 0.0
      %4601 = vmatprep.subr.mxu0 0.0
      %4602 = vmatpush2.msra.mxu0 0.0
      %4603 = vmatprep.subr.mxu0 0.0
      %4604 = vmatpush2.msra.mxu0 0.0
      %4605 = vmatprep.subr.mxu0 0.0
      %4606 = vmatpush2.msra.mxu0 0.0
      %4607 = vmatprep.subr.mxu0 0.0
      %4608 = vmatpush2.msra.mxu0 0.0
      %4609 = vmatprep.subr.mxu0 0.0
      %4610 = vmatpush2.msra.mxu0 0.0
      %4611 = vmatprep.subr.mxu0 0.0
      %4612 = vmatpush2.msra.mxu0 0.0
      %4613 = vmatprep.subr.mxu0 0.0
      %4614 = vmatpush2.msra.mxu0 0.0
      %4615 = vmatprep.subr.mxu0 0.0
      %4616 = vmatpush2.msra.mxu0 0.0
      %4617 = vmatprep.subr.mxu0 0.0
      %4618 = vmatpush2.msra.mxu0 0.0
      %4619 = vmatprep.subr.mxu0 0.0
      %4620 = vmatpush2.msra.mxu0 0.0
      %4621 = vmatprep.subr.mxu0 0.0
      %4622 = vmatpush2.msra.mxu0 0.0
      %4623 = vmatprep.subr.mxu0 0.0
      %4624 = vmatpush2.msra.mxu0 0.0
      %4625 = vmatprep.subr.mxu0 0.0
      %4626 = vmatpush2.msra.mxu0 0.0
      %4627 = vmatprep.subr.mxu0 0.0
      %4628 = vmatpush2.msra.mxu0 0.0
      %4629 = vmatprep.mubr.f32.mxu0 0.0
      %4630 = vmatmul.mubr.f32.gmra.mxu0 %v4445
      %v4631 = vpop.f32.mrf.mxu0
      %v4632 = vadd.f32 0.0, %v4631
      %v4633 = vpop.f32.mrf.mxu0
      %4634 = vmatprep.mubr.f32.mxu0 0.0
      %4635 = vmatmul.mubr.f32.gmra.mxu0 %v4447
      %v4636 = vpop.f32.mrf.mxu0
      %v4637 = vadd.f32 0.0, %v4636
      %v4638 = vpop.f32.mrf.mxu0
      %4639 = vmatprep.mubr.f32.mxu0 0.0
      %4640 = vmatmul.mubr.f32.gmra.mxu0 %v4449
      %v4641 = vpop.f32.mrf.mxu0
      %v4642 = vadd.f32 0.0, %v4641
      %v4643 = vpop.f32.mrf.mxu0
      %4644 = vmatprep.mubr.f32.mxu0 0.0
      %4645 = vmatmul.mubr.f32.gmra.mxu0 %v4451
      %v4646 = vpop.f32.mrf.mxu0
      %v4647 = vadd.f32 0.0, %v4646
      %v4648 = vpop.f32.mrf.mxu0
      %4649 = vmatprep.mubr.f32.mxu0 0.0
      %4650 = vmatmul.mubr.f32.gmra.mxu0 %v4453
      %v4651 = vpop.f32.mrf.mxu0
      %v4652 = vadd.f32 0.0, %v4651
      %v4653 = vpop.f32.mrf.mxu0
      %4654 = vmatprep.mubr.f32.mxu0 0.0
      %4655 = vmatmul.mubr.f32.gmra.mxu0 %v4455
      %v4656 = vpop.f32.mrf.mxu0
      %v4657 = vadd.f32 0.0, %v4656
      %v4658 = vpop.f32.mrf.mxu0
      %4659 = vmatprep.mubr.f32.mxu0 0.0
      %4660 = vmatmul.mubr.f32.gmra.mxu0 %v4457
      %v4661 = vpop.f32.mrf.mxu0
      %v4662 = vadd.f32 0.0, %v4661
      %v4663 = vpop.f32.mrf.mxu0
      %4664 = vmatprep.mubr.f32.mxu0 0.0
      %4665 = vmatmul.mubr.f32.gmra.mxu0 %v4459
      %v4666 = vpop.f32.mrf.mxu0
      %v4667 = vadd.f32 0.0, %v4666
      %v4668 = vpop.f32.mrf.mxu0
      %4669 = vmatprep.mubr.f32.mxu0 0.0
      %4670 = vmatmul.mubr.f32.gmra.mxu0 %v4461
      %v4671 = vpop.f32.mrf.mxu0
      %v4672 = vadd.f32 0.0, %v4671
      %v4673 = vpop.f32.mrf.mxu0
      %4674 = vmatprep.mubr.f32.mxu0 0.0
      %4675 = vmatmul.mubr.f32.gmra.mxu0 %v4463
      %v4676 = vpop.f32.mrf.mxu0
      %v4677 = vadd.f32 0.0, %v4676
      %v4678 = vpop.f32.mrf.mxu0
      %4679 = vmatprep.mubr.f32.mxu0 0.0
      %4680 = vmatmul.mubr.f32.gmra.mxu0 %v4465
      %v4681 = vpop.f32.mrf.mxu0
      %v4682 = vadd.f32 0.0, %v4681
      %v4683 = vpop.f32.mrf.mxu0
      %4684 = vmatprep.mubr.f32.mxu0 0.0
      %4685 = vmatmul.mubr.f32.gmra.mxu0 %v4467
      %v4686 = vpop.f32.mrf.mxu0
      %v4687 = vadd.f32 0.0, %v4686
      %v4688 = vpop.f32.mrf.mxu0
      %4689 = vmatprep.mubr.f32.mxu0 0.0
      %4690 = vmatmul.mubr.f32.gmra.mxu0 %v4469
      %v4691 = vpop.f32.mrf.mxu0
      %v4692 = vadd.f32 0.0, %v4691
      %v4693 = vpop.f32.mrf.mxu0
      %4694 = vmatprep.mubr.f32.mxu0 0.0
      %4695 = vmatmul.mubr.f32.gmra.mxu0 %v4471
      %v4696 = vpop.f32.mrf.mxu0
      %v4697 = vadd.f32 0.0, %v4696
      %v4698 = vpop.f32.mrf.mxu0
      %4699 = vmatprep.mubr.f32.mxu0 0.0
      %4700 = vmatmul.mubr.f32.gmra.mxu0 %v4473
      %v4701 = vpop.f32.mrf.mxu0
      %v4702 = vadd.f32 0.0, %v4701
      %v4703 = vpop.f32.mrf.mxu0
      %4704 = vmatprep.mubr.f32.mxu0 0.0
      %4705 = vmatmul.mubr.f32.gmra.mxu0 %v4475
      %v4706 = vpop.f32.mrf.mxu0
      %v4707 = vadd.f32 0.0, %v4706
      %v4708 = vpop.f32.mrf.mxu0
      %4709 = vmatprep.mubr.f32.mxu0 0.0
      %4710 = vmatmul.mubr.f32.gmra.mxu0 %v4477
      %v4711 = vpop.f32.mrf.mxu0
      %v4712 = vadd.f32 0.0, %v4711
      %v4713 = vpop.f32.mrf.mxu0
      %4714 = vmatprep.mubr.f32.mxu0 0.0
      %4715 = vmatmul.mubr.f32.gmra.mxu0 %v4479
      %v4716 = vpop.f32.mrf.mxu0
      %v4717 = vadd.f32 0.0, %v4716
      %v4718 = vpop.f32.mrf.mxu0
      %4719 = vmatprep.mubr.f32.mxu0 0.0
      %4720 = vmatmul.mubr.f32.gmra.mxu0 %v4481
      %v4721 = vpop.f32.mrf.mxu0
      %v4722 = vadd.f32 0.0, %v4721
      %v4723 = vpop.f32.mrf.mxu0
      %4724 = vmatprep.mubr.f32.mxu0 0.0
      %4725 = vmatmul.mubr.f32.gmra.mxu0 %v4483
      %v4726 = vpop.f32.mrf.mxu0
      %v4727 = vadd.f32 0.0, %v4726
      %v4728 = vpop.f32.mrf.mxu0
      %4729 = vmatprep.mubr.f32.mxu0 0.0
      %4730 = vmatmul.mubr.f32.gmra.mxu0 %v4485
      %v4731 = vpop.f32.mrf.mxu0
      %v4732 = vadd.f32 0.0, %v4731
      %v4733 = vpop.f32.mrf.mxu0
      %4734 = vmatprep.mubr.f32.mxu0 0.0
      %4735 = vmatmul.mubr.f32.gmra.mxu0 %v4487
      %v4736 = vpop.f32.mrf.mxu0
      %v4737 = vadd.f32 0.0, %v4736
      %v4738 = vpop.f32.mrf.mxu0
      %4739 = vmatprep.mubr.f32.mxu0 0.0
      %4740 = vmatmul.mubr.f32.gmra.mxu0 %v4489
      %v4741 = vpop.f32.mrf.mxu0
      %v4742 = vadd.f32 0.0, %v4741
      %v4743 = vpop.f32.mrf.mxu0
      %4744 = vmatprep.mubr.f32.mxu0 0.0
      %4745 = vmatmul.mubr.f32.gmra.mxu0 %v4491
      %v4746 = vpop.f32.mrf.mxu0
      %v4747 = vadd.f32 0.0, %v4746
      %v4748 = vpop.f32.mrf.mxu0
      %4749 = vmatprep.mubr.f32.mxu0 0.0
      %4750 = vmatmul.mubr.f32.gmra.mxu0 %v4493
      %v4751 = vpop.f32.mrf.mxu0
      %v4752 = vadd.f32 0.0, %v4751
      %v4753 = vpop.f32.mrf.mxu0
      %4754 = vmatprep.mubr.f32.mxu0 0.0
      %4755 = vmatmul.mubr.f32.gmra.mxu0 %v4495
      %v4756 = vpop.f32.mrf.mxu0
      %v4757 = vadd.f32 0.0, %v4756
      %v4758 = vpop.f32.mrf.mxu0
      %4759 = vmatprep.mubr.f32.mxu0 0.0
      %4760 = vmatmul.mubr.f32.gmra.mxu0 %v4497
      %v4761 = vpop.f32.mrf.mxu0
      %v4762 = vadd.f32 0.0, %v4761
      %v4763 = vpop.f32.mrf.mxu0
      %4764 = vmatprep.mubr.f32.mxu0 0.0
      %4765 = vmatmul.mubr.f32.gmra.mxu0 %v4499
      %v4766 = vpop.f32.mrf.mxu0
      %v4767 = vadd.f32 0.0, %v4766
      %v4768 = vpop.f32.mrf.mxu0
      %4769 = vmatprep.mubr.f32.mxu0 0.0
      %4770 = vmatmul.mubr.f32.gmra.mxu0 %v4501
      %v4771 = vpop.f32.mrf.mxu0
      %v4772 = vadd.f32 0.0, %v4771
      %v4773 = vpop.f32.mrf.mxu0
      %4774 = vmatprep.mubr.f32.mxu0 0.0
      %4775 = vmatmul.mubr.f32.gmra.mxu0 %v4503
      %v4776 = vpop.f32.mrf.mxu0
      %v4777 = vadd.f32 0.0, %v4776
      %v4778 = vpop.f32.mrf.mxu0
      %4779 = vmatprep.mubr.f32.mxu0 0.0
      %4780 = vmatmul.mubr.f32.gmra.mxu0 %v4505
      %v4781 = vpop.f32.mrf.mxu0
      %v4782 = vadd.f32 0.0, %v4781
      %v4783 = vpop.f32.mrf.mxu0
      %4784 = vmatprep.mubr.f32.mxu0 0.0
      %4785 = vmatmul.mubr.f32.gmra.mxu0 %v4507
      %v4786 = vpop.f32.mrf.mxu0
      %v4787 = vadd.f32 0.0, %v4786
      %v4788 = vpop.f32.mrf.mxu0
      %4789 = vmatprep.mubr.f32.mxu0 0.0
      %4790 = vmatmul.mubr.f32.gmra.mxu0 %v4509
      %v4791 = vpop.f32.mrf.mxu0
      %v4792 = vadd.f32 0.0, %v4791
      %v4793 = vpop.f32.mrf.mxu0
      %4794 = vmatprep.mubr.f32.mxu0 0.0
      %4795 = vmatmul.mubr.f32.gmra.mxu0 %v4511
      %v4796 = vpop.f32.mrf.mxu0
      %v4797 = vadd.f32 0.0, %v4796
      %v4798 = vpop.f32.mrf.mxu0
      %4799 = vmatprep.mubr.f32.mxu0 0.0
      %4800 = vmatmul.mubr.f32.gmra.mxu0 %v4513
      %v4801 = vpop.f32.mrf.mxu0
      %v4802 = vadd.f32 0.0, %v4801
      %v4803 = vpop.f32.mrf.mxu0
      %4804 = vmatprep.mubr.f32.mxu0 0.0
      %4805 = vmatmul.mubr.f32.gmra.mxu0 %v4515
      %v4806 = vpop.f32.mrf.mxu0
      %v4807 = vadd.f32 0.0, %v4806
      %v4808 = vpop.f32.mrf.mxu0
      %4809 = vmatprep.mubr.f32.mxu0 0.0
      %4810 = vmatmul.mubr.f32.gmra.mxu0 %v4517
      %v4811 = vpop.f32.mrf.mxu0
      %v4812 = vadd.f32 0.0, %v4811
      %v4813 = vpop.f32.mrf.mxu0
      %4814 = vmatprep.mubr.f32.mxu0 0.0
      %4815 = vmatmul.mubr.f32.gmra.mxu0 %v4519
      %v4816 = vpop.f32.mrf.mxu0
      %v4817 = vadd.f32 0.0, %v4816
      %v4818 = vpop.f32.mrf.mxu0
      %4819 = vmatprep.mubr.f32.mxu0 0.0
      %4820 = vmatmul.mubr.f32.gmra.mxu0 %v4521
      %v4821 = vpop.f32.mrf.mxu0
      %v4822 = vadd.f32 0.0, %v4821
      %v4823 = vpop.f32.mrf.mxu0
      %4824 = vmatprep.mubr.f32.mxu0 0.0
      %4825 = vmatmul.mubr.f32.gmra.mxu0 %v4523
      %v4826 = vpop.f32.mrf.mxu0
      %v4827 = vadd.f32 0.0, %v4826
      %v4828 = vpop.f32.mrf.mxu0
      %4829 = vmatprep.mubr.f32.mxu0 0.0
      %4830 = vmatmul.mubr.f32.gmra.mxu0 %v4522
      %v4831 = vpop.f32.mrf.mxu0
      %v4832 = vadd.f32 0.0, %v4831
      %v4833 = vpop.f32.mrf.mxu0
      %4834 = vdwg.mxu0
      %v4835 = vadd.f32 %v4303, %v4632
      %v4836 = vadd.f32 %v4304, %v4637
      %v4837 = vadd.f32 %v4305, %v4642
      %v4838 = vadd.f32 %v4306, %v4647
      %v4839 = vadd.f32 %v4307, %v4652
      %v4840 = vadd.f32 %v4308, %v4657
      %v4841 = vadd.f32 %v4309, %v4662
      %v4842 = vadd.f32 %v4310, %v4667
      %v4843 = vadd.f32 %v4311, %v4672
      %v4844 = vadd.f32 %v4312, %v4677
      %v4845 = vadd.f32 %v4313, %v4682
      %v4846 = vadd.f32 %v4314, %v4687
      %v4847 = vadd.f32 %v4315, %v4692
      %v4848 = vadd.f32 %v4316, %v4697
      %v4849 = vadd.f32 %v4317, %v4702
      %v4850 = vadd.f32 %v4318, %v4707
      %v4851 = vadd.f32 %v4319, %v4712
      %v4852 = vadd.f32 %v4320, %v4717
      %v4853 = vadd.f32 %v4321, %v4722
      %v4854 = vadd.f32 %v4322, %v4727
      %v4855 = vadd.f32 %v4323, %v4732
      %v4856 = vadd.f32 %v4324, %v4737
      %v4857 = vadd.f32 %v4325, %v4742
      %v4858 = vadd.f32 %v4326, %v4747
      %v4859 = vadd.f32 %v4327, %v4752
      %v4860 = vadd.f32 %v4328, %v4757
      %v4861 = vadd.f32 %v4329, %v4762
      %v4862 = vadd.f32 %v4330, %v4767
      %v4863 = vadd.f32 %v4331, %v4772
      %v4864 = vadd.f32 %v4332, %v4777
      %v4865 = vadd.f32 %v4333, %v4782
      %v4866 = vadd.f32 %v4334, %v4787
      %v4867 = vadd.f32 %v4335, %v4792
      %v4868 = vadd.f32 %v4336, %v4797
      %v4869 = vadd.f32 %v4337, %v4802
      %v4870 = vadd.f32 %v4338, %v4807
      %v4871 = vadd.f32 %v4339, %v4812
      %v4872 = vadd.f32 %v4340, %v4817
      %v4873 = vadd.f32 %v4341, %v4822
      %v4874 = vadd.f32 %v4342, %v4827
      %v4875 = vadd.f32 %v4343, %v4832
      %v4876 = vmul.f32 %v4835, %v770
      %v4877 = vmul.f32 %v4836, %v771
      %v4878 = vmul.f32 %v4837, %v772
      %v4879 = vmul.f32 %v4838, %v773
      %v4880 = vmul.f32 %v4839, %v774
      %v4881 = vmul.f32 %v4840, %v775
      %v4882 = vmul.f32 %v4841, %v776
      %v4883 = vmul.f32 %v4842, %v777
      %v4884 = vmul.f32 %v4843, %v778
      %v4885 = vmul.f32 %v4844, %v779
      %v4886 = vmul.f32 %v4845, %v780
      %v4887 = vmul.f32 %v4846, %v781
      %v4888 = vmul.f32 %v4847, %v782
      %v4889 = vmul.f32 %v4848, %v783
      %v4890 = vmul.f32 %v4849, %v784
      %v4891 = vmul.f32 %v4850, %v785
      %v4892 = vmul.f32 %v4851, %v786
      %v4893 = vmul.f32 %v4852, %v787
      %v4894 = vmul.f32 %v4853, %v788
      %v4895 = vmul.f32 %v4854, %v789
      %v4896 = vmul.f32 %v4855, %v790
      %v4897 = vmul.f32 %v4856, %v791
      %v4898 = vmul.f32 %v4857, %v792
      %v4899 = vmul.f32 %v4858, %v793
      %v4900 = vmul.f32 %v4859, %v794
      %v4901 = vmul.f32 %v4860, %v795
      %v4902 = vmul.f32 %v4861, %v796
      %v4903 = vmul.f32 %v4862, %v797
      %v4904 = vmul.f32 %v4863, %v798
      %v4905 = vmul.f32 %v4864, %v799
      %v4906 = vmul.f32 %v4865, %v800
      %v4907 = vmul.f32 %v4866, %v801
      %v4908 = vmul.f32 %v4867, %v802
      %v4909 = vmul.f32 %v4868, %v803
      %v4910 = vmul.f32 %v4869, %v804
      %v4911 = vmul.f32 %v4870, %v805
      %v4912 = vmul.f32 %v4871, %v806
      %v4913 = vmul.f32 %v4872, %v807
      %v4914 = vmul.f32 %v4873, %v808
      %v4915 = vmul.f32 %v4874, %v809
      %v4916 = vmul.f32 %v4875, %v810
      %v4917 = vadd.f32 %v4876, %v4877
      %v4918 = vadd.f32 %v4917, %v4878
      %v4919 = vadd.f32 %v4918, %v4879
      %v4920 = vadd.f32 %v4919, %v4880
      %v4921 = vadd.f32 %v4920, %v4881
      %v4922 = vadd.f32 %v4921, %v4882
      %v4923 = vadd.f32 %v4922, %v4883
      %v4924 = vadd.f32 %v4923, %v4884
      %v4925 = vadd.f32 %v4924, %v4885
      %v4926 = vadd.f32 %v4925, %v4886
      %v4927 = vadd.f32 %v4926, %v4887
      %v4928 = vadd.f32 %v4927, %v4888
      %v4929 = vadd.f32 %v4928, %v4889
      %v4930 = vadd.f32 %v4929, %v4890
      %v4931 = vadd.f32 %v4930, %v4891
      %v4932 = vadd.f32 %v4931, %v4892
      %v4933 = vadd.f32 %v4932, %v4893
      %v4934 = vadd.f32 %v4933, %v4894
      %v4935 = vadd.f32 %v4934, %v4895
      %v4936 = vadd.f32 %v4935, %v4896
      %v4937 = vadd.f32 %v4936, %v4897
      %v4938 = vadd.f32 %v4937, %v4898
      %v4939 = vadd.f32 %v4938, %v4899
      %v4940 = vadd.f32 %v4939, %v4900
      %v4941 = vadd.f32 %v4940, %v4901
      %v4942 = vadd.f32 %v4941, %v4902
      %v4943 = vadd.f32 %v4942, %v4903
      %v4944 = vadd.f32 %v4943, %v4904
      %v4945 = vadd.f32 %v4944, %v4905
      %v4946 = vadd.f32 %v4945, %v4906
      %v4947 = vadd.f32 %v4946, %v4907
      %v4948 = vadd.f32 %v4947, %v4908
      %v4949 = vadd.f32 %v4948, %v4909
      %v4950 = vadd.f32 %v4949, %v4910
      %v4951 = vadd.f32 %v4950, %v4911
      %v4952 = vadd.f32 %v4951, %v4912
      %v4953 = vadd.f32 %v4952, %v4913
      %v4954 = vadd.f32 %v4953, %v4914
      %v4955 = vadd.f32 %v4954, %v4915
      %v4956 = vsel %vm1245, %v4916, 0.0
      %v4957 = vadd.f32 %v4955, %v4956
      %v4958 = vrot.slane %v4957, 4
      %v4959 = vadd.f32 %v4957, %v4958
      %v4960 = vrot.slane %v4959, 2
      %v4961 = vadd.f32 %v4959, %v4960
      %v4962 = vrot.slane %v4961, 1
      %v4963 = vadd.f32 %v4961, %v4962
      %4964 = vst [vmem:[%s235] sm:$0x1] %v4963
      %v4965 = vmul.f32 %v4835, %v4876
      %v4966 = vmul.f32 %v4836, %v4877
      %v4967 = vmul.f32 %v4837, %v4878
      %v4968 = vmul.f32 %v4838, %v4879
      %v4969 = vmul.f32 %v4839, %v4880
      %v4970 = vmul.f32 %v4840, %v4881
      %v4971 = vmul.f32 %v4841, %v4882
      %v4972 = vmul.f32 %v4842, %v4883
      %v4973 = vmul.f32 %v4843, %v4884
      %v4974 = vmul.f32 %v4844, %v4885
      %v4975 = vmul.f32 %v4845, %v4886
      %v4976 = vmul.f32 %v4846, %v4887
      %v4977 = vmul.f32 %v4847, %v4888
      %v4978 = vmul.f32 %v4848, %v4889
      %v4979 = vmul.f32 %v4849, %v4890
      %v4980 = vmul.f32 %v4850, %v4891
      %v4981 = vmul.f32 %v4851, %v4892
      %v4982 = vmul.f32 %v4852, %v4893
      %v4983 = vmul.f32 %v4853, %v4894
      %v4984 = vmul.f32 %v4854, %v4895
      %v4985 = vmul.f32 %v4855, %v4896
      %v4986 = vmul.f32 %v4856, %v4897
      %v4987 = vmul.f32 %v4857, %v4898
      %v4988 = vmul.f32 %v4858, %v4899
      %v4989 = vmul.f32 %v4859, %v4900
      %v4990 = vmul.f32 %v4860, %v4901
      %v4991 = vmul.f32 %v4861, %v4902
      %v4992 = vmul.f32 %v4862, %v4903
      %v4993 = vmul.f32 %v4863, %v4904
      %v4994 = vmul.f32 %v4864, %v4905
      %v4995 = vmul.f32 %v4865, %v4906
      %v4996 = vmul.f32 %v4866, %v4907
      %v4997 = vmul.f32 %v4867, %v4908
      %v4998 = vmul.f32 %v4868, %v4909
      %v4999 = vmul.f32 %v4869, %v4910
      %v5000 = vmul.f32 %v4870, %v4911
      %v5001 = vmul.f32 %v4871, %v4912
      %v5002 = vmul.f32 %v4872, %v4913
      %v5003 = vmul.f32 %v4873, %v4914
      %v5004 = vmul.f32 %v4874, %v4915
      %v5005 = vmul.f32 %v4875, %v4916
      %v5006 = vadd.f32 %v4965, %v4966
      %v5007 = vadd.f32 %v5006, %v4967
      %v5008 = vadd.f32 %v5007, %v4968
      %v5009 = vadd.f32 %v5008, %v4969
      %v5010 = vadd.f32 %v5009, %v4970
      %v5011 = vadd.f32 %v5010, %v4971
      %v5012 = vadd.f32 %v5011, %v4972
      %v5013 = vadd.f32 %v5012, %v4973
      %v5014 = vadd.f32 %v5013, %v4974
      %v5015 = vadd.f32 %v5014, %v4975
      %v5016 = vadd.f32 %v5015, %v4976
      %v5017 = vadd.f32 %v5016, %v4977
      %v5018 = vadd.f32 %v5017, %v4978
      %v5019 = vadd.f32 %v5018, %v4979
      %v5020 = vadd.f32 %v5019, %v4980
      %v5021 = vadd.f32 %v5020, %v4981
      %v5022 = vadd.f32 %v5021, %v4982
      %v5023 = vadd.f32 %v5022, %v4983
      %v5024 = vadd.f32 %v5023, %v4984
      %v5025 = vadd.f32 %v5024, %v4985
      %v5026 = vadd.f32 %v5025, %v4986
      %v5027 = vadd.f32 %v5026, %v4987
      %v5028 = vadd.f32 %v5027, %v4988
      %v5029 = vadd.f32 %v5028, %v4989
      %v5030 = vadd.f32 %v5029, %v4990
      %v5031 = vadd.f32 %v5030, %v4991
      %v5032 = vadd.f32 %v5031, %v4992
      %v5033 = vadd.f32 %v5032, %v4993
      %v5034 = vadd.f32 %v5033, %v4994
      %v5035 = vadd.f32 %v5034, %v4995
      %v5036 = vadd.f32 %v5035, %v4996
      %v5037 = vadd.f32 %v5036, %v4997
      %v5038 = vadd.f32 %v5037, %v4998
      %v5039 = vadd.f32 %v5038, %v4999
      %v5040 = vadd.f32 %v5039, %v5000
      %v5041 = vadd.f32 %v5040, %v5001
      %v5042 = vadd.f32 %v5041, %v5002
      %v5043 = vadd.f32 %v5042, %v5003
      %v5044 = vadd.f32 %v5043, %v5004
      %v5045 = vsel %vm1245, %v5005, 0.0
      %v5046 = vadd.f32 %v5044, %v5045
      %v5047 = vrot.slane %v5046, 4
      %v5048 = vadd.f32 %v5046, %v5047
      %v5049 = vrot.slane %v5048, 2
      %v5050 = vadd.f32 %v5048, %v5049
      %v5051 = vrot.slane %v5050, 1
      %v5052 = vadd.f32 %v5050, %v5051
      %5053 = vst [vmem:[%s235 + $0x1] sm:$0x1] %v5052
      %5054 = vst [vmem:[%s231] sm:$0xff] %v4835
      %5055 = vst [vmem:[%s231 + $0x8] sm:$0xff] %v4836
      %5056 = vst [vmem:[%s231 + $0x10] sm:$0xff] %v4837
      %5057 = vst [vmem:[%s231 + $0x18] sm:$0xff] %v4838
      %5058 = vst [vmem:[%s231 + $0x20] sm:$0xff] %v4839
      %5059 = vst [vmem:[%s231 + $0x28] sm:$0xff] %v4840
      %5060 = vst [vmem:[%s231 + $0x30] sm:$0xff] %v4841
      %5061 = vst [vmem:[%s231 + $0x38] sm:$0xff] %v4842
      %5062 = vst [vmem:[%s231 + $0x40] sm:$0xff] %v4843
      %5063 = vst [vmem:[%s231 + $0x48] sm:$0xff] %v4844
      %5064 = vst [vmem:[%s231 + $0x50] sm:$0xff] %v4845
      %5065 = vst [vmem:[%s231 + $0x58] sm:$0xff] %v4846
      %5066 = vst [vmem:[%s231 + $0x60] sm:$0xff] %v4847
      %5067 = vst [vmem:[%s231 + $0x68] sm:$0xff] %v4848
      %5068 = vst [vmem:[%s231 + $0x70] sm:$0xff] %v4849
      %5069 = vst [vmem:[%s231 + $0x78] sm:$0xff] %v4850
      %5070 = vst [vmem:[%s231 + $0x80] sm:$0xff] %v4851
      %5071 = vst [vmem:[%s231 + $0x88] sm:$0xff] %v4852
      %5072 = vst [vmem:[%s231 + $0x90] sm:$0xff] %v4853
      %5073 = vst [vmem:[%s231 + $0x98] sm:$0xff] %v4854
      %5074 = vst [vmem:[%s231 + $0xa0] sm:$0xff] %v4855
      %5075 = vst [vmem:[%s231 + $0xa8] sm:$0xff] %v4856
      %5076 = vst [vmem:[%s231 + $0xb0] sm:$0xff] %v4857
      %5077 = vst [vmem:[%s231 + $0xb8] sm:$0xff] %v4858
      %5078 = vst [vmem:[%s231 + $0xc0] sm:$0xff] %v4859
      %5079 = vst [vmem:[%s231 + $0xc8] sm:$0xff] %v4860
      %5080 = vst [vmem:[%s231 + $0xd0] sm:$0xff] %v4861
      %5081 = vst [vmem:[%s231 + $0xd8] sm:$0xff] %v4862
      %5082 = vst [vmem:[%s231 + $0xe0] sm:$0xff] %v4863
      %5083 = vst [vmem:[%s231 + $0xe8] sm:$0xff] %v4864
      %5084 = vst [vmem:[%s231 + $0xf0] sm:$0xff] %v4865
      %5085 = vst [vmem:[%s231 + $0xf8] sm:$0xff] %v4866
      %5086 = vst [vmem:[%s231 + $0x100] sm:$0xff] %v4867
      %5087 = vst [vmem:[%s231 + $0x108] sm:$0xff] %v4868
      %5088 = vst [vmem:[%s231 + $0x110] sm:$0xff] %v4869
      %5089 = vst [vmem:[%s231 + $0x118] sm:$0xff] %v4870
      %5090 = vst [vmem:[%s231 + $0x120] sm:$0xff] %v4871
      %5091 = vst [vmem:[%s231 + $0x128] sm:$0xff] %v4872
      %5092 = vst [vmem:[%s231 + $0x130] sm:$0xff] %v4873
      %5093 = vst [vmem:[%s231 + $0x138] sm:$0xff] %v4874
      %5094 = vst [vmem:[%s231 + $0x140] sm:$0xf] %v4875
      %p5095 = scmp.lt.s32.totalorder %s17, 1
      %s5096 = scalar_select %p5095, %s17, 1
      %s5097 = smul.addr %s5096, 41
      %s5098 = smul.addr %s5097, 8
      %s5099 = scalar_lea.vmem %s4, %s5098
      %p5100 = scmp.lt.s32.totalorder %s17, 1
      %s5101 = scalar_select %p5100, %s17, 1
      %s5102 = smul.addr %s5101, 2
      %s5103 = scalar_lea.vmem %s5, %s5102
      // Predicated region
      $region37: #{double_conv.4} parent=35 // pred_check
        %p5104 = pneg %p124
      $region38: #{double_conv.4} parent=35 // pred_check_branch
        %5106 = sbr.rel (%p5104) target = $region40
      $region39: #{double_conv.4} parent=35 // pred_region
        _
      $region40: #{double_conv.4} parent=35 // pred_fallthru
        _
      // Predicated region
      $region41: #{double_conv.4} parent=35 // pred_check
        %p5107 = pneg %p150
      $region42: #{double_conv.4} parent=35 // pred_check_branch
        %5109 = sbr.rel (%p5107) target = $region44
      $region43: #{double_conv.4} parent=35 // pred_region
        _
      $region44: #{double_conv.4} parent=35 // pred_fallthru
        _
    $region36: #{double_conv.4} parent=5 // pred_fallthru
      _
    %p5110 = scmp.le.s32.totalorder 2, %s12
    // Predicated region
    $region45: #{double_conv.4} parent=5 // pred_check
      %p5111 = pneg %p5110
    $region46: #{double_conv.4} parent=5 // pred_check_branch
      %5113 = sbr.rel (%p5111) target = $region48
    $region47: #{double_conv.4} parent=5 // pred_region
      %s5114 = ssub.s32 %s12, 2
      // Predicated region
      $region49: #{double_conv.4} parent=47 // pred_check
        %p5115 = pneg %p130
      $region50: #{double_conv.4} parent=47 // pred_check_branch
        %5117 = sbr.rel (%p5115) target = $region52
      $region51: #{double_conv.4} parent=47 // pred_region
        %p5118 = scmp.lt.s32.totalorder %s18, 1
        %s5119 = scalar_select %p5118, %s18, 1
        %s5120 = smul.addr %s5119, 41
        %s5121 = smul.addr %s5120, 8
        %s5122 = scalar_lea.vmem %s4, %s5121
      $region52: #{double_conv.4} parent=47 // pred_fallthru
        _
      // Predicated region
      $region53: #{double_conv.4} parent=47 // pred_check
        %p5123 = pneg %p156
      $region54: #{double_conv.4} parent=47 // pred_check_branch
        %5125 = sbr.rel (%p5123) target = $region56
      $region55: #{double_conv.4} parent=47 // pred_region
        %p5126 = scmp.lt.s32.totalorder %s18, 1
        %s5127 = scalar_select %p5126, %s18, 1
        %s5128 = smul.addr %s5127, 2
        %s5129 = scalar_lea.vmem %s5, %s5128
      $region56: #{double_conv.4} parent=47 // pred_fallthru
        _
    $region48: #{double_conv.4} parent=5 // pred_fallthru
      _
  $region6: #{double_conv.4} parent=0 // loop_footer
    %s16 = sadd.s32 1, %s12
  $region7: #{double_conv.4} parent=0 // loop_footer_branch
    %11 = sbr.rel target = $region3
  $region8: #{double_conv.4} parent=0 // loop_exit
    _

</llo_original>
